<compile_context>
chip_gen: v5e
topology: v5e:2x2
jax: 0.10.0
libtpu: 0.0.40
codegen_flags: <defaults>
</compile_context>

<pallas_src>
import jax
import jax.numpy as jnp
from jax import lax
from jax.experimental import pallas as pl
from jax.experimental.pallas import tpu as pltpu

EMB = 64
EPS = 1e-5      # torch.nn.LayerNorm default eps
_PAD = 128      # node / edge padding multiple (lane + MXU alignment)


def _round_up(x, m):
    return ((x + m - 1) // m) * m


def _vmem_limit_bytes():
    """~100 MiB on v5e/v6e (128 MiB VMEM), ~56 MiB on v7x (64 MiB VMEM)."""
    cap = 64 * 1024 * 1024
    try:
        info = pltpu.get_tpu_info()
        cap = int(getattr(info, "vmem_capacity_bytes", cap))
    except Exception:
        pass
    return max(32 * 1024 * 1024, min(cap - 8 * 1024 * 1024, 100 * 1024 * 1024))


# ------------------------------------------------------------------ the single fused kernel
def _make_kernel(n_vars_true):
    def kernel(cons_ref, var_ref, cidx_ref, vidx_ref, cw1_ref, vw1_ref,
               w64_ref, w128_ref, vec_ref, out_ref):
        nc_pad = cons_ref.shape[0]
        nv_pad = var_ref.shape[0]
        e_pad = cidx_ref.shape[0]

        vecs = vec_ref[...]                       # (37, 64) f32 -- tiny, load once

        def vrow(i):                              # (1, 64) bias / LN row
            return vecs[i:i + 1, :]

        def normalize(x):                         # PyTorch LayerNorm core (population var)
            m = jnp.mean(x, axis=-1, keepdims=True)
            v = jnp.mean((x - m) ** 2, axis=-1, keepdims=True)
            return (x - m) * lax.rsqrt(v + EPS)

        def ln(x, w, b):
            return normalize(x) * w + b

        def mm(a, w_bf16):                        # bf16 MXU matmul, f32 accumulation
            return jnp.dot(a.astype(jnp.bfloat16), w_bf16,
                           preferred_element_type=jnp.float32)

        def mm_t(a_bf16, b):                      # contract leading (edge) axis: a^T @ b
            return lax.dot_general(a_bf16, b.astype(jnp.bfloat16),
                                   (((0,), (0,)), ((), ())),
                                   preferred_element_type=jnp.float32)

        # ---- gather matrices generated in-kernel from int32 indices (no HBM one-hots) --
        a_c = jnp.where(cidx_ref[...] ==
                        lax.broadcasted_iota(jnp.int32, (e_pad, nc_pad), 1),
                        1.0, 0.0).astype(jnp.bfloat16)                   # (E, Nc)
        a_v = jnp.where(vidx_ref[...] ==
                        lax.broadcasted_iota(jnp.int32, (e_pad, nv_pad), 1),
                        1.0, 0.0).astype(jnp.bfloat16)                   # (E, Nv)
        a_cv = jnp.concatenate([a_c, a_v], axis=-1)                      # (E, Nc+Nv)

        # ---- node embeddings (raw-feature LayerNorm scale/shift folded into w1'/b1') ---
        c = normalize(cons_ref[...])
        c = jnp.tanh(jnp.dot(c, cw1_ref[...], preferred_element_type=jnp.float32)
                     + vrow(0))
        c = jnp.tanh(mm(c, w64_ref[0]) + vrow(1))                        # (Nc, 64)

        v = normalize(var_ref[...])
        v = jnp.tanh(jnp.dot(v, vw1_ref[...], preferred_element_type=jnp.float32)
                     + vrow(2))
        v = jnp.tanh(mm(v, w64_ref[1]) + vrow(3))                        # (Nv, 64)

        def conv(k, c_nodes, v_nodes, target_is_cons):
            base = 4 + 8 * k
            fl_w = w64_ref[2 + 4 * k]      # target-side Linear (bias folded into pre_bias)
            fr_w = w64_ref[3 + 4 * k]      # source-side Linear (bias=False)
            fin_w = w64_ref[4 + 4 * k]
            out2_w = w64_ref[5 + 4 * k]
            out1_w = w128_ref[k]           # (128, 64) concat weight

            if target_is_cons:
                lin_c, lin_v = mm(c_nodes, fl_w), mm(v_nodes, fr_w)
                right, a_tgt = c_nodes, a_c
            else:
                lin_c, lin_v = mm(c_nodes, fr_w), mm(v_nodes, fl_w)
                right, a_tgt = v_nodes, a_v

            # single fused gather: [a_c | a_v] @ [lin(cons); lin(vars)]  (K = Nc+Nv)
            stacked = jnp.concatenate([lin_c, lin_v], axis=0).astype(jnp.bfloat16)
            pre = jnp.dot(a_cv, stacked,
                          preferred_element_type=jnp.float32) + vrow(base + 0)

            msg = jnp.maximum(ln(pre, vrow(base + 1), vrow(base + 2)), 0.0)
            msg = mm(msg, fin_w) + vrow(base + 3)                        # (E, 64)

            # 'add' aggregation onto target nodes = a_tgt^T @ msg  (segment-sum as matmul)
            agg = mm_t(a_tgt, msg)                                       # (Nt, 64)
            post = ln(agg, vrow(base + 4), vrow(base + 5))

            # fused concat-matmul: one lane-dense K = 128 contraction
            h = jnp.concatenate([post, right], axis=-1)                  # (Nt, 128)
            h = jnp.maximum(mm(h, out1_w) + vrow(base + 6), 0.0)
            return mm(h, out2_w) + vrow(base + 7)

        c = conv(0, c, v, True)      # conv_v_to_c   (source=vars, target=cons)
        v = conv(1, c, v, False)     # conv_c_to_v   (source=cons, target=vars)
        c = conv(2, c, v, True)      # conv_v_to_c2
        v = conv(3, c, v, False)     # conv_c_to_v2

        # ---- value head: Linear -> Tanh -> Linear(no bias, zero-padded to 64 cols) ->
        #      Tanh -> mean over the (unpadded) variable nodes
        h = jnp.tanh(mm(v, w64_ref[18]) + vrow(36))
        y = jnp.tanh(mm(h, w64_ref[19]))          # (Nv_pad, 64); columns 1..63 exactly 0
        rmask = jnp.where(
            lax.broadcasted_iota(jnp.int32, (nv_pad, 1), 0) < n_vars_true, 1.0, 0.0)
        s = jnp.sum(y * rmask, axis=1, keepdims=True)
        out_ref[...] = jnp.sum(s, axis=0, keepdims=True) * (1.0 / float(n_vars_true))

    return kernel


# ------------------------------------------------------------------ parameter init
def init_linear(key, fan_in, fan_out, bias=True):
    kw, kb = jax.random.split(key)
    w = jax.random.normal(kw, (fan_in, fan_out), jnp.float32) / jnp.sqrt(float(fan_in))
    b = (0.01 * jax.random.normal(kb, (1, fan_out), jnp.float32)) if bias else None
    return w, b


def init_ln(key, dim):
    kw, kb = jax.random.split(key)
    w = 1.0 + 0.1 * jax.random.normal(kw, (1, dim), jnp.float32)
    b = 0.1 * jax.random.normal(kb, (1, dim), jnp.float32)
    return w, b


def make_embedding_params(key, nfeats, emb):
    k0, k1, k2 = jax.random.split(key, 3)
    ln_w, ln_b = init_ln(k0, nfeats)
    w1, b1 = init_linear(k1, nfeats, emb)
    w2, b2 = init_linear(k2, emb, emb)
    return dict(ln_w=ln_w, ln_b=ln_b, w1=w1, b1=b1, w2=w2, b2=b2)


def make_conv_params(key, emb):
    ks = jax.random.split(key, 8)
    fl_w, fl_b = init_linear(ks[0], emb, emb)
    fe_w, _ = init_linear(ks[1], 1, emb, bias=False)
    fr_w, _ = init_linear(ks[2], emb, emb, bias=False)
    fin_ln_w, fin_ln_b = init_ln(ks[3], emb)
    fin_w, fin_b = init_linear(ks[4], emb, emb)
    post_ln_w, post_ln_b = init_ln(ks[5], emb)
    out1_w, out1_b = init_linear(ks[6], 2 * emb, emb)
    out2_w, out2_b = init_linear(ks[7], emb, emb)
    return dict(fl_w=fl_w, fl_b=fl_b, fe_w=fe_w, fr_w=fr_w,
                fin_ln_w=fin_ln_w, fin_ln_b=fin_ln_b, fin_w=fin_w, fin_b=fin_b,
                post_ln_w=post_ln_w, post_ln_b=post_ln_b,
                out1_w=out1_w, out1_b=out1_b, out2_w=out2_w, out2_b=out2_b)


def make_valuenet_params(key, cons_nfeats, edge_nfeats, var_nfeats, emb=EMB):
    ks = jax.random.split(key, 8)
    ow1, ob1 = init_linear(ks[6], emb, emb)
    ow2, _ = init_linear(ks[7], emb, 1, bias=False)
    edge_ln_w, edge_ln_b = init_ln(ks[2], edge_nfeats)
    return dict(
        cons_embedding=make_embedding_params(ks[0], cons_nfeats, emb),
        var_embedding=make_embedding_params(ks[1], var_nfeats, emb),
        edge_ln_w=edge_ln_w, edge_ln_b=edge_ln_b,
        conv_v_to_c=make_conv_params(ks[3], emb),
        conv_c_to_v=make_conv_params(ks[4], emb),
        conv_v_to_c2=make_conv_params(ks[5], emb),
        conv_c_to_v2=make_conv_params(jax.random.fold_in(key, 99), emb),
        out_w1=ow1, out_b1=ob1, out_w2=ow2,
    )


_CONV_NAMES = ("conv_v_to_c", "conv_c_to_v", "conv_v_to_c2", "conv_c_to_v2")


def pack_params(params):
    """Pack ~63 parameter tensors into 5 arrays (bf16 weight stacks + f32 vector stack)."""
    p = params
    edge_b = p["edge_ln_b"][0, 0]   # LayerNorm(1) on edges == its bias (exact)

    def embed_fold(ep):
        # fold raw-feature LayerNorm scale/shift into the first Linear
        w1p = ep["w1"] * ep["ln_w"].reshape(-1, 1)
        b1p = ep["ln_b"] @ ep["w1"] + ep["b1"]
        return w1p, b1p

    cons_w1p, cons_b1p = embed_fold(p["cons_embedding"])
    var_w1p, var_b1p = embed_fold(p["var_embedding"])

    w64 = [p["cons_embedding"]["w2"], p["var_embedding"]["w2"]]
    for name in _CONV_NAMES:
        cp = p[name]
        w64 += [cp["fl_w"], cp["fr_w"], cp["fin_w"], cp["out2_w"]]
    w64 += [p["out_w1"], jnp.pad(p["out_w2"], ((0, 0), (0, EMB - 1)))]
    w64_stack = jnp.stack(w64).astype(jnp.bfloat16)                      # (20, 64, 64)

    w128_stack = jnp.stack(
        [p[name]["out1_w"] for name in _CONV_NAMES]).astype(jnp.bfloat16)  # (4, 128, 64)

    vec = [cons_b1p, p["cons_embedding"]["b2"], var_b1p, p["var_embedding"]["b2"]]
    for name in _CONV_NAMES:
        cp = p[name]
        vec += [cp["fl_b"] + edge_b * cp["fe_w"],        # pre_bias: fl_b + LN(edge)*fe_w
                cp["fin_ln_w"], cp["fin_ln_b"], cp["fin_b"],
                cp["post_ln_w"], cp["post_ln_b"],
                cp["out1_b"], cp["out2_b"]]
    vec += [p["out_b1"]]
    vec_stack = jnp.concatenate(vec, axis=0).astype(jnp.float32)         # (37, 64)

    return (cons_w1p.astype(jnp.float32), var_w1p.astype(jnp.float32),
            w64_stack, w128_stack, vec_stack)


# ------------------------------------------------------------------ wrapper (one pallas_call)
def value_net_forward(params, constraint_features, edge_indices, edge_features,
                      variable_features):
    # edge_features are mathematically inert: LayerNorm over the single edge feature
    # degenerates exactly to its bias (faithful to the torch module); folded into pre_bias.
    del edge_features

    n_cons = constraint_features.shape[0]
    n_vars = variable_features.shape[0]
    n_edges = edge_indices.shape[1]

    nc_pad = _round_up(max(n_cons, 1), _PAD)
    nv_pad = _round_up(max(n_vars, 1), _PAD)
    e_pad = _round_up(max(n_edges, 1), _PAD)

    cons = jnp.pad(constraint_features.astype(jnp.float32),
                   ((0, nc_pad - n_cons), (0, 0)))
    var = jnp.pad(variable_features.astype(jnp.float32),
                  ((0, nv_pad - n_vars), (0, 0)))
    # padded edges get index -1 -> all-zero one-hot rows -> no contribution anywhere
    cidx = jnp.pad(edge_indices[0].astype(jnp.int32), (0, e_pad - n_edges),
                   constant_values=-1).reshape(e_pad, 1)
    vidx = jnp.pad(edge_indices[1].astype(jnp.int32), (0, e_pad - n_edges),
                   constant_values=-1).reshape(e_pad, 1)

    cons_w1p, var_w1p, w64_stack, w128_stack, vec_stack = pack_params(params)

    args = [cons, var, cidx, vidx, cons_w1p, var_w1p, w64_stack, w128_stack, vec_stack]

    out = pl.pallas_call(
        _make_kernel(n_vars),
        out_shape=jax.ShapeDtypeStruct((1, 1), jnp.float32),
        in_specs=[pl.BlockSpec(memory_space=pltpu.MemorySpace.VMEM) for _ in args],
        out_specs=pl.BlockSpec(memory_space=pltpu.MemorySpace.VMEM),
        compiler_params=pltpu.CompilerParams(vmem_limit_bytes=_vmem_limit_bytes()),
    )(*args)
    return out[0, 0]


# ------------------------------------------------------------------ main
if __name__ == "__main__":
    key = jax.random.PRNGKey(0)

    # small synthetic bipartite MILP graph
    n_cons, n_vars, n_edges = 8, 16, 32
    cons_nfeats, edge_nfeats, var_nfeats = 4, 1, 8

    k_c, k_e, k_v, k_i0, k_i1, k_p = jax.random.split(key, 6)
    constraint_features = jax.random.normal(k_c, (n_cons, cons_nfeats), jnp.float32)
    edge_features = jax.random.normal(k_e, (n_edges, edge_nfeats), jnp.float32)
    variable_features = jax.random.normal(k_v, (n_vars, var_nfeats), jnp.float32)
    edge_indices = jnp.stack([
        jax.random.randint(k_i0, (n_edges,), 0, n_cons, dtype=jnp.int32),
        jax.random.randint(k_i1, (n_edges,), 0, n_vars, dtype=jnp.int32),
    ], axis=0)  # (2, E): row 0 = constraint idx, row 1 = variable idx

    params = make_valuenet_params(k_p, cons_nfeats, edge_nfeats, var_nfeats)

    forward = jax.jit(value_net_forward)
    out = forward(params, constraint_features, edge_indices,
                  edge_features, variable_features)
    out = jax.block_until_ready(out)
    assert out.shape == () and jnp.isfinite(out)
    print("KERNEL_OK")
</pallas_src>

<mosaic_0001>
module attributes {stable_mosaic.version = 11 : i64} {
  func.func @kernel(%arg0: memref<128x4xf32, #tpu.memory_space<vmem>>, %arg1: memref<128x8xf32, #tpu.memory_space<vmem>>, %arg2: memref<128x1xi32, #tpu.memory_space<vmem>>, %arg3: memref<128x1xi32, #tpu.memory_space<vmem>>, %arg4: memref<4x64xf32, #tpu.memory_space<vmem>>, %arg5: memref<8x64xf32, #tpu.memory_space<vmem>>, %arg6: memref<20x64x64xbf16, #tpu.memory_space<vmem>>, %arg7: memref<4x128x64xbf16, #tpu.memory_space<vmem>>, %arg8: memref<37x64xf32, #tpu.memory_space<vmem>>, %arg9: memref<1x1xf32, #tpu.memory_space<vmem>>) attributes {dimension_semantics = [], scalar_prefetch = 0 : i64, scratch_operands = 0 : i64, tpu.core_type = #tpu.core_type<tc>} {
    %c0 = arith.constant 0 : index
    %c0_0 = arith.constant 0 : index
    %0 = vector.load %arg8[%c0, %c0_0] : memref<37x64xf32, #tpu.memory_space<vmem>>, vector<37x64xf32>
    %c0_1 = arith.constant 0 : index
    %c0_2 = arith.constant 0 : index
    %1 = vector.load %arg2[%c0_1, %c0_2] : memref<128x1xi32, #tpu.memory_space<vmem>>, vector<128x1xi32>
    %2 = tpu.iota {dimensions = array<i32: 1>} : vector<128x128xi32>
    %3 = vector.broadcast %1 : vector<128x1xi32> to vector<128x128xi32>
    %4 = arith.cmpi eq, %3, %2 : vector<128x128xi32>
    %cst = arith.constant 1.000000e+00 : f32
    %cst_3 = arith.constant 0.000000e+00 : f32
    %5 = vector.broadcast %cst : f32 to vector<128x128xf32>
    %6 = vector.broadcast %cst_3 : f32 to vector<128x128xf32>
    %7 = arith.select %4, %5, %6 : vector<128x128xi1>, vector<128x128xf32>
    %8 = arith.truncf %7 : vector<128x128xf32> to vector<128x128xbf16>
    %c0_4 = arith.constant 0 : index
    %c0_5 = arith.constant 0 : index
    %9 = vector.load %arg3[%c0_4, %c0_5] : memref<128x1xi32, #tpu.memory_space<vmem>>, vector<128x1xi32>
    %10 = tpu.iota {dimensions = array<i32: 1>} : vector<128x128xi32>
    %11 = vector.broadcast %9 : vector<128x1xi32> to vector<128x128xi32>
    %12 = arith.cmpi eq, %11, %10 : vector<128x128xi32>
    %cst_6 = arith.constant 1.000000e+00 : f32
    %cst_7 = arith.constant 0.000000e+00 : f32
    %13 = vector.broadcast %cst_6 : f32 to vector<128x128xf32>
    %14 = vector.broadcast %cst_7 : f32 to vector<128x128xf32>
    %15 = arith.select %12, %13, %14 : vector<128x128xi1>, vector<128x128xf32>
    %16 = arith.truncf %15 : vector<128x128xf32> to vector<128x128xbf16>
    %17 = tpu.concatenate %8, %16 in 1 : vector<128x128xbf16>, vector<128x128xbf16> -> vector<128x256xbf16>
    %c0_8 = arith.constant 0 : index
    %c0_9 = arith.constant 0 : index
    %18 = vector.load %arg0[%c0_8, %c0_9] : memref<128x4xf32, #tpu.memory_space<vmem>>, vector<128x4xf32>
    %cst_10 = arith.constant dense<0.000000e+00> : vector<128xf32>
    %19 = vector.multi_reduction <add>, %18, %cst_10 [1] : vector<128x4xf32> to vector<128xf32>
    %20 = vector.shape_cast %19 : vector<128xf32> to vector<128x1xf32>
    %cst_11 = arith.constant 4.000000e+00 : f32
    %21 = vector.broadcast %cst_11 : f32 to vector<128x1xf32>
    %22 = arith.divf %20, %21 : vector<128x1xf32>
    %23 = vector.broadcast %22 : vector<128x1xf32> to vector<128x4xf32>
    %24 = arith.subf %18, %23 : vector<128x4xf32>
    %25 = arith.mulf %24, %24 : vector<128x4xf32>
    %cst_12 = arith.constant dense<0.000000e+00> : vector<128xf32>
    %26 = vector.multi_reduction <add>, %25, %cst_12 [1] : vector<128x4xf32> to vector<128xf32>
    %27 = vector.shape_cast %26 : vector<128xf32> to vector<128x1xf32>
    %cst_13 = arith.constant 4.000000e+00 : f32
    %28 = vector.broadcast %cst_13 : f32 to vector<128x1xf32>
    %29 = arith.divf %27, %28 : vector<128x1xf32>
    %30 = vector.broadcast %22 : vector<128x1xf32> to vector<128x4xf32>
    %31 = arith.subf %18, %30 : vector<128x4xf32>
    %cst_14 = arith.constant 9.99999974E-6 : f32
    %32 = vector.broadcast %cst_14 : f32 to vector<128x1xf32>
    %33 = arith.addf %29, %32 : vector<128x1xf32>
    %34 = math.rsqrt %33 : vector<128x1xf32>
    %35 = vector.broadcast %34 : vector<128x1xf32> to vector<128x4xf32>
    %36 = arith.mulf %31, %35 : vector<128x4xf32>
    %c0_15 = arith.constant 0 : index
    %c0_16 = arith.constant 0 : index
    %37 = vector.load %arg4[%c0_15, %c0_16] : memref<4x64xf32, #tpu.memory_space<vmem>>, vector<4x64xf32>
    %cst_17 = arith.constant dense<0.000000e+00> : vector<128x64xf32>
    %38 = tpu.matmul %36, %37, %cst_17 {dimension_numbers = #tpu.dot_dimension_numbers<[1], [0], [0], [1], [0, 0, 1, 1], [], []>} : vector<128x4xf32>, vector<4x64xf32>, vector<128x64xf32> -> vector<128x64xf32>
    %39 = vector.extract_strided_slice %0 {offsets = [0, 0], sizes = [1, 64], strides = [1, 1]} : vector<37x64xf32> to vector<1x64xf32>
    %40 = vector.broadcast %39 : vector<1x64xf32> to vector<128x64xf32>
    %41 = arith.addf %38, %40 : vector<128x64xf32>
    %42 = math.tanh %41 : vector<128x64xf32>
    %c0_18 = arith.constant 0 : index
    %c0_19 = arith.constant 0 : index
    %c0_20 = arith.constant 0 : index
    %43 = vector.load %arg6[%c0_18, %c0_19, %c0_20] : memref<20x64x64xbf16, #tpu.memory_space<vmem>>, vector<1x64x64xbf16>
    %44 = vector.shape_cast %43 : vector<1x64x64xbf16> to vector<64x64xbf16>
    %45 = arith.truncf %42 : vector<128x64xf32> to vector<128x64xbf16>
    %cst_21 = arith.constant dense<0.000000e+00> : vector<128x64xf32>
    %46 = tpu.matmul %45, %44, %cst_21 {dimension_numbers = #tpu.dot_dimension_numbers<[1], [0], [0], [1], [0, 0, 1, 1], [], []>} : vector<128x64xbf16>, vector<64x64xbf16>, vector<128x64xf32> -> vector<128x64xf32>
    %47 = vector.extract_strided_slice %0 {offsets = [1, 0], sizes = [1, 64], strides = [1, 1]} : vector<37x64xf32> to vector<1x64xf32>
    %48 = vector.broadcast %47 : vector<1x64xf32> to vector<128x64xf32>
    %49 = arith.addf %46, %48 : vector<128x64xf32>
    %50 = math.tanh %49 : vector<128x64xf32>
    %c0_22 = arith.constant 0 : index
    %c0_23 = arith.constant 0 : index
    %51 = vector.load %arg1[%c0_22, %c0_23] : memref<128x8xf32, #tpu.memory_space<vmem>>, vector<128x8xf32>
    %cst_24 = arith.constant dense<0.000000e+00> : vector<128xf32>
    %52 = vector.multi_reduction <add>, %51, %cst_24 [1] : vector<128x8xf32> to vector<128xf32>
    %53 = vector.shape_cast %52 : vector<128xf32> to vector<128x1xf32>
    %cst_25 = arith.constant 8.000000e+00 : f32
    %54 = vector.broadcast %cst_25 : f32 to vector<128x1xf32>
    %55 = arith.divf %53, %54 : vector<128x1xf32>
    %56 = vector.broadcast %55 : vector<128x1xf32> to vector<128x8xf32>
    %57 = arith.subf %51, %56 : vector<128x8xf32>
    %58 = arith.mulf %57, %57 : vector<128x8xf32>
    %cst_26 = arith.constant dense<0.000000e+00> : vector<128xf32>
    %59 = vector.multi_reduction <add>, %58, %cst_26 [1] : vector<128x8xf32> to vector<128xf32>
    %60 = vector.shape_cast %59 : vector<128xf32> to vector<128x1xf32>
    %cst_27 = arith.constant 8.000000e+00 : f32
    %61 = vector.broadcast %cst_27 : f32 to vector<128x1xf32>
    %62 = arith.divf %60, %61 : vector<128x1xf32>
    %63 = vector.broadcast %55 : vector<128x1xf32> to vector<128x8xf32>
    %64 = arith.subf %51, %63 : vector<128x8xf32>
    %cst_28 = arith.constant 9.99999974E-6 : f32
    %65 = vector.broadcast %cst_28 : f32 to vector<128x1xf32>
    %66 = arith.addf %62, %65 : vector<128x1xf32>
    %67 = math.rsqrt %66 : vector<128x1xf32>
    %68 = vector.broadcast %67 : vector<128x1xf32> to vector<128x8xf32>
    %69 = arith.mulf %64, %68 : vector<128x8xf32>
    %c0_29 = arith.constant 0 : index
    %c0_30 = arith.constant 0 : index
    %70 = vector.load %arg5[%c0_29, %c0_30] : memref<8x64xf32, #tpu.memory_space<vmem>>, vector<8x64xf32>
    %cst_31 = arith.constant dense<0.000000e+00> : vector<128x64xf32>
    %71 = tpu.matmul %69, %70, %cst_31 {dimension_numbers = #tpu.dot_dimension_numbers<[1], [0], [0], [1], [0, 0, 1, 1], [], []>} : vector<128x8xf32>, vector<8x64xf32>, vector<128x64xf32> -> vector<128x64xf32>
    %72 = vector.extract_strided_slice %0 {offsets = [2, 0], sizes = [1, 64], strides = [1, 1]} : vector<37x64xf32> to vector<1x64xf32>
    %73 = vector.broadcast %72 : vector<1x64xf32> to vector<128x64xf32>
    %74 = arith.addf %71, %73 : vector<128x64xf32>
    %75 = math.tanh %74 : vector<128x64xf32>
    %c1 = arith.constant 1 : index
    %c0_32 = arith.constant 0 : index
    %c0_33 = arith.constant 0 : index
    %76 = vector.load %arg6[%c1, %c0_32, %c0_33] : memref<20x64x64xbf16, #tpu.memory_space<vmem>>, vector<1x64x64xbf16>
    %77 = vector.shape_cast %76 : vector<1x64x64xbf16> to vector<64x64xbf16>
    %78 = arith.truncf %75 : vector<128x64xf32> to vector<128x64xbf16>
    %cst_34 = arith.constant dense<0.000000e+00> : vector<128x64xf32>
    %79 = tpu.matmul %78, %77, %cst_34 {dimension_numbers = #tpu.dot_dimension_numbers<[1], [0], [0], [1], [0, 0, 1, 1], [], []>} : vector<128x64xbf16>, vector<64x64xbf16>, vector<128x64xf32> -> vector<128x64xf32>
    %80 = vector.extract_strided_slice %0 {offsets = [3, 0], sizes = [1, 64], strides = [1, 1]} : vector<37x64xf32> to vector<1x64xf32>
    %81 = vector.broadcast %80 : vector<1x64xf32> to vector<128x64xf32>
    %82 = arith.addf %79, %81 : vector<128x64xf32>
    %83 = math.tanh %82 : vector<128x64xf32>
    %c2 = arith.constant 2 : index
    %c0_35 = arith.constant 0 : index
    %c0_36 = arith.constant 0 : index
    %84 = vector.load %arg6[%c2, %c0_35, %c0_36] : memref<20x64x64xbf16, #tpu.memory_space<vmem>>, vector<1x64x64xbf16>
    %85 = vector.shape_cast %84 : vector<1x64x64xbf16> to vector<64x64xbf16>
    %c3 = arith.constant 3 : index
    %c0_37 = arith.constant 0 : index
    %c0_38 = arith.constant 0 : index
    %86 = vector.load %arg6[%c3, %c0_37, %c0_38] : memref<20x64x64xbf16, #tpu.memory_space<vmem>>, vector<1x64x64xbf16>
    %87 = vector.shape_cast %86 : vector<1x64x64xbf16> to vector<64x64xbf16>
    %c4 = arith.constant 4 : index
    %c0_39 = arith.constant 0 : index
    %c0_40 = arith.constant 0 : index
    %88 = vector.load %arg6[%c4, %c0_39, %c0_40] : memref<20x64x64xbf16, #tpu.memory_space<vmem>>, vector<1x64x64xbf16>
    %89 = vector.shape_cast %88 : vector<1x64x64xbf16> to vector<64x64xbf16>
    %c5 = arith.constant 5 : index
    %c0_41 = arith.constant 0 : index
    %c0_42 = arith.constant 0 : index
    %90 = vector.load %arg6[%c5, %c0_41, %c0_42] : memref<20x64x64xbf16, #tpu.memory_space<vmem>>, vector<1x64x64xbf16>
    %91 = vector.shape_cast %90 : vector<1x64x64xbf16> to vector<64x64xbf16>
    %c0_43 = arith.constant 0 : index
    %c0_44 = arith.constant 0 : index
    %c0_45 = arith.constant 0 : index
    %92 = vector.load %arg7[%c0_43, %c0_44, %c0_45] : memref<4x128x64xbf16, #tpu.memory_space<vmem>>, vector<1x128x64xbf16>
    %93 = vector.shape_cast %92 : vector<1x128x64xbf16> to vector<128x64xbf16>
    %94 = arith.truncf %50 : vector<128x64xf32> to vector<128x64xbf16>
    %cst_46 = arith.constant dense<0.000000e+00> : vector<128x64xf32>
    %95 = tpu.matmul %94, %85, %cst_46 {dimension_numbers = #tpu.dot_dimension_numbers<[1], [0], [0], [1], [0, 0, 1, 1], [], []>} : vector<128x64xbf16>, vector<64x64xbf16>, vector<128x64xf32> -> vector<128x64xf32>
    %96 = arith.truncf %83 : vector<128x64xf32> to vector<128x64xbf16>
    %cst_47 = arith.constant dense<0.000000e+00> : vector<128x64xf32>
    %97 = tpu.matmul %96, %87, %cst_47 {dimension_numbers = #tpu.dot_dimension_numbers<[1], [0], [0], [1], [0, 0, 1, 1], [], []>} : vector<128x64xbf16>, vector<64x64xbf16>, vector<128x64xf32> -> vector<128x64xf32>
    %98 = tpu.concatenate %95, %97 in 0 : vector<128x64xf32>, vector<128x64xf32> -> vector<256x64xf32>
    %99 = arith.truncf %98 : vector<256x64xf32> to vector<256x64xbf16>
    %cst_48 = arith.constant dense<0.000000e+00> : vector<128x64xf32>
    %100 = tpu.matmul %17, %99, %cst_48 {dimension_numbers = #tpu.dot_dimension_numbers<[1], [0], [0], [1], [0, 0, 1, 1], [], []>} : vector<128x256xbf16>, vector<256x64xbf16>, vector<128x64xf32> -> vector<128x64xf32>
    %101 = vector.extract_strided_slice %0 {offsets = [4, 0], sizes = [1, 64], strides = [1, 1]} : vector<37x64xf32> to vector<1x64xf32>
    %102 = vector.broadcast %101 : vector<1x64xf32> to vector<128x64xf32>
    %103 = arith.addf %100, %102 : vector<128x64xf32>
    %104 = vector.extract_strided_slice %0 {offsets = [5, 0], sizes = [1, 64], strides = [1, 1]} : vector<37x64xf32> to vector<1x64xf32>
    %105 = vector.extract_strided_slice %0 {offsets = [6, 0], sizes = [1, 64], strides = [1, 1]} : vector<37x64xf32> to vector<1x64xf32>
    %cst_49 = arith.constant dense<0.000000e+00> : vector<128xf32>
    %106 = vector.multi_reduction <add>, %103, %cst_49 [1] : vector<128x64xf32> to vector<128xf32>
    %107 = vector.shape_cast %106 : vector<128xf32> to vector<128x1xf32>
    %cst_50 = arith.constant 6.400000e+01 : f32
    %108 = vector.broadcast %cst_50 : f32 to vector<128x1xf32>
    %109 = arith.divf %107, %108 : vector<128x1xf32>
    %110 = vector.broadcast %109 : vector<128x1xf32> to vector<128x64xf32>
    %111 = arith.subf %103, %110 : vector<128x64xf32>
    %112 = arith.mulf %111, %111 : vector<128x64xf32>
    %cst_51 = arith.constant dense<0.000000e+00> : vector<128xf32>
    %113 = vector.multi_reduction <add>, %112, %cst_51 [1] : vector<128x64xf32> to vector<128xf32>
    %114 = vector.shape_cast %113 : vector<128xf32> to vector<128x1xf32>
    %cst_52 = arith.constant 6.400000e+01 : f32
    %115 = vector.broadcast %cst_52 : f32 to vector<128x1xf32>
    %116 = arith.divf %114, %115 : vector<128x1xf32>
    %117 = vector.broadcast %109 : vector<128x1xf32> to vector<128x64xf32>
    %118 = arith.subf %103, %117 : vector<128x64xf32>
    %cst_53 = arith.constant 9.99999974E-6 : f32
    %119 = vector.broadcast %cst_53 : f32 to vector<128x1xf32>
    %120 = arith.addf %116, %119 : vector<128x1xf32>
    %121 = math.rsqrt %120 : vector<128x1xf32>
    %122 = vector.broadcast %121 : vector<128x1xf32> to vector<128x64xf32>
    %123 = arith.mulf %118, %122 : vector<128x64xf32>
    %124 = vector.broadcast %104 : vector<1x64xf32> to vector<128x64xf32>
    %125 = arith.mulf %123, %124 : vector<128x64xf32>
    %126 = vector.broadcast %105 : vector<1x64xf32> to vector<128x64xf32>
    %127 = arith.addf %125, %126 : vector<128x64xf32>
    %cst_54 = arith.constant 0.000000e+00 : f32
    %128 = vector.broadcast %cst_54 : f32 to vector<128x64xf32>
    %129 = arith.maximumf %127, %128 : vector<128x64xf32>
    %130 = arith.truncf %129 : vector<128x64xf32> to vector<128x64xbf16>
    %cst_55 = arith.constant dense<0.000000e+00> : vector<128x64xf32>
    %131 = tpu.matmul %130, %89, %cst_55 {dimension_numbers = #tpu.dot_dimension_numbers<[1], [0], [0], [1], [0, 0, 1, 1], [], []>} : vector<128x64xbf16>, vector<64x64xbf16>, vector<128x64xf32> -> vector<128x64xf32>
    %132 = vector.extract_strided_slice %0 {offsets = [7, 0], sizes = [1, 64], strides = [1, 1]} : vector<37x64xf32> to vector<1x64xf32>
    %133 = vector.broadcast %132 : vector<1x64xf32> to vector<128x64xf32>
    %134 = arith.addf %131, %133 : vector<128x64xf32>
    %135 = arith.truncf %134 : vector<128x64xf32> to vector<128x64xbf16>
    %cst_56 = arith.constant dense<0.000000e+00> : vector<128x64xf32>
    %136 = tpu.matmul %8, %135, %cst_56 {dimension_numbers = #tpu.dot_dimension_numbers<[0], [0], [1], [1], [0, 1, 1, 1], [], []>} : vector<128x128xbf16>, vector<128x64xbf16>, vector<128x64xf32> -> vector<128x64xf32>
    %137 = vector.extract_strided_slice %0 {offsets = [8, 0], sizes = [1, 64], strides = [1, 1]} : vector<37x64xf32> to vector<1x64xf32>
    %138 = vector.extract_strided_slice %0 {offsets = [9, 0], sizes = [1, 64], strides = [1, 1]} : vector<37x64xf32> to vector<1x64xf32>
    %cst_57 = arith.constant dense<0.000000e+00> : vector<128xf32>
    %139 = vector.multi_reduction <add>, %136, %cst_57 [1] : vector<128x64xf32> to vector<128xf32>
    %140 = vector.shape_cast %139 : vector<128xf32> to vector<128x1xf32>
    %cst_58 = arith.constant 6.400000e+01 : f32
    %141 = vector.broadcast %cst_58 : f32 to vector<128x1xf32>
    %142 = arith.divf %140, %141 : vector<128x1xf32>
    %143 = vector.broadcast %142 : vector<128x1xf32> to vector<128x64xf32>
    %144 = arith.subf %136, %143 : vector<128x64xf32>
    %145 = arith.mulf %144, %144 : vector<128x64xf32>
    %cst_59 = arith.constant dense<0.000000e+00> : vector<128xf32>
    %146 = vector.multi_reduction <add>, %145, %cst_59 [1] : vector<128x64xf32> to vector<128xf32>
    %147 = vector.shape_cast %146 : vector<128xf32> to vector<128x1xf32>
    %cst_60 = arith.constant 6.400000e+01 : f32
    %148 = vector.broadcast %cst_60 : f32 to vector<128x1xf32>
    %149 = arith.divf %147, %148 : vector<128x1xf32>
    %150 = vector.broadcast %142 : vector<128x1xf32> to vector<128x64xf32>
    %151 = arith.subf %136, %150 : vector<128x64xf32>
    %cst_61 = arith.constant 9.99999974E-6 : f32
    %152 = vector.broadcast %cst_61 : f32 to vector<128x1xf32>
    %153 = arith.addf %149, %152 : vector<128x1xf32>
    %154 = math.rsqrt %153 : vector<128x1xf32>
    %155 = vector.broadcast %154 : vector<128x1xf32> to vector<128x64xf32>
    %156 = arith.mulf %151, %155 : vector<128x64xf32>
    %157 = vector.broadcast %137 : vector<1x64xf32> to vector<128x64xf32>
    %158 = arith.mulf %156, %157 : vector<128x64xf32>
    %159 = vector.broadcast %138 : vector<1x64xf32> to vector<128x64xf32>
    %160 = arith.addf %158, %159 : vector<128x64xf32>
    %161 = tpu.concatenate %160, %50 in 1 : vector<128x64xf32>, vector<128x64xf32> -> vector<128x128xf32>
    %162 = arith.truncf %161 : vector<128x128xf32> to vector<128x128xbf16>
    %cst_62 = arith.constant dense<0.000000e+00> : vector<128x64xf32>
    %163 = tpu.matmul %162, %93, %cst_62 {dimension_numbers = #tpu.dot_dimension_numbers<[1], [0], [0], [1], [0, 0, 1, 1], [], []>} : vector<128x128xbf16>, vector<128x64xbf16>, vector<128x64xf32> -> vector<128x64xf32>
    %164 = vector.extract_strided_slice %0 {offsets = [10, 0], sizes = [1, 64], strides = [1, 1]} : vector<37x64xf32> to vector<1x64xf32>
    %165 = vector.broadcast %164 : vector<1x64xf32> to vector<128x64xf32>
    %166 = arith.addf %163, %165 : vector<128x64xf32>
    %cst_63 = arith.constant 0.000000e+00 : f32
    %167 = vector.broadcast %cst_63 : f32 to vector<128x64xf32>
    %168 = arith.maximumf %166, %167 : vector<128x64xf32>
    %169 = arith.truncf %168 : vector<128x64xf32> to vector<128x64xbf16>
    %cst_64 = arith.constant dense<0.000000e+00> : vector<128x64xf32>
    %170 = tpu.matmul %169, %91, %cst_64 {dimension_numbers = #tpu.dot_dimension_numbers<[1], [0], [0], [1], [0, 0, 1, 1], [], []>} : vector<128x64xbf16>, vector<64x64xbf16>, vector<128x64xf32> -> vector<128x64xf32>
    %171 = vector.extract_strided_slice %0 {offsets = [11, 0], sizes = [1, 64], strides = [1, 1]} : vector<37x64xf32> to vector<1x64xf32>
    %172 = vector.broadcast %171 : vector<1x64xf32> to vector<128x64xf32>
    %173 = arith.addf %170, %172 : vector<128x64xf32>
    %c6 = arith.constant 6 : index
    %c0_65 = arith.constant 0 : index
    %c0_66 = arith.constant 0 : index
    %174 = vector.load %arg6[%c6, %c0_65, %c0_66] : memref<20x64x64xbf16, #tpu.memory_space<vmem>>, vector<1x64x64xbf16>
    %175 = vector.shape_cast %174 : vector<1x64x64xbf16> to vector<64x64xbf16>
    %c7 = arith.constant 7 : index
    %c0_67 = arith.constant 0 : index
    %c0_68 = arith.constant 0 : index
    %176 = vector.load %arg6[%c7, %c0_67, %c0_68] : memref<20x64x64xbf16, #tpu.memory_space<vmem>>, vector<1x64x64xbf16>
    %177 = vector.shape_cast %176 : vector<1x64x64xbf16> to vector<64x64xbf16>
    %c8 = arith.constant 8 : index
    %c0_69 = arith.constant 0 : index
    %c0_70 = arith.constant 0 : index
    %178 = vector.load %arg6[%c8, %c0_69, %c0_70] : memref<20x64x64xbf16, #tpu.memory_space<vmem>>, vector<1x64x64xbf16>
    %179 = vector.shape_cast %178 : vector<1x64x64xbf16> to vector<64x64xbf16>
    %c9 = arith.constant 9 : index
    %c0_71 = arith.constant 0 : index
    %c0_72 = arith.constant 0 : index
    %180 = vector.load %arg6[%c9, %c0_71, %c0_72] : memref<20x64x64xbf16, #tpu.memory_space<vmem>>, vector<1x64x64xbf16>
    %181 = vector.shape_cast %180 : vector<1x64x64xbf16> to vector<64x64xbf16>
    %c1_73 = arith.constant 1 : index
    %c0_74 = arith.constant 0 : index
    %c0_75 = arith.constant 0 : index
    %182 = vector.load %arg7[%c1_73, %c0_74, %c0_75] : memref<4x128x64xbf16, #tpu.memory_space<vmem>>, vector<1x128x64xbf16>
    %183 = vector.shape_cast %182 : vector<1x128x64xbf16> to vector<128x64xbf16>
    %184 = arith.truncf %173 : vector<128x64xf32> to vector<128x64xbf16>
    %cst_76 = arith.constant dense<0.000000e+00> : vector<128x64xf32>
    %185 = tpu.matmul %184, %177, %cst_76 {dimension_numbers = #tpu.dot_dimension_numbers<[1], [0], [0], [1], [0, 0, 1, 1], [], []>} : vector<128x64xbf16>, vector<64x64xbf16>, vector<128x64xf32> -> vector<128x64xf32>
    %186 = arith.truncf %83 : vector<128x64xf32> to vector<128x64xbf16>
    %cst_77 = arith.constant dense<0.000000e+00> : vector<128x64xf32>
    %187 = tpu.matmul %186, %175, %cst_77 {dimension_numbers = #tpu.dot_dimension_numbers<[1], [0], [0], [1], [0, 0, 1, 1], [], []>} : vector<128x64xbf16>, vector<64x64xbf16>, vector<128x64xf32> -> vector<128x64xf32>
    %188 = tpu.concatenate %185, %187 in 0 : vector<128x64xf32>, vector<128x64xf32> -> vector<256x64xf32>
    %189 = arith.truncf %188 : vector<256x64xf32> to vector<256x64xbf16>
    %cst_78 = arith.constant dense<0.000000e+00> : vector<128x64xf32>
    %190 = tpu.matmul %17, %189, %cst_78 {dimension_numbers = #tpu.dot_dimension_numbers<[1], [0], [0], [1], [0, 0, 1, 1], [], []>} : vector<128x256xbf16>, vector<256x64xbf16>, vector<128x64xf32> -> vector<128x64xf32>
    %191 = vector.extract_strided_slice %0 {offsets = [12, 0], sizes = [1, 64], strides = [1, 1]} : vector<37x64xf32> to vector<1x64xf32>
    %192 = vector.broadcast %191 : vector<1x64xf32> to vector<128x64xf32>
    %193 = arith.addf %190, %192 : vector<128x64xf32>
    %194 = vector.extract_strided_slice %0 {offsets = [13, 0], sizes = [1, 64], strides = [1, 1]} : vector<37x64xf32> to vector<1x64xf32>
    %195 = vector.extract_strided_slice %0 {offsets = [14, 0], sizes = [1, 64], strides = [1, 1]} : vector<37x64xf32> to vector<1x64xf32>
    %cst_79 = arith.constant dense<0.000000e+00> : vector<128xf32>
    %196 = vector.multi_reduction <add>, %193, %cst_79 [1] : vector<128x64xf32> to vector<128xf32>
    %197 = vector.shape_cast %196 : vector<128xf32> to vector<128x1xf32>
    %cst_80 = arith.constant 6.400000e+01 : f32
    %198 = vector.broadcast %cst_80 : f32 to vector<128x1xf32>
    %199 = arith.divf %197, %198 : vector<128x1xf32>
    %200 = vector.broadcast %199 : vector<128x1xf32> to vector<128x64xf32>
    %201 = arith.subf %193, %200 : vector<128x64xf32>
    %202 = arith.mulf %201, %201 : vector<128x64xf32>
    %cst_81 = arith.constant dense<0.000000e+00> : vector<128xf32>
    %203 = vector.multi_reduction <add>, %202, %cst_81 [1] : vector<128x64xf32> to vector<128xf32>
    %204 = vector.shape_cast %203 : vector<128xf32> to vector<128x1xf32>
    %cst_82 = arith.constant 6.400000e+01 : f32
    %205 = vector.broadcast %cst_82 : f32 to vector<128x1xf32>
    %206 = arith.divf %204, %205 : vector<128x1xf32>
    %207 = vector.broadcast %199 : vector<128x1xf32> to vector<128x64xf32>
    %208 = arith.subf %193, %207 : vector<128x64xf32>
    %cst_83 = arith.constant 9.99999974E-6 : f32
    %209 = vector.broadcast %cst_83 : f32 to vector<128x1xf32>
    %210 = arith.addf %206, %209 : vector<128x1xf32>
    %211 = math.rsqrt %210 : vector<128x1xf32>
    %212 = vector.broadcast %211 : vector<128x1xf32> to vector<128x64xf32>
    %213 = arith.mulf %208, %212 : vector<128x64xf32>
    %214 = vector.broadcast %194 : vector<1x64xf32> to vector<128x64xf32>
    %215 = arith.mulf %213, %214 : vector<128x64xf32>
    %216 = vector.broadcast %195 : vector<1x64xf32> to vector<128x64xf32>
    %217 = arith.addf %215, %216 : vector<128x64xf32>
    %cst_84 = arith.constant 0.000000e+00 : f32
    %218 = vector.broadcast %cst_84 : f32 to vector<128x64xf32>
    %219 = arith.maximumf %217, %218 : vector<128x64xf32>
    %220 = arith.truncf %219 : vector<128x64xf32> to vector<128x64xbf16>
    %cst_85 = arith.constant dense<0.000000e+00> : vector<128x64xf32>
    %221 = tpu.matmul %220, %179, %cst_85 {dimension_numbers = #tpu.dot_dimension_numbers<[1], [0], [0], [1], [0, 0, 1, 1], [], []>} : vector<128x64xbf16>, vector<64x64xbf16>, vector<128x64xf32> -> vector<128x64xf32>
    %222 = vector.extract_strided_slice %0 {offsets = [15, 0], sizes = [1, 64], strides = [1, 1]} : vector<37x64xf32> to vector<1x64xf32>
    %223 = vector.broadcast %222 : vector<1x64xf32> to vector<128x64xf32>
    %224 = arith.addf %221, %223 : vector<128x64xf32>
    %225 = arith.truncf %224 : vector<128x64xf32> to vector<128x64xbf16>
    %cst_86 = arith.constant dense<0.000000e+00> : vector<128x64xf32>
    %226 = tpu.matmul %16, %225, %cst_86 {dimension_numbers = #tpu.dot_dimension_numbers<[0], [0], [1], [1], [0, 1, 1, 1], [], []>} : vector<128x128xbf16>, vector<128x64xbf16>, vector<128x64xf32> -> vector<128x64xf32>
    %227 = vector.extract_strided_slice %0 {offsets = [16, 0], sizes = [1, 64], strides = [1, 1]} : vector<37x64xf32> to vector<1x64xf32>
    %228 = vector.extract_strided_slice %0 {offsets = [17, 0], sizes = [1, 64], strides = [1, 1]} : vector<37x64xf32> to vector<1x64xf32>
    %cst_87 = arith.constant dense<0.000000e+00> : vector<128xf32>
    %229 = vector.multi_reduction <add>, %226, %cst_87 [1] : vector<128x64xf32> to vector<128xf32>
    %230 = vector.shape_cast %229 : vector<128xf32> to vector<128x1xf32>
    %cst_88 = arith.constant 6.400000e+01 : f32
    %231 = vector.broadcast %cst_88 : f32 to vector<128x1xf32>
    %232 = arith.divf %230, %231 : vector<128x1xf32>
    %233 = vector.broadcast %232 : vector<128x1xf32> to vector<128x64xf32>
    %234 = arith.subf %226, %233 : vector<128x64xf32>
    %235 = arith.mulf %234, %234 : vector<128x64xf32>
    %cst_89 = arith.constant dense<0.000000e+00> : vector<128xf32>
    %236 = vector.multi_reduction <add>, %235, %cst_89 [1] : vector<128x64xf32> to vector<128xf32>
    %237 = vector.shape_cast %236 : vector<128xf32> to vector<128x1xf32>
    %cst_90 = arith.constant 6.400000e+01 : f32
    %238 = vector.broadcast %cst_90 : f32 to vector<128x1xf32>
    %239 = arith.divf %237, %238 : vector<128x1xf32>
    %240 = vector.broadcast %232 : vector<128x1xf32> to vector<128x64xf32>
    %241 = arith.subf %226, %240 : vector<128x64xf32>
    %cst_91 = arith.constant 9.99999974E-6 : f32
    %242 = vector.broadcast %cst_91 : f32 to vector<128x1xf32>
    %243 = arith.addf %239, %242 : vector<128x1xf32>
    %244 = math.rsqrt %243 : vector<128x1xf32>
    %245 = vector.broadcast %244 : vector<128x1xf32> to vector<128x64xf32>
    %246 = arith.mulf %241, %245 : vector<128x64xf32>
    %247 = vector.broadcast %227 : vector<1x64xf32> to vector<128x64xf32>
    %248 = arith.mulf %246, %247 : vector<128x64xf32>
    %249 = vector.broadcast %228 : vector<1x64xf32> to vector<128x64xf32>
    %250 = arith.addf %248, %249 : vector<128x64xf32>
    %251 = tpu.concatenate %250, %83 in 1 : vector<128x64xf32>, vector<128x64xf32> -> vector<128x128xf32>
    %252 = arith.truncf %251 : vector<128x128xf32> to vector<128x128xbf16>
    %cst_92 = arith.constant dense<0.000000e+00> : vector<128x64xf32>
    %253 = tpu.matmul %252, %183, %cst_92 {dimension_numbers = #tpu.dot_dimension_numbers<[1], [0], [0], [1], [0, 0, 1, 1], [], []>} : vector<128x128xbf16>, vector<128x64xbf16>, vector<128x64xf32> -> vector<128x64xf32>
    %254 = vector.extract_strided_slice %0 {offsets = [18, 0], sizes = [1, 64], strides = [1, 1]} : vector<37x64xf32> to vector<1x64xf32>
    %255 = vector.broadcast %254 : vector<1x64xf32> to vector<128x64xf32>
    %256 = arith.addf %253, %255 : vector<128x64xf32>
    %cst_93 = arith.constant 0.000000e+00 : f32
    %257 = vector.broadcast %cst_93 : f32 to vector<128x64xf32>
    %258 = arith.maximumf %256, %257 : vector<128x64xf32>
    %259 = arith.truncf %258 : vector<128x64xf32> to vector<128x64xbf16>
    %cst_94 = arith.constant dense<0.000000e+00> : vector<128x64xf32>
    %260 = tpu.matmul %259, %181, %cst_94 {dimension_numbers = #tpu.dot_dimension_numbers<[1], [0], [0], [1], [0, 0, 1, 1], [], []>} : vector<128x64xbf16>, vector<64x64xbf16>, vector<128x64xf32> -> vector<128x64xf32>
    %261 = vector.extract_strided_slice %0 {offsets = [19, 0], sizes = [1, 64], strides = [1, 1]} : vector<37x64xf32> to vector<1x64xf32>
    %262 = vector.broadcast %261 : vector<1x64xf32> to vector<128x64xf32>
    %263 = arith.addf %260, %262 : vector<128x64xf32>
    %c10 = arith.constant 10 : index
    %c0_95 = arith.constant 0 : index
    %c0_96 = arith.constant 0 : index
    %264 = vector.load %arg6[%c10, %c0_95, %c0_96] : memref<20x64x64xbf16, #tpu.memory_space<vmem>>, vector<1x64x64xbf16>
    %265 = vector.shape_cast %264 : vector<1x64x64xbf16> to vector<64x64xbf16>
    %c11 = arith.constant 11 : index
    %c0_97 = arith.constant 0 : index
    %c0_98 = arith.constant 0 : index
    %266 = vector.load %arg6[%c11, %c0_97, %c0_98] : memref<20x64x64xbf16, #tpu.memory_space<vmem>>, vector<1x64x64xbf16>
    %267 = vector.shape_cast %266 : vector<1x64x64xbf16> to vector<64x64xbf16>
    %c12 = arith.constant 12 : index
    %c0_99 = arith.constant 0 : index
    %c0_100 = arith.constant 0 : index
    %268 = vector.load %arg6[%c12, %c0_99, %c0_100] : memref<20x64x64xbf16, #tpu.memory_space<vmem>>, vector<1x64x64xbf16>
    %269 = vector.shape_cast %268 : vector<1x64x64xbf16> to vector<64x64xbf16>
    %c13 = arith.constant 13 : index
    %c0_101 = arith.constant 0 : index
    %c0_102 = arith.constant 0 : index
    %270 = vector.load %arg6[%c13, %c0_101, %c0_102] : memref<20x64x64xbf16, #tpu.memory_space<vmem>>, vector<1x64x64xbf16>
    %271 = vector.shape_cast %270 : vector<1x64x64xbf16> to vector<64x64xbf16>
    %c2_103 = arith.constant 2 : index
    %c0_104 = arith.constant 0 : index
    %c0_105 = arith.constant 0 : index
    %272 = vector.load %arg7[%c2_103, %c0_104, %c0_105] : memref<4x128x64xbf16, #tpu.memory_space<vmem>>, vector<1x128x64xbf16>
    %273 = vector.shape_cast %272 : vector<1x128x64xbf16> to vector<128x64xbf16>
    %274 = arith.truncf %173 : vector<128x64xf32> to vector<128x64xbf16>
    %cst_106 = arith.constant dense<0.000000e+00> : vector<128x64xf32>
    %275 = tpu.matmul %274, %265, %cst_106 {dimension_numbers = #tpu.dot_dimension_numbers<[1], [0], [0], [1], [0, 0, 1, 1], [], []>} : vector<128x64xbf16>, vector<64x64xbf16>, vector<128x64xf32> -> vector<128x64xf32>
    %276 = arith.truncf %263 : vector<128x64xf32> to vector<128x64xbf16>
    %cst_107 = arith.constant dense<0.000000e+00> : vector<128x64xf32>
    %277 = tpu.matmul %276, %267, %cst_107 {dimension_numbers = #tpu.dot_dimension_numbers<[1], [0], [0], [1], [0, 0, 1, 1], [], []>} : vector<128x64xbf16>, vector<64x64xbf16>, vector<128x64xf32> -> vector<128x64xf32>
    %278 = tpu.concatenate %275, %277 in 0 : vector<128x64xf32>, vector<128x64xf32> -> vector<256x64xf32>
    %279 = arith.truncf %278 : vector<256x64xf32> to vector<256x64xbf16>
    %cst_108 = arith.constant dense<0.000000e+00> : vector<128x64xf32>
    %280 = tpu.matmul %17, %279, %cst_108 {dimension_numbers = #tpu.dot_dimension_numbers<[1], [0], [0], [1], [0, 0, 1, 1], [], []>} : vector<128x256xbf16>, vector<256x64xbf16>, vector<128x64xf32> -> vector<128x64xf32>
    %281 = vector.extract_strided_slice %0 {offsets = [20, 0], sizes = [1, 64], strides = [1, 1]} : vector<37x64xf32> to vector<1x64xf32>
    %282 = vector.broadcast %281 : vector<1x64xf32> to vector<128x64xf32>
    %283 = arith.addf %280, %282 : vector<128x64xf32>
    %284 = vector.extract_strided_slice %0 {offsets = [21, 0], sizes = [1, 64], strides = [1, 1]} : vector<37x64xf32> to vector<1x64xf32>
    %285 = vector.extract_strided_slice %0 {offsets = [22, 0], sizes = [1, 64], strides = [1, 1]} : vector<37x64xf32> to vector<1x64xf32>
    %cst_109 = arith.constant dense<0.000000e+00> : vector<128xf32>
    %286 = vector.multi_reduction <add>, %283, %cst_109 [1] : vector<128x64xf32> to vector<128xf32>
    %287 = vector.shape_cast %286 : vector<128xf32> to vector<128x1xf32>
    %cst_110 = arith.constant 6.400000e+01 : f32
    %288 = vector.broadcast %cst_110 : f32 to vector<128x1xf32>
    %289 = arith.divf %287, %288 : vector<128x1xf32>
    %290 = vector.broadcast %289 : vector<128x1xf32> to vector<128x64xf32>
    %291 = arith.subf %283, %290 : vector<128x64xf32>
    %292 = arith.mulf %291, %291 : vector<128x64xf32>
    %cst_111 = arith.constant dense<0.000000e+00> : vector<128xf32>
    %293 = vector.multi_reduction <add>, %292, %cst_111 [1] : vector<128x64xf32> to vector<128xf32>
    %294 = vector.shape_cast %293 : vector<128xf32> to vector<128x1xf32>
    %cst_112 = arith.constant 6.400000e+01 : f32
    %295 = vector.broadcast %cst_112 : f32 to vector<128x1xf32>
    %296 = arith.divf %294, %295 : vector<128x1xf32>
    %297 = vector.broadcast %289 : vector<128x1xf32> to vector<128x64xf32>
    %298 = arith.subf %283, %297 : vector<128x64xf32>
    %cst_113 = arith.constant 9.99999974E-6 : f32
    %299 = vector.broadcast %cst_113 : f32 to vector<128x1xf32>
    %300 = arith.addf %296, %299 : vector<128x1xf32>
    %301 = math.rsqrt %300 : vector<128x1xf32>
    %302 = vector.broadcast %301 : vector<128x1xf32> to vector<128x64xf32>
    %303 = arith.mulf %298, %302 : vector<128x64xf32>
    %304 = vector.broadcast %284 : vector<1x64xf32> to vector<128x64xf32>
    %305 = arith.mulf %303, %304 : vector<128x64xf32>
    %306 = vector.broadcast %285 : vector<1x64xf32> to vector<128x64xf32>
    %307 = arith.addf %305, %306 : vector<128x64xf32>
    %cst_114 = arith.constant 0.000000e+00 : f32
    %308 = vector.broadcast %cst_114 : f32 to vector<128x64xf32>
    %309 = arith.maximumf %307, %308 : vector<128x64xf32>
    %310 = arith.truncf %309 : vector<128x64xf32> to vector<128x64xbf16>
    %cst_115 = arith.constant dense<0.000000e+00> : vector<128x64xf32>
    %311 = tpu.matmul %310, %269, %cst_115 {dimension_numbers = #tpu.dot_dimension_numbers<[1], [0], [0], [1], [0, 0, 1, 1], [], []>} : vector<128x64xbf16>, vector<64x64xbf16>, vector<128x64xf32> -> vector<128x64xf32>
    %312 = vector.extract_strided_slice %0 {offsets = [23, 0], sizes = [1, 64], strides = [1, 1]} : vector<37x64xf32> to vector<1x64xf32>
    %313 = vector.broadcast %312 : vector<1x64xf32> to vector<128x64xf32>
    %314 = arith.addf %311, %313 : vector<128x64xf32>
    %315 = arith.truncf %314 : vector<128x64xf32> to vector<128x64xbf16>
    %cst_116 = arith.constant dense<0.000000e+00> : vector<128x64xf32>
    %316 = tpu.matmul %8, %315, %cst_116 {dimension_numbers = #tpu.dot_dimension_numbers<[0], [0], [1], [1], [0, 1, 1, 1], [], []>} : vector<128x128xbf16>, vector<128x64xbf16>, vector<128x64xf32> -> vector<128x64xf32>
    %317 = vector.extract_strided_slice %0 {offsets = [24, 0], sizes = [1, 64], strides = [1, 1]} : vector<37x64xf32> to vector<1x64xf32>
    %318 = vector.extract_strided_slice %0 {offsets = [25, 0], sizes = [1, 64], strides = [1, 1]} : vector<37x64xf32> to vector<1x64xf32>
    %cst_117 = arith.constant dense<0.000000e+00> : vector<128xf32>
    %319 = vector.multi_reduction <add>, %316, %cst_117 [1] : vector<128x64xf32> to vector<128xf32>
    %320 = vector.shape_cast %319 : vector<128xf32> to vector<128x1xf32>
    %cst_118 = arith.constant 6.400000e+01 : f32
    %321 = vector.broadcast %cst_118 : f32 to vector<128x1xf32>
    %322 = arith.divf %320, %321 : vector<128x1xf32>
    %323 = vector.broadcast %322 : vector<128x1xf32> to vector<128x64xf32>
    %324 = arith.subf %316, %323 : vector<128x64xf32>
    %325 = arith.mulf %324, %324 : vector<128x64xf32>
    %cst_119 = arith.constant dense<0.000000e+00> : vector<128xf32>
    %326 = vector.multi_reduction <add>, %325, %cst_119 [1] : vector<128x64xf32> to vector<128xf32>
    %327 = vector.shape_cast %326 : vector<128xf32> to vector<128x1xf32>
    %cst_120 = arith.constant 6.400000e+01 : f32
    %328 = vector.broadcast %cst_120 : f32 to vector<128x1xf32>
    %329 = arith.divf %327, %328 : vector<128x1xf32>
    %330 = vector.broadcast %322 : vector<128x1xf32> to vector<128x64xf32>
    %331 = arith.subf %316, %330 : vector<128x64xf32>
    %cst_121 = arith.constant 9.99999974E-6 : f32
    %332 = vector.broadcast %cst_121 : f32 to vector<128x1xf32>
    %333 = arith.addf %329, %332 : vector<128x1xf32>
    %334 = math.rsqrt %333 : vector<128x1xf32>
    %335 = vector.broadcast %334 : vector<128x1xf32> to vector<128x64xf32>
    %336 = arith.mulf %331, %335 : vector<128x64xf32>
    %337 = vector.broadcast %317 : vector<1x64xf32> to vector<128x64xf32>
    %338 = arith.mulf %336, %337 : vector<128x64xf32>
    %339 = vector.broadcast %318 : vector<1x64xf32> to vector<128x64xf32>
    %340 = arith.addf %338, %339 : vector<128x64xf32>
    %341 = tpu.concatenate %340, %173 in 1 : vector<128x64xf32>, vector<128x64xf32> -> vector<128x128xf32>
    %342 = arith.truncf %341 : vector<128x128xf32> to vector<128x128xbf16>
    %cst_122 = arith.constant dense<0.000000e+00> : vector<128x64xf32>
    %343 = tpu.matmul %342, %273, %cst_122 {dimension_numbers = #tpu.dot_dimension_numbers<[1], [0], [0], [1], [0, 0, 1, 1], [], []>} : vector<128x128xbf16>, vector<128x64xbf16>, vector<128x64xf32> -> vector<128x64xf32>
    %344 = vector.extract_strided_slice %0 {offsets = [26, 0], sizes = [1, 64], strides = [1, 1]} : vector<37x64xf32> to vector<1x64xf32>
    %345 = vector.broadcast %344 : vector<1x64xf32> to vector<128x64xf32>
    %346 = arith.addf %343, %345 : vector<128x64xf32>
    %cst_123 = arith.constant 0.000000e+00 : f32
    %347 = vector.broadcast %cst_123 : f32 to vector<128x64xf32>
    %348 = arith.maximumf %346, %347 : vector<128x64xf32>
    %349 = arith.truncf %348 : vector<128x64xf32> to vector<128x64xbf16>
    %cst_124 = arith.constant dense<0.000000e+00> : vector<128x64xf32>
    %350 = tpu.matmul %349, %271, %cst_124 {dimension_numbers = #tpu.dot_dimension_numbers<[1], [0], [0], [1], [0, 0, 1, 1], [], []>} : vector<128x64xbf16>, vector<64x64xbf16>, vector<128x64xf32> -> vector<128x64xf32>
    %351 = vector.extract_strided_slice %0 {offsets = [27, 0], sizes = [1, 64], strides = [1, 1]} : vector<37x64xf32> to vector<1x64xf32>
    %352 = vector.broadcast %351 : vector<1x64xf32> to vector<128x64xf32>
    %353 = arith.addf %350, %352 : vector<128x64xf32>
    %c14 = arith.constant 14 : index
    %c0_125 = arith.constant 0 : index
    %c0_126 = arith.constant 0 : index
    %354 = vector.load %arg6[%c14, %c0_125, %c0_126] : memref<20x64x64xbf16, #tpu.memory_space<vmem>>, vector<1x64x64xbf16>
    %355 = vector.shape_cast %354 : vector<1x64x64xbf16> to vector<64x64xbf16>
    %c15 = arith.constant 15 : index
    %c0_127 = arith.constant 0 : index
    %c0_128 = arith.constant 0 : index
    %356 = vector.load %arg6[%c15, %c0_127, %c0_128] : memref<20x64x64xbf16, #tpu.memory_space<vmem>>, vector<1x64x64xbf16>
    %357 = vector.shape_cast %356 : vector<1x64x64xbf16> to vector<64x64xbf16>
    %c16 = arith.constant 16 : index
    %c0_129 = arith.constant 0 : index
    %c0_130 = arith.constant 0 : index
    %358 = vector.load %arg6[%c16, %c0_129, %c0_130] : memref<20x64x64xbf16, #tpu.memory_space<vmem>>, vector<1x64x64xbf16>
    %359 = vector.shape_cast %358 : vector<1x64x64xbf16> to vector<64x64xbf16>
    %c17 = arith.constant 17 : index
    %c0_131 = arith.constant 0 : index
    %c0_132 = arith.constant 0 : index
    %360 = vector.load %arg6[%c17, %c0_131, %c0_132] : memref<20x64x64xbf16, #tpu.memory_space<vmem>>, vector<1x64x64xbf16>
    %361 = vector.shape_cast %360 : vector<1x64x64xbf16> to vector<64x64xbf16>
    %c3_133 = arith.constant 3 : index
    %c0_134 = arith.constant 0 : index
    %c0_135 = arith.constant 0 : index
    %362 = vector.load %arg7[%c3_133, %c0_134, %c0_135] : memref<4x128x64xbf16, #tpu.memory_space<vmem>>, vector<1x128x64xbf16>
    %363 = vector.shape_cast %362 : vector<1x128x64xbf16> to vector<128x64xbf16>
    %364 = arith.truncf %353 : vector<128x64xf32> to vector<128x64xbf16>
    %cst_136 = arith.constant dense<0.000000e+00> : vector<128x64xf32>
    %365 = tpu.matmul %364, %357, %cst_136 {dimension_numbers = #tpu.dot_dimension_numbers<[1], [0], [0], [1], [0, 0, 1, 1], [], []>} : vector<128x64xbf16>, vector<64x64xbf16>, vector<128x64xf32> -> vector<128x64xf32>
    %366 = arith.truncf %263 : vector<128x64xf32> to vector<128x64xbf16>
    %cst_137 = arith.constant dense<0.000000e+00> : vector<128x64xf32>
    %367 = tpu.matmul %366, %355, %cst_137 {dimension_numbers = #tpu.dot_dimension_numbers<[1], [0], [0], [1], [0, 0, 1, 1], [], []>} : vector<128x64xbf16>, vector<64x64xbf16>, vector<128x64xf32> -> vector<128x64xf32>
    %368 = tpu.concatenate %365, %367 in 0 : vector<128x64xf32>, vector<128x64xf32> -> vector<256x64xf32>
    %369 = arith.truncf %368 : vector<256x64xf32> to vector<256x64xbf16>
    %cst_138 = arith.constant dense<0.000000e+00> : vector<128x64xf32>
    %370 = tpu.matmul %17, %369, %cst_138 {dimension_numbers = #tpu.dot_dimension_numbers<[1], [0], [0], [1], [0, 0, 1, 1], [], []>} : vector<128x256xbf16>, vector<256x64xbf16>, vector<128x64xf32> -> vector<128x64xf32>
    %371 = vector.extract_strided_slice %0 {offsets = [28, 0], sizes = [1, 64], strides = [1, 1]} : vector<37x64xf32> to vector<1x64xf32>
    %372 = vector.broadcast %371 : vector<1x64xf32> to vector<128x64xf32>
    %373 = arith.addf %370, %372 : vector<128x64xf32>
    %374 = vector.extract_strided_slice %0 {offsets = [29, 0], sizes = [1, 64], strides = [1, 1]} : vector<37x64xf32> to vector<1x64xf32>
    %375 = vector.extract_strided_slice %0 {offsets = [30, 0], sizes = [1, 64], strides = [1, 1]} : vector<37x64xf32> to vector<1x64xf32>
    %cst_139 = arith.constant dense<0.000000e+00> : vector<128xf32>
    %376 = vector.multi_reduction <add>, %373, %cst_139 [1] : vector<128x64xf32> to vector<128xf32>
    %377 = vector.shape_cast %376 : vector<128xf32> to vector<128x1xf32>
    %cst_140 = arith.constant 6.400000e+01 : f32
    %378 = vector.broadcast %cst_140 : f32 to vector<128x1xf32>
    %379 = arith.divf %377, %378 : vector<128x1xf32>
    %380 = vector.broadcast %379 : vector<128x1xf32> to vector<128x64xf32>
    %381 = arith.subf %373, %380 : vector<128x64xf32>
    %382 = arith.mulf %381, %381 : vector<128x64xf32>
    %cst_141 = arith.constant dense<0.000000e+00> : vector<128xf32>
    %383 = vector.multi_reduction <add>, %382, %cst_141 [1] : vector<128x64xf32> to vector<128xf32>
    %384 = vector.shape_cast %383 : vector<128xf32> to vector<128x1xf32>
    %cst_142 = arith.constant 6.400000e+01 : f32
    %385 = vector.broadcast %cst_142 : f32 to vector<128x1xf32>
    %386 = arith.divf %384, %385 : vector<128x1xf32>
    %387 = vector.broadcast %379 : vector<128x1xf32> to vector<128x64xf32>
    %388 = arith.subf %373, %387 : vector<128x64xf32>
    %cst_143 = arith.constant 9.99999974E-6 : f32
    %389 = vector.broadcast %cst_143 : f32 to vector<128x1xf32>
    %390 = arith.addf %386, %389 : vector<128x1xf32>
    %391 = math.rsqrt %390 : vector<128x1xf32>
    %392 = vector.broadcast %391 : vector<128x1xf32> to vector<128x64xf32>
    %393 = arith.mulf %388, %392 : vector<128x64xf32>
    %394 = vector.broadcast %374 : vector<1x64xf32> to vector<128x64xf32>
    %395 = arith.mulf %393, %394 : vector<128x64xf32>
    %396 = vector.broadcast %375 : vector<1x64xf32> to vector<128x64xf32>
    %397 = arith.addf %395, %396 : vector<128x64xf32>
    %cst_144 = arith.constant 0.000000e+00 : f32
    %398 = vector.broadcast %cst_144 : f32 to vector<128x64xf32>
    %399 = arith.maximumf %397, %398 : vector<128x64xf32>
    %400 = arith.truncf %399 : vector<128x64xf32> to vector<128x64xbf16>
    %cst_145 = arith.constant dense<0.000000e+00> : vector<128x64xf32>
    %401 = tpu.matmul %400, %359, %cst_145 {dimension_numbers = #tpu.dot_dimension_numbers<[1], [0], [0], [1], [0, 0, 1, 1], [], []>} : vector<128x64xbf16>, vector<64x64xbf16>, vector<128x64xf32> -> vector<128x64xf32>
    %402 = vector.extract_strided_slice %0 {offsets = [31, 0], sizes = [1, 64], strides = [1, 1]} : vector<37x64xf32> to vector<1x64xf32>
    %403 = vector.broadcast %402 : vector<1x64xf32> to vector<128x64xf32>
    %404 = arith.addf %401, %403 : vector<128x64xf32>
    %405 = arith.truncf %404 : vector<128x64xf32> to vector<128x64xbf16>
    %cst_146 = arith.constant dense<0.000000e+00> : vector<128x64xf32>
    %406 = tpu.matmul %16, %405, %cst_146 {dimension_numbers = #tpu.dot_dimension_numbers<[0], [0], [1], [1], [0, 1, 1, 1], [], []>} : vector<128x128xbf16>, vector<128x64xbf16>, vector<128x64xf32> -> vector<128x64xf32>
    %407 = vector.extract_strided_slice %0 {offsets = [32, 0], sizes = [1, 64], strides = [1, 1]} : vector<37x64xf32> to vector<1x64xf32>
    %408 = vector.extract_strided_slice %0 {offsets = [33, 0], sizes = [1, 64], strides = [1, 1]} : vector<37x64xf32> to vector<1x64xf32>
    %cst_147 = arith.constant dense<0.000000e+00> : vector<128xf32>
    %409 = vector.multi_reduction <add>, %406, %cst_147 [1] : vector<128x64xf32> to vector<128xf32>
    %410 = vector.shape_cast %409 : vector<128xf32> to vector<128x1xf32>
    %cst_148 = arith.constant 6.400000e+01 : f32
    %411 = vector.broadcast %cst_148 : f32 to vector<128x1xf32>
    %412 = arith.divf %410, %411 : vector<128x1xf32>
    %413 = vector.broadcast %412 : vector<128x1xf32> to vector<128x64xf32>
    %414 = arith.subf %406, %413 : vector<128x64xf32>
    %415 = arith.mulf %414, %414 : vector<128x64xf32>
    %cst_149 = arith.constant dense<0.000000e+00> : vector<128xf32>
    %416 = vector.multi_reduction <add>, %415, %cst_149 [1] : vector<128x64xf32> to vector<128xf32>
    %417 = vector.shape_cast %416 : vector<128xf32> to vector<128x1xf32>
    %cst_150 = arith.constant 6.400000e+01 : f32
    %418 = vector.broadcast %cst_150 : f32 to vector<128x1xf32>
    %419 = arith.divf %417, %418 : vector<128x1xf32>
    %420 = vector.broadcast %412 : vector<128x1xf32> to vector<128x64xf32>
    %421 = arith.subf %406, %420 : vector<128x64xf32>
    %cst_151 = arith.constant 9.99999974E-6 : f32
    %422 = vector.broadcast %cst_151 : f32 to vector<128x1xf32>
    %423 = arith.addf %419, %422 : vector<128x1xf32>
    %424 = math.rsqrt %423 : vector<128x1xf32>
    %425 = vector.broadcast %424 : vector<128x1xf32> to vector<128x64xf32>
    %426 = arith.mulf %421, %425 : vector<128x64xf32>
    %427 = vector.broadcast %407 : vector<1x64xf32> to vector<128x64xf32>
    %428 = arith.mulf %426, %427 : vector<128x64xf32>
    %429 = vector.broadcast %408 : vector<1x64xf32> to vector<128x64xf32>
    %430 = arith.addf %428, %429 : vector<128x64xf32>
    %431 = tpu.concatenate %430, %263 in 1 : vector<128x64xf32>, vector<128x64xf32> -> vector<128x128xf32>
    %432 = arith.truncf %431 : vector<128x128xf32> to vector<128x128xbf16>
    %cst_152 = arith.constant dense<0.000000e+00> : vector<128x64xf32>
    %433 = tpu.matmul %432, %363, %cst_152 {dimension_numbers = #tpu.dot_dimension_numbers<[1], [0], [0], [1], [0, 0, 1, 1], [], []>} : vector<128x128xbf16>, vector<128x64xbf16>, vector<128x64xf32> -> vector<128x64xf32>
    %434 = vector.extract_strided_slice %0 {offsets = [34, 0], sizes = [1, 64], strides = [1, 1]} : vector<37x64xf32> to vector<1x64xf32>
    %435 = vector.broadcast %434 : vector<1x64xf32> to vector<128x64xf32>
    %436 = arith.addf %433, %435 : vector<128x64xf32>
    %cst_153 = arith.constant 0.000000e+00 : f32
    %437 = vector.broadcast %cst_153 : f32 to vector<128x64xf32>
    %438 = arith.maximumf %436, %437 : vector<128x64xf32>
    %439 = arith.truncf %438 : vector<128x64xf32> to vector<128x64xbf16>
    %cst_154 = arith.constant dense<0.000000e+00> : vector<128x64xf32>
    %440 = tpu.matmul %439, %361, %cst_154 {dimension_numbers = #tpu.dot_dimension_numbers<[1], [0], [0], [1], [0, 0, 1, 1], [], []>} : vector<128x64xbf16>, vector<64x64xbf16>, vector<128x64xf32> -> vector<128x64xf32>
    %441 = vector.extract_strided_slice %0 {offsets = [35, 0], sizes = [1, 64], strides = [1, 1]} : vector<37x64xf32> to vector<1x64xf32>
    %442 = vector.broadcast %441 : vector<1x64xf32> to vector<128x64xf32>
    %443 = arith.addf %440, %442 : vector<128x64xf32>
    %c18 = arith.constant 18 : index
    %c0_155 = arith.constant 0 : index
    %c0_156 = arith.constant 0 : index
    %444 = vector.load %arg6[%c18, %c0_155, %c0_156] : memref<20x64x64xbf16, #tpu.memory_space<vmem>>, vector<1x64x64xbf16>
    %445 = vector.shape_cast %444 : vector<1x64x64xbf16> to vector<64x64xbf16>
    %446 = arith.truncf %443 : vector<128x64xf32> to vector<128x64xbf16>
    %cst_157 = arith.constant dense<0.000000e+00> : vector<128x64xf32>
    %447 = tpu.matmul %446, %445, %cst_157 {dimension_numbers = #tpu.dot_dimension_numbers<[1], [0], [0], [1], [0, 0, 1, 1], [], []>} : vector<128x64xbf16>, vector<64x64xbf16>, vector<128x64xf32> -> vector<128x64xf32>
    %448 = vector.extract_strided_slice %0 {offsets = [36, 0], sizes = [1, 64], strides = [1, 1]} : vector<37x64xf32> to vector<1x64xf32>
    %449 = vector.broadcast %448 : vector<1x64xf32> to vector<128x64xf32>
    %450 = arith.addf %447, %449 : vector<128x64xf32>
    %451 = math.tanh %450 : vector<128x64xf32>
    %c19 = arith.constant 19 : index
    %c0_158 = arith.constant 0 : index
    %c0_159 = arith.constant 0 : index
    %452 = vector.load %arg6[%c19, %c0_158, %c0_159] : memref<20x64x64xbf16, #tpu.memory_space<vmem>>, vector<1x64x64xbf16>
    %453 = vector.shape_cast %452 : vector<1x64x64xbf16> to vector<64x64xbf16>
    %454 = arith.truncf %451 : vector<128x64xf32> to vector<128x64xbf16>
    %cst_160 = arith.constant dense<0.000000e+00> : vector<128x64xf32>
    %455 = tpu.matmul %454, %453, %cst_160 {dimension_numbers = #tpu.dot_dimension_numbers<[1], [0], [0], [1], [0, 0, 1, 1], [], []>} : vector<128x64xbf16>, vector<64x64xbf16>, vector<128x64xf32> -> vector<128x64xf32>
    %456 = math.tanh %455 : vector<128x64xf32>
    %457 = tpu.iota {dimensions = array<i32: 0>} : vector<128x1xi32>
    %c16_i32 = arith.constant 16 : i32
    %458 = vector.broadcast %c16_i32 : i32 to vector<128x1xi32>
    %459 = arith.cmpi slt, %457, %458 : vector<128x1xi32>
    %cst_161 = arith.constant 1.000000e+00 : f32
    %cst_162 = arith.constant 0.000000e+00 : f32
    %460 = vector.broadcast %cst_161 : f32 to vector<128x1xf32>
    %461 = vector.broadcast %cst_162 : f32 to vector<128x1xf32>
    %462 = arith.select %459, %460, %461 : vector<128x1xi1>, vector<128x1xf32>
    %463 = vector.broadcast %462 : vector<128x1xf32> to vector<128x64xf32>
    %464 = arith.mulf %456, %463 : vector<128x64xf32>
    %cst_163 = arith.constant dense<0.000000e+00> : vector<128xf32>
    %465 = vector.multi_reduction <add>, %464, %cst_163 [1] : vector<128x64xf32> to vector<128xf32>
    %466 = vector.shape_cast %465 : vector<128xf32> to vector<128x1xf32>
    %cst_164 = arith.constant dense<0.000000e+00> : vector<1xf32>
    %467 = vector.multi_reduction <add>, %466, %cst_164 [0] : vector<128x1xf32> to vector<1xf32>
    %468 = vector.shape_cast %467 : vector<1xf32> to vector<1x1xf32>
    %cst_165 = arith.constant 6.250000e-02 : f32
    %469 = vector.broadcast %cst_165 : f32 to vector<1x1xf32>
    %470 = arith.mulf %468, %469 : vector<1x1xf32>
    %c0_166 = arith.constant 0 : index
    %c0_167 = arith.constant 0 : index
    %471 = vector.load %arg9[%c0_166, %c0_167] : memref<1x1xf32, #tpu.memory_space<vmem>>, vector<1x1xf32>
    tpu.vector_store %arg9[%c0_166, %c0_167], %470 {strides = array<i32>} : memref<1x1xf32, #tpu.memory_space<vmem>>, vector<1x1xf32>,
    return
  }
}

</mosaic_0001>

<llo_original>
// kernel: value_net_forward.1
$region0: #{value_net_forward.1}
  #allocation0 [shape = 'u32[]', space=smem, size = 0x4, offset = 0x4, fixed_abs, tag = 'smem constant byte address 0x4 - core index']
  #allocation1 [shape = 'u32[72,128]{1,0:T(1,128)}', space=vmem, size = 0x9000, scoped, tag = 'internal scratch']
  %s0 = inlined_call_operand.vmem [shape: f32[128,4], index: 0, kind: input, shape index: {}]
  %s1 = inlined_call_operand.vmem [shape: f32[128,8], index: 1, kind: input, shape index: {}]
  %s2 = inlined_call_operand.vmem [shape: s32[128,1], index: 2, kind: input, shape index: {}]
  %s3 = inlined_call_operand.vmem [shape: s32[128,1], index: 3, kind: input, shape index: {}]
  %s4 = inlined_call_operand.vmem [shape: f32[4,64], index: 4, kind: input, shape index: {}]
  %s5 = inlined_call_operand.vmem [shape: f32[8,64], index: 5, kind: input, shape index: {}]
  %s6 = inlined_call_operand.vmem [shape: bf16[20,64,64], index: 6, kind: input, shape index: {}]
  %s7 = inlined_call_operand.vmem [shape: bf16[4,128,64], index: 7, kind: input, shape index: {}]
  %s8 = inlined_call_operand.vmem [shape: f32[37,64], index: 8, kind: input, shape index: {}]
  %s9 = inlined_call_operand.hbm [shape: f32[1,1], index: 9, kind: output, shape index: {}]
  %s10 = sld [smem:[#allocation0]]
  $region46: #{value_net_forward.1} parent=0
    _
  %s12 = ssub.s32 1, %s10
  %s13 = scalar_select 0, %s12, %s10
  $region1: #{value_net_forward.1} parent=0
    #allocation2 [shape = 'u8[512]{0}', space=vmem, size = 0x400, scoped, tag = 'output window, operand 0, single buffered']
    #allocation3 [shape = 's32[1]{0}', space=sflag, size = 0x4, scoped, tag = 'scoped memory for value_net_forward.1']
    %14 = vsyncpa [#allocation3], 0
    // Predicated region
    $region2: #{value_net_forward.1} parent=1 // pred_check
      _
    $region3: #{value_net_forward.1} parent=1 // pred_check_branch
      %16 = sbr.rel (0) target = $region5
    $region4: #{value_net_forward.1} parent=1 // pred_region
      _
    $region5: #{value_net_forward.1} parent=1 // pred_fallthru
      _
    // Predicated region
    $region6: #{value_net_forward.1} parent=1 // pred_check
      _
    $region7: #{value_net_forward.1} parent=1 // pred_check_branch
      %18 = sbr.rel (0) target = $region9
    $region8: #{value_net_forward.1} parent=1 // pred_region
      _
    $region9: #{value_net_forward.1} parent=1 // pred_fallthru
      _
    // Predicated region
    $region10: #{value_net_forward.1} parent=1 // pred_check
      _
    $region11: #{value_net_forward.1} parent=1 // pred_check_branch
      %20 = sbr.rel (0) target = $region13
    $region12: #{value_net_forward.1} parent=1 // pred_region
      _
    $region13: #{value_net_forward.1} parent=1 // pred_fallthru
      _
    // Predicated region
    $region14: #{value_net_forward.1} parent=1 // pred_check
      _
    $region15: #{value_net_forward.1} parent=1 // pred_check_branch
      %22 = sbr.rel (0) target = $region17
    $region16: #{value_net_forward.1} parent=1 // pred_region
      _
    $region17: #{value_net_forward.1} parent=1 // pred_fallthru
      _
    // Predicated region
    $region18: #{value_net_forward.1} parent=1 // pred_check
      _
    $region19: #{value_net_forward.1} parent=1 // pred_check_branch
      %24 = sbr.rel (0) target = $region21
    $region20: #{value_net_forward.1} parent=1 // pred_region
      _
    $region21: #{value_net_forward.1} parent=1 // pred_fallthru
      _
    // Predicated region
    $region22: #{value_net_forward.1} parent=1 // pred_check
      _
    $region23: #{value_net_forward.1} parent=1 // pred_check_branch
      %26 = sbr.rel (0) target = $region25
    $region24: #{value_net_forward.1} parent=1 // pred_region
      _
    $region25: #{value_net_forward.1} parent=1 // pred_fallthru
      _
    // Predicated region
    $region26: #{value_net_forward.1} parent=1 // pred_check
      _
    $region27: #{value_net_forward.1} parent=1 // pred_check_branch
      %28 = sbr.rel (0) target = $region29
    $region28: #{value_net_forward.1} parent=1 // pred_region
      _
    $region29: #{value_net_forward.1} parent=1 // pred_fallthru
      _
    // Predicated region
    $region30: #{value_net_forward.1} parent=1 // pred_check
      _
    $region31: #{value_net_forward.1} parent=1 // pred_check_branch
      %30 = sbr.rel (0) target = $region33
    $region32: #{value_net_forward.1} parent=1 // pred_region
      _
    $region33: #{value_net_forward.1} parent=1 // pred_fallthru
      _
    // Predicated region
    $region34: #{value_net_forward.1} parent=1 // pred_check
      _
    $region35: #{value_net_forward.1} parent=1 // pred_check_branch
      %32 = sbr.rel (0) target = $region37
    $region36: #{value_net_forward.1} parent=1 // pred_region
      _
    $region37: #{value_net_forward.1} parent=1 // pred_fallthru
      _
    %v34 = vld [vmem:[%s8] sm:$0xff]
    %v35 = vld [vmem:[%s8 + $0x8] sm:$0xff]
    %v36 = vld [vmem:[%s8 + $0x10] sm:$0xff]
    %v37 = vld [vmem:[%s8 + $0x18] sm:$0xff]
    %v38 = vld [vmem:[%s8 + $0x20] sm:$0x1f]
    %v39 = vld [vmem:[%s2] sm:$0xff]
    %v40 = vld [vmem:[%s2 + $0x8] sm:$0xff]
    %v41 = vld [vmem:[%s2 + $0x10] sm:$0xff]
    %v42 = vld [vmem:[%s2 + $0x18] sm:$0xff]
    %v43 = vld [vmem:[%s2 + $0x20] sm:$0xff]
    %v44 = vld [vmem:[%s2 + $0x28] sm:$0xff]
    %v45 = vld [vmem:[%s2 + $0x30] sm:$0xff]
    %v46 = vld [vmem:[%s2 + $0x38] sm:$0xff]
    %v47 = vld [vmem:[%s2 + $0x40] sm:$0xff]
    %v48 = vld [vmem:[%s2 + $0x48] sm:$0xff]
    %v49 = vld [vmem:[%s2 + $0x50] sm:$0xff]
    %v50 = vld [vmem:[%s2 + $0x58] sm:$0xff]
    %v51 = vld [vmem:[%s2 + $0x60] sm:$0xff]
    %v52 = vld [vmem:[%s2 + $0x68] sm:$0xff]
    %v53 = vld [vmem:[%s2 + $0x70] sm:$0xff]
    %v54 = vld [vmem:[%s2 + $0x78] sm:$0xff]
    %v55 = vlaneseq
    %v56 = vand.u32 %v55, 127
    %57 = vset.pattern.permute.xlu0 0
    %58 = vperm.xlu0 %57, %v39
    %v59 = vpop.permute.xlu0 %58
    %60 = vset.pattern.permute.xlu0 0
    %61 = vperm.xlu0 %60, %v40
    %v62 = vpop.permute.xlu0 %61
    %63 = vset.pattern.permute.xlu0 0
    %64 = vperm.xlu0 %63, %v41
    %v65 = vpop.permute.xlu0 %64
    %66 = vset.pattern.permute.xlu0 0
    %67 = vperm.xlu0 %66, %v42
    %v68 = vpop.permute.xlu0 %67
    %69 = vset.pattern.permute.xlu0 0
    %70 = vperm.xlu0 %69, %v43
    %v71 = vpop.permute.xlu0 %70
    %72 = vset.pattern.permute.xlu0 0
    %73 = vperm.xlu0 %72, %v44
    %v74 = vpop.permute.xlu0 %73
    %75 = vset.pattern.permute.xlu0 0
    %76 = vperm.xlu0 %75, %v45
    %v77 = vpop.permute.xlu0 %76
    %78 = vset.pattern.permute.xlu0 0
    %79 = vperm.xlu0 %78, %v46
    %v80 = vpop.permute.xlu0 %79
    %81 = vset.pattern.permute.xlu0 0
    %82 = vperm.xlu0 %81, %v47
    %v83 = vpop.permute.xlu0 %82
    %84 = vset.pattern.permute.xlu0 0
    %85 = vperm.xlu0 %84, %v48
    %v86 = vpop.permute.xlu0 %85
    %87 = vset.pattern.permute.xlu0 0
    %88 = vperm.xlu0 %87, %v49
    %v89 = vpop.permute.xlu0 %88
    %90 = vset.pattern.permute.xlu0 0
    %91 = vperm.xlu0 %90, %v50
    %v92 = vpop.permute.xlu0 %91
    %93 = vset.pattern.permute.xlu0 0
    %94 = vperm.xlu0 %93, %v51
    %v95 = vpop.permute.xlu0 %94
    %96 = vset.pattern.permute.xlu0 0
    %97 = vperm.xlu0 %96, %v52
    %v98 = vpop.permute.xlu0 %97
    %99 = vset.pattern.permute.xlu0 0
    %100 = vperm.xlu0 %99, %v53
    %v101 = vpop.permute.xlu0 %100
    %102 = vset.pattern.permute.xlu0 0
    %103 = vperm.xlu0 %102, %v54
    %v104 = vpop.permute.xlu0 %103
    %vm105 = vcmp.eq.s32.totalorder %v59, %v56
    %vm106 = vcmp.eq.s32.totalorder %v62, %v56
    %vm107 = vcmp.eq.s32.totalorder %v65, %v56
    %vm108 = vcmp.eq.s32.totalorder %v68, %v56
    %vm109 = vcmp.eq.s32.totalorder %v71, %v56
    %vm110 = vcmp.eq.s32.totalorder %v74, %v56
    %vm111 = vcmp.eq.s32.totalorder %v77, %v56
    %vm112 = vcmp.eq.s32.totalorder %v80, %v56
    %vm113 = vcmp.eq.s32.totalorder %v83, %v56
    %vm114 = vcmp.eq.s32.totalorder %v86, %v56
    %vm115 = vcmp.eq.s32.totalorder %v89, %v56
    %vm116 = vcmp.eq.s32.totalorder %v92, %v56
    %vm117 = vcmp.eq.s32.totalorder %v95, %v56
    %vm118 = vcmp.eq.s32.totalorder %v98, %v56
    %vm119 = vcmp.eq.s32.totalorder %v101, %v56
    %vm120 = vcmp.eq.s32.totalorder %v104, %v56
    %v121 = vsel %vm105, 1.0, 0.0
    %v122 = vsel %vm106, 1.0, 0.0
    %v123 = vsel %vm107, 1.0, 0.0
    %v124 = vsel %vm108, 1.0, 0.0
    %v125 = vsel %vm109, 1.0, 0.0
    %v126 = vsel %vm110, 1.0, 0.0
    %v127 = vsel %vm111, 1.0, 0.0
    %v128 = vsel %vm112, 1.0, 0.0
    %v129 = vsel %vm113, 1.0, 0.0
    %v130 = vsel %vm114, 1.0, 0.0
    %v131 = vsel %vm115, 1.0, 0.0
    %v132 = vsel %vm116, 1.0, 0.0
    %v133 = vsel %vm117, 1.0, 0.0
    %v134 = vsel %vm118, 1.0, 0.0
    %v135 = vsel %vm119, 1.0, 0.0
    %v136 = vsel %vm120, 1.0, 0.0
    %v137 = vpack.c.bf16 %v121, %v121
    %v138 = vpack.c.bf16 %v122, %v122
    %v139 = vpack.c.bf16 %v123, %v123
    %v140 = vpack.c.bf16 %v124, %v124
    %v141 = vpack.c.bf16 %v125, %v125
    %v142 = vpack.c.bf16 %v126, %v126
    %v143 = vpack.c.bf16 %v127, %v127
    %v144 = vpack.c.bf16 %v128, %v128
    %v145 = vpack.c.bf16 %v129, %v129
    %v146 = vpack.c.bf16 %v130, %v130
    %v147 = vpack.c.bf16 %v131, %v131
    %v148 = vpack.c.bf16 %v132, %v132
    %v149 = vpack.c.bf16 %v133, %v133
    %v150 = vpack.c.bf16 %v134, %v134
    %v151 = vpack.c.bf16 %v135, %v135
    %v152 = vpack.c.bf16 %v136, %v136
    %v153 = vld [vmem:[%s3] sm:$0xff]
    %v154 = vld [vmem:[%s3 + $0x8] sm:$0xff]
    %v155 = vld [vmem:[%s3 + $0x10] sm:$0xff]
    %v156 = vld [vmem:[%s3 + $0x18] sm:$0xff]
    %v157 = vld [vmem:[%s3 + $0x20] sm:$0xff]
    %v158 = vld [vmem:[%s3 + $0x28] sm:$0xff]
    %v159 = vld [vmem:[%s3 + $0x30] sm:$0xff]
    %v160 = vld [vmem:[%s3 + $0x38] sm:$0xff]
    %v161 = vld [vmem:[%s3 + $0x40] sm:$0xff]
    %v162 = vld [vmem:[%s3 + $0x48] sm:$0xff]
    %v163 = vld [vmem:[%s3 + $0x50] sm:$0xff]
    %v164 = vld [vmem:[%s3 + $0x58] sm:$0xff]
    %v165 = vld [vmem:[%s3 + $0x60] sm:$0xff]
    %v166 = vld [vmem:[%s3 + $0x68] sm:$0xff]
    %v167 = vld [vmem:[%s3 + $0x70] sm:$0xff]
    %v168 = vld [vmem:[%s3 + $0x78] sm:$0xff]
    %169 = vset.pattern.permute.xlu0 0
    %170 = vperm.xlu0 %169, %v153
    %v171 = vpop.permute.xlu0 %170
    %172 = vset.pattern.permute.xlu0 0
    %173 = vperm.xlu0 %172, %v154
    %v174 = vpop.permute.xlu0 %173
    %175 = vset.pattern.permute.xlu0 0
    %176 = vperm.xlu0 %175, %v155
    %v177 = vpop.permute.xlu0 %176
    %178 = vset.pattern.permute.xlu0 0
    %179 = vperm.xlu0 %178, %v156
    %v180 = vpop.permute.xlu0 %179
    %181 = vset.pattern.permute.xlu0 0
    %182 = vperm.xlu0 %181, %v157
    %v183 = vpop.permute.xlu0 %182
    %184 = vset.pattern.permute.xlu0 0
    %185 = vperm.xlu0 %184, %v158
    %v186 = vpop.permute.xlu0 %185
    %187 = vset.pattern.permute.xlu0 0
    %188 = vperm.xlu0 %187, %v159
    %v189 = vpop.permute.xlu0 %188
    %190 = vset.pattern.permute.xlu0 0
    %191 = vperm.xlu0 %190, %v160
    %v192 = vpop.permute.xlu0 %191
    %193 = vset.pattern.permute.xlu0 0
    %194 = vperm.xlu0 %193, %v161
    %v195 = vpop.permute.xlu0 %194
    %196 = vset.pattern.permute.xlu0 0
    %197 = vperm.xlu0 %196, %v162
    %v198 = vpop.permute.xlu0 %197
    %199 = vset.pattern.permute.xlu0 0
    %200 = vperm.xlu0 %199, %v163
    %v201 = vpop.permute.xlu0 %200
    %202 = vset.pattern.permute.xlu0 0
    %203 = vperm.xlu0 %202, %v164
    %v204 = vpop.permute.xlu0 %203
    %205 = vset.pattern.permute.xlu0 0
    %206 = vperm.xlu0 %205, %v165
    %v207 = vpop.permute.xlu0 %206
    %208 = vset.pattern.permute.xlu0 0
    %209 = vperm.xlu0 %208, %v166
    %v210 = vpop.permute.xlu0 %209
    %211 = vset.pattern.permute.xlu0 0
    %212 = vperm.xlu0 %211, %v167
    %v213 = vpop.permute.xlu0 %212
    %214 = vset.pattern.permute.xlu0 0
    %215 = vperm.xlu0 %214, %v168
    %v216 = vpop.permute.xlu0 %215
    %vm217 = vcmp.eq.s32.totalorder %v171, %v56
    %vm218 = vcmp.eq.s32.totalorder %v174, %v56
    %vm219 = vcmp.eq.s32.totalorder %v177, %v56
    %vm220 = vcmp.eq.s32.totalorder %v180, %v56
    %vm221 = vcmp.eq.s32.totalorder %v183, %v56
    %vm222 = vcmp.eq.s32.totalorder %v186, %v56
    %vm223 = vcmp.eq.s32.totalorder %v189, %v56
    %vm224 = vcmp.eq.s32.totalorder %v192, %v56
    %vm225 = vcmp.eq.s32.totalorder %v195, %v56
    %vm226 = vcmp.eq.s32.totalorder %v198, %v56
    %vm227 = vcmp.eq.s32.totalorder %v201, %v56
    %vm228 = vcmp.eq.s32.totalorder %v204, %v56
    %vm229 = vcmp.eq.s32.totalorder %v207, %v56
    %vm230 = vcmp.eq.s32.totalorder %v210, %v56
    %vm231 = vcmp.eq.s32.totalorder %v213, %v56
    %vm232 = vcmp.eq.s32.totalorder %v216, %v56
    %v233 = vsel %vm217, 1.0, 0.0
    %v234 = vsel %vm218, 1.0, 0.0
    %v235 = vsel %vm219, 1.0, 0.0
    %v236 = vsel %vm220, 1.0, 0.0
    %v237 = vsel %vm221, 1.0, 0.0
    %v238 = vsel %vm222, 1.0, 0.0
    %v239 = vsel %vm223, 1.0, 0.0
    %v240 = vsel %vm224, 1.0, 0.0
    %v241 = vsel %vm225, 1.0, 0.0
    %v242 = vsel %vm226, 1.0, 0.0
    %v243 = vsel %vm227, 1.0, 0.0
    %v244 = vsel %vm228, 1.0, 0.0
    %v245 = vsel %vm229, 1.0, 0.0
    %v246 = vsel %vm230, 1.0, 0.0
    %v247 = vsel %vm231, 1.0, 0.0
    %v248 = vsel %vm232, 1.0, 0.0
    %v249 = vpack.c.bf16 %v233, %v233
    %v250 = vpack.c.bf16 %v234, %v234
    %v251 = vpack.c.bf16 %v235, %v235
    %v252 = vpack.c.bf16 %v236, %v236
    %v253 = vpack.c.bf16 %v237, %v237
    %v254 = vpack.c.bf16 %v238, %v238
    %v255 = vpack.c.bf16 %v239, %v239
    %v256 = vpack.c.bf16 %v240, %v240
    %v257 = vpack.c.bf16 %v241, %v241
    %v258 = vpack.c.bf16 %v242, %v242
    %v259 = vpack.c.bf16 %v243, %v243
    %v260 = vpack.c.bf16 %v244, %v244
    %v261 = vpack.c.bf16 %v245, %v245
    %v262 = vpack.c.bf16 %v246, %v246
    %v263 = vpack.c.bf16 %v247, %v247
    %v264 = vpack.c.bf16 %v248, %v248
    %v281 = vunpack.c.l.b16 %v137
    %v282 = vunpack.c.l.b16 %v138
    %v283 = vunpack.c.l.b16 %v139
    %v284 = vunpack.c.l.b16 %v140
    %v285 = vunpack.c.l.b16 %v141
    %v286 = vunpack.c.l.b16 %v142
    %v287 = vunpack.c.l.b16 %v143
    %v288 = vunpack.c.l.b16 %v144
    %v289 = vunpack.c.l.b16 %v145
    %v290 = vunpack.c.l.b16 %v146
    %v291 = vunpack.c.l.b16 %v147
    %v292 = vunpack.c.l.b16 %v148
    %v293 = vunpack.c.l.b16 %v149
    %v294 = vunpack.c.l.b16 %v150
    %v295 = vunpack.c.l.b16 %v151
    %v296 = vunpack.c.l.b16 %v152
    %v297 = vpack.c.b16 %v282, %v281
    %v298 = vpack.c.b16 %v284, %v283
    %v299 = vpack.c.b16 %v286, %v285
    %v300 = vpack.c.b16 %v288, %v287
    %v301 = vpack.c.b16 %v290, %v289
    %v302 = vpack.c.b16 %v292, %v291
    %v303 = vpack.c.b16 %v294, %v293
    %v304 = vpack.c.b16 %v296, %v295
    %v329 = vunpack.c.l.b16 %v249
    %v330 = vunpack.c.l.b16 %v250
    %v331 = vunpack.c.l.b16 %v251
    %v332 = vunpack.c.l.b16 %v252
    %v333 = vunpack.c.l.b16 %v253
    %v334 = vunpack.c.l.b16 %v254
    %v335 = vunpack.c.l.b16 %v255
    %v336 = vunpack.c.l.b16 %v256
    %v337 = vunpack.c.l.b16 %v257
    %v338 = vunpack.c.l.b16 %v258
    %v339 = vunpack.c.l.b16 %v259
    %v340 = vunpack.c.l.b16 %v260
    %v341 = vunpack.c.l.b16 %v261
    %v342 = vunpack.c.l.b16 %v262
    %v343 = vunpack.c.l.b16 %v263
    %v344 = vunpack.c.l.b16 %v264
    %v345 = vpack.c.b16 %v330, %v329
    %v346 = vpack.c.b16 %v332, %v331
    %v347 = vpack.c.b16 %v334, %v333
    %v348 = vpack.c.b16 %v336, %v335
    %v349 = vpack.c.b16 %v338, %v337
    %v350 = vpack.c.b16 %v340, %v339
    %v351 = vpack.c.b16 %v342, %v341
    %v352 = vpack.c.b16 %v344, %v343
    %v361 = vld [vmem:[%s0] sm:$0xff]
    %v362 = vld [vmem:[%s0 + $0x8] sm:$0xff]
    %v363 = vld [vmem:[%s0 + $0x10] sm:$0xff]
    %v364 = vld [vmem:[%s0 + $0x18] sm:$0xff]
    %v365 = vld [vmem:[%s0 + $0x20] sm:$0xff]
    %v366 = vld [vmem:[%s0 + $0x28] sm:$0xff]
    %v367 = vld [vmem:[%s0 + $0x30] sm:$0xff]
    %v368 = vld [vmem:[%s0 + $0x38] sm:$0xff]
    %v369 = vld [vmem:[%s0 + $0x40] sm:$0xff]
    %v370 = vld [vmem:[%s0 + $0x48] sm:$0xff]
    %v371 = vld [vmem:[%s0 + $0x50] sm:$0xff]
    %v372 = vld [vmem:[%s0 + $0x58] sm:$0xff]
    %v373 = vld [vmem:[%s0 + $0x60] sm:$0xff]
    %v374 = vld [vmem:[%s0 + $0x68] sm:$0xff]
    %v375 = vld [vmem:[%s0 + $0x70] sm:$0xff]
    %v376 = vld [vmem:[%s0 + $0x78] sm:$0xff]
    %vm377 = vcmask 31744
    %v378 = vsel %vm377, %v361, 0.0
    %379 = vadd.xlane.f32.xlu0 %v378
    %v380 = vpop.xlane.xlu0 %379
    %v381 = vsel %vm377, %v362, 0.0
    %382 = vadd.xlane.f32.xlu0 %v381
    %v383 = vpop.xlane.xlu0 %382
    %v384 = vsel %vm377, %v363, 0.0
    %385 = vadd.xlane.f32.xlu0 %v384
    %v386 = vpop.xlane.xlu0 %385
    %v387 = vsel %vm377, %v364, 0.0
    %388 = vadd.xlane.f32.xlu0 %v387
    %v389 = vpop.xlane.xlu0 %388
    %v390 = vsel %vm377, %v365, 0.0
    %391 = vadd.xlane.f32.xlu0 %v390
    %v392 = vpop.xlane.xlu0 %391
    %v393 = vsel %vm377, %v366, 0.0
    %394 = vadd.xlane.f32.xlu0 %v393
    %v395 = vpop.xlane.xlu0 %394
    %v396 = vsel %vm377, %v367, 0.0
    %397 = vadd.xlane.f32.xlu0 %v396
    %v398 = vpop.xlane.xlu0 %397
    %v399 = vsel %vm377, %v368, 0.0
    %400 = vadd.xlane.f32.xlu0 %v399
    %v401 = vpop.xlane.xlu0 %400
    %v402 = vsel %vm377, %v369, 0.0
    %403 = vadd.xlane.f32.xlu0 %v402
    %v404 = vpop.xlane.xlu0 %403
    %v405 = vsel %vm377, %v370, 0.0
    %406 = vadd.xlane.f32.xlu0 %v405
    %v407 = vpop.xlane.xlu0 %406
    %v408 = vsel %vm377, %v371, 0.0
    %409 = vadd.xlane.f32.xlu0 %v408
    %v410 = vpop.xlane.xlu0 %409
    %v411 = vsel %vm377, %v372, 0.0
    %412 = vadd.xlane.f32.xlu0 %v411
    %v413 = vpop.xlane.xlu0 %412
    %v414 = vsel %vm377, %v373, 0.0
    %415 = vadd.xlane.f32.xlu0 %v414
    %v416 = vpop.xlane.xlu0 %415
    %v417 = vsel %vm377, %v374, 0.0
    %418 = vadd.xlane.f32.xlu0 %v417
    %v419 = vpop.xlane.xlu0 %418
    %v420 = vsel %vm377, %v375, 0.0
    %421 = vadd.xlane.f32.xlu0 %v420
    %v422 = vpop.xlane.xlu0 %421
    %v423 = vsel %vm377, %v376, 0.0
    %424 = vadd.xlane.f32.xlu0 %v423
    %v425 = vpop.xlane.xlu0 %424
    %v426 = vrcp.pop 4.0
    %v427 = vmul.f32 4.0, %v426
    %v428 = vsub.f32 1.0, %v427
    %v429 = vmul.f32 %v426, %v428
    %v430 = vadd.f32 %v426, %v429
    %vm431 = vweird.f32 %v426
    %v432 = vsel %vm431, %v426, %v430
    %v433 = vmul.f32 %v380, %v432
    %v434 = vmul.f32 %v383, %v432
    %v435 = vmul.f32 %v386, %v432
    %v436 = vmul.f32 %v389, %v432
    %v437 = vmul.f32 %v392, %v432
    %v438 = vmul.f32 %v395, %v432
    %v439 = vmul.f32 %v398, %v432
    %v440 = vmul.f32 %v401, %v432
    %v441 = vmul.f32 %v404, %v432
    %v442 = vmul.f32 %v407, %v432
    %v443 = vmul.f32 %v410, %v432
    %v444 = vmul.f32 %v413, %v432
    %v445 = vmul.f32 %v416, %v432
    %v446 = vmul.f32 %v419, %v432
    %v447 = vmul.f32 %v422, %v432
    %v448 = vmul.f32 %v425, %v432
    %v449 = vsub.f32 %v361, %v433
    %v450 = vsub.f32 %v362, %v434
    %v451 = vsub.f32 %v363, %v435
    %v452 = vsub.f32 %v364, %v436
    %v453 = vsub.f32 %v365, %v437
    %v454 = vsub.f32 %v366, %v438
    %v455 = vsub.f32 %v367, %v439
    %v456 = vsub.f32 %v368, %v440
    %v457 = vsub.f32 %v369, %v441
    %v458 = vsub.f32 %v370, %v442
    %v459 = vsub.f32 %v371, %v443
    %v460 = vsub.f32 %v372, %v444
    %v461 = vsub.f32 %v373, %v445
    %v462 = vsub.f32 %v374, %v446
    %v463 = vsub.f32 %v375, %v447
    %v464 = vsub.f32 %v376, %v448
    %v465 = vmul.f32 %v449, %v449
    %v466 = vmul.f32 %v450, %v450
    %v467 = vmul.f32 %v451, %v451
    %v468 = vmul.f32 %v452, %v452
    %v469 = vmul.f32 %v453, %v453
    %v470 = vmul.f32 %v454, %v454
    %v471 = vmul.f32 %v455, %v455
    %v472 = vmul.f32 %v456, %v456
    %v473 = vmul.f32 %v457, %v457
    %v474 = vmul.f32 %v458, %v458
    %v475 = vmul.f32 %v459, %v459
    %v476 = vmul.f32 %v460, %v460
    %v477 = vmul.f32 %v461, %v461
    %v478 = vmul.f32 %v462, %v462
    %v479 = vmul.f32 %v463, %v463
    %v480 = vmul.f32 %v464, %v464
    %v481 = vsel %vm377, %v465, 0.0
    %482 = vadd.xlane.f32.xlu0 %v481
    %v483 = vpop.xlane.xlu0 %482
    %v484 = vsel %vm377, %v466, 0.0
    %485 = vadd.xlane.f32.xlu0 %v484
    %v486 = vpop.xlane.xlu0 %485
    %v487 = vsel %vm377, %v467, 0.0
    %488 = vadd.xlane.f32.xlu0 %v487
    %v489 = vpop.xlane.xlu0 %488
    %v490 = vsel %vm377, %v468, 0.0
    %491 = vadd.xlane.f32.xlu0 %v490
    %v492 = vpop.xlane.xlu0 %491
    %v493 = vsel %vm377, %v469, 0.0
    %494 = vadd.xlane.f32.xlu0 %v493
    %v495 = vpop.xlane.xlu0 %494
    %v496 = vsel %vm377, %v470, 0.0
    %497 = vadd.xlane.f32.xlu0 %v496
    %v498 = vpop.xlane.xlu0 %497
    %v499 = vsel %vm377, %v471, 0.0
    %500 = vadd.xlane.f32.xlu0 %v499
    %v501 = vpop.xlane.xlu0 %500
    %v502 = vsel %vm377, %v472, 0.0
    %503 = vadd.xlane.f32.xlu0 %v502
    %v504 = vpop.xlane.xlu0 %503
    %v505 = vsel %vm377, %v473, 0.0
    %506 = vadd.xlane.f32.xlu0 %v505
    %v507 = vpop.xlane.xlu0 %506
    %v508 = vsel %vm377, %v474, 0.0
    %509 = vadd.xlane.f32.xlu0 %v508
    %v510 = vpop.xlane.xlu0 %509
    %v511 = vsel %vm377, %v475, 0.0
    %512 = vadd.xlane.f32.xlu0 %v511
    %v513 = vpop.xlane.xlu0 %512
    %v514 = vsel %vm377, %v476, 0.0
    %515 = vadd.xlane.f32.xlu0 %v514
    %v516 = vpop.xlane.xlu0 %515
    %v517 = vsel %vm377, %v477, 0.0
    %518 = vadd.xlane.f32.xlu0 %v517
    %v519 = vpop.xlane.xlu0 %518
    %v520 = vsel %vm377, %v478, 0.0
    %521 = vadd.xlane.f32.xlu0 %v520
    %v522 = vpop.xlane.xlu0 %521
    %v523 = vsel %vm377, %v479, 0.0
    %524 = vadd.xlane.f32.xlu0 %v523
    %v525 = vpop.xlane.xlu0 %524
    %v526 = vsel %vm377, %v480, 0.0
    %527 = vadd.xlane.f32.xlu0 %v526
    %v528 = vpop.xlane.xlu0 %527
    %v529 = vmul.f32 %v483, %v432
    %v530 = vmul.f32 %v486, %v432
    %v531 = vmul.f32 %v489, %v432
    %v532 = vmul.f32 %v492, %v432
    %v533 = vmul.f32 %v495, %v432
    %v534 = vmul.f32 %v498, %v432
    %v535 = vmul.f32 %v501, %v432
    %v536 = vmul.f32 %v504, %v432
    %v537 = vmul.f32 %v507, %v432
    %v538 = vmul.f32 %v510, %v432
    %v539 = vmul.f32 %v513, %v432
    %v540 = vmul.f32 %v516, %v432
    %v541 = vmul.f32 %v519, %v432
    %v542 = vmul.f32 %v522, %v432
    %v543 = vmul.f32 %v525, %v432
    %v544 = vmul.f32 %v528, %v432
    %v545 = vadd.f32 %v529, 1e-05
    %v546 = vadd.f32 %v530, 1e-05
    %v547 = vadd.f32 %v531, 1e-05
    %v548 = vadd.f32 %v532, 1e-05
    %v549 = vadd.f32 %v533, 1e-05
    %v550 = vadd.f32 %v534, 1e-05
    %v551 = vadd.f32 %v535, 1e-05
    %v552 = vadd.f32 %v536, 1e-05
    %v553 = vadd.f32 %v537, 1e-05
    %v554 = vadd.f32 %v538, 1e-05
    %v555 = vadd.f32 %v539, 1e-05
    %v556 = vadd.f32 %v540, 1e-05
    %v557 = vadd.f32 %v541, 1e-05
    %v558 = vadd.f32 %v542, 1e-05
    %v559 = vadd.f32 %v543, 1e-05
    %v560 = vadd.f32 %v544, 1e-05
    %v561 = vrsqrt.pop %v545
    %v562 = vmul.f32 %v561, %v545
    %v563 = vmul.f32 %v562, %v561
    %v564 = vmul.f32 0.5, %v563
    %v565 = vsub.f32 1.5, %v564
    %v566 = vmul.f32 %v561, %v565
    %vm567 = vweird.f32 %v545
    %vm568 = vweird.f32 %v561
    %vm569 = vmor %vm567, %vm568
    %v570 = vsel %vm569, %v561, %v566
    %v571 = vrsqrt.pop %v546
    %v572 = vmul.f32 %v571, %v546
    %v573 = vmul.f32 %v572, %v571
    %v574 = vmul.f32 0.5, %v573
    %v575 = vsub.f32 1.5, %v574
    %v576 = vmul.f32 %v571, %v575
    %vm577 = vweird.f32 %v546
    %vm578 = vweird.f32 %v571
    %vm579 = vmor %vm577, %vm578
    %v580 = vsel %vm579, %v571, %v576
    %v581 = vrsqrt.pop %v547
    %v582 = vmul.f32 %v581, %v547
    %v583 = vmul.f32 %v582, %v581
    %v584 = vmul.f32 0.5, %v583
    %v585 = vsub.f32 1.5, %v584
    %v586 = vmul.f32 %v581, %v585
    %vm587 = vweird.f32 %v547
    %vm588 = vweird.f32 %v581
    %vm589 = vmor %vm587, %vm588
    %v590 = vsel %vm589, %v581, %v586
    %v591 = vrsqrt.pop %v548
    %v592 = vmul.f32 %v591, %v548
    %v593 = vmul.f32 %v592, %v591
    %v594 = vmul.f32 0.5, %v593
    %v595 = vsub.f32 1.5, %v594
    %v596 = vmul.f32 %v591, %v595
    %vm597 = vweird.f32 %v548
    %vm598 = vweird.f32 %v591
    %vm599 = vmor %vm597, %vm598
    %v600 = vsel %vm599, %v591, %v596
    %v601 = vrsqrt.pop %v549
    %v602 = vmul.f32 %v601, %v549
    %v603 = vmul.f32 %v602, %v601
    %v604 = vmul.f32 0.5, %v603
    %v605 = vsub.f32 1.5, %v604
    %v606 = vmul.f32 %v601, %v605
    %vm607 = vweird.f32 %v549
    %vm608 = vweird.f32 %v601
    %vm609 = vmor %vm607, %vm608
    %v610 = vsel %vm609, %v601, %v606
    %v611 = vrsqrt.pop %v550
    %v612 = vmul.f32 %v611, %v550
    %v613 = vmul.f32 %v612, %v611
    %v614 = vmul.f32 0.5, %v613
    %v615 = vsub.f32 1.5, %v614
    %v616 = vmul.f32 %v611, %v615
    %vm617 = vweird.f32 %v550
    %vm618 = vweird.f32 %v611
    %vm619 = vmor %vm617, %vm618
    %v620 = vsel %vm619, %v611, %v616
    %v621 = vrsqrt.pop %v551
    %v622 = vmul.f32 %v621, %v551
    %v623 = vmul.f32 %v622, %v621
    %v624 = vmul.f32 0.5, %v623
    %v625 = vsub.f32 1.5, %v624
    %v626 = vmul.f32 %v621, %v625
    %vm627 = vweird.f32 %v551
    %vm628 = vweird.f32 %v621
    %vm629 = vmor %vm627, %vm628
    %v630 = vsel %vm629, %v621, %v626
    %v631 = vrsqrt.pop %v552
    %v632 = vmul.f32 %v631, %v552
    %v633 = vmul.f32 %v632, %v631
    %v634 = vmul.f32 0.5, %v633
    %v635 = vsub.f32 1.5, %v634
    %v636 = vmul.f32 %v631, %v635
    %vm637 = vweird.f32 %v552
    %vm638 = vweird.f32 %v631
    %vm639 = vmor %vm637, %vm638
    %v640 = vsel %vm639, %v631, %v636
    %v641 = vrsqrt.pop %v553
    %v642 = vmul.f32 %v641, %v553
    %v643 = vmul.f32 %v642, %v641
    %v644 = vmul.f32 0.5, %v643
    %v645 = vsub.f32 1.5, %v644
    %v646 = vmul.f32 %v641, %v645
    %vm647 = vweird.f32 %v553
    %vm648 = vweird.f32 %v641
    %vm649 = vmor %vm647, %vm648
    %v650 = vsel %vm649, %v641, %v646
    %v651 = vrsqrt.pop %v554
    %v652 = vmul.f32 %v651, %v554
    %v653 = vmul.f32 %v652, %v651
    %v654 = vmul.f32 0.5, %v653
    %v655 = vsub.f32 1.5, %v654
    %v656 = vmul.f32 %v651, %v655
    %vm657 = vweird.f32 %v554
    %vm658 = vweird.f32 %v651
    %vm659 = vmor %vm657, %vm658
    %v660 = vsel %vm659, %v651, %v656
    %v661 = vrsqrt.pop %v555
    %v662 = vmul.f32 %v661, %v555
    %v663 = vmul.f32 %v662, %v661
    %v664 = vmul.f32 0.5, %v663
    %v665 = vsub.f32 1.5, %v664
    %v666 = vmul.f32 %v661, %v665
    %vm667 = vweird.f32 %v555
    %vm668 = vweird.f32 %v661
    %vm669 = vmor %vm667, %vm668
    %v670 = vsel %vm669, %v661, %v666
    %v671 = vrsqrt.pop %v556
    %v672 = vmul.f32 %v671, %v556
    %v673 = vmul.f32 %v672, %v671
    %v674 = vmul.f32 0.5, %v673
    %v675 = vsub.f32 1.5, %v674
    %v676 = vmul.f32 %v671, %v675
    %vm677 = vweird.f32 %v556
    %vm678 = vweird.f32 %v671
    %vm679 = vmor %vm677, %vm678
    %v680 = vsel %vm679, %v671, %v676
    %v681 = vrsqrt.pop %v557
    %v682 = vmul.f32 %v681, %v557
    %v683 = vmul.f32 %v682, %v681
    %v684 = vmul.f32 0.5, %v683
    %v685 = vsub.f32 1.5, %v684
    %v686 = vmul.f32 %v681, %v685
    %vm687 = vweird.f32 %v557
    %vm688 = vweird.f32 %v681
    %vm689 = vmor %vm687, %vm688
    %v690 = vsel %vm689, %v681, %v686
    %v691 = vrsqrt.pop %v558
    %v692 = vmul.f32 %v691, %v558
    %v693 = vmul.f32 %v692, %v691
    %v694 = vmul.f32 0.5, %v693
    %v695 = vsub.f32 1.5, %v694
    %v696 = vmul.f32 %v691, %v695
    %vm697 = vweird.f32 %v558
    %vm698 = vweird.f32 %v691
    %vm699 = vmor %vm697, %vm698
    %v700 = vsel %vm699, %v691, %v696
    %v701 = vrsqrt.pop %v559
    %v702 = vmul.f32 %v701, %v559
    %v703 = vmul.f32 %v702, %v701
    %v704 = vmul.f32 0.5, %v703
    %v705 = vsub.f32 1.5, %v704
    %v706 = vmul.f32 %v701, %v705
    %vm707 = vweird.f32 %v559
    %vm708 = vweird.f32 %v701
    %vm709 = vmor %vm707, %vm708
    %v710 = vsel %vm709, %v701, %v706
    %v711 = vrsqrt.pop %v560
    %v712 = vmul.f32 %v711, %v560
    %v713 = vmul.f32 %v712, %v711
    %v714 = vmul.f32 0.5, %v713
    %v715 = vsub.f32 1.5, %v714
    %v716 = vmul.f32 %v711, %v715
    %vm717 = vweird.f32 %v560
    %vm718 = vweird.f32 %v711
    %vm719 = vmor %vm717, %vm718
    %v720 = vsel %vm719, %v711, %v716
    %v721 = vmul.f32 %v449, %v570
    %v722 = vmul.f32 %v450, %v580
    %v723 = vmul.f32 %v451, %v590
    %v724 = vmul.f32 %v452, %v600
    %v725 = vmul.f32 %v453, %v610
    %v726 = vmul.f32 %v454, %v620
    %v727 = vmul.f32 %v455, %v630
    %v728 = vmul.f32 %v456, %v640
    %v729 = vmul.f32 %v457, %v650
    %v730 = vmul.f32 %v458, %v660
    %v731 = vmul.f32 %v459, %v670
    %v732 = vmul.f32 %v460, %v680
    %v733 = vmul.f32 %v461, %v690
    %v734 = vmul.f32 %v462, %v700
    %v735 = vmul.f32 %v463, %v710
    %v736 = vmul.f32 %v464, %v720
    %v737 = vld [vmem:[%s4] sm:$0xf]
    %v738 = vperm.slane %v34, 0
    %v740 = vsel %vm377, %v721, 0
    %v743 = vsel %vm377, %v722, 0
    %v746 = vsel %vm377, %v723, 0
    %v749 = vsel %vm377, %v724, 0
    %v752 = vsel %vm377, %v725, 0
    %v755 = vsel %vm377, %v726, 0
    %v758 = vsel %vm377, %v727, 0
    %v761 = vsel %vm377, %v728, 0
    %v764 = vsel %vm377, %v729, 0
    %v767 = vsel %vm377, %v730, 0
    %v770 = vsel %vm377, %v731, 0
    %v773 = vsel %vm377, %v732, 0
    %v776 = vsel %vm377, %v733, 0
    %v779 = vsel %vm377, %v734, 0
    %v782 = vsel %vm377, %v735, 0
    %v785 = vsel %vm377, %v736, 0
    %vm787 = vcmask 1043456
    %v789 = vsel %vm787, %v737, 0
    %791 = vmatpush.msra.mxu0 0.0
    %792 = vmatpush.msra.mxu0 0.0
    %793 = vmatpush.msra.mxu0 0.0
    %794 = vmatpush.msra.mxu0 0.0
    %795 = vmatpush.msra.mxu0 0.0
    %796 = vmatpush.msra.mxu0 0.0
    %797 = vmatpush.msra.mxu0 0.0
    %798 = vmatpush.msra.mxu0 0.0
    %799 = vmatpush.msra.mxu0 0.0
    %800 = vmatpush.msra.mxu0 0.0
    %801 = vmatpush.msra.mxu0 0.0
    %802 = vmatpush.msra.mxu0 0.0
    %803 = vmatpush.msra.mxu0 0.0
    %804 = vmatpush.msra.mxu0 0.0
    %805 = vmatpush.msra.mxu0 0.0
    %806 = vmatpush.msra.mxu0 %v789
    %807 = vmatmul.f32.gmra.mxu0 %v740
    %v808 = vpop.f32.mrf.mxu0
    %v809 = vadd.f32 %v738, %v808
    %810 = vmatmul.f32.gmra.mxu0 %v743
    %v811 = vpop.f32.mrf.mxu0
    %v812 = vadd.f32 %v738, %v811
    %813 = vmatmul.f32.gmra.mxu0 %v746
    %v814 = vpop.f32.mrf.mxu0
    %v815 = vadd.f32 %v738, %v814
    %816 = vmatmul.f32.gmra.mxu0 %v749
    %v817 = vpop.f32.mrf.mxu0
    %v818 = vadd.f32 %v738, %v817
    %819 = vmatmul.f32.gmra.mxu0 %v752
    %v820 = vpop.f32.mrf.mxu0
    %v821 = vadd.f32 %v738, %v820
    %822 = vmatmul.f32.gmra.mxu0 %v755
    %v823 = vpop.f32.mrf.mxu0
    %v824 = vadd.f32 %v738, %v823
    %825 = vmatmul.f32.gmra.mxu0 %v758
    %v826 = vpop.f32.mrf.mxu0
    %v827 = vadd.f32 %v738, %v826
    %828 = vmatmul.f32.gmra.mxu0 %v761
    %v829 = vpop.f32.mrf.mxu0
    %v830 = vadd.f32 %v738, %v829
    %831 = vmatmul.f32.gmra.mxu0 %v764
    %v832 = vpop.f32.mrf.mxu0
    %v833 = vadd.f32 %v738, %v832
    %834 = vmatmul.f32.gmra.mxu0 %v767
    %v835 = vpop.f32.mrf.mxu0
    %v836 = vadd.f32 %v738, %v835
    %837 = vmatmul.f32.gmra.mxu0 %v770
    %v838 = vpop.f32.mrf.mxu0
    %v839 = vadd.f32 %v738, %v838
    %840 = vmatmul.f32.gmra.mxu0 %v773
    %v841 = vpop.f32.mrf.mxu0
    %v842 = vadd.f32 %v738, %v841
    %843 = vmatmul.f32.gmra.mxu0 %v776
    %v844 = vpop.f32.mrf.mxu0
    %v845 = vadd.f32 %v738, %v844
    %846 = vmatmul.f32.gmra.mxu0 %v779
    %v847 = vpop.f32.mrf.mxu0
    %v848 = vadd.f32 %v738, %v847
    %849 = vmatmul.f32.gmra.mxu0 %v782
    %v850 = vpop.f32.mrf.mxu0
    %v851 = vadd.f32 %v738, %v850
    %852 = vmatmul.f32.gmra.mxu0 %v785
    %v853 = vpop.f32.mrf.mxu0
    %v854 = vadd.f32 %v738, %v853
    %855 = vdwg.mxu0
    %v856 = vtanh.pop %v809
    %v857 = vtanh.pop %v812
    %v858 = vtanh.pop %v815
    %v859 = vtanh.pop %v818
    %v860 = vtanh.pop %v821
    %v861 = vtanh.pop %v824
    %v862 = vtanh.pop %v827
    %v863 = vtanh.pop %v830
    %v864 = vtanh.pop %v833
    %v865 = vtanh.pop %v836
    %v866 = vtanh.pop %v839
    %v867 = vtanh.pop %v842
    %v868 = vtanh.pop %v845
    %v869 = vtanh.pop %v848
    %v870 = vtanh.pop %v851
    %v871 = vtanh.pop %v854
    %v872 = vld [vmem:[%s6] sm:$0xf]
    %v873 = vld [vmem:[%s6 + $0x4] sm:$0xf]
    %v874 = vld [vmem:[%s6 + $0x8] sm:$0xf]
    %v875 = vld [vmem:[%s6 + $0xc] sm:$0xf]
    %v876 = vld [vmem:[%s6 + $0x10] sm:$0xf]
    %v877 = vld [vmem:[%s6 + $0x14] sm:$0xf]
    %v878 = vld [vmem:[%s6 + $0x18] sm:$0xf]
    %v879 = vld [vmem:[%s6 + $0x1c] sm:$0xf]
    %v880 = vpack.c.bf16 %v857, %v856
    %v881 = vpack.c.bf16 %v859, %v858
    %v882 = vpack.c.bf16 %v861, %v860
    %v883 = vpack.c.bf16 %v863, %v862
    %v884 = vpack.c.bf16 %v865, %v864
    %v885 = vpack.c.bf16 %v867, %v866
    %v886 = vpack.c.bf16 %v869, %v868
    %v887 = vpack.c.bf16 %v871, %v870
    %v888 = vperm.slane %v34, 1
    %v897 = vunpack.c.l.b16 %v872
    %v898 = vunpack.c.l.b16 %v873
    %v899 = vunpack.c.l.b16 %v874
    %v900 = vunpack.c.l.b16 %v875
    %v901 = vunpack.c.l.b16 %v876
    %v902 = vunpack.c.l.b16 %v877
    %v903 = vunpack.c.l.b16 %v878
    %v904 = vunpack.c.l.b16 %v879
    %v905 = vpack.c.b16 %v898, %v897
    %v906 = vpack.c.b16 %v900, %v899
    %v907 = vpack.c.b16 %v902, %v901
    %v908 = vpack.c.b16 %v904, %v903
    %vm913 = vcmask 523264
    %v915 = vsel %vm913, %v880, 0
    %v918 = vsel %vm913, %v881, 0
    %v921 = vsel %vm913, %v882, 0
    %v924 = vsel %vm913, %v883, 0
    %v927 = vsel %vm913, %v884, 0
    %v930 = vsel %vm913, %v885, 0
    %v933 = vsel %vm913, %v886, 0
    %v936 = vsel %vm913, %v887, 0
    %938 = vmatpush.bf16.msra.mxu0 0
    %939 = vmatpush.bf16.msra.mxu0 0
    %940 = vmatpush.bf16.msra.mxu0 0
    %941 = vmatpush.bf16.msra.mxu0 0
    %942 = vmatpush.bf16.msra.mxu0 %v908
    %943 = vmatpush.bf16.msra.mxu0 %v907
    %944 = vmatpush.bf16.msra.mxu0 %v906
    %945 = vmatpush.bf16.msra.mxu0 %v905
    %946 = vmatmul.bf16.gmra.mxu0 %v915
    %v947 = vpop.f32.mrf.mxu0
    %v948 = vadd.f32 %v888, %v947
    %v949 = vpop.f32.mrf.mxu0
    %v950 = vadd.f32 %v888, %v949
    %951 = vmatmul.bf16.gmra.mxu0 %v918
    %v952 = vpop.f32.mrf.mxu0
    %v953 = vadd.f32 %v888, %v952
    %v954 = vpop.f32.mrf.mxu0
    %v955 = vadd.f32 %v888, %v954
    %956 = vmatmul.bf16.gmra.mxu0 %v921
    %v957 = vpop.f32.mrf.mxu0
    %v958 = vadd.f32 %v888, %v957
    %v959 = vpop.f32.mrf.mxu0
    %v960 = vadd.f32 %v888, %v959
    %961 = vmatmul.bf16.gmra.mxu0 %v924
    %v962 = vpop.f32.mrf.mxu0
    %v963 = vadd.f32 %v888, %v962
    %v964 = vpop.f32.mrf.mxu0
    %v965 = vadd.f32 %v888, %v964
    %966 = vmatmul.bf16.gmra.mxu0 %v927
    %v967 = vpop.f32.mrf.mxu0
    %v968 = vadd.f32 %v888, %v967
    %v969 = vpop.f32.mrf.mxu0
    %v970 = vadd.f32 %v888, %v969
    %971 = vmatmul.bf16.gmra.mxu0 %v930
    %v972 = vpop.f32.mrf.mxu0
    %v973 = vadd.f32 %v888, %v972
    %v974 = vpop.f32.mrf.mxu0
    %v975 = vadd.f32 %v888, %v974
    %976 = vmatmul.bf16.gmra.mxu0 %v933
    %v977 = vpop.f32.mrf.mxu0
    %v978 = vadd.f32 %v888, %v977
    %v979 = vpop.f32.mrf.mxu0
    %v980 = vadd.f32 %v888, %v979
    %981 = vmatmul.bf16.gmra.mxu0 %v936
    %v982 = vpop.f32.mrf.mxu0
    %v983 = vadd.f32 %v888, %v982
    %v984 = vpop.f32.mrf.mxu0
    %v985 = vadd.f32 %v888, %v984
    %986 = vdwg.mxu0
    %v987 = vtanh.pop %v948
    %v988 = vtanh.pop %v950
    %v989 = vtanh.pop %v953
    %v990 = vtanh.pop %v955
    %v991 = vtanh.pop %v958
    %v992 = vtanh.pop %v960
    %v993 = vtanh.pop %v963
    %v994 = vtanh.pop %v965
    %v995 = vtanh.pop %v968
    %v996 = vtanh.pop %v970
    %v997 = vtanh.pop %v973
    %v998 = vtanh.pop %v975
    %v999 = vtanh.pop %v978
    %v1000 = vtanh.pop %v980
    %v1001 = vtanh.pop %v983
    %v1002 = vtanh.pop %v985
    %v1003 = vld [vmem:[%s1] sm:$0xff]
    %v1004 = vld [vmem:[%s1 + $0x8] sm:$0xff]
    %v1005 = vld [vmem:[%s1 + $0x10] sm:$0xff]
    %v1006 = vld [vmem:[%s1 + $0x18] sm:$0xff]
    %v1007 = vld [vmem:[%s1 + $0x20] sm:$0xff]
    %v1008 = vld [vmem:[%s1 + $0x28] sm:$0xff]
    %v1009 = vld [vmem:[%s1 + $0x30] sm:$0xff]
    %v1010 = vld [vmem:[%s1 + $0x38] sm:$0xff]
    %v1011 = vld [vmem:[%s1 + $0x40] sm:$0xff]
    %v1012 = vld [vmem:[%s1 + $0x48] sm:$0xff]
    %v1013 = vld [vmem:[%s1 + $0x50] sm:$0xff]
    %v1014 = vld [vmem:[%s1 + $0x58] sm:$0xff]
    %v1015 = vld [vmem:[%s1 + $0x60] sm:$0xff]
    %v1016 = vld [vmem:[%s1 + $0x68] sm:$0xff]
    %v1017 = vld [vmem:[%s1 + $0x70] sm:$0xff]
    %v1018 = vld [vmem:[%s1 + $0x78] sm:$0xff]
    %vm1019 = vcmask 64512
    %v1020 = vsel %vm1019, %v1003, 0.0
    %1021 = vadd.xlane.f32.xlu0 %v1020
    %v1022 = vpop.xlane.xlu0 %1021
    %v1023 = vsel %vm1019, %v1004, 0.0
    %1024 = vadd.xlane.f32.xlu0 %v1023
    %v1025 = vpop.xlane.xlu0 %1024
    %v1026 = vsel %vm1019, %v1005, 0.0
    %1027 = vadd.xlane.f32.xlu0 %v1026
    %v1028 = vpop.xlane.xlu0 %1027
    %v1029 = vsel %vm1019, %v1006, 0.0
    %1030 = vadd.xlane.f32.xlu0 %v1029
    %v1031 = vpop.xlane.xlu0 %1030
    %v1032 = vsel %vm1019, %v1007, 0.0
    %1033 = vadd.xlane.f32.xlu0 %v1032
    %v1034 = vpop.xlane.xlu0 %1033
    %v1035 = vsel %vm1019, %v1008, 0.0
    %1036 = vadd.xlane.f32.xlu0 %v1035
    %v1037 = vpop.xlane.xlu0 %1036
    %v1038 = vsel %vm1019, %v1009, 0.0
    %1039 = vadd.xlane.f32.xlu0 %v1038
    %v1040 = vpop.xlane.xlu0 %1039
    %v1041 = vsel %vm1019, %v1010, 0.0
    %1042 = vadd.xlane.f32.xlu0 %v1041
    %v1043 = vpop.xlane.xlu0 %1042
    %v1044 = vsel %vm1019, %v1011, 0.0
    %1045 = vadd.xlane.f32.xlu0 %v1044
    %v1046 = vpop.xlane.xlu0 %1045
    %v1047 = vsel %vm1019, %v1012, 0.0
    %1048 = vadd.xlane.f32.xlu0 %v1047
    %v1049 = vpop.xlane.xlu0 %1048
    %v1050 = vsel %vm1019, %v1013, 0.0
    %1051 = vadd.xlane.f32.xlu0 %v1050
    %v1052 = vpop.xlane.xlu0 %1051
    %v1053 = vsel %vm1019, %v1014, 0.0
    %1054 = vadd.xlane.f32.xlu0 %v1053
    %v1055 = vpop.xlane.xlu0 %1054
    %v1056 = vsel %vm1019, %v1015, 0.0
    %1057 = vadd.xlane.f32.xlu0 %v1056
    %v1058 = vpop.xlane.xlu0 %1057
    %v1059 = vsel %vm1019, %v1016, 0.0
    %1060 = vadd.xlane.f32.xlu0 %v1059
    %v1061 = vpop.xlane.xlu0 %1060
    %v1062 = vsel %vm1019, %v1017, 0.0
    %1063 = vadd.xlane.f32.xlu0 %v1062
    %v1064 = vpop.xlane.xlu0 %1063
    %v1065 = vsel %vm1019, %v1018, 0.0
    %1066 = vadd.xlane.f32.xlu0 %v1065
    %v1067 = vpop.xlane.xlu0 %1066
    %v1068 = vrcp.pop 8.0
    %v1069 = vmul.f32 8.0, %v1068
    %v1070 = vsub.f32 1.0, %v1069
    %v1071 = vmul.f32 %v1068, %v1070
    %v1072 = vadd.f32 %v1068, %v1071
    %vm1073 = vweird.f32 %v1068
    %v1074 = vsel %vm1073, %v1068, %v1072
    %v1075 = vmul.f32 %v1022, %v1074
    %v1076 = vmul.f32 %v1025, %v1074
    %v1077 = vmul.f32 %v1028, %v1074
    %v1078 = vmul.f32 %v1031, %v1074
    %v1079 = vmul.f32 %v1034, %v1074
    %v1080 = vmul.f32 %v1037, %v1074
    %v1081 = vmul.f32 %v1040, %v1074
    %v1082 = vmul.f32 %v1043, %v1074
    %v1083 = vmul.f32 %v1046, %v1074
    %v1084 = vmul.f32 %v1049, %v1074
    %v1085 = vmul.f32 %v1052, %v1074
    %v1086 = vmul.f32 %v1055, %v1074
    %v1087 = vmul.f32 %v1058, %v1074
    %v1088 = vmul.f32 %v1061, %v1074
    %v1089 = vmul.f32 %v1064, %v1074
    %v1090 = vmul.f32 %v1067, %v1074
    %v1091 = vsub.f32 %v1003, %v1075
    %v1092 = vsub.f32 %v1004, %v1076
    %v1093 = vsub.f32 %v1005, %v1077
    %v1094 = vsub.f32 %v1006, %v1078
    %v1095 = vsub.f32 %v1007, %v1079
    %v1096 = vsub.f32 %v1008, %v1080
    %v1097 = vsub.f32 %v1009, %v1081
    %v1098 = vsub.f32 %v1010, %v1082
    %v1099 = vsub.f32 %v1011, %v1083
    %v1100 = vsub.f32 %v1012, %v1084
    %v1101 = vsub.f32 %v1013, %v1085
    %v1102 = vsub.f32 %v1014, %v1086
    %v1103 = vsub.f32 %v1015, %v1087
    %v1104 = vsub.f32 %v1016, %v1088
    %v1105 = vsub.f32 %v1017, %v1089
    %v1106 = vsub.f32 %v1018, %v1090
    %v1107 = vmul.f32 %v1091, %v1091
    %v1108 = vmul.f32 %v1092, %v1092
    %v1109 = vmul.f32 %v1093, %v1093
    %v1110 = vmul.f32 %v1094, %v1094
    %v1111 = vmul.f32 %v1095, %v1095
    %v1112 = vmul.f32 %v1096, %v1096
    %v1113 = vmul.f32 %v1097, %v1097
    %v1114 = vmul.f32 %v1098, %v1098
    %v1115 = vmul.f32 %v1099, %v1099
    %v1116 = vmul.f32 %v1100, %v1100
    %v1117 = vmul.f32 %v1101, %v1101
    %v1118 = vmul.f32 %v1102, %v1102
    %v1119 = vmul.f32 %v1103, %v1103
    %v1120 = vmul.f32 %v1104, %v1104
    %v1121 = vmul.f32 %v1105, %v1105
    %v1122 = vmul.f32 %v1106, %v1106
    %v1123 = vsel %vm1019, %v1107, 0.0
    %1124 = vadd.xlane.f32.xlu0 %v1123
    %v1125 = vpop.xlane.xlu0 %1124
    %v1126 = vsel %vm1019, %v1108, 0.0
    %1127 = vadd.xlane.f32.xlu0 %v1126
    %v1128 = vpop.xlane.xlu0 %1127
    %v1129 = vsel %vm1019, %v1109, 0.0
    %1130 = vadd.xlane.f32.xlu0 %v1129
    %v1131 = vpop.xlane.xlu0 %1130
    %v1132 = vsel %vm1019, %v1110, 0.0
    %1133 = vadd.xlane.f32.xlu0 %v1132
    %v1134 = vpop.xlane.xlu0 %1133
    %v1135 = vsel %vm1019, %v1111, 0.0
    %1136 = vadd.xlane.f32.xlu0 %v1135
    %v1137 = vpop.xlane.xlu0 %1136
    %v1138 = vsel %vm1019, %v1112, 0.0
    %1139 = vadd.xlane.f32.xlu0 %v1138
    %v1140 = vpop.xlane.xlu0 %1139
    %v1141 = vsel %vm1019, %v1113, 0.0
    %1142 = vadd.xlane.f32.xlu0 %v1141
    %v1143 = vpop.xlane.xlu0 %1142
    %v1144 = vsel %vm1019, %v1114, 0.0
    %1145 = vadd.xlane.f32.xlu0 %v1144
    %v1146 = vpop.xlane.xlu0 %1145
    %v1147 = vsel %vm1019, %v1115, 0.0
    %1148 = vadd.xlane.f32.xlu0 %v1147
    %v1149 = vpop.xlane.xlu0 %1148
    %v1150 = vsel %vm1019, %v1116, 0.0
    %1151 = vadd.xlane.f32.xlu0 %v1150
    %v1152 = vpop.xlane.xlu0 %1151
    %v1153 = vsel %vm1019, %v1117, 0.0
    %1154 = vadd.xlane.f32.xlu0 %v1153
    %v1155 = vpop.xlane.xlu0 %1154
    %v1156 = vsel %vm1019, %v1118, 0.0
    %1157 = vadd.xlane.f32.xlu0 %v1156
    %v1158 = vpop.xlane.xlu0 %1157
    %v1159 = vsel %vm1019, %v1119, 0.0
    %1160 = vadd.xlane.f32.xlu0 %v1159
    %v1161 = vpop.xlane.xlu0 %1160
    %v1162 = vsel %vm1019, %v1120, 0.0
    %1163 = vadd.xlane.f32.xlu0 %v1162
    %v1164 = vpop.xlane.xlu0 %1163
    %v1165 = vsel %vm1019, %v1121, 0.0
    %1166 = vadd.xlane.f32.xlu0 %v1165
    %v1167 = vpop.xlane.xlu0 %1166
    %v1168 = vsel %vm1019, %v1122, 0.0
    %1169 = vadd.xlane.f32.xlu0 %v1168
    %v1170 = vpop.xlane.xlu0 %1169
    %v1171 = vmul.f32 %v1125, %v1074
    %v1172 = vmul.f32 %v1128, %v1074
    %v1173 = vmul.f32 %v1131, %v1074
    %v1174 = vmul.f32 %v1134, %v1074
    %v1175 = vmul.f32 %v1137, %v1074
    %v1176 = vmul.f32 %v1140, %v1074
    %v1177 = vmul.f32 %v1143, %v1074
    %v1178 = vmul.f32 %v1146, %v1074
    %v1179 = vmul.f32 %v1149, %v1074
    %v1180 = vmul.f32 %v1152, %v1074
    %v1181 = vmul.f32 %v1155, %v1074
    %v1182 = vmul.f32 %v1158, %v1074
    %v1183 = vmul.f32 %v1161, %v1074
    %v1184 = vmul.f32 %v1164, %v1074
    %v1185 = vmul.f32 %v1167, %v1074
    %v1186 = vmul.f32 %v1170, %v1074
    %v1187 = vadd.f32 %v1171, 1e-05
    %v1188 = vadd.f32 %v1172, 1e-05
    %v1189 = vadd.f32 %v1173, 1e-05
    %v1190 = vadd.f32 %v1174, 1e-05
    %v1191 = vadd.f32 %v1175, 1e-05
    %v1192 = vadd.f32 %v1176, 1e-05
    %v1193 = vadd.f32 %v1177, 1e-05
    %v1194 = vadd.f32 %v1178, 1e-05
    %v1195 = vadd.f32 %v1179, 1e-05
    %v1196 = vadd.f32 %v1180, 1e-05
    %v1197 = vadd.f32 %v1181, 1e-05
    %v1198 = vadd.f32 %v1182, 1e-05
    %v1199 = vadd.f32 %v1183, 1e-05
    %v1200 = vadd.f32 %v1184, 1e-05
    %v1201 = vadd.f32 %v1185, 1e-05
    %v1202 = vadd.f32 %v1186, 1e-05
    %v1203 = vrsqrt.pop %v1187
    %v1204 = vmul.f32 %v1203, %v1187
    %v1205 = vmul.f32 %v1204, %v1203
    %v1206 = vmul.f32 0.5, %v1205
    %v1207 = vsub.f32 1.5, %v1206
    %v1208 = vmul.f32 %v1203, %v1207
    %vm1209 = vweird.f32 %v1187
    %vm1210 = vweird.f32 %v1203
    %vm1211 = vmor %vm1209, %vm1210
    %v1212 = vsel %vm1211, %v1203, %v1208
    %v1213 = vrsqrt.pop %v1188
    %v1214 = vmul.f32 %v1213, %v1188
    %v1215 = vmul.f32 %v1214, %v1213
    %v1216 = vmul.f32 0.5, %v1215
    %v1217 = vsub.f32 1.5, %v1216
    %v1218 = vmul.f32 %v1213, %v1217
    %vm1219 = vweird.f32 %v1188
    %vm1220 = vweird.f32 %v1213
    %vm1221 = vmor %vm1219, %vm1220
    %v1222 = vsel %vm1221, %v1213, %v1218
    %v1223 = vrsqrt.pop %v1189
    %v1224 = vmul.f32 %v1223, %v1189
    %v1225 = vmul.f32 %v1224, %v1223
    %v1226 = vmul.f32 0.5, %v1225
    %v1227 = vsub.f32 1.5, %v1226
    %v1228 = vmul.f32 %v1223, %v1227
    %vm1229 = vweird.f32 %v1189
    %vm1230 = vweird.f32 %v1223
    %vm1231 = vmor %vm1229, %vm1230
    %v1232 = vsel %vm1231, %v1223, %v1228
    %v1233 = vrsqrt.pop %v1190
    %v1234 = vmul.f32 %v1233, %v1190
    %v1235 = vmul.f32 %v1234, %v1233
    %v1236 = vmul.f32 0.5, %v1235
    %v1237 = vsub.f32 1.5, %v1236
    %v1238 = vmul.f32 %v1233, %v1237
    %vm1239 = vweird.f32 %v1190
    %vm1240 = vweird.f32 %v1233
    %vm1241 = vmor %vm1239, %vm1240
    %v1242 = vsel %vm1241, %v1233, %v1238
    %v1243 = vrsqrt.pop %v1191
    %v1244 = vmul.f32 %v1243, %v1191
    %v1245 = vmul.f32 %v1244, %v1243
    %v1246 = vmul.f32 0.5, %v1245
    %v1247 = vsub.f32 1.5, %v1246
    %v1248 = vmul.f32 %v1243, %v1247
    %vm1249 = vweird.f32 %v1191
    %vm1250 = vweird.f32 %v1243
    %vm1251 = vmor %vm1249, %vm1250
    %v1252 = vsel %vm1251, %v1243, %v1248
    %v1253 = vrsqrt.pop %v1192
    %v1254 = vmul.f32 %v1253, %v1192
    %v1255 = vmul.f32 %v1254, %v1253
    %v1256 = vmul.f32 0.5, %v1255
    %v1257 = vsub.f32 1.5, %v1256
    %v1258 = vmul.f32 %v1253, %v1257
    %vm1259 = vweird.f32 %v1192
    %vm1260 = vweird.f32 %v1253
    %vm1261 = vmor %vm1259, %vm1260
    %v1262 = vsel %vm1261, %v1253, %v1258
    %v1263 = vrsqrt.pop %v1193
    %v1264 = vmul.f32 %v1263, %v1193
    %v1265 = vmul.f32 %v1264, %v1263
    %v1266 = vmul.f32 0.5, %v1265
    %v1267 = vsub.f32 1.5, %v1266
    %v1268 = vmul.f32 %v1263, %v1267
    %vm1269 = vweird.f32 %v1193
    %vm1270 = vweird.f32 %v1263
    %vm1271 = vmor %vm1269, %vm1270
    %v1272 = vsel %vm1271, %v1263, %v1268
    %v1273 = vrsqrt.pop %v1194
    %v1274 = vmul.f32 %v1273, %v1194
    %v1275 = vmul.f32 %v1274, %v1273
    %v1276 = vmul.f32 0.5, %v1275
    %v1277 = vsub.f32 1.5, %v1276
    %v1278 = vmul.f32 %v1273, %v1277
    %vm1279 = vweird.f32 %v1194
    %vm1280 = vweird.f32 %v1273
    %vm1281 = vmor %vm1279, %vm1280
    %v1282 = vsel %vm1281, %v1273, %v1278
    %v1283 = vrsqrt.pop %v1195
    %v1284 = vmul.f32 %v1283, %v1195
    %v1285 = vmul.f32 %v1284, %v1283
    %v1286 = vmul.f32 0.5, %v1285
    %v1287 = vsub.f32 1.5, %v1286
    %v1288 = vmul.f32 %v1283, %v1287
    %vm1289 = vweird.f32 %v1195
    %vm1290 = vweird.f32 %v1283
    %vm1291 = vmor %vm1289, %vm1290
    %v1292 = vsel %vm1291, %v1283, %v1288
    %v1293 = vrsqrt.pop %v1196
    %v1294 = vmul.f32 %v1293, %v1196
    %v1295 = vmul.f32 %v1294, %v1293
    %v1296 = vmul.f32 0.5, %v1295
    %v1297 = vsub.f32 1.5, %v1296
    %v1298 = vmul.f32 %v1293, %v1297
    %vm1299 = vweird.f32 %v1196
    %vm1300 = vweird.f32 %v1293
    %vm1301 = vmor %vm1299, %vm1300
    %v1302 = vsel %vm1301, %v1293, %v1298
    %v1303 = vrsqrt.pop %v1197
    %v1304 = vmul.f32 %v1303, %v1197
    %v1305 = vmul.f32 %v1304, %v1303
    %v1306 = vmul.f32 0.5, %v1305
    %v1307 = vsub.f32 1.5, %v1306
    %v1308 = vmul.f32 %v1303, %v1307
    %vm1309 = vweird.f32 %v1197
    %vm1310 = vweird.f32 %v1303
    %vm1311 = vmor %vm1309, %vm1310
    %v1312 = vsel %vm1311, %v1303, %v1308
    %v1313 = vrsqrt.pop %v1198
    %v1314 = vmul.f32 %v1313, %v1198
    %v1315 = vmul.f32 %v1314, %v1313
    %v1316 = vmul.f32 0.5, %v1315
    %v1317 = vsub.f32 1.5, %v1316
    %v1318 = vmul.f32 %v1313, %v1317
    %vm1319 = vweird.f32 %v1198
    %vm1320 = vweird.f32 %v1313
    %vm1321 = vmor %vm1319, %vm1320
    %v1322 = vsel %vm1321, %v1313, %v1318
    %v1323 = vrsqrt.pop %v1199
    %v1324 = vmul.f32 %v1323, %v1199
    %v1325 = vmul.f32 %v1324, %v1323
    %v1326 = vmul.f32 0.5, %v1325
    %v1327 = vsub.f32 1.5, %v1326
    %v1328 = vmul.f32 %v1323, %v1327
    %vm1329 = vweird.f32 %v1199
    %vm1330 = vweird.f32 %v1323
    %vm1331 = vmor %vm1329, %vm1330
    %v1332 = vsel %vm1331, %v1323, %v1328
    %v1333 = vrsqrt.pop %v1200
    %v1334 = vmul.f32 %v1333, %v1200
    %v1335 = vmul.f32 %v1334, %v1333
    %v1336 = vmul.f32 0.5, %v1335
    %v1337 = vsub.f32 1.5, %v1336
    %v1338 = vmul.f32 %v1333, %v1337
    %vm1339 = vweird.f32 %v1200
    %vm1340 = vweird.f32 %v1333
    %vm1341 = vmor %vm1339, %vm1340
    %v1342 = vsel %vm1341, %v1333, %v1338
    %v1343 = vrsqrt.pop %v1201
    %v1344 = vmul.f32 %v1343, %v1201
    %v1345 = vmul.f32 %v1344, %v1343
    %v1346 = vmul.f32 0.5, %v1345
    %v1347 = vsub.f32 1.5, %v1346
    %v1348 = vmul.f32 %v1343, %v1347
    %vm1349 = vweird.f32 %v1201
    %vm1350 = vweird.f32 %v1343
    %vm1351 = vmor %vm1349, %vm1350
    %v1352 = vsel %vm1351, %v1343, %v1348
    %v1353 = vrsqrt.pop %v1202
    %v1354 = vmul.f32 %v1353, %v1202
    %v1355 = vmul.f32 %v1354, %v1353
    %v1356 = vmul.f32 0.5, %v1355
    %v1357 = vsub.f32 1.5, %v1356
    %v1358 = vmul.f32 %v1353, %v1357
    %vm1359 = vweird.f32 %v1202
    %vm1360 = vweird.f32 %v1353
    %vm1361 = vmor %vm1359, %vm1360
    %v1362 = vsel %vm1361, %v1353, %v1358
    %v1363 = vmul.f32 %v1091, %v1212
    %v1364 = vmul.f32 %v1092, %v1222
    %v1365 = vmul.f32 %v1093, %v1232
    %v1366 = vmul.f32 %v1094, %v1242
    %v1367 = vmul.f32 %v1095, %v1252
    %v1368 = vmul.f32 %v1096, %v1262
    %v1369 = vmul.f32 %v1097, %v1272
    %v1370 = vmul.f32 %v1098, %v1282
    %v1371 = vmul.f32 %v1099, %v1292
    %v1372 = vmul.f32 %v1100, %v1302
    %v1373 = vmul.f32 %v1101, %v1312
    %v1374 = vmul.f32 %v1102, %v1322
    %v1375 = vmul.f32 %v1103, %v1332
    %v1376 = vmul.f32 %v1104, %v1342
    %v1377 = vmul.f32 %v1105, %v1352
    %v1378 = vmul.f32 %v1106, %v1362
    %v1379 = vld [vmem:[%s5] sm:$0xff]
    %v1380 = vperm.slane %v34, 2
    %v1382 = vsel %vm1019, %v1363, 0
    %v1385 = vsel %vm1019, %v1364, 0
    %v1388 = vsel %vm1019, %v1365, 0
    %v1391 = vsel %vm1019, %v1366, 0
    %v1394 = vsel %vm1019, %v1367, 0
    %v1397 = vsel %vm1019, %v1368, 0
    %v1400 = vsel %vm1019, %v1369, 0
    %v1403 = vsel %vm1019, %v1370, 0
    %v1406 = vsel %vm1019, %v1371, 0
    %v1409 = vsel %vm1019, %v1372, 0
    %v1412 = vsel %vm1019, %v1373, 0
    %v1415 = vsel %vm1019, %v1374, 0
    %v1418 = vsel %vm1019, %v1375, 0
    %v1421 = vsel %vm1019, %v1376, 0
    %v1424 = vsel %vm1019, %v1377, 0
    %v1427 = vsel %vm1019, %v1378, 0
    %1429 = vmatpush.msra.mxu0 0.0
    %1430 = vmatpush.msra.mxu0 0.0
    %1431 = vmatpush.msra.mxu0 0.0
    %1432 = vmatpush.msra.mxu0 0.0
    %1433 = vmatpush.msra.mxu0 0.0
    %1434 = vmatpush.msra.mxu0 0.0
    %1435 = vmatpush.msra.mxu0 0.0
    %1436 = vmatpush.msra.mxu0 0.0
    %1437 = vmatpush.msra.mxu0 0.0
    %1438 = vmatpush.msra.mxu0 0.0
    %1439 = vmatpush.msra.mxu0 0.0
    %1440 = vmatpush.msra.mxu0 0.0
    %1441 = vmatpush.msra.mxu0 0.0
    %1442 = vmatpush.msra.mxu0 0.0
    %1443 = vmatpush.msra.mxu0 0.0
    %1444 = vmatpush.msra.mxu0 %v1379
    %1445 = vmatmul.f32.gmra.mxu0 %v1382
    %v1446 = vpop.f32.mrf.mxu0
    %v1447 = vadd.f32 %v1380, %v1446
    %1448 = vmatmul.f32.gmra.mxu0 %v1385
    %v1449 = vpop.f32.mrf.mxu0
    %v1450 = vadd.f32 %v1380, %v1449
    %1451 = vmatmul.f32.gmra.mxu0 %v1388
    %v1452 = vpop.f32.mrf.mxu0
    %v1453 = vadd.f32 %v1380, %v1452
    %1454 = vmatmul.f32.gmra.mxu0 %v1391
    %v1455 = vpop.f32.mrf.mxu0
    %v1456 = vadd.f32 %v1380, %v1455
    %1457 = vmatmul.f32.gmra.mxu0 %v1394
    %v1458 = vpop.f32.mrf.mxu0
    %v1459 = vadd.f32 %v1380, %v1458
    %1460 = vmatmul.f32.gmra.mxu0 %v1397
    %v1461 = vpop.f32.mrf.mxu0
    %v1462 = vadd.f32 %v1380, %v1461
    %1463 = vmatmul.f32.gmra.mxu0 %v1400
    %v1464 = vpop.f32.mrf.mxu0
    %v1465 = vadd.f32 %v1380, %v1464
    %1466 = vmatmul.f32.gmra.mxu0 %v1403
    %v1467 = vpop.f32.mrf.mxu0
    %v1468 = vadd.f32 %v1380, %v1467
    %1469 = vmatmul.f32.gmra.mxu0 %v1406
    %v1470 = vpop.f32.mrf.mxu0
    %v1471 = vadd.f32 %v1380, %v1470
    %1472 = vmatmul.f32.gmra.mxu0 %v1409
    %v1473 = vpop.f32.mrf.mxu0
    %v1474 = vadd.f32 %v1380, %v1473
    %1475 = vmatmul.f32.gmra.mxu0 %v1412
    %v1476 = vpop.f32.mrf.mxu0
    %v1477 = vadd.f32 %v1380, %v1476
    %1478 = vmatmul.f32.gmra.mxu0 %v1415
    %v1479 = vpop.f32.mrf.mxu0
    %v1480 = vadd.f32 %v1380, %v1479
    %1481 = vmatmul.f32.gmra.mxu0 %v1418
    %v1482 = vpop.f32.mrf.mxu0
    %v1483 = vadd.f32 %v1380, %v1482
    %1484 = vmatmul.f32.gmra.mxu0 %v1421
    %v1485 = vpop.f32.mrf.mxu0
    %v1486 = vadd.f32 %v1380, %v1485
    %1487 = vmatmul.f32.gmra.mxu0 %v1424
    %v1488 = vpop.f32.mrf.mxu0
    %v1489 = vadd.f32 %v1380, %v1488
    %1490 = vmatmul.f32.gmra.mxu0 %v1427
    %v1491 = vpop.f32.mrf.mxu0
    %v1492 = vadd.f32 %v1380, %v1491
    %1493 = vdwg.mxu0
    %v1494 = vtanh.pop %v1447
    %v1495 = vtanh.pop %v1450
    %v1496 = vtanh.pop %v1453
    %v1497 = vtanh.pop %v1456
    %v1498 = vtanh.pop %v1459
    %v1499 = vtanh.pop %v1462
    %v1500 = vtanh.pop %v1465
    %v1501 = vtanh.pop %v1468
    %v1502 = vtanh.pop %v1471
    %v1503 = vtanh.pop %v1474
    %v1504 = vtanh.pop %v1477
    %v1505 = vtanh.pop %v1480
    %v1506 = vtanh.pop %v1483
    %v1507 = vtanh.pop %v1486
    %v1508 = vtanh.pop %v1489
    %v1509 = vtanh.pop %v1492
    %s1510 = scalar_lea.vmem %s6, 32
    %v1511 = vld [vmem:[%s1510] sm:$0xf]
    %v1512 = vld [vmem:[%s1510 + $0x4] sm:$0xf]
    %v1513 = vld [vmem:[%s1510 + $0x8] sm:$0xf]
    %v1514 = vld [vmem:[%s1510 + $0xc] sm:$0xf]
    %v1515 = vld [vmem:[%s1510 + $0x10] sm:$0xf]
    %v1516 = vld [vmem:[%s1510 + $0x14] sm:$0xf]
    %v1517 = vld [vmem:[%s1510 + $0x18] sm:$0xf]
    %v1518 = vld [vmem:[%s1510 + $0x1c] sm:$0xf]
    %v1519 = vpack.c.bf16 %v1495, %v1494
    %v1520 = vpack.c.bf16 %v1497, %v1496
    %v1521 = vpack.c.bf16 %v1499, %v1498
    %v1522 = vpack.c.bf16 %v1501, %v1500
    %v1523 = vpack.c.bf16 %v1503, %v1502
    %v1524 = vpack.c.bf16 %v1505, %v1504
    %v1525 = vpack.c.bf16 %v1507, %v1506
    %v1526 = vpack.c.bf16 %v1509, %v1508
    %v1527 = vperm.slane %v34, 3
    %v1536 = vunpack.c.l.b16 %v1511
    %v1537 = vunpack.c.l.b16 %v1512
    %v1538 = vunpack.c.l.b16 %v1513
    %v1539 = vunpack.c.l.b16 %v1514
    %v1540 = vunpack.c.l.b16 %v1515
    %v1541 = vunpack.c.l.b16 %v1516
    %v1542 = vunpack.c.l.b16 %v1517
    %v1543 = vunpack.c.l.b16 %v1518
    %v1544 = vpack.c.b16 %v1537, %v1536
    %v1545 = vpack.c.b16 %v1539, %v1538
    %v1546 = vpack.c.b16 %v1541, %v1540
    %v1547 = vpack.c.b16 %v1543, %v1542
    %v1553 = vsel %vm913, %v1519, 0
    %v1556 = vsel %vm913, %v1520, 0
    %v1559 = vsel %vm913, %v1521, 0
    %v1562 = vsel %vm913, %v1522, 0
    %v1565 = vsel %vm913, %v1523, 0
    %v1568 = vsel %vm913, %v1524, 0
    %v1571 = vsel %vm913, %v1525, 0
    %v1574 = vsel %vm913, %v1526, 0
    %1576 = vmatpush.bf16.msra.mxu0 0
    %1577 = vmatpush.bf16.msra.mxu0 0
    %1578 = vmatpush.bf16.msra.mxu0 0
    %1579 = vmatpush.bf16.msra.mxu0 0
    %1580 = vmatpush.bf16.msra.mxu0 %v1547
    %1581 = vmatpush.bf16.msra.mxu0 %v1546
    %1582 = vmatpush.bf16.msra.mxu0 %v1545
    %1583 = vmatpush.bf16.msra.mxu0 %v1544
    %1584 = vmatmul.bf16.gmra.mxu0 %v1553
    %v1585 = vpop.f32.mrf.mxu0
    %v1586 = vadd.f32 %v1527, %v1585
    %v1587 = vpop.f32.mrf.mxu0
    %v1588 = vadd.f32 %v1527, %v1587
    %1589 = vmatmul.bf16.gmra.mxu0 %v1556
    %v1590 = vpop.f32.mrf.mxu0
    %v1591 = vadd.f32 %v1527, %v1590
    %v1592 = vpop.f32.mrf.mxu0
    %v1593 = vadd.f32 %v1527, %v1592
    %1594 = vmatmul.bf16.gmra.mxu0 %v1559
    %v1595 = vpop.f32.mrf.mxu0
    %v1596 = vadd.f32 %v1527, %v1595
    %v1597 = vpop.f32.mrf.mxu0
    %v1598 = vadd.f32 %v1527, %v1597
    %1599 = vmatmul.bf16.gmra.mxu0 %v1562
    %v1600 = vpop.f32.mrf.mxu0
    %v1601 = vadd.f32 %v1527, %v1600
    %v1602 = vpop.f32.mrf.mxu0
    %v1603 = vadd.f32 %v1527, %v1602
    %1604 = vmatmul.bf16.gmra.mxu0 %v1565
    %v1605 = vpop.f32.mrf.mxu0
    %v1606 = vadd.f32 %v1527, %v1605
    %v1607 = vpop.f32.mrf.mxu0
    %v1608 = vadd.f32 %v1527, %v1607
    %1609 = vmatmul.bf16.gmra.mxu0 %v1568
    %v1610 = vpop.f32.mrf.mxu0
    %v1611 = vadd.f32 %v1527, %v1610
    %v1612 = vpop.f32.mrf.mxu0
    %v1613 = vadd.f32 %v1527, %v1612
    %1614 = vmatmul.bf16.gmra.mxu0 %v1571
    %v1615 = vpop.f32.mrf.mxu0
    %v1616 = vadd.f32 %v1527, %v1615
    %v1617 = vpop.f32.mrf.mxu0
    %v1618 = vadd.f32 %v1527, %v1617
    %1619 = vmatmul.bf16.gmra.mxu0 %v1574
    %v1620 = vpop.f32.mrf.mxu0
    %v1621 = vadd.f32 %v1527, %v1620
    %v1622 = vpop.f32.mrf.mxu0
    %v1623 = vadd.f32 %v1527, %v1622
    %1624 = vdwg.mxu0
    %v1625 = vtanh.pop %v1586
    %v1626 = vtanh.pop %v1588
    %v1627 = vtanh.pop %v1591
    %v1628 = vtanh.pop %v1593
    %v1629 = vtanh.pop %v1596
    %v1630 = vtanh.pop %v1598
    %v1631 = vtanh.pop %v1601
    %v1632 = vtanh.pop %v1603
    %v1633 = vtanh.pop %v1606
    %v1634 = vtanh.pop %v1608
    %v1635 = vtanh.pop %v1611
    %v1636 = vtanh.pop %v1613
    %v1637 = vtanh.pop %v1616
    %v1638 = vtanh.pop %v1618
    %v1639 = vtanh.pop %v1621
    %v1640 = vtanh.pop %v1623
    %s1641 = scalar_lea.vmem %s6, 64
    %v1642 = vld [vmem:[%s1641] sm:$0xf]
    %v1643 = vld [vmem:[%s1641 + $0x4] sm:$0xf]
    %v1644 = vld [vmem:[%s1641 + $0x8] sm:$0xf]
    %v1645 = vld [vmem:[%s1641 + $0xc] sm:$0xf]
    %v1646 = vld [vmem:[%s1641 + $0x10] sm:$0xf]
    %v1647 = vld [vmem:[%s1641 + $0x14] sm:$0xf]
    %v1648 = vld [vmem:[%s1641 + $0x18] sm:$0xf]
    %v1649 = vld [vmem:[%s1641 + $0x1c] sm:$0xf]
    %s1650 = scalar_lea.vmem %s6, 96
    %v1651 = vld [vmem:[%s1650] sm:$0xf]
    %v1652 = vld [vmem:[%s1650 + $0x4] sm:$0xf]
    %v1653 = vld [vmem:[%s1650 + $0x8] sm:$0xf]
    %v1654 = vld [vmem:[%s1650 + $0xc] sm:$0xf]
    %v1655 = vld [vmem:[%s1650 + $0x10] sm:$0xf]
    %v1656 = vld [vmem:[%s1650 + $0x14] sm:$0xf]
    %v1657 = vld [vmem:[%s1650 + $0x18] sm:$0xf]
    %v1658 = vld [vmem:[%s1650 + $0x1c] sm:$0xf]
    %s1659 = scalar_lea.vmem %s6, 128
    %v1660 = vld [vmem:[%s1659] sm:$0xf]
    %v1661 = vld [vmem:[%s1659 + $0x4] sm:$0xf]
    %v1662 = vld [vmem:[%s1659 + $0x8] sm:$0xf]
    %v1663 = vld [vmem:[%s1659 + $0xc] sm:$0xf]
    %v1664 = vld [vmem:[%s1659 + $0x10] sm:$0xf]
    %v1665 = vld [vmem:[%s1659 + $0x14] sm:$0xf]
    %v1666 = vld [vmem:[%s1659 + $0x18] sm:$0xf]
    %v1667 = vld [vmem:[%s1659 + $0x1c] sm:$0xf]
    %s1668 = scalar_lea.vmem %s6, 160
    %v1669 = vld [vmem:[%s1668] sm:$0xf]
    %v1670 = vld [vmem:[%s1668 + $0x4] sm:$0xf]
    %v1671 = vld [vmem:[%s1668 + $0x8] sm:$0xf]
    %v1672 = vld [vmem:[%s1668 + $0xc] sm:$0xf]
    %v1673 = vld [vmem:[%s1668 + $0x10] sm:$0xf]
    %v1674 = vld [vmem:[%s1668 + $0x14] sm:$0xf]
    %v1675 = vld [vmem:[%s1668 + $0x18] sm:$0xf]
    %v1676 = vld [vmem:[%s1668 + $0x1c] sm:$0xf]
    %v1677 = vld [vmem:[%s7] sm:$0xf]
    %v1678 = vld [vmem:[%s7 + $0x4] sm:$0xf]
    %v1679 = vld [vmem:[%s7 + $0x8] sm:$0xf]
    %v1680 = vld [vmem:[%s7 + $0xc] sm:$0xf]
    %v1681 = vld [vmem:[%s7 + $0x10] sm:$0xf]
    %v1682 = vld [vmem:[%s7 + $0x14] sm:$0xf]
    %v1683 = vld [vmem:[%s7 + $0x18] sm:$0xf]
    %v1684 = vld [vmem:[%s7 + $0x1c] sm:$0xf]
    %v1685 = vld [vmem:[%s7 + $0x20] sm:$0xf]
    %v1686 = vld [vmem:[%s7 + $0x24] sm:$0xf]
    %v1687 = vld [vmem:[%s7 + $0x28] sm:$0xf]
    %v1688 = vld [vmem:[%s7 + $0x2c] sm:$0xf]
    %v1689 = vld [vmem:[%s7 + $0x30] sm:$0xf]
    %v1690 = vld [vmem:[%s7 + $0x34] sm:$0xf]
    %v1691 = vld [vmem:[%s7 + $0x38] sm:$0xf]
    %v1692 = vld [vmem:[%s7 + $0x3c] sm:$0xf]
    %v1693 = vpack.c.bf16 %v988, %v987
    %v1694 = vpack.c.bf16 %v990, %v989
    %v1695 = vpack.c.bf16 %v992, %v991
    %v1696 = vpack.c.bf16 %v994, %v993
    %v1697 = vpack.c.bf16 %v996, %v995
    %v1698 = vpack.c.bf16 %v998, %v997
    %v1699 = vpack.c.bf16 %v1000, %v999
    %v1700 = vpack.c.bf16 %v1002, %v1001
    %v1709 = vunpack.c.l.b16 %v1642
    %v1710 = vunpack.c.l.b16 %v1643
    %v1711 = vunpack.c.l.b16 %v1644
    %v1712 = vunpack.c.l.b16 %v1645
    %v1713 = vunpack.c.l.b16 %v1646
    %v1714 = vunpack.c.l.b16 %v1647
    %v1715 = vunpack.c.l.b16 %v1648
    %v1716 = vunpack.c.l.b16 %v1649
    %v1717 = vpack.c.b16 %v1710, %v1709
    %v1718 = vpack.c.b16 %v1712, %v1711
    %v1719 = vpack.c.b16 %v1714, %v1713
    %v1720 = vpack.c.b16 %v1716, %v1715
    %v1726 = vsel %vm913, %v1693, 0
    %v1729 = vsel %vm913, %v1694, 0
    %v1732 = vsel %vm913, %v1695, 0
    %v1735 = vsel %vm913, %v1696, 0
    %v1738 = vsel %vm913, %v1697, 0
    %v1741 = vsel %vm913, %v1698, 0
    %v1744 = vsel %vm913, %v1699, 0
    %v1747 = vsel %vm913, %v1700, 0
    %1749 = vmatpush.bf16.msra.mxu0 0
    %1750 = vmatpush.bf16.msra.mxu0 0
    %1751 = vmatpush.bf16.msra.mxu0 0
    %1752 = vmatpush.bf16.msra.mxu0 0
    %1753 = vmatpush.bf16.msra.mxu0 %v1720
    %1754 = vmatpush.bf16.msra.mxu0 %v1719
    %1755 = vmatpush.bf16.msra.mxu0 %v1718
    %1756 = vmatpush.bf16.msra.mxu0 %v1717
    %1757 = vmatmul.bf16.gmra.mxu0 %v1726
    %v1758 = vpop.f32.mrf.mxu0
    %v1759 = vadd.f32 0.0, %v1758
    %v1760 = vpop.f32.mrf.mxu0
    %v1761 = vadd.f32 0.0, %v1760
    %1762 = vmatmul.bf16.gmra.mxu0 %v1729
    %v1763 = vpop.f32.mrf.mxu0
    %v1764 = vadd.f32 0.0, %v1763
    %v1765 = vpop.f32.mrf.mxu0
    %v1766 = vadd.f32 0.0, %v1765
    %1767 = vmatmul.bf16.gmra.mxu0 %v1732
    %v1768 = vpop.f32.mrf.mxu0
    %v1769 = vadd.f32 0.0, %v1768
    %v1770 = vpop.f32.mrf.mxu0
    %v1771 = vadd.f32 0.0, %v1770
    %1772 = vmatmul.bf16.gmra.mxu0 %v1735
    %v1773 = vpop.f32.mrf.mxu0
    %v1774 = vadd.f32 0.0, %v1773
    %v1775 = vpop.f32.mrf.mxu0
    %v1776 = vadd.f32 0.0, %v1775
    %1777 = vmatmul.bf16.gmra.mxu0 %v1738
    %v1778 = vpop.f32.mrf.mxu0
    %v1779 = vadd.f32 0.0, %v1778
    %v1780 = vpop.f32.mrf.mxu0
    %v1781 = vadd.f32 0.0, %v1780
    %1782 = vmatmul.bf16.gmra.mxu0 %v1741
    %v1783 = vpop.f32.mrf.mxu0
    %v1784 = vadd.f32 0.0, %v1783
    %v1785 = vpop.f32.mrf.mxu0
    %v1786 = vadd.f32 0.0, %v1785
    %1787 = vmatmul.bf16.gmra.mxu0 %v1744
    %v1788 = vpop.f32.mrf.mxu0
    %v1789 = vadd.f32 0.0, %v1788
    %v1790 = vpop.f32.mrf.mxu0
    %v1791 = vadd.f32 0.0, %v1790
    %1792 = vmatmul.bf16.gmra.mxu0 %v1747
    %v1793 = vpop.f32.mrf.mxu0
    %v1794 = vadd.f32 0.0, %v1793
    %v1795 = vpop.f32.mrf.mxu0
    %v1796 = vadd.f32 0.0, %v1795
    %1797 = vdwg.mxu0
    %v1798 = vpack.c.bf16 %v1626, %v1625
    %v1799 = vpack.c.bf16 %v1628, %v1627
    %v1800 = vpack.c.bf16 %v1630, %v1629
    %v1801 = vpack.c.bf16 %v1632, %v1631
    %v1802 = vpack.c.bf16 %v1634, %v1633
    %v1803 = vpack.c.bf16 %v1636, %v1635
    %v1804 = vpack.c.bf16 %v1638, %v1637
    %v1805 = vpack.c.bf16 %v1640, %v1639
    %v1814 = vunpack.c.l.b16 %v1651
    %v1815 = vunpack.c.l.b16 %v1652
    %v1816 = vunpack.c.l.b16 %v1653
    %v1817 = vunpack.c.l.b16 %v1654
    %v1818 = vunpack.c.l.b16 %v1655
    %v1819 = vunpack.c.l.b16 %v1656
    %v1820 = vunpack.c.l.b16 %v1657
    %v1821 = vunpack.c.l.b16 %v1658
    %v1822 = vpack.c.b16 %v1815, %v1814
    %v1823 = vpack.c.b16 %v1817, %v1816
    %v1824 = vpack.c.b16 %v1819, %v1818
    %v1825 = vpack.c.b16 %v1821, %v1820
    %v1831 = vsel %vm913, %v1798, 0
    %v1834 = vsel %vm913, %v1799, 0
    %v1837 = vsel %vm913, %v1800, 0
    %v1840 = vsel %vm913, %v1801, 0
    %v1843 = vsel %vm913, %v1802, 0
    %v1846 = vsel %vm913, %v1803, 0
    %v1849 = vsel %vm913, %v1804, 0
    %v1852 = vsel %vm913, %v1805, 0
    %1854 = vmatpush.bf16.msra.mxu0 0
    %1855 = vmatpush.bf16.msra.mxu0 0
    %1856 = vmatpush.bf16.msra.mxu0 0
    %1857 = vmatpush.bf16.msra.mxu0 0
    %1858 = vmatpush.bf16.msra.mxu0 %v1825
    %1859 = vmatpush.bf16.msra.mxu0 %v1824
    %1860 = vmatpush.bf16.msra.mxu0 %v1823
    %1861 = vmatpush.bf16.msra.mxu0 %v1822
    %1862 = vmatmul.bf16.gmra.mxu0 %v1831
    %v1863 = vpop.f32.mrf.mxu0
    %v1864 = vadd.f32 0.0, %v1863
    %v1865 = vpop.f32.mrf.mxu0
    %v1866 = vadd.f32 0.0, %v1865
    %1867 = vmatmul.bf16.gmra.mxu0 %v1834
    %v1868 = vpop.f32.mrf.mxu0
    %v1869 = vadd.f32 0.0, %v1868
    %v1870 = vpop.f32.mrf.mxu0
    %v1871 = vadd.f32 0.0, %v1870
    %1872 = vmatmul.bf16.gmra.mxu0 %v1837
    %v1873 = vpop.f32.mrf.mxu0
    %v1874 = vadd.f32 0.0, %v1873
    %v1875 = vpop.f32.mrf.mxu0
    %v1876 = vadd.f32 0.0, %v1875
    %1877 = vmatmul.bf16.gmra.mxu0 %v1840
    %v1878 = vpop.f32.mrf.mxu0
    %v1879 = vadd.f32 0.0, %v1878
    %v1880 = vpop.f32.mrf.mxu0
    %v1881 = vadd.f32 0.0, %v1880
    %1882 = vmatmul.bf16.gmra.mxu0 %v1843
    %v1883 = vpop.f32.mrf.mxu0
    %v1884 = vadd.f32 0.0, %v1883
    %v1885 = vpop.f32.mrf.mxu0
    %v1886 = vadd.f32 0.0, %v1885
    %1887 = vmatmul.bf16.gmra.mxu0 %v1846
    %v1888 = vpop.f32.mrf.mxu0
    %v1889 = vadd.f32 0.0, %v1888
    %v1890 = vpop.f32.mrf.mxu0
    %v1891 = vadd.f32 0.0, %v1890
    %1892 = vmatmul.bf16.gmra.mxu0 %v1849
    %v1893 = vpop.f32.mrf.mxu0
    %v1894 = vadd.f32 0.0, %v1893
    %v1895 = vpop.f32.mrf.mxu0
    %v1896 = vadd.f32 0.0, %v1895
    %1897 = vmatmul.bf16.gmra.mxu0 %v1852
    %v1898 = vpop.f32.mrf.mxu0
    %v1899 = vadd.f32 0.0, %v1898
    %v1900 = vpop.f32.mrf.mxu0
    %v1901 = vadd.f32 0.0, %v1900
    %1902 = vdwg.mxu0
    %v1903 = vpack.c.bf16 %v1761, %v1759
    %v1904 = vpack.c.bf16 %v1766, %v1764
    %v1905 = vpack.c.bf16 %v1771, %v1769
    %v1906 = vpack.c.bf16 %v1776, %v1774
    %v1907 = vpack.c.bf16 %v1781, %v1779
    %v1908 = vpack.c.bf16 %v1786, %v1784
    %v1909 = vpack.c.bf16 %v1791, %v1789
    %v1910 = vpack.c.bf16 %v1796, %v1794
    %v1911 = vpack.c.bf16 %v1866, %v1864
    %v1912 = vpack.c.bf16 %v1871, %v1869
    %v1913 = vpack.c.bf16 %v1876, %v1874
    %v1914 = vpack.c.bf16 %v1881, %v1879
    %v1915 = vpack.c.bf16 %v1886, %v1884
    %v1916 = vpack.c.bf16 %v1891, %v1889
    %v1917 = vpack.c.bf16 %v1896, %v1894
    %v1918 = vpack.c.bf16 %v1901, %v1899
    %v1919 = vperm.slane %v34, 4
    %1920 = vmatpush.bf16.msra.mxu0 %v1910
    %1921 = vmatpush.bf16.msra.mxu0 %v1909
    %1922 = vmatpush.bf16.msra.mxu0 %v1908
    %1923 = vmatpush.bf16.msra.mxu0 %v1907
    %1924 = vmatpush.bf16.msra.mxu0 %v1906
    %1925 = vmatpush.bf16.msra.mxu0 %v1905
    %1926 = vmatpush.bf16.msra.mxu0 %v1904
    %1927 = vmatpush.bf16.msra.mxu0 %v1903
    %1928 = vmatmul.bf16.gmra.mxu0 %v297
    %v1929 = vpop.f32.mrf.mxu0
    %v1930 = vadd.f32 %v1919, %v1929
    %v1931 = vpop.f32.mrf.mxu0
    %v1932 = vadd.f32 %v1919, %v1931
    %1933 = vmatmul.bf16.gmra.mxu0 %v298
    %v1934 = vpop.f32.mrf.mxu0
    %v1935 = vadd.f32 %v1919, %v1934
    %v1936 = vpop.f32.mrf.mxu0
    %v1937 = vadd.f32 %v1919, %v1936
    %1938 = vmatmul.bf16.gmra.mxu0 %v299
    %v1939 = vpop.f32.mrf.mxu0
    %v1940 = vadd.f32 %v1919, %v1939
    %v1941 = vpop.f32.mrf.mxu0
    %v1942 = vadd.f32 %v1919, %v1941
    %1943 = vmatmul.bf16.gmra.mxu0 %v300
    %v1944 = vpop.f32.mrf.mxu0
    %v1945 = vadd.f32 %v1919, %v1944
    %v1946 = vpop.f32.mrf.mxu0
    %v1947 = vadd.f32 %v1919, %v1946
    %1948 = vmatmul.bf16.gmra.mxu0 %v301
    %v1949 = vpop.f32.mrf.mxu0
    %v1950 = vadd.f32 %v1919, %v1949
    %v1951 = vpop.f32.mrf.mxu0
    %v1952 = vadd.f32 %v1919, %v1951
    %1953 = vmatmul.bf16.gmra.mxu0 %v302
    %v1954 = vpop.f32.mrf.mxu0
    %v1955 = vadd.f32 %v1919, %v1954
    %v1956 = vpop.f32.mrf.mxu0
    %v1957 = vadd.f32 %v1919, %v1956
    %1958 = vmatmul.bf16.gmra.mxu0 %v303
    %v1959 = vpop.f32.mrf.mxu0
    %v1960 = vadd.f32 %v1919, %v1959
    %v1961 = vpop.f32.mrf.mxu0
    %v1962 = vadd.f32 %v1919, %v1961
    %1963 = vmatmul.bf16.gmra.mxu0 %v304
    %v1964 = vpop.f32.mrf.mxu0
    %v1965 = vadd.f32 %v1919, %v1964
    %v1966 = vpop.f32.mrf.mxu0
    %v1967 = vadd.f32 %v1919, %v1966
    %1968 = vdwg.mxu0
    %1969 = vmatpush.bf16.msra.mxu0 %v1918
    %1970 = vmatpush.bf16.msra.mxu0 %v1917
    %1971 = vmatpush.bf16.msra.mxu0 %v1916
    %1972 = vmatpush.bf16.msra.mxu0 %v1915
    %1973 = vmatpush.bf16.msra.mxu0 %v1914
    %1974 = vmatpush.bf16.msra.mxu0 %v1913
    %1975 = vmatpush.bf16.msra.mxu0 %v1912
    %1976 = vmatpush.bf16.msra.mxu0 %v1911
    %1977 = vmatmul.bf16.gmra.mxu0 %v345
    %v1978 = vpop.f32.mrf.mxu0
    %v1979 = vadd.f32 %v1930, %v1978
    %v1980 = vpop.f32.mrf.mxu0
    %v1981 = vadd.f32 %v1932, %v1980
    %1982 = vmatmul.bf16.gmra.mxu0 %v346
    %v1983 = vpop.f32.mrf.mxu0
    %v1984 = vadd.f32 %v1935, %v1983
    %v1985 = vpop.f32.mrf.mxu0
    %v1986 = vadd.f32 %v1937, %v1985
    %1987 = vmatmul.bf16.gmra.mxu0 %v347
    %v1988 = vpop.f32.mrf.mxu0
    %v1989 = vadd.f32 %v1940, %v1988
    %v1990 = vpop.f32.mrf.mxu0
    %v1991 = vadd.f32 %v1942, %v1990
    %1992 = vmatmul.bf16.gmra.mxu0 %v348
    %v1993 = vpop.f32.mrf.mxu0
    %v1994 = vadd.f32 %v1945, %v1993
    %v1995 = vpop.f32.mrf.mxu0
    %v1996 = vadd.f32 %v1947, %v1995
    %1997 = vmatmul.bf16.gmra.mxu0 %v349
    %v1998 = vpop.f32.mrf.mxu0
    %v1999 = vadd.f32 %v1950, %v1998
    %v2000 = vpop.f32.mrf.mxu0
    %v2001 = vadd.f32 %v1952, %v2000
    %2002 = vmatmul.bf16.gmra.mxu0 %v350
    %v2003 = vpop.f32.mrf.mxu0
    %v2004 = vadd.f32 %v1955, %v2003
    %v2005 = vpop.f32.mrf.mxu0
    %v2006 = vadd.f32 %v1957, %v2005
    %2007 = vmatmul.bf16.gmra.mxu0 %v351
    %v2008 = vpop.f32.mrf.mxu0
    %v2009 = vadd.f32 %v1960, %v2008
    %v2010 = vpop.f32.mrf.mxu0
    %v2011 = vadd.f32 %v1962, %v2010
    %2012 = vmatmul.bf16.gmra.mxu0 %v352
    %v2013 = vpop.f32.mrf.mxu0
    %v2014 = vadd.f32 %v1965, %v2013
    %v2015 = vpop.f32.mrf.mxu0
    %v2016 = vadd.f32 %v1967, %v2015
    %2017 = vdwg.mxu0
    %v2018 = vsel %vm913, %v1979, 0.0
    %2019 = vadd.xlane.f32.xlu0 %v2018
    %v2020 = vpop.xlane.xlu0 %2019
    %v2021 = vsel %vm913, %v1981, 0.0
    %2022 = vadd.xlane.f32.xlu0 %v2021
    %v2023 = vpop.xlane.xlu0 %2022
    %v2024 = vsel %vm913, %v1984, 0.0
    %2025 = vadd.xlane.f32.xlu0 %v2024
    %v2026 = vpop.xlane.xlu0 %2025
    %v2027 = vsel %vm913, %v1986, 0.0
    %2028 = vadd.xlane.f32.xlu0 %v2027
    %v2029 = vpop.xlane.xlu0 %2028
    %v2030 = vsel %vm913, %v1989, 0.0
    %2031 = vadd.xlane.f32.xlu0 %v2030
    %v2032 = vpop.xlane.xlu0 %2031
    %v2033 = vsel %vm913, %v1991, 0.0
    %2034 = vadd.xlane.f32.xlu0 %v2033
    %v2035 = vpop.xlane.xlu0 %2034
    %v2036 = vsel %vm913, %v1994, 0.0
    %2037 = vadd.xlane.f32.xlu0 %v2036
    %v2038 = vpop.xlane.xlu0 %2037
    %v2039 = vsel %vm913, %v1996, 0.0
    %2040 = vadd.xlane.f32.xlu0 %v2039
    %v2041 = vpop.xlane.xlu0 %2040
    %v2042 = vsel %vm913, %v1999, 0.0
    %2043 = vadd.xlane.f32.xlu0 %v2042
    %v2044 = vpop.xlane.xlu0 %2043
    %v2045 = vsel %vm913, %v2001, 0.0
    %2046 = vadd.xlane.f32.xlu0 %v2045
    %v2047 = vpop.xlane.xlu0 %2046
    %v2048 = vsel %vm913, %v2004, 0.0
    %2049 = vadd.xlane.f32.xlu0 %v2048
    %v2050 = vpop.xlane.xlu0 %2049
    %v2051 = vsel %vm913, %v2006, 0.0
    %2052 = vadd.xlane.f32.xlu0 %v2051
    %v2053 = vpop.xlane.xlu0 %2052
    %v2054 = vsel %vm913, %v2009, 0.0
    %2055 = vadd.xlane.f32.xlu0 %v2054
    %v2056 = vpop.xlane.xlu0 %2055
    %v2057 = vsel %vm913, %v2011, 0.0
    %2058 = vadd.xlane.f32.xlu0 %v2057
    %v2059 = vpop.xlane.xlu0 %2058
    %v2060 = vsel %vm913, %v2014, 0.0
    %2061 = vadd.xlane.f32.xlu0 %v2060
    %v2062 = vpop.xlane.xlu0 %2061
    %v2063 = vsel %vm913, %v2016, 0.0
    %2064 = vadd.xlane.f32.xlu0 %v2063
    %v2065 = vpop.xlane.xlu0 %2064
    %v2066 = vrcp.pop 64.0
    %v2067 = vmul.f32 64.0, %v2066
    %v2068 = vsub.f32 1.0, %v2067
    %v2069 = vmul.f32 %v2066, %v2068
    %v2070 = vadd.f32 %v2066, %v2069
    %vm2071 = vweird.f32 %v2066
    %v2072 = vsel %vm2071, %v2066, %v2070
    %v2073 = vmul.f32 %v2020, %v2072
    %v2074 = vmul.f32 %v2023, %v2072
    %v2075 = vmul.f32 %v2026, %v2072
    %v2076 = vmul.f32 %v2029, %v2072
    %v2077 = vmul.f32 %v2032, %v2072
    %v2078 = vmul.f32 %v2035, %v2072
    %v2079 = vmul.f32 %v2038, %v2072
    %v2080 = vmul.f32 %v2041, %v2072
    %v2081 = vmul.f32 %v2044, %v2072
    %v2082 = vmul.f32 %v2047, %v2072
    %v2083 = vmul.f32 %v2050, %v2072
    %v2084 = vmul.f32 %v2053, %v2072
    %v2085 = vmul.f32 %v2056, %v2072
    %v2086 = vmul.f32 %v2059, %v2072
    %v2087 = vmul.f32 %v2062, %v2072
    %v2088 = vmul.f32 %v2065, %v2072
    %v2089 = vsub.f32 %v1979, %v2073
    %v2090 = vsub.f32 %v1981, %v2074
    %v2091 = vsub.f32 %v1984, %v2075
    %v2092 = vsub.f32 %v1986, %v2076
    %v2093 = vsub.f32 %v1989, %v2077
    %v2094 = vsub.f32 %v1991, %v2078
    %v2095 = vsub.f32 %v1994, %v2079
    %v2096 = vsub.f32 %v1996, %v2080
    %v2097 = vsub.f32 %v1999, %v2081
    %v2098 = vsub.f32 %v2001, %v2082
    %v2099 = vsub.f32 %v2004, %v2083
    %v2100 = vsub.f32 %v2006, %v2084
    %v2101 = vsub.f32 %v2009, %v2085
    %v2102 = vsub.f32 %v2011, %v2086
    %v2103 = vsub.f32 %v2014, %v2087
    %v2104 = vsub.f32 %v2016, %v2088
    %v2105 = vmul.f32 %v2089, %v2089
    %v2106 = vmul.f32 %v2090, %v2090
    %v2107 = vmul.f32 %v2091, %v2091
    %v2108 = vmul.f32 %v2092, %v2092
    %v2109 = vmul.f32 %v2093, %v2093
    %v2110 = vmul.f32 %v2094, %v2094
    %v2111 = vmul.f32 %v2095, %v2095
    %v2112 = vmul.f32 %v2096, %v2096
    %v2113 = vmul.f32 %v2097, %v2097
    %v2114 = vmul.f32 %v2098, %v2098
    %v2115 = vmul.f32 %v2099, %v2099
    %v2116 = vmul.f32 %v2100, %v2100
    %v2117 = vmul.f32 %v2101, %v2101
    %v2118 = vmul.f32 %v2102, %v2102
    %v2119 = vmul.f32 %v2103, %v2103
    %v2120 = vmul.f32 %v2104, %v2104
    %v2121 = vsel %vm913, %v2105, 0.0
    %2122 = vadd.xlane.f32.xlu0 %v2121
    %v2123 = vpop.xlane.xlu0 %2122
    %v2124 = vsel %vm913, %v2106, 0.0
    %2125 = vadd.xlane.f32.xlu0 %v2124
    %v2126 = vpop.xlane.xlu0 %2125
    %v2127 = vsel %vm913, %v2107, 0.0
    %2128 = vadd.xlane.f32.xlu0 %v2127
    %v2129 = vpop.xlane.xlu0 %2128
    %v2130 = vsel %vm913, %v2108, 0.0
    %2131 = vadd.xlane.f32.xlu0 %v2130
    %v2132 = vpop.xlane.xlu0 %2131
    %v2133 = vsel %vm913, %v2109, 0.0
    %2134 = vadd.xlane.f32.xlu0 %v2133
    %v2135 = vpop.xlane.xlu0 %2134
    %v2136 = vsel %vm913, %v2110, 0.0
    %2137 = vadd.xlane.f32.xlu0 %v2136
    %v2138 = vpop.xlane.xlu0 %2137
    %v2139 = vsel %vm913, %v2111, 0.0
    %2140 = vadd.xlane.f32.xlu0 %v2139
    %v2141 = vpop.xlane.xlu0 %2140
    %v2142 = vsel %vm913, %v2112, 0.0
    %2143 = vadd.xlane.f32.xlu0 %v2142
    %v2144 = vpop.xlane.xlu0 %2143
    %v2145 = vsel %vm913, %v2113, 0.0
    %2146 = vadd.xlane.f32.xlu0 %v2145
    %v2147 = vpop.xlane.xlu0 %2146
    %v2148 = vsel %vm913, %v2114, 0.0
    %2149 = vadd.xlane.f32.xlu0 %v2148
    %v2150 = vpop.xlane.xlu0 %2149
    %v2151 = vsel %vm913, %v2115, 0.0
    %2152 = vadd.xlane.f32.xlu0 %v2151
    %v2153 = vpop.xlane.xlu0 %2152
    %v2154 = vsel %vm913, %v2116, 0.0
    %2155 = vadd.xlane.f32.xlu0 %v2154
    %v2156 = vpop.xlane.xlu0 %2155
    %v2157 = vsel %vm913, %v2117, 0.0
    %2158 = vadd.xlane.f32.xlu0 %v2157
    %v2159 = vpop.xlane.xlu0 %2158
    %v2160 = vsel %vm913, %v2118, 0.0
    %2161 = vadd.xlane.f32.xlu0 %v2160
    %v2162 = vpop.xlane.xlu0 %2161
    %v2163 = vsel %vm913, %v2119, 0.0
    %2164 = vadd.xlane.f32.xlu0 %v2163
    %v2165 = vpop.xlane.xlu0 %2164
    %v2166 = vsel %vm913, %v2120, 0.0
    %2167 = vadd.xlane.f32.xlu0 %v2166
    %v2168 = vpop.xlane.xlu0 %2167
    %v2169 = vmul.f32 %v2123, %v2072
    %v2170 = vmul.f32 %v2126, %v2072
    %v2171 = vmul.f32 %v2129, %v2072
    %v2172 = vmul.f32 %v2132, %v2072
    %v2173 = vmul.f32 %v2135, %v2072
    %v2174 = vmul.f32 %v2138, %v2072
    %v2175 = vmul.f32 %v2141, %v2072
    %v2176 = vmul.f32 %v2144, %v2072
    %v2177 = vmul.f32 %v2147, %v2072
    %v2178 = vmul.f32 %v2150, %v2072
    %v2179 = vmul.f32 %v2153, %v2072
    %v2180 = vmul.f32 %v2156, %v2072
    %v2181 = vmul.f32 %v2159, %v2072
    %v2182 = vmul.f32 %v2162, %v2072
    %v2183 = vmul.f32 %v2165, %v2072
    %v2184 = vmul.f32 %v2168, %v2072
    %v2185 = vadd.f32 %v2169, 1e-05
    %v2186 = vadd.f32 %v2170, 1e-05
    %v2187 = vadd.f32 %v2171, 1e-05
    %v2188 = vadd.f32 %v2172, 1e-05
    %v2189 = vadd.f32 %v2173, 1e-05
    %v2190 = vadd.f32 %v2174, 1e-05
    %v2191 = vadd.f32 %v2175, 1e-05
    %v2192 = vadd.f32 %v2176, 1e-05
    %v2193 = vadd.f32 %v2177, 1e-05
    %v2194 = vadd.f32 %v2178, 1e-05
    %v2195 = vadd.f32 %v2179, 1e-05
    %v2196 = vadd.f32 %v2180, 1e-05
    %v2197 = vadd.f32 %v2181, 1e-05
    %v2198 = vadd.f32 %v2182, 1e-05
    %v2199 = vadd.f32 %v2183, 1e-05
    %v2200 = vadd.f32 %v2184, 1e-05
    %v2201 = vrsqrt.pop %v2185
    %v2202 = vmul.f32 %v2201, %v2185
    %v2203 = vmul.f32 %v2202, %v2201
    %v2204 = vmul.f32 0.5, %v2203
    %v2205 = vsub.f32 1.5, %v2204
    %v2206 = vmul.f32 %v2201, %v2205
    %vm2207 = vweird.f32 %v2185
    %vm2208 = vweird.f32 %v2201
    %vm2209 = vmor %vm2207, %vm2208
    %v2210 = vsel %vm2209, %v2201, %v2206
    %v2211 = vrsqrt.pop %v2186
    %v2212 = vmul.f32 %v2211, %v2186
    %v2213 = vmul.f32 %v2212, %v2211
    %v2214 = vmul.f32 0.5, %v2213
    %v2215 = vsub.f32 1.5, %v2214
    %v2216 = vmul.f32 %v2211, %v2215
    %vm2217 = vweird.f32 %v2186
    %vm2218 = vweird.f32 %v2211
    %vm2219 = vmor %vm2217, %vm2218
    %v2220 = vsel %vm2219, %v2211, %v2216
    %v2221 = vrsqrt.pop %v2187
    %v2222 = vmul.f32 %v2221, %v2187
    %v2223 = vmul.f32 %v2222, %v2221
    %v2224 = vmul.f32 0.5, %v2223
    %v2225 = vsub.f32 1.5, %v2224
    %v2226 = vmul.f32 %v2221, %v2225
    %vm2227 = vweird.f32 %v2187
    %vm2228 = vweird.f32 %v2221
    %vm2229 = vmor %vm2227, %vm2228
    %v2230 = vsel %vm2229, %v2221, %v2226
    %v2231 = vrsqrt.pop %v2188
    %v2232 = vmul.f32 %v2231, %v2188
    %v2233 = vmul.f32 %v2232, %v2231
    %v2234 = vmul.f32 0.5, %v2233
    %v2235 = vsub.f32 1.5, %v2234
    %v2236 = vmul.f32 %v2231, %v2235
    %vm2237 = vweird.f32 %v2188
    %vm2238 = vweird.f32 %v2231
    %vm2239 = vmor %vm2237, %vm2238
    %v2240 = vsel %vm2239, %v2231, %v2236
    %v2241 = vrsqrt.pop %v2189
    %v2242 = vmul.f32 %v2241, %v2189
    %v2243 = vmul.f32 %v2242, %v2241
    %v2244 = vmul.f32 0.5, %v2243
    %v2245 = vsub.f32 1.5, %v2244
    %v2246 = vmul.f32 %v2241, %v2245
    %vm2247 = vweird.f32 %v2189
    %vm2248 = vweird.f32 %v2241
    %vm2249 = vmor %vm2247, %vm2248
    %v2250 = vsel %vm2249, %v2241, %v2246
    %v2251 = vrsqrt.pop %v2190
    %v2252 = vmul.f32 %v2251, %v2190
    %v2253 = vmul.f32 %v2252, %v2251
    %v2254 = vmul.f32 0.5, %v2253
    %v2255 = vsub.f32 1.5, %v2254
    %v2256 = vmul.f32 %v2251, %v2255
    %vm2257 = vweird.f32 %v2190
    %vm2258 = vweird.f32 %v2251
    %vm2259 = vmor %vm2257, %vm2258
    %v2260 = vsel %vm2259, %v2251, %v2256
    %v2261 = vrsqrt.pop %v2191
    %v2262 = vmul.f32 %v2261, %v2191
    %v2263 = vmul.f32 %v2262, %v2261
    %v2264 = vmul.f32 0.5, %v2263
    %v2265 = vsub.f32 1.5, %v2264
    %v2266 = vmul.f32 %v2261, %v2265
    %vm2267 = vweird.f32 %v2191
    %vm2268 = vweird.f32 %v2261
    %vm2269 = vmor %vm2267, %vm2268
    %v2270 = vsel %vm2269, %v2261, %v2266
    %v2271 = vrsqrt.pop %v2192
    %v2272 = vmul.f32 %v2271, %v2192
    %v2273 = vmul.f32 %v2272, %v2271
    %v2274 = vmul.f32 0.5, %v2273
    %v2275 = vsub.f32 1.5, %v2274
    %v2276 = vmul.f32 %v2271, %v2275
    %vm2277 = vweird.f32 %v2192
    %vm2278 = vweird.f32 %v2271
    %vm2279 = vmor %vm2277, %vm2278
    %v2280 = vsel %vm2279, %v2271, %v2276
    %v2281 = vrsqrt.pop %v2193
    %v2282 = vmul.f32 %v2281, %v2193
    %v2283 = vmul.f32 %v2282, %v2281
    %v2284 = vmul.f32 0.5, %v2283
    %v2285 = vsub.f32 1.5, %v2284
    %v2286 = vmul.f32 %v2281, %v2285
    %vm2287 = vweird.f32 %v2193
    %vm2288 = vweird.f32 %v2281
    %vm2289 = vmor %vm2287, %vm2288
    %v2290 = vsel %vm2289, %v2281, %v2286
    %v2291 = vrsqrt.pop %v2194
    %v2292 = vmul.f32 %v2291, %v2194
    %v2293 = vmul.f32 %v2292, %v2291
    %v2294 = vmul.f32 0.5, %v2293
    %v2295 = vsub.f32 1.5, %v2294
    %v2296 = vmul.f32 %v2291, %v2295
    %vm2297 = vweird.f32 %v2194
    %vm2298 = vweird.f32 %v2291
    %vm2299 = vmor %vm2297, %vm2298
    %v2300 = vsel %vm2299, %v2291, %v2296
    %v2301 = vrsqrt.pop %v2195
    %v2302 = vmul.f32 %v2301, %v2195
    %v2303 = vmul.f32 %v2302, %v2301
    %v2304 = vmul.f32 0.5, %v2303
    %v2305 = vsub.f32 1.5, %v2304
    %v2306 = vmul.f32 %v2301, %v2305
    %vm2307 = vweird.f32 %v2195
    %vm2308 = vweird.f32 %v2301
    %vm2309 = vmor %vm2307, %vm2308
    %v2310 = vsel %vm2309, %v2301, %v2306
    %v2311 = vrsqrt.pop %v2196
    %v2312 = vmul.f32 %v2311, %v2196
    %v2313 = vmul.f32 %v2312, %v2311
    %v2314 = vmul.f32 0.5, %v2313
    %v2315 = vsub.f32 1.5, %v2314
    %v2316 = vmul.f32 %v2311, %v2315
    %vm2317 = vweird.f32 %v2196
    %vm2318 = vweird.f32 %v2311
    %vm2319 = vmor %vm2317, %vm2318
    %v2320 = vsel %vm2319, %v2311, %v2316
    %v2321 = vrsqrt.pop %v2197
    %v2322 = vmul.f32 %v2321, %v2197
    %v2323 = vmul.f32 %v2322, %v2321
    %v2324 = vmul.f32 0.5, %v2323
    %v2325 = vsub.f32 1.5, %v2324
    %v2326 = vmul.f32 %v2321, %v2325
    %vm2327 = vweird.f32 %v2197
    %vm2328 = vweird.f32 %v2321
    %vm2329 = vmor %vm2327, %vm2328
    %v2330 = vsel %vm2329, %v2321, %v2326
    %v2331 = vrsqrt.pop %v2198
    %v2332 = vmul.f32 %v2331, %v2198
    %v2333 = vmul.f32 %v2332, %v2331
    %v2334 = vmul.f32 0.5, %v2333
    %v2335 = vsub.f32 1.5, %v2334
    %v2336 = vmul.f32 %v2331, %v2335
    %vm2337 = vweird.f32 %v2198
    %vm2338 = vweird.f32 %v2331
    %vm2339 = vmor %vm2337, %vm2338
    %v2340 = vsel %vm2339, %v2331, %v2336
    %v2341 = vrsqrt.pop %v2199
    %v2342 = vmul.f32 %v2341, %v2199
    %v2343 = vmul.f32 %v2342, %v2341
    %v2344 = vmul.f32 0.5, %v2343
    %v2345 = vsub.f32 1.5, %v2344
    %v2346 = vmul.f32 %v2341, %v2345
    %vm2347 = vweird.f32 %v2199
    %vm2348 = vweird.f32 %v2341
    %vm2349 = vmor %vm2347, %vm2348
    %v2350 = vsel %vm2349, %v2341, %v2346
    %v2351 = vrsqrt.pop %v2200
    %v2352 = vmul.f32 %v2351, %v2200
    %v2353 = vmul.f32 %v2352, %v2351
    %v2354 = vmul.f32 0.5, %v2353
    %v2355 = vsub.f32 1.5, %v2354
    %v2356 = vmul.f32 %v2351, %v2355
    %vm2357 = vweird.f32 %v2200
    %vm2358 = vweird.f32 %v2351
    %vm2359 = vmor %vm2357, %vm2358
    %v2360 = vsel %vm2359, %v2351, %v2356
    %v2361 = vmul.f32 %v2089, %v2210
    %v2362 = vmul.f32 %v2090, %v2220
    %v2363 = vmul.f32 %v2091, %v2230
    %v2364 = vmul.f32 %v2092, %v2240
    %v2365 = vmul.f32 %v2093, %v2250
    %v2366 = vmul.f32 %v2094, %v2260
    %v2367 = vmul.f32 %v2095, %v2270
    %v2368 = vmul.f32 %v2096, %v2280
    %v2369 = vmul.f32 %v2097, %v2290
    %v2370 = vmul.f32 %v2098, %v2300
    %v2371 = vmul.f32 %v2099, %v2310
    %v2372 = vmul.f32 %v2100, %v2320
    %v2373 = vmul.f32 %v2101, %v2330
    %v2374 = vmul.f32 %v2102, %v2340
    %v2375 = vmul.f32 %v2103, %v2350
    %v2376 = vmul.f32 %v2104, %v2360
    %v2377 = vperm.slane %v34, 5
    %v2378 = vmul.f32 %v2361, %v2377
    %v2379 = vmul.f32 %v2362, %v2377
    %v2380 = vmul.f32 %v2363, %v2377
    %v2381 = vmul.f32 %v2364, %v2377
    %v2382 = vmul.f32 %v2365, %v2377
    %v2383 = vmul.f32 %v2366, %v2377
    %v2384 = vmul.f32 %v2367, %v2377
    %v2385 = vmul.f32 %v2368, %v2377
    %v2386 = vmul.f32 %v2369, %v2377
    %v2387 = vmul.f32 %v2370, %v2377
    %v2388 = vmul.f32 %v2371, %v2377
    %v2389 = vmul.f32 %v2372, %v2377
    %v2390 = vmul.f32 %v2373, %v2377
    %v2391 = vmul.f32 %v2374, %v2377
    %v2392 = vmul.f32 %v2375, %v2377
    %v2393 = vmul.f32 %v2376, %v2377
    %v2394 = vperm.slane %v34, 6
    %v2395 = vadd.f32 %v2378, %v2394
    %v2396 = vadd.f32 %v2379, %v2394
    %v2397 = vadd.f32 %v2380, %v2394
    %v2398 = vadd.f32 %v2381, %v2394
    %v2399 = vadd.f32 %v2382, %v2394
    %v2400 = vadd.f32 %v2383, %v2394
    %v2401 = vadd.f32 %v2384, %v2394
    %v2402 = vadd.f32 %v2385, %v2394
    %v2403 = vadd.f32 %v2386, %v2394
    %v2404 = vadd.f32 %v2387, %v2394
    %v2405 = vadd.f32 %v2388, %v2394
    %v2406 = vadd.f32 %v2389, %v2394
    %v2407 = vadd.f32 %v2390, %v2394
    %v2408 = vadd.f32 %v2391, %v2394
    %v2409 = vadd.f32 %v2392, %v2394
    %v2410 = vadd.f32 %v2393, %v2394
    %v2411 = vmax.f32 %v2395, 0.0
    %v2412 = vmax.f32 %v2396, 0.0
    %v2413 = vmax.f32 %v2397, 0.0
    %v2414 = vmax.f32 %v2398, 0.0
    %v2415 = vmax.f32 %v2399, 0.0
    %v2416 = vmax.f32 %v2400, 0.0
    %v2417 = vmax.f32 %v2401, 0.0
    %v2418 = vmax.f32 %v2402, 0.0
    %v2419 = vmax.f32 %v2403, 0.0
    %v2420 = vmax.f32 %v2404, 0.0
    %v2421 = vmax.f32 %v2405, 0.0
    %v2422 = vmax.f32 %v2406, 0.0
    %v2423 = vmax.f32 %v2407, 0.0
    %v2424 = vmax.f32 %v2408, 0.0
    %v2425 = vmax.f32 %v2409, 0.0
    %v2426 = vmax.f32 %v2410, 0.0
    %v2427 = vpack.c.bf16 %v2412, %v2411
    %v2428 = vpack.c.bf16 %v2414, %v2413
    %v2429 = vpack.c.bf16 %v2416, %v2415
    %v2430 = vpack.c.bf16 %v2418, %v2417
    %v2431 = vpack.c.bf16 %v2420, %v2419
    %v2432 = vpack.c.bf16 %v2422, %v2421
    %v2433 = vpack.c.bf16 %v2424, %v2423
    %v2434 = vpack.c.bf16 %v2426, %v2425
    %v2435 = vperm.slane %v34, 7
    %v2444 = vunpack.c.l.b16 %v1660
    %v2445 = vunpack.c.l.b16 %v1661
    %v2446 = vunpack.c.l.b16 %v1662
    %v2447 = vunpack.c.l.b16 %v1663
    %v2448 = vunpack.c.l.b16 %v1664
    %v2449 = vunpack.c.l.b16 %v1665
    %v2450 = vunpack.c.l.b16 %v1666
    %v2451 = vunpack.c.l.b16 %v1667
    %v2452 = vpack.c.b16 %v2445, %v2444
    %v2453 = vpack.c.b16 %v2447, %v2446
    %v2454 = vpack.c.b16 %v2449, %v2448
    %v2455 = vpack.c.b16 %v2451, %v2450
    %v2461 = vsel %vm913, %v2427, 0
    %v2464 = vsel %vm913, %v2428, 0
    %v2467 = vsel %vm913, %v2429, 0
    %v2470 = vsel %vm913, %v2430, 0
    %v2473 = vsel %vm913, %v2431, 0
    %v2476 = vsel %vm913, %v2432, 0
    %v2479 = vsel %vm913, %v2433, 0
    %v2482 = vsel %vm913, %v2434, 0
    %2484 = vmatpush.bf16.msra.mxu0 0
    %2485 = vmatpush.bf16.msra.mxu0 0
    %2486 = vmatpush.bf16.msra.mxu0 0
    %2487 = vmatpush.bf16.msra.mxu0 0
    %2488 = vmatpush.bf16.msra.mxu0 %v2455
    %2489 = vmatpush.bf16.msra.mxu0 %v2454
    %2490 = vmatpush.bf16.msra.mxu0 %v2453
    %2491 = vmatpush.bf16.msra.mxu0 %v2452
    %2492 = vmatmul.bf16.gmra.mxu0 %v2461
    %v2493 = vpop.f32.mrf.mxu0
    %v2494 = vadd.f32 %v2435, %v2493
    %v2495 = vpop.f32.mrf.mxu0
    %v2496 = vadd.f32 %v2435, %v2495
    %2497 = vmatmul.bf16.gmra.mxu0 %v2464
    %v2498 = vpop.f32.mrf.mxu0
    %v2499 = vadd.f32 %v2435, %v2498
    %v2500 = vpop.f32.mrf.mxu0
    %v2501 = vadd.f32 %v2435, %v2500
    %2502 = vmatmul.bf16.gmra.mxu0 %v2467
    %v2503 = vpop.f32.mrf.mxu0
    %v2504 = vadd.f32 %v2435, %v2503
    %v2505 = vpop.f32.mrf.mxu0
    %v2506 = vadd.f32 %v2435, %v2505
    %2507 = vmatmul.bf16.gmra.mxu0 %v2470
    %v2508 = vpop.f32.mrf.mxu0
    %v2509 = vadd.f32 %v2435, %v2508
    %v2510 = vpop.f32.mrf.mxu0
    %v2511 = vadd.f32 %v2435, %v2510
    %2512 = vmatmul.bf16.gmra.mxu0 %v2473
    %v2513 = vpop.f32.mrf.mxu0
    %v2514 = vadd.f32 %v2435, %v2513
    %v2515 = vpop.f32.mrf.mxu0
    %v2516 = vadd.f32 %v2435, %v2515
    %2517 = vmatmul.bf16.gmra.mxu0 %v2476
    %v2518 = vpop.f32.mrf.mxu0
    %v2519 = vadd.f32 %v2435, %v2518
    %v2520 = vpop.f32.mrf.mxu0
    %v2521 = vadd.f32 %v2435, %v2520
    %2522 = vmatmul.bf16.gmra.mxu0 %v2479
    %v2523 = vpop.f32.mrf.mxu0
    %v2524 = vadd.f32 %v2435, %v2523
    %v2525 = vpop.f32.mrf.mxu0
    %v2526 = vadd.f32 %v2435, %v2525
    %2527 = vmatmul.bf16.gmra.mxu0 %v2482
    %v2528 = vpop.f32.mrf.mxu0
    %v2529 = vadd.f32 %v2435, %v2528
    %v2530 = vpop.f32.mrf.mxu0
    %v2531 = vadd.f32 %v2435, %v2530
    %2532 = vdwg.mxu0
    %v2533 = vpack.c.bf16 %v2496, %v2494
    %v2534 = vpack.c.bf16 %v2501, %v2499
    %v2535 = vpack.c.bf16 %v2506, %v2504
    %v2536 = vpack.c.bf16 %v2511, %v2509
    %v2537 = vpack.c.bf16 %v2516, %v2514
    %v2538 = vpack.c.bf16 %v2521, %v2519
    %v2539 = vpack.c.bf16 %v2526, %v2524
    %v2540 = vpack.c.bf16 %v2531, %v2529
    %2541 = vxpose.xlu0.c.b16.start [1/8] %v297, 128
    %2542 = vxpose.xlu0.c.b16.cont [2/8] %v298, 128
    %2543 = vxpose.xlu0.c.b16.cont [3/8] %v299, 128
    %2544 = vxpose.xlu0.c.b16.cont [4/8] %v300, 128
    %2545 = vxpose.xlu0.c.b16.cont [5/8] %v301, 128
    %2546 = vxpose.xlu0.c.b16.cont [6/8] %v302, 128
    %2547 = vxpose.xlu0.c.b16.cont [7/8] %v303, 128
    %2548 = vxpose.xlu0.c.b16.end [8/8] %v304, 128
    %v2549 = vpop.trf.xlu0
    %v2550 = vpop.trf.xlu0
    %v2551 = vpop.trf.xlu0
    %v2552 = vpop.trf.xlu0
    %v2553 = vpop.trf.xlu0
    %v2554 = vpop.trf.xlu0
    %v2555 = vpop.trf.xlu0
    %v2556 = vpop.trf.xlu0
    %2557 = vmatpush.bf16.msra.mxu0 %v2540
    %2558 = vmatpush.bf16.msra.mxu0 %v2539
    %2559 = vmatpush.bf16.msra.mxu0 %v2538
    %2560 = vmatpush.bf16.msra.mxu0 %v2537
    %2561 = vmatpush.bf16.msra.mxu0 %v2536
    %2562 = vmatpush.bf16.msra.mxu0 %v2535
    %2563 = vmatpush.bf16.msra.mxu0 %v2534
    %2564 = vmatpush.bf16.msra.mxu0 %v2533
    %2565 = vmatmul.bf16.gmra.mxu0 %v2549
    %v2566 = vpop.f32.mrf.mxu0
    %v2567 = vadd.f32 0.0, %v2566
    %v2568 = vpop.f32.mrf.mxu0
    %v2569 = vadd.f32 0.0, %v2568
    %2570 = vmatmul.bf16.gmra.mxu0 %v2550
    %v2571 = vpop.f32.mrf.mxu0
    %v2572 = vadd.f32 0.0, %v2571
    %v2573 = vpop.f32.mrf.mxu0
    %v2574 = vadd.f32 0.0, %v2573
    %2575 = vmatmul.bf16.gmra.mxu0 %v2551
    %v2576 = vpop.f32.mrf.mxu0
    %v2577 = vadd.f32 0.0, %v2576
    %v2578 = vpop.f32.mrf.mxu0
    %v2579 = vadd.f32 0.0, %v2578
    %2580 = vmatmul.bf16.gmra.mxu0 %v2552
    %v2581 = vpop.f32.mrf.mxu0
    %v2582 = vadd.f32 0.0, %v2581
    %v2583 = vpop.f32.mrf.mxu0
    %v2584 = vadd.f32 0.0, %v2583
    %2585 = vmatmul.bf16.gmra.mxu0 %v2553
    %v2586 = vpop.f32.mrf.mxu0
    %v2587 = vadd.f32 0.0, %v2586
    %v2588 = vpop.f32.mrf.mxu0
    %v2589 = vadd.f32 0.0, %v2588
    %2590 = vmatmul.bf16.gmra.mxu0 %v2554
    %v2591 = vpop.f32.mrf.mxu0
    %v2592 = vadd.f32 0.0, %v2591
    %v2593 = vpop.f32.mrf.mxu0
    %v2594 = vadd.f32 0.0, %v2593
    %2595 = vmatmul.bf16.gmra.mxu0 %v2555
    %v2596 = vpop.f32.mrf.mxu0
    %v2597 = vadd.f32 0.0, %v2596
    %v2598 = vpop.f32.mrf.mxu0
    %v2599 = vadd.f32 0.0, %v2598
    %2600 = vmatmul.bf16.gmra.mxu0 %v2556
    %v2601 = vpop.f32.mrf.mxu0
    %v2602 = vadd.f32 0.0, %v2601
    %v2603 = vpop.f32.mrf.mxu0
    %v2604 = vadd.f32 0.0, %v2603
    %2605 = vdwg.mxu0
    %v2606 = vsel %vm913, %v2567, 0.0
    %2607 = vadd.xlane.f32.xlu0 %v2606
    %v2608 = vpop.xlane.xlu0 %2607
    %v2609 = vsel %vm913, %v2569, 0.0
    %2610 = vadd.xlane.f32.xlu0 %v2609
    %v2611 = vpop.xlane.xlu0 %2610
    %v2612 = vsel %vm913, %v2572, 0.0
    %2613 = vadd.xlane.f32.xlu0 %v2612
    %v2614 = vpop.xlane.xlu0 %2613
    %v2615 = vsel %vm913, %v2574, 0.0
    %2616 = vadd.xlane.f32.xlu0 %v2615
    %v2617 = vpop.xlane.xlu0 %2616
    %v2618 = vsel %vm913, %v2577, 0.0
    %2619 = vadd.xlane.f32.xlu0 %v2618
    %v2620 = vpop.xlane.xlu0 %2619
    %v2621 = vsel %vm913, %v2579, 0.0
    %2622 = vadd.xlane.f32.xlu0 %v2621
    %v2623 = vpop.xlane.xlu0 %2622
    %v2624 = vsel %vm913, %v2582, 0.0
    %2625 = vadd.xlane.f32.xlu0 %v2624
    %v2626 = vpop.xlane.xlu0 %2625
    %v2627 = vsel %vm913, %v2584, 0.0
    %2628 = vadd.xlane.f32.xlu0 %v2627
    %v2629 = vpop.xlane.xlu0 %2628
    %v2630 = vsel %vm913, %v2587, 0.0
    %2631 = vadd.xlane.f32.xlu0 %v2630
    %v2632 = vpop.xlane.xlu0 %2631
    %v2633 = vsel %vm913, %v2589, 0.0
    %2634 = vadd.xlane.f32.xlu0 %v2633
    %v2635 = vpop.xlane.xlu0 %2634
    %v2636 = vsel %vm913, %v2592, 0.0
    %2637 = vadd.xlane.f32.xlu0 %v2636
    %v2638 = vpop.xlane.xlu0 %2637
    %v2639 = vsel %vm913, %v2594, 0.0
    %2640 = vadd.xlane.f32.xlu0 %v2639
    %v2641 = vpop.xlane.xlu0 %2640
    %v2642 = vsel %vm913, %v2597, 0.0
    %2643 = vadd.xlane.f32.xlu0 %v2642
    %v2644 = vpop.xlane.xlu0 %2643
    %v2645 = vsel %vm913, %v2599, 0.0
    %2646 = vadd.xlane.f32.xlu0 %v2645
    %v2647 = vpop.xlane.xlu0 %2646
    %v2648 = vsel %vm913, %v2602, 0.0
    %2649 = vadd.xlane.f32.xlu0 %v2648
    %v2650 = vpop.xlane.xlu0 %2649
    %v2651 = vsel %vm913, %v2604, 0.0
    %2652 = vadd.xlane.f32.xlu0 %v2651
    %v2653 = vpop.xlane.xlu0 %2652
    %v2654 = vmul.f32 %v2608, %v2072
    %v2655 = vmul.f32 %v2611, %v2072
    %v2656 = vmul.f32 %v2614, %v2072
    %v2657 = vmul.f32 %v2617, %v2072
    %v2658 = vmul.f32 %v2620, %v2072
    %v2659 = vmul.f32 %v2623, %v2072
    %v2660 = vmul.f32 %v2626, %v2072
    %v2661 = vmul.f32 %v2629, %v2072
    %v2662 = vmul.f32 %v2632, %v2072
    %v2663 = vmul.f32 %v2635, %v2072
    %v2664 = vmul.f32 %v2638, %v2072
    %v2665 = vmul.f32 %v2641, %v2072
    %v2666 = vmul.f32 %v2644, %v2072
    %v2667 = vmul.f32 %v2647, %v2072
    %v2668 = vmul.f32 %v2650, %v2072
    %v2669 = vmul.f32 %v2653, %v2072
    %v2670 = vsub.f32 %v2567, %v2654
    %v2671 = vsub.f32 %v2569, %v2655
    %v2672 = vsub.f32 %v2572, %v2656
    %v2673 = vsub.f32 %v2574, %v2657
    %v2674 = vsub.f32 %v2577, %v2658
    %v2675 = vsub.f32 %v2579, %v2659
    %v2676 = vsub.f32 %v2582, %v2660
    %v2677 = vsub.f32 %v2584, %v2661
    %v2678 = vsub.f32 %v2587, %v2662
    %v2679 = vsub.f32 %v2589, %v2663
    %v2680 = vsub.f32 %v2592, %v2664
    %v2681 = vsub.f32 %v2594, %v2665
    %v2682 = vsub.f32 %v2597, %v2666
    %v2683 = vsub.f32 %v2599, %v2667
    %v2684 = vsub.f32 %v2602, %v2668
    %v2685 = vsub.f32 %v2604, %v2669
    %v2686 = vmul.f32 %v2670, %v2670
    %v2687 = vmul.f32 %v2671, %v2671
    %v2688 = vmul.f32 %v2672, %v2672
    %v2689 = vmul.f32 %v2673, %v2673
    %v2690 = vmul.f32 %v2674, %v2674
    %v2691 = vmul.f32 %v2675, %v2675
    %v2692 = vmul.f32 %v2676, %v2676
    %v2693 = vmul.f32 %v2677, %v2677
    %v2694 = vmul.f32 %v2678, %v2678
    %v2695 = vmul.f32 %v2679, %v2679
    %v2696 = vmul.f32 %v2680, %v2680
    %v2697 = vmul.f32 %v2681, %v2681
    %v2698 = vmul.f32 %v2682, %v2682
    %v2699 = vmul.f32 %v2683, %v2683
    %v2700 = vmul.f32 %v2684, %v2684
    %v2701 = vmul.f32 %v2685, %v2685
    %v2702 = vsel %vm913, %v2686, 0.0
    %2703 = vadd.xlane.f32.xlu0 %v2702
    %v2704 = vpop.xlane.xlu0 %2703
    %v2705 = vsel %vm913, %v2687, 0.0
    %2706 = vadd.xlane.f32.xlu0 %v2705
    %v2707 = vpop.xlane.xlu0 %2706
    %v2708 = vsel %vm913, %v2688, 0.0
    %2709 = vadd.xlane.f32.xlu0 %v2708
    %v2710 = vpop.xlane.xlu0 %2709
    %v2711 = vsel %vm913, %v2689, 0.0
    %2712 = vadd.xlane.f32.xlu0 %v2711
    %v2713 = vpop.xlane.xlu0 %2712
    %v2714 = vsel %vm913, %v2690, 0.0
    %2715 = vadd.xlane.f32.xlu0 %v2714
    %v2716 = vpop.xlane.xlu0 %2715
    %v2717 = vsel %vm913, %v2691, 0.0
    %2718 = vadd.xlane.f32.xlu0 %v2717
    %v2719 = vpop.xlane.xlu0 %2718
    %v2720 = vsel %vm913, %v2692, 0.0
    %2721 = vadd.xlane.f32.xlu0 %v2720
    %v2722 = vpop.xlane.xlu0 %2721
    %v2723 = vsel %vm913, %v2693, 0.0
    %2724 = vadd.xlane.f32.xlu0 %v2723
    %v2725 = vpop.xlane.xlu0 %2724
    %v2726 = vsel %vm913, %v2694, 0.0
    %2727 = vadd.xlane.f32.xlu0 %v2726
    %v2728 = vpop.xlane.xlu0 %2727
    %v2729 = vsel %vm913, %v2695, 0.0
    %2730 = vadd.xlane.f32.xlu0 %v2729
    %v2731 = vpop.xlane.xlu0 %2730
    %v2732 = vsel %vm913, %v2696, 0.0
    %2733 = vadd.xlane.f32.xlu0 %v2732
    %v2734 = vpop.xlane.xlu0 %2733
    %v2735 = vsel %vm913, %v2697, 0.0
    %2736 = vadd.xlane.f32.xlu0 %v2735
    %v2737 = vpop.xlane.xlu0 %2736
    %v2738 = vsel %vm913, %v2698, 0.0
    %2739 = vadd.xlane.f32.xlu0 %v2738
    %v2740 = vpop.xlane.xlu0 %2739
    %v2741 = vsel %vm913, %v2699, 0.0
    %2742 = vadd.xlane.f32.xlu0 %v2741
    %v2743 = vpop.xlane.xlu0 %2742
    %v2744 = vsel %vm913, %v2700, 0.0
    %2745 = vadd.xlane.f32.xlu0 %v2744
    %v2746 = vpop.xlane.xlu0 %2745
    %v2747 = vsel %vm913, %v2701, 0.0
    %2748 = vadd.xlane.f32.xlu0 %v2747
    %v2749 = vpop.xlane.xlu0 %2748
    %v2750 = vmul.f32 %v2704, %v2072
    %v2751 = vmul.f32 %v2707, %v2072
    %v2752 = vmul.f32 %v2710, %v2072
    %v2753 = vmul.f32 %v2713, %v2072
    %v2754 = vmul.f32 %v2716, %v2072
    %v2755 = vmul.f32 %v2719, %v2072
    %v2756 = vmul.f32 %v2722, %v2072
    %v2757 = vmul.f32 %v2725, %v2072
    %v2758 = vmul.f32 %v2728, %v2072
    %v2759 = vmul.f32 %v2731, %v2072
    %v2760 = vmul.f32 %v2734, %v2072
    %v2761 = vmul.f32 %v2737, %v2072
    %v2762 = vmul.f32 %v2740, %v2072
    %v2763 = vmul.f32 %v2743, %v2072
    %v2764 = vmul.f32 %v2746, %v2072
    %v2765 = vmul.f32 %v2749, %v2072
    %v2766 = vadd.f32 %v2750, 1e-05
    %v2767 = vadd.f32 %v2751, 1e-05
    %v2768 = vadd.f32 %v2752, 1e-05
    %v2769 = vadd.f32 %v2753, 1e-05
    %v2770 = vadd.f32 %v2754, 1e-05
    %v2771 = vadd.f32 %v2755, 1e-05
    %v2772 = vadd.f32 %v2756, 1e-05
    %v2773 = vadd.f32 %v2757, 1e-05
    %v2774 = vadd.f32 %v2758, 1e-05
    %v2775 = vadd.f32 %v2759, 1e-05
    %v2776 = vadd.f32 %v2760, 1e-05
    %v2777 = vadd.f32 %v2761, 1e-05
    %v2778 = vadd.f32 %v2762, 1e-05
    %v2779 = vadd.f32 %v2763, 1e-05
    %v2780 = vadd.f32 %v2764, 1e-05
    %v2781 = vadd.f32 %v2765, 1e-05
    %v2782 = vrsqrt.pop %v2766
    %v2783 = vmul.f32 %v2782, %v2766
    %v2784 = vmul.f32 %v2783, %v2782
    %v2785 = vmul.f32 0.5, %v2784
    %v2786 = vsub.f32 1.5, %v2785
    %v2787 = vmul.f32 %v2782, %v2786
    %vm2788 = vweird.f32 %v2766
    %vm2789 = vweird.f32 %v2782
    %vm2790 = vmor %vm2788, %vm2789
    %v2791 = vsel %vm2790, %v2782, %v2787
    %v2792 = vrsqrt.pop %v2767
    %v2793 = vmul.f32 %v2792, %v2767
    %v2794 = vmul.f32 %v2793, %v2792
    %v2795 = vmul.f32 0.5, %v2794
    %v2796 = vsub.f32 1.5, %v2795
    %v2797 = vmul.f32 %v2792, %v2796
    %vm2798 = vweird.f32 %v2767
    %vm2799 = vweird.f32 %v2792
    %vm2800 = vmor %vm2798, %vm2799
    %v2801 = vsel %vm2800, %v2792, %v2797
    %v2802 = vrsqrt.pop %v2768
    %v2803 = vmul.f32 %v2802, %v2768
    %v2804 = vmul.f32 %v2803, %v2802
    %v2805 = vmul.f32 0.5, %v2804
    %v2806 = vsub.f32 1.5, %v2805
    %v2807 = vmul.f32 %v2802, %v2806
    %vm2808 = vweird.f32 %v2768
    %vm2809 = vweird.f32 %v2802
    %vm2810 = vmor %vm2808, %vm2809
    %v2811 = vsel %vm2810, %v2802, %v2807
    %v2812 = vrsqrt.pop %v2769
    %v2813 = vmul.f32 %v2812, %v2769
    %v2814 = vmul.f32 %v2813, %v2812
    %v2815 = vmul.f32 0.5, %v2814
    %v2816 = vsub.f32 1.5, %v2815
    %v2817 = vmul.f32 %v2812, %v2816
    %vm2818 = vweird.f32 %v2769
    %vm2819 = vweird.f32 %v2812
    %vm2820 = vmor %vm2818, %vm2819
    %v2821 = vsel %vm2820, %v2812, %v2817
    %v2822 = vrsqrt.pop %v2770
    %v2823 = vmul.f32 %v2822, %v2770
    %v2824 = vmul.f32 %v2823, %v2822
    %v2825 = vmul.f32 0.5, %v2824
    %v2826 = vsub.f32 1.5, %v2825
    %v2827 = vmul.f32 %v2822, %v2826
    %vm2828 = vweird.f32 %v2770
    %vm2829 = vweird.f32 %v2822
    %vm2830 = vmor %vm2828, %vm2829
    %v2831 = vsel %vm2830, %v2822, %v2827
    %v2832 = vrsqrt.pop %v2771
    %v2833 = vmul.f32 %v2832, %v2771
    %v2834 = vmul.f32 %v2833, %v2832
    %v2835 = vmul.f32 0.5, %v2834
    %v2836 = vsub.f32 1.5, %v2835
    %v2837 = vmul.f32 %v2832, %v2836
    %vm2838 = vweird.f32 %v2771
    %vm2839 = vweird.f32 %v2832
    %vm2840 = vmor %vm2838, %vm2839
    %v2841 = vsel %vm2840, %v2832, %v2837
    %v2842 = vrsqrt.pop %v2772
    %v2843 = vmul.f32 %v2842, %v2772
    %v2844 = vmul.f32 %v2843, %v2842
    %v2845 = vmul.f32 0.5, %v2844
    %v2846 = vsub.f32 1.5, %v2845
    %v2847 = vmul.f32 %v2842, %v2846
    %vm2848 = vweird.f32 %v2772
    %vm2849 = vweird.f32 %v2842
    %vm2850 = vmor %vm2848, %vm2849
    %v2851 = vsel %vm2850, %v2842, %v2847
    %v2852 = vrsqrt.pop %v2773
    %v2853 = vmul.f32 %v2852, %v2773
    %v2854 = vmul.f32 %v2853, %v2852
    %v2855 = vmul.f32 0.5, %v2854
    %v2856 = vsub.f32 1.5, %v2855
    %v2857 = vmul.f32 %v2852, %v2856
    %vm2858 = vweird.f32 %v2773
    %vm2859 = vweird.f32 %v2852
    %vm2860 = vmor %vm2858, %vm2859
    %v2861 = vsel %vm2860, %v2852, %v2857
    %v2862 = vrsqrt.pop %v2774
    %v2863 = vmul.f32 %v2862, %v2774
    %v2864 = vmul.f32 %v2863, %v2862
    %v2865 = vmul.f32 0.5, %v2864
    %v2866 = vsub.f32 1.5, %v2865
    %v2867 = vmul.f32 %v2862, %v2866
    %vm2868 = vweird.f32 %v2774
    %vm2869 = vweird.f32 %v2862
    %vm2870 = vmor %vm2868, %vm2869
    %v2871 = vsel %vm2870, %v2862, %v2867
    %v2872 = vrsqrt.pop %v2775
    %v2873 = vmul.f32 %v2872, %v2775
    %v2874 = vmul.f32 %v2873, %v2872
    %v2875 = vmul.f32 0.5, %v2874
    %v2876 = vsub.f32 1.5, %v2875
    %v2877 = vmul.f32 %v2872, %v2876
    %vm2878 = vweird.f32 %v2775
    %vm2879 = vweird.f32 %v2872
    %vm2880 = vmor %vm2878, %vm2879
    %v2881 = vsel %vm2880, %v2872, %v2877
    %v2882 = vrsqrt.pop %v2776
    %v2883 = vmul.f32 %v2882, %v2776
    %v2884 = vmul.f32 %v2883, %v2882
    %v2885 = vmul.f32 0.5, %v2884
    %v2886 = vsub.f32 1.5, %v2885
    %v2887 = vmul.f32 %v2882, %v2886
    %vm2888 = vweird.f32 %v2776
    %vm2889 = vweird.f32 %v2882
    %vm2890 = vmor %vm2888, %vm2889
    %v2891 = vsel %vm2890, %v2882, %v2887
    %v2892 = vrsqrt.pop %v2777
    %v2893 = vmul.f32 %v2892, %v2777
    %v2894 = vmul.f32 %v2893, %v2892
    %v2895 = vmul.f32 0.5, %v2894
    %v2896 = vsub.f32 1.5, %v2895
    %v2897 = vmul.f32 %v2892, %v2896
    %vm2898 = vweird.f32 %v2777
    %vm2899 = vweird.f32 %v2892
    %vm2900 = vmor %vm2898, %vm2899
    %v2901 = vsel %vm2900, %v2892, %v2897
    %v2902 = vrsqrt.pop %v2778
    %v2903 = vmul.f32 %v2902, %v2778
    %v2904 = vmul.f32 %v2903, %v2902
    %v2905 = vmul.f32 0.5, %v2904
    %v2906 = vsub.f32 1.5, %v2905
    %v2907 = vmul.f32 %v2902, %v2906
    %vm2908 = vweird.f32 %v2778
    %vm2909 = vweird.f32 %v2902
    %vm2910 = vmor %vm2908, %vm2909
    %v2911 = vsel %vm2910, %v2902, %v2907
    %v2912 = vrsqrt.pop %v2779
    %v2913 = vmul.f32 %v2912, %v2779
    %v2914 = vmul.f32 %v2913, %v2912
    %v2915 = vmul.f32 0.5, %v2914
    %v2916 = vsub.f32 1.5, %v2915
    %v2917 = vmul.f32 %v2912, %v2916
    %vm2918 = vweird.f32 %v2779
    %vm2919 = vweird.f32 %v2912
    %vm2920 = vmor %vm2918, %vm2919
    %v2921 = vsel %vm2920, %v2912, %v2917
    %v2922 = vrsqrt.pop %v2780
    %v2923 = vmul.f32 %v2922, %v2780
    %v2924 = vmul.f32 %v2923, %v2922
    %v2925 = vmul.f32 0.5, %v2924
    %v2926 = vsub.f32 1.5, %v2925
    %v2927 = vmul.f32 %v2922, %v2926
    %vm2928 = vweird.f32 %v2780
    %vm2929 = vweird.f32 %v2922
    %vm2930 = vmor %vm2928, %vm2929
    %v2931 = vsel %vm2930, %v2922, %v2927
    %v2932 = vrsqrt.pop %v2781
    %v2933 = vmul.f32 %v2932, %v2781
    %v2934 = vmul.f32 %v2933, %v2932
    %v2935 = vmul.f32 0.5, %v2934
    %v2936 = vsub.f32 1.5, %v2935
    %v2937 = vmul.f32 %v2932, %v2936
    %vm2938 = vweird.f32 %v2781
    %vm2939 = vweird.f32 %v2932
    %vm2940 = vmor %vm2938, %vm2939
    %v2941 = vsel %vm2940, %v2932, %v2937
    %v2942 = vmul.f32 %v2670, %v2791
    %v2943 = vmul.f32 %v2671, %v2801
    %v2944 = vmul.f32 %v2672, %v2811
    %v2945 = vmul.f32 %v2673, %v2821
    %v2946 = vmul.f32 %v2674, %v2831
    %v2947 = vmul.f32 %v2675, %v2841
    %v2948 = vmul.f32 %v2676, %v2851
    %v2949 = vmul.f32 %v2677, %v2861
    %v2950 = vmul.f32 %v2678, %v2871
    %v2951 = vmul.f32 %v2679, %v2881
    %v2952 = vmul.f32 %v2680, %v2891
    %v2953 = vmul.f32 %v2681, %v2901
    %v2954 = vmul.f32 %v2682, %v2911
    %v2955 = vmul.f32 %v2683, %v2921
    %v2956 = vmul.f32 %v2684, %v2931
    %v2957 = vmul.f32 %v2685, %v2941
    %v2958 = vperm.slane %v35, 0
    %v2959 = vmul.f32 %v2942, %v2958
    %v2960 = vmul.f32 %v2943, %v2958
    %v2961 = vmul.f32 %v2944, %v2958
    %v2962 = vmul.f32 %v2945, %v2958
    %v2963 = vmul.f32 %v2946, %v2958
    %v2964 = vmul.f32 %v2947, %v2958
    %v2965 = vmul.f32 %v2948, %v2958
    %v2966 = vmul.f32 %v2949, %v2958
    %v2967 = vmul.f32 %v2950, %v2958
    %v2968 = vmul.f32 %v2951, %v2958
    %v2969 = vmul.f32 %v2952, %v2958
    %v2970 = vmul.f32 %v2953, %v2958
    %v2971 = vmul.f32 %v2954, %v2958
    %v2972 = vmul.f32 %v2955, %v2958
    %v2973 = vmul.f32 %v2956, %v2958
    %v2974 = vmul.f32 %v2957, %v2958
    %v2975 = vperm.slane %v35, 1
    %v2976 = vadd.f32 %v2959, %v2975
    %v2977 = vadd.f32 %v2960, %v2975
    %v2978 = vadd.f32 %v2961, %v2975
    %v2979 = vadd.f32 %v2962, %v2975
    %v2980 = vadd.f32 %v2963, %v2975
    %v2981 = vadd.f32 %v2964, %v2975
    %v2982 = vadd.f32 %v2965, %v2975
    %v2983 = vadd.f32 %v2966, %v2975
    %v2984 = vadd.f32 %v2967, %v2975
    %v2985 = vadd.f32 %v2968, %v2975
    %v2986 = vadd.f32 %v2969, %v2975
    %v2987 = vadd.f32 %v2970, %v2975
    %v2988 = vadd.f32 %v2971, %v2975
    %v2989 = vadd.f32 %v2972, %v2975
    %v2990 = vadd.f32 %v2973, %v2975
    %v2991 = vadd.f32 %v2974, %v2975
    %3008 = vrot.lane.b32.xlu0 %v987, 64
    %v3009 = vpop.permute.xlu0 %3008
    %3010 = vrot.lane.b32.xlu0 %v988, 64
    %v3011 = vpop.permute.xlu0 %3010
    %3012 = vrot.lane.b32.xlu0 %v989, 64
    %v3013 = vpop.permute.xlu0 %3012
    %3014 = vrot.lane.b32.xlu0 %v990, 64
    %v3015 = vpop.permute.xlu0 %3014
    %3016 = vrot.lane.b32.xlu0 %v991, 64
    %v3017 = vpop.permute.xlu0 %3016
    %3018 = vrot.lane.b32.xlu0 %v992, 64
    %v3019 = vpop.permute.xlu0 %3018
    %3020 = vrot.lane.b32.xlu0 %v993, 64
    %v3021 = vpop.permute.xlu0 %3020
    %3022 = vrot.lane.b32.xlu0 %v994, 64
    %v3023 = vpop.permute.xlu0 %3022
    %3024 = vrot.lane.b32.xlu0 %v995, 64
    %v3025 = vpop.permute.xlu0 %3024
    %3026 = vrot.lane.b32.xlu0 %v996, 64
    %v3027 = vpop.permute.xlu0 %3026
    %3028 = vrot.lane.b32.xlu0 %v997, 64
    %v3029 = vpop.permute.xlu0 %3028
    %3030 = vrot.lane.b32.xlu0 %v998, 64
    %v3031 = vpop.permute.xlu0 %3030
    %3032 = vrot.lane.b32.xlu0 %v999, 64
    %v3033 = vpop.permute.xlu0 %3032
    %3034 = vrot.lane.b32.xlu0 %v1000, 64
    %v3035 = vpop.permute.xlu0 %3034
    %3036 = vrot.lane.b32.xlu0 %v1001, 64
    %v3037 = vpop.permute.xlu0 %3036
    %3038 = vrot.lane.b32.xlu0 %v1002, 64
    %v3039 = vpop.permute.xlu0 %3038
    %v3056 = vsel %vm913, %v2976, %v3009
    %v3057 = vsel %vm913, %v2977, %v3011
    %v3058 = vsel %vm913, %v2978, %v3013
    %v3059 = vsel %vm913, %v2979, %v3015
    %v3060 = vsel %vm913, %v2980, %v3017
    %v3061 = vsel %vm913, %v2981, %v3019
    %v3062 = vsel %vm913, %v2982, %v3021
    %v3063 = vsel %vm913, %v2983, %v3023
    %v3064 = vsel %vm913, %v2984, %v3025
    %v3065 = vsel %vm913, %v2985, %v3027
    %v3066 = vsel %vm913, %v2986, %v3029
    %v3067 = vsel %vm913, %v2987, %v3031
    %v3068 = vsel %vm913, %v2988, %v3033
    %v3069 = vsel %vm913, %v2989, %v3035
    %v3070 = vsel %vm913, %v2990, %v3037
    %v3071 = vsel %vm913, %v2991, %v3039
    %v3072 = vpack.c.bf16 %v3057, %v3056
    %v3073 = vpack.c.bf16 %v3059, %v3058
    %v3074 = vpack.c.bf16 %v3061, %v3060
    %v3075 = vpack.c.bf16 %v3063, %v3062
    %v3076 = vpack.c.bf16 %v3065, %v3064
    %v3077 = vpack.c.bf16 %v3067, %v3066
    %v3078 = vpack.c.bf16 %v3069, %v3068
    %v3079 = vpack.c.bf16 %v3071, %v3070
    %v3080 = vperm.slane %v35, 2
    %v3097 = vunpack.c.l.b16 %v1677
    %v3098 = vunpack.c.l.b16 %v1678
    %v3099 = vunpack.c.l.b16 %v1679
    %v3100 = vunpack.c.l.b16 %v1680
    %v3101 = vunpack.c.l.b16 %v1681
    %v3102 = vunpack.c.l.b16 %v1682
    %v3103 = vunpack.c.l.b16 %v1683
    %v3104 = vunpack.c.l.b16 %v1684
    %v3105 = vunpack.c.l.b16 %v1685
    %v3106 = vunpack.c.l.b16 %v1686
    %v3107 = vunpack.c.l.b16 %v1687
    %v3108 = vunpack.c.l.b16 %v1688
    %v3109 = vunpack.c.l.b16 %v1689
    %v3110 = vunpack.c.l.b16 %v1690
    %v3111 = vunpack.c.l.b16 %v1691
    %v3112 = vunpack.c.l.b16 %v1692
    %v3113 = vpack.c.b16 %v3098, %v3097
    %v3114 = vpack.c.b16 %v3100, %v3099
    %v3115 = vpack.c.b16 %v3102, %v3101
    %v3116 = vpack.c.b16 %v3104, %v3103
    %v3117 = vpack.c.b16 %v3106, %v3105
    %v3118 = vpack.c.b16 %v3108, %v3107
    %v3119 = vpack.c.b16 %v3110, %v3109
    %v3120 = vpack.c.b16 %v3112, %v3111
    %3129 = vmatpush.bf16.msra.mxu0 %v3120
    %3130 = vmatpush.bf16.msra.mxu0 %v3119
    %3131 = vmatpush.bf16.msra.mxu0 %v3118
    %3132 = vmatpush.bf16.msra.mxu0 %v3117
    %3133 = vmatpush.bf16.msra.mxu0 %v3116
    %3134 = vmatpush.bf16.msra.mxu0 %v3115
    %3135 = vmatpush.bf16.msra.mxu0 %v3114
    %3136 = vmatpush.bf16.msra.mxu0 %v3113
    %3137 = vmatmul.bf16.gmra.mxu0 %v3072
    %v3138 = vpop.f32.mrf.mxu0
    %v3139 = vadd.f32 %v3080, %v3138
    %v3140 = vpop.f32.mrf.mxu0
    %v3141 = vadd.f32 %v3080, %v3140
    %3142 = vmatmul.bf16.gmra.mxu0 %v3073
    %v3143 = vpop.f32.mrf.mxu0
    %v3144 = vadd.f32 %v3080, %v3143
    %v3145 = vpop.f32.mrf.mxu0
    %v3146 = vadd.f32 %v3080, %v3145
    %3147 = vmatmul.bf16.gmra.mxu0 %v3074
    %v3148 = vpop.f32.mrf.mxu0
    %v3149 = vadd.f32 %v3080, %v3148
    %v3150 = vpop.f32.mrf.mxu0
    %v3151 = vadd.f32 %v3080, %v3150
    %3152 = vmatmul.bf16.gmra.mxu0 %v3075
    %v3153 = vpop.f32.mrf.mxu0
    %v3154 = vadd.f32 %v3080, %v3153
    %v3155 = vpop.f32.mrf.mxu0
    %v3156 = vadd.f32 %v3080, %v3155
    %3157 = vmatmul.bf16.gmra.mxu0 %v3076
    %v3158 = vpop.f32.mrf.mxu0
    %v3159 = vadd.f32 %v3080, %v3158
    %v3160 = vpop.f32.mrf.mxu0
    %v3161 = vadd.f32 %v3080, %v3160
    %3162 = vmatmul.bf16.gmra.mxu0 %v3077
    %v3163 = vpop.f32.mrf.mxu0
    %v3164 = vadd.f32 %v3080, %v3163
    %v3165 = vpop.f32.mrf.mxu0
    %v3166 = vadd.f32 %v3080, %v3165
    %3167 = vmatmul.bf16.gmra.mxu0 %v3078
    %v3168 = vpop.f32.mrf.mxu0
    %v3169 = vadd.f32 %v3080, %v3168
    %v3170 = vpop.f32.mrf.mxu0
    %v3171 = vadd.f32 %v3080, %v3170
    %3172 = vmatmul.bf16.gmra.mxu0 %v3079
    %v3173 = vpop.f32.mrf.mxu0
    %v3174 = vadd.f32 %v3080, %v3173
    %v3175 = vpop.f32.mrf.mxu0
    %v3176 = vadd.f32 %v3080, %v3175
    %3177 = vdwg.mxu0
    %v3178 = vmax.f32 %v3139, 0.0
    %v3179 = vmax.f32 %v3141, 0.0
    %v3180 = vmax.f32 %v3144, 0.0
    %v3181 = vmax.f32 %v3146, 0.0
    %v3182 = vmax.f32 %v3149, 0.0
    %v3183 = vmax.f32 %v3151, 0.0
    %v3184 = vmax.f32 %v3154, 0.0
    %v3185 = vmax.f32 %v3156, 0.0
    %v3186 = vmax.f32 %v3159, 0.0
    %v3187 = vmax.f32 %v3161, 0.0
    %v3188 = vmax.f32 %v3164, 0.0
    %v3189 = vmax.f32 %v3166, 0.0
    %v3190 = vmax.f32 %v3169, 0.0
    %v3191 = vmax.f32 %v3171, 0.0
    %v3192 = vmax.f32 %v3174, 0.0
    %v3193 = vmax.f32 %v3176, 0.0
    %v3194 = vpack.c.bf16 %v3179, %v3178
    %v3195 = vpack.c.bf16 %v3181, %v3180
    %v3196 = vpack.c.bf16 %v3183, %v3182
    %v3197 = vpack.c.bf16 %v3185, %v3184
    %v3198 = vpack.c.bf16 %v3187, %v3186
    %v3199 = vpack.c.bf16 %v3189, %v3188
    %v3200 = vpack.c.bf16 %v3191, %v3190
    %v3201 = vpack.c.bf16 %v3193, %v3192
    %v3202 = vperm.slane %v35, 3
    %v3211 = vunpack.c.l.b16 %v1669
    %v3212 = vunpack.c.l.b16 %v1670
    %v3213 = vunpack.c.l.b16 %v1671
    %v3214 = vunpack.c.l.b16 %v1672
    %v3215 = vunpack.c.l.b16 %v1673
    %v3216 = vunpack.c.l.b16 %v1674
    %v3217 = vunpack.c.l.b16 %v1675
    %v3218 = vunpack.c.l.b16 %v1676
    %v3219 = vpack.c.b16 %v3212, %v3211
    %v3220 = vpack.c.b16 %v3214, %v3213
    %v3221 = vpack.c.b16 %v3216, %v3215
    %v3222 = vpack.c.b16 %v3218, %v3217
    %v3228 = vsel %vm913, %v3194, 0
    %v3231 = vsel %vm913, %v3195, 0
    %v3234 = vsel %vm913, %v3196, 0
    %v3237 = vsel %vm913, %v3197, 0
    %v3240 = vsel %vm913, %v3198, 0
    %v3243 = vsel %vm913, %v3199, 0
    %v3246 = vsel %vm913, %v3200, 0
    %v3249 = vsel %vm913, %v3201, 0
    %3251 = vmatpush.bf16.msra.mxu0 0
    %3252 = vmatpush.bf16.msra.mxu0 0
    %3253 = vmatpush.bf16.msra.mxu0 0
    %3254 = vmatpush.bf16.msra.mxu0 0
    %3255 = vmatpush.bf16.msra.mxu0 %v3222
    %3256 = vmatpush.bf16.msra.mxu0 %v3221
    %3257 = vmatpush.bf16.msra.mxu0 %v3220
    %3258 = vmatpush.bf16.msra.mxu0 %v3219
    %3259 = vmatmul.bf16.gmra.mxu0 %v3228
    %v3260 = vpop.f32.mrf.mxu0
    %v3261 = vadd.f32 %v3202, %v3260
    %v3262 = vpop.f32.mrf.mxu0
    %v3263 = vadd.f32 %v3202, %v3262
    %3264 = vmatmul.bf16.gmra.mxu0 %v3231
    %v3265 = vpop.f32.mrf.mxu0
    %v3266 = vadd.f32 %v3202, %v3265
    %v3267 = vpop.f32.mrf.mxu0
    %v3268 = vadd.f32 %v3202, %v3267
    %3269 = vmatmul.bf16.gmra.mxu0 %v3234
    %v3270 = vpop.f32.mrf.mxu0
    %v3271 = vadd.f32 %v3202, %v3270
    %v3272 = vpop.f32.mrf.mxu0
    %v3273 = vadd.f32 %v3202, %v3272
    %3274 = vmatmul.bf16.gmra.mxu0 %v3237
    %v3275 = vpop.f32.mrf.mxu0
    %v3276 = vadd.f32 %v3202, %v3275
    %v3277 = vpop.f32.mrf.mxu0
    %v3278 = vadd.f32 %v3202, %v3277
    %3279 = vmatmul.bf16.gmra.mxu0 %v3240
    %v3280 = vpop.f32.mrf.mxu0
    %v3281 = vadd.f32 %v3202, %v3280
    %v3282 = vpop.f32.mrf.mxu0
    %v3283 = vadd.f32 %v3202, %v3282
    %3284 = vmatmul.bf16.gmra.mxu0 %v3243
    %v3285 = vpop.f32.mrf.mxu0
    %v3286 = vadd.f32 %v3202, %v3285
    %v3287 = vpop.f32.mrf.mxu0
    %v3288 = vadd.f32 %v3202, %v3287
    %3289 = vmatmul.bf16.gmra.mxu0 %v3246
    %v3290 = vpop.f32.mrf.mxu0
    %v3291 = vadd.f32 %v3202, %v3290
    %v3292 = vpop.f32.mrf.mxu0
    %v3293 = vadd.f32 %v3202, %v3292
    %3294 = vmatmul.bf16.gmra.mxu0 %v3249
    %v3295 = vpop.f32.mrf.mxu0
    %v3296 = vadd.f32 %v3202, %v3295
    %v3297 = vpop.f32.mrf.mxu0
    %v3298 = vadd.f32 %v3202, %v3297
    %3299 = vdwg.mxu0
    %s3300 = scalar_lea.vmem %s6, 192
    %v3301 = vld [vmem:[%s3300] sm:$0xf]
    %v3302 = vld [vmem:[%s3300 + $0x4] sm:$0xf]
    %v3303 = vld [vmem:[%s3300 + $0x8] sm:$0xf]
    %v3304 = vld [vmem:[%s3300 + $0xc] sm:$0xf]
    %v3305 = vld [vmem:[%s3300 + $0x10] sm:$0xf]
    %v3306 = vld [vmem:[%s3300 + $0x14] sm:$0xf]
    %v3307 = vld [vmem:[%s3300 + $0x18] sm:$0xf]
    %v3308 = vld [vmem:[%s3300 + $0x1c] sm:$0xf]
    %s3309 = scalar_lea.vmem %s6, 224
    %v3310 = vld [vmem:[%s3309] sm:$0xf]
    %v3311 = vld [vmem:[%s3309 + $0x4] sm:$0xf]
    %v3312 = vld [vmem:[%s3309 + $0x8] sm:$0xf]
    %v3313 = vld [vmem:[%s3309 + $0xc] sm:$0xf]
    %v3314 = vld [vmem:[%s3309 + $0x10] sm:$0xf]
    %v3315 = vld [vmem:[%s3309 + $0x14] sm:$0xf]
    %v3316 = vld [vmem:[%s3309 + $0x18] sm:$0xf]
    %v3317 = vld [vmem:[%s3309 + $0x1c] sm:$0xf]
    %s3318 = scalar_lea.vmem %s6, 256
    %v3319 = vld [vmem:[%s3318] sm:$0xf]
    %v3320 = vld [vmem:[%s3318 + $0x4] sm:$0xf]
    %v3321 = vld [vmem:[%s3318 + $0x8] sm:$0xf]
    %v3322 = vld [vmem:[%s3318 + $0xc] sm:$0xf]
    %v3323 = vld [vmem:[%s3318 + $0x10] sm:$0xf]
    %v3324 = vld [vmem:[%s3318 + $0x14] sm:$0xf]
    %v3325 = vld [vmem:[%s3318 + $0x18] sm:$0xf]
    %v3326 = vld [vmem:[%s3318 + $0x1c] sm:$0xf]
    %s3327 = scalar_lea.vmem %s6, 288
    %v3328 = vld [vmem:[%s3327] sm:$0xf]
    %v3329 = vld [vmem:[%s3327 + $0x4] sm:$0xf]
    %v3330 = vld [vmem:[%s3327 + $0x8] sm:$0xf]
    %v3331 = vld [vmem:[%s3327 + $0xc] sm:$0xf]
    %v3332 = vld [vmem:[%s3327 + $0x10] sm:$0xf]
    %v3333 = vld [vmem:[%s3327 + $0x14] sm:$0xf]
    %v3334 = vld [vmem:[%s3327 + $0x18] sm:$0xf]
    %v3335 = vld [vmem:[%s3327 + $0x1c] sm:$0xf]
    %s3336 = scalar_lea.vmem %s7, 64
    %v3337 = vld [vmem:[%s3336] sm:$0xf]
    %v3338 = vld [vmem:[%s3336 + $0x4] sm:$0xf]
    %v3339 = vld [vmem:[%s3336 + $0x8] sm:$0xf]
    %v3340 = vld [vmem:[%s3336 + $0xc] sm:$0xf]
    %v3341 = vld [vmem:[%s3336 + $0x10] sm:$0xf]
    %v3342 = vld [vmem:[%s3336 + $0x14] sm:$0xf]
    %v3343 = vld [vmem:[%s3336 + $0x18] sm:$0xf]
    %v3344 = vld [vmem:[%s3336 + $0x1c] sm:$0xf]
    %v3345 = vld [vmem:[%s3336 + $0x20] sm:$0xf]
    %v3346 = vld [vmem:[%s3336 + $0x24] sm:$0xf]
    %v3347 = vld [vmem:[%s3336 + $0x28] sm:$0xf]
    %v3348 = vld [vmem:[%s3336 + $0x2c] sm:$0xf]
    %v3349 = vld [vmem:[%s3336 + $0x30] sm:$0xf]
    %v3350 = vld [vmem:[%s3336 + $0x34] sm:$0xf]
    %v3351 = vld [vmem:[%s3336 + $0x38] sm:$0xf]
    %v3352 = vld [vmem:[%s3336 + $0x3c] sm:$0xf]
    %v3353 = vpack.c.bf16 %v3263, %v3261
    %v3354 = vpack.c.bf16 %v3268, %v3266
    %v3355 = vpack.c.bf16 %v3273, %v3271
    %v3356 = vpack.c.bf16 %v3278, %v3276
    %v3357 = vpack.c.bf16 %v3283, %v3281
    %v3358 = vpack.c.bf16 %v3288, %v3286
    %v3359 = vpack.c.bf16 %v3293, %v3291
    %v3360 = vpack.c.bf16 %v3298, %v3296
    %v3369 = vunpack.c.l.b16 %v3310
    %v3370 = vunpack.c.l.b16 %v3311
    %v3371 = vunpack.c.l.b16 %v3312
    %v3372 = vunpack.c.l.b16 %v3313
    %v3373 = vunpack.c.l.b16 %v3314
    %v3374 = vunpack.c.l.b16 %v3315
    %v3375 = vunpack.c.l.b16 %v3316
    %v3376 = vunpack.c.l.b16 %v3317
    %v3377 = vpack.c.b16 %v3370, %v3369
    %v3378 = vpack.c.b16 %v3372, %v3371
    %v3379 = vpack.c.b16 %v3374, %v3373
    %v3380 = vpack.c.b16 %v3376, %v3375
    %v3386 = vsel %vm913, %v3353, 0
    %v3389 = vsel %vm913, %v3354, 0
    %v3392 = vsel %vm913, %v3355, 0
    %v3395 = vsel %vm913, %v3356, 0
    %v3398 = vsel %vm913, %v3357, 0
    %v3401 = vsel %vm913, %v3358, 0
    %v3404 = vsel %vm913, %v3359, 0
    %v3407 = vsel %vm913, %v3360, 0
    %3409 = vmatpush.bf16.msra.mxu0 0
    %3410 = vmatpush.bf16.msra.mxu0 0
    %3411 = vmatpush.bf16.msra.mxu0 0
    %3412 = vmatpush.bf16.msra.mxu0 0
    %3413 = vmatpush.bf16.msra.mxu0 %v3380
    %3414 = vmatpush.bf16.msra.mxu0 %v3379
    %3415 = vmatpush.bf16.msra.mxu0 %v3378
    %3416 = vmatpush.bf16.msra.mxu0 %v3377
    %3417 = vmatmul.bf16.gmra.mxu0 %v3386
    %v3418 = vpop.f32.mrf.mxu0
    %v3419 = vadd.f32 0.0, %v3418
    %v3420 = vpop.f32.mrf.mxu0
    %v3421 = vadd.f32 0.0, %v3420
    %3422 = vmatmul.bf16.gmra.mxu0 %v3389
    %v3423 = vpop.f32.mrf.mxu0
    %v3424 = vadd.f32 0.0, %v3423
    %v3425 = vpop.f32.mrf.mxu0
    %v3426 = vadd.f32 0.0, %v3425
    %3427 = vmatmul.bf16.gmra.mxu0 %v3392
    %v3428 = vpop.f32.mrf.mxu0
    %v3429 = vadd.f32 0.0, %v3428
    %v3430 = vpop.f32.mrf.mxu0
    %v3431 = vadd.f32 0.0, %v3430
    %3432 = vmatmul.bf16.gmra.mxu0 %v3395
    %v3433 = vpop.f32.mrf.mxu0
    %v3434 = vadd.f32 0.0, %v3433
    %v3435 = vpop.f32.mrf.mxu0
    %v3436 = vadd.f32 0.0, %v3435
    %3437 = vmatmul.bf16.gmra.mxu0 %v3398
    %v3438 = vpop.f32.mrf.mxu0
    %v3439 = vadd.f32 0.0, %v3438
    %v3440 = vpop.f32.mrf.mxu0
    %v3441 = vadd.f32 0.0, %v3440
    %3442 = vmatmul.bf16.gmra.mxu0 %v3401
    %v3443 = vpop.f32.mrf.mxu0
    %v3444 = vadd.f32 0.0, %v3443
    %v3445 = vpop.f32.mrf.mxu0
    %v3446 = vadd.f32 0.0, %v3445
    %3447 = vmatmul.bf16.gmra.mxu0 %v3404
    %v3448 = vpop.f32.mrf.mxu0
    %v3449 = vadd.f32 0.0, %v3448
    %v3450 = vpop.f32.mrf.mxu0
    %v3451 = vadd.f32 0.0, %v3450
    %3452 = vmatmul.bf16.gmra.mxu0 %v3407
    %v3453 = vpop.f32.mrf.mxu0
    %v3454 = vadd.f32 0.0, %v3453
    %v3455 = vpop.f32.mrf.mxu0
    %v3456 = vadd.f32 0.0, %v3455
    %3457 = vdwg.mxu0
    %v3466 = vunpack.c.l.b16 %v3301
    %v3467 = vunpack.c.l.b16 %v3302
    %v3468 = vunpack.c.l.b16 %v3303
    %v3469 = vunpack.c.l.b16 %v3304
    %v3470 = vunpack.c.l.b16 %v3305
    %v3471 = vunpack.c.l.b16 %v3306
    %v3472 = vunpack.c.l.b16 %v3307
    %v3473 = vunpack.c.l.b16 %v3308
    %v3474 = vpack.c.b16 %v3467, %v3466
    %v3475 = vpack.c.b16 %v3469, %v3468
    %v3476 = vpack.c.b16 %v3471, %v3470
    %v3477 = vpack.c.b16 %v3473, %v3472
    %3482 = vmatpush.bf16.msra.mxu0 0
    %3483 = vmatpush.bf16.msra.mxu0 0
    %3484 = vmatpush.bf16.msra.mxu0 0
    %3485 = vmatpush.bf16.msra.mxu0 0
    %3486 = vmatpush.bf16.msra.mxu0 %v3477
    %3487 = vmatpush.bf16.msra.mxu0 %v3476
    %3488 = vmatpush.bf16.msra.mxu0 %v3475
    %3489 = vmatpush.bf16.msra.mxu0 %v3474
    %3490 = vmatmul.bf16.gmra.mxu0 %v1831
    %v3491 = vpop.f32.mrf.mxu0
    %v3492 = vadd.f32 0.0, %v3491
    %v3493 = vpop.f32.mrf.mxu0
    %v3494 = vadd.f32 0.0, %v3493
    %3495 = vmatmul.bf16.gmra.mxu0 %v1834
    %v3496 = vpop.f32.mrf.mxu0
    %v3497 = vadd.f32 0.0, %v3496
    %v3498 = vpop.f32.mrf.mxu0
    %v3499 = vadd.f32 0.0, %v3498
    %3500 = vmatmul.bf16.gmra.mxu0 %v1837
    %v3501 = vpop.f32.mrf.mxu0
    %v3502 = vadd.f32 0.0, %v3501
    %v3503 = vpop.f32.mrf.mxu0
    %v3504 = vadd.f32 0.0, %v3503
    %3505 = vmatmul.bf16.gmra.mxu0 %v1840
    %v3506 = vpop.f32.mrf.mxu0
    %v3507 = vadd.f32 0.0, %v3506
    %v3508 = vpop.f32.mrf.mxu0
    %v3509 = vadd.f32 0.0, %v3508
    %3510 = vmatmul.bf16.gmra.mxu0 %v1843
    %v3511 = vpop.f32.mrf.mxu0
    %v3512 = vadd.f32 0.0, %v3511
    %v3513 = vpop.f32.mrf.mxu0
    %v3514 = vadd.f32 0.0, %v3513
    %3515 = vmatmul.bf16.gmra.mxu0 %v1846
    %v3516 = vpop.f32.mrf.mxu0
    %v3517 = vadd.f32 0.0, %v3516
    %v3518 = vpop.f32.mrf.mxu0
    %v3519 = vadd.f32 0.0, %v3518
    %3520 = vmatmul.bf16.gmra.mxu0 %v1849
    %v3521 = vpop.f32.mrf.mxu0
    %v3522 = vadd.f32 0.0, %v3521
    %v3523 = vpop.f32.mrf.mxu0
    %v3524 = vadd.f32 0.0, %v3523
    %3525 = vmatmul.bf16.gmra.mxu0 %v1852
    %v3526 = vpop.f32.mrf.mxu0
    %v3527 = vadd.f32 0.0, %v3526
    %v3528 = vpop.f32.mrf.mxu0
    %v3529 = vadd.f32 0.0, %v3528
    %3530 = vdwg.mxu0
    %v3531 = vpack.c.bf16 %v3421, %v3419
    %v3532 = vpack.c.bf16 %v3426, %v3424
    %v3533 = vpack.c.bf16 %v3431, %v3429
    %v3534 = vpack.c.bf16 %v3436, %v3434
    %v3535 = vpack.c.bf16 %v3441, %v3439
    %v3536 = vpack.c.bf16 %v3446, %v3444
    %v3537 = vpack.c.bf16 %v3451, %v3449
    %v3538 = vpack.c.bf16 %v3456, %v3454
    %v3539 = vpack.c.bf16 %v3494, %v3492
    %v3540 = vpack.c.bf16 %v3499, %v3497
    %v3541 = vpack.c.bf16 %v3504, %v3502
    %v3542 = vpack.c.bf16 %v3509, %v3507
    %v3543 = vpack.c.bf16 %v3514, %v3512
    %v3544 = vpack.c.bf16 %v3519, %v3517
    %v3545 = vpack.c.bf16 %v3524, %v3522
    %v3546 = vpack.c.bf16 %v3529, %v3527
    %v3547 = vperm.slane %v35, 4
    %3548 = vmatpush.bf16.msra.mxu0 %v3538
    %3549 = vmatpush.bf16.msra.mxu0 %v3537
    %3550 = vmatpush.bf16.msra.mxu0 %v3536
    %3551 = vmatpush.bf16.msra.mxu0 %v3535
    %3552 = vmatpush.bf16.msra.mxu0 %v3534
    %3553 = vmatpush.bf16.msra.mxu0 %v3533
    %3554 = vmatpush.bf16.msra.mxu0 %v3532
    %3555 = vmatpush.bf16.msra.mxu0 %v3531
    %3556 = vmatmul.bf16.gmra.mxu0 %v297
    %v3557 = vpop.f32.mrf.mxu0
    %v3558 = vadd.f32 %v3547, %v3557
    %v3559 = vpop.f32.mrf.mxu0
    %v3560 = vadd.f32 %v3547, %v3559
    %3561 = vmatmul.bf16.gmra.mxu0 %v298
    %v3562 = vpop.f32.mrf.mxu0
    %v3563 = vadd.f32 %v3547, %v3562
    %v3564 = vpop.f32.mrf.mxu0
    %v3565 = vadd.f32 %v3547, %v3564
    %3566 = vmatmul.bf16.gmra.mxu0 %v299
    %v3567 = vpop.f32.mrf.mxu0
    %v3568 = vadd.f32 %v3547, %v3567
    %v3569 = vpop.f32.mrf.mxu0
    %v3570 = vadd.f32 %v3547, %v3569
    %3571 = vmatmul.bf16.gmra.mxu0 %v300
    %v3572 = vpop.f32.mrf.mxu0
    %v3573 = vadd.f32 %v3547, %v3572
    %v3574 = vpop.f32.mrf.mxu0
    %v3575 = vadd.f32 %v3547, %v3574
    %3576 = vmatmul.bf16.gmra.mxu0 %v301
    %v3577 = vpop.f32.mrf.mxu0
    %v3578 = vadd.f32 %v3547, %v3577
    %v3579 = vpop.f32.mrf.mxu0
    %v3580 = vadd.f32 %v3547, %v3579
    %3581 = vmatmul.bf16.gmra.mxu0 %v302
    %v3582 = vpop.f32.mrf.mxu0
    %v3583 = vadd.f32 %v3547, %v3582
    %v3584 = vpop.f32.mrf.mxu0
    %v3585 = vadd.f32 %v3547, %v3584
    %3586 = vmatmul.bf16.gmra.mxu0 %v303
    %v3587 = vpop.f32.mrf.mxu0
    %v3588 = vadd.f32 %v3547, %v3587
    %v3589 = vpop.f32.mrf.mxu0
    %v3590 = vadd.f32 %v3547, %v3589
    %3591 = vmatmul.bf16.gmra.mxu0 %v304
    %v3592 = vpop.f32.mrf.mxu0
    %v3593 = vadd.f32 %v3547, %v3592
    %v3594 = vpop.f32.mrf.mxu0
    %v3595 = vadd.f32 %v3547, %v3594
    %3596 = vdwg.mxu0
    %3597 = vmatpush.bf16.msra.mxu0 %v3546
    %3598 = vmatpush.bf16.msra.mxu0 %v3545
    %3599 = vmatpush.bf16.msra.mxu0 %v3544
    %3600 = vmatpush.bf16.msra.mxu0 %v3543
    %3601 = vmatpush.bf16.msra.mxu0 %v3542
    %3602 = vmatpush.bf16.msra.mxu0 %v3541
    %3603 = vmatpush.bf16.msra.mxu0 %v3540
    %3604 = vmatpush.bf16.msra.mxu0 %v3539
    %3605 = vmatmul.bf16.gmra.mxu0 %v345
    %v3606 = vpop.f32.mrf.mxu0
    %v3607 = vadd.f32 %v3558, %v3606
    %v3608 = vpop.f32.mrf.mxu0
    %v3609 = vadd.f32 %v3560, %v3608
    %3610 = vmatmul.bf16.gmra.mxu0 %v346
    %v3611 = vpop.f32.mrf.mxu0
    %v3612 = vadd.f32 %v3563, %v3611
    %v3613 = vpop.f32.mrf.mxu0
    %v3614 = vadd.f32 %v3565, %v3613
    %3615 = vmatmul.bf16.gmra.mxu0 %v347
    %v3616 = vpop.f32.mrf.mxu0
    %v3617 = vadd.f32 %v3568, %v3616
    %v3618 = vpop.f32.mrf.mxu0
    %v3619 = vadd.f32 %v3570, %v3618
    %3620 = vmatmul.bf16.gmra.mxu0 %v348
    %v3621 = vpop.f32.mrf.mxu0
    %v3622 = vadd.f32 %v3573, %v3621
    %v3623 = vpop.f32.mrf.mxu0
    %v3624 = vadd.f32 %v3575, %v3623
    %3625 = vmatmul.bf16.gmra.mxu0 %v349
    %v3626 = vpop.f32.mrf.mxu0
    %v3627 = vadd.f32 %v3578, %v3626
    %v3628 = vpop.f32.mrf.mxu0
    %v3629 = vadd.f32 %v3580, %v3628
    %3630 = vmatmul.bf16.gmra.mxu0 %v350
    %v3631 = vpop.f32.mrf.mxu0
    %v3632 = vadd.f32 %v3583, %v3631
    %v3633 = vpop.f32.mrf.mxu0
    %v3634 = vadd.f32 %v3585, %v3633
    %3635 = vmatmul.bf16.gmra.mxu0 %v351
    %v3636 = vpop.f32.mrf.mxu0
    %v3637 = vadd.f32 %v3588, %v3636
    %v3638 = vpop.f32.mrf.mxu0
    %v3639 = vadd.f32 %v3590, %v3638
    %3640 = vmatmul.bf16.gmra.mxu0 %v352
    %v3641 = vpop.f32.mrf.mxu0
    %v3642 = vadd.f32 %v3593, %v3641
    %v3643 = vpop.f32.mrf.mxu0
    %v3644 = vadd.f32 %v3595, %v3643
    %3645 = vdwg.mxu0
    %v3646 = vsel %vm913, %v3607, 0.0
    %3647 = vadd.xlane.f32.xlu0 %v3646
    %v3648 = vpop.xlane.xlu0 %3647
    %v3649 = vsel %vm913, %v3609, 0.0
    %3650 = vadd.xlane.f32.xlu0 %v3649
    %v3651 = vpop.xlane.xlu0 %3650
    %v3652 = vsel %vm913, %v3612, 0.0
    %3653 = vadd.xlane.f32.xlu0 %v3652
    %v3654 = vpop.xlane.xlu0 %3653
    %v3655 = vsel %vm913, %v3614, 0.0
    %3656 = vadd.xlane.f32.xlu0 %v3655
    %v3657 = vpop.xlane.xlu0 %3656
    %v3658 = vsel %vm913, %v3617, 0.0
    %3659 = vadd.xlane.f32.xlu0 %v3658
    %v3660 = vpop.xlane.xlu0 %3659
    %v3661 = vsel %vm913, %v3619, 0.0
    %3662 = vadd.xlane.f32.xlu0 %v3661
    %v3663 = vpop.xlane.xlu0 %3662
    %v3664 = vsel %vm913, %v3622, 0.0
    %3665 = vadd.xlane.f32.xlu0 %v3664
    %v3666 = vpop.xlane.xlu0 %3665
    %v3667 = vsel %vm913, %v3624, 0.0
    %3668 = vadd.xlane.f32.xlu0 %v3667
    %v3669 = vpop.xlane.xlu0 %3668
    %v3670 = vsel %vm913, %v3627, 0.0
    %3671 = vadd.xlane.f32.xlu0 %v3670
    %v3672 = vpop.xlane.xlu0 %3671
    %v3673 = vsel %vm913, %v3629, 0.0
    %3674 = vadd.xlane.f32.xlu0 %v3673
    %v3675 = vpop.xlane.xlu0 %3674
    %v3676 = vsel %vm913, %v3632, 0.0
    %3677 = vadd.xlane.f32.xlu0 %v3676
    %v3678 = vpop.xlane.xlu0 %3677
    %v3679 = vsel %vm913, %v3634, 0.0
    %3680 = vadd.xlane.f32.xlu0 %v3679
    %v3681 = vpop.xlane.xlu0 %3680
    %v3682 = vsel %vm913, %v3637, 0.0
    %3683 = vadd.xlane.f32.xlu0 %v3682
    %v3684 = vpop.xlane.xlu0 %3683
    %v3685 = vsel %vm913, %v3639, 0.0
    %3686 = vadd.xlane.f32.xlu0 %v3685
    %v3687 = vpop.xlane.xlu0 %3686
    %v3688 = vsel %vm913, %v3642, 0.0
    %3689 = vadd.xlane.f32.xlu0 %v3688
    %v3690 = vpop.xlane.xlu0 %3689
    %v3691 = vsel %vm913, %v3644, 0.0
    %3692 = vadd.xlane.f32.xlu0 %v3691
    %v3693 = vpop.xlane.xlu0 %3692
    %v3694 = vmul.f32 %v3648, %v2072
    %v3695 = vmul.f32 %v3651, %v2072
    %v3696 = vmul.f32 %v3654, %v2072
    %v3697 = vmul.f32 %v3657, %v2072
    %v3698 = vmul.f32 %v3660, %v2072
    %v3699 = vmul.f32 %v3663, %v2072
    %v3700 = vmul.f32 %v3666, %v2072
    %v3701 = vmul.f32 %v3669, %v2072
    %v3702 = vmul.f32 %v3672, %v2072
    %v3703 = vmul.f32 %v3675, %v2072
    %v3704 = vmul.f32 %v3678, %v2072
    %v3705 = vmul.f32 %v3681, %v2072
    %v3706 = vmul.f32 %v3684, %v2072
    %v3707 = vmul.f32 %v3687, %v2072
    %v3708 = vmul.f32 %v3690, %v2072
    %v3709 = vmul.f32 %v3693, %v2072
    %v3710 = vsub.f32 %v3607, %v3694
    %v3711 = vsub.f32 %v3609, %v3695
    %v3712 = vsub.f32 %v3612, %v3696
    %v3713 = vsub.f32 %v3614, %v3697
    %v3714 = vsub.f32 %v3617, %v3698
    %v3715 = vsub.f32 %v3619, %v3699
    %v3716 = vsub.f32 %v3622, %v3700
    %v3717 = vsub.f32 %v3624, %v3701
    %v3718 = vsub.f32 %v3627, %v3702
    %v3719 = vsub.f32 %v3629, %v3703
    %v3720 = vsub.f32 %v3632, %v3704
    %v3721 = vsub.f32 %v3634, %v3705
    %v3722 = vsub.f32 %v3637, %v3706
    %v3723 = vsub.f32 %v3639, %v3707
    %v3724 = vsub.f32 %v3642, %v3708
    %v3725 = vsub.f32 %v3644, %v3709
    %v3726 = vmul.f32 %v3710, %v3710
    %v3727 = vmul.f32 %v3711, %v3711
    %v3728 = vmul.f32 %v3712, %v3712
    %v3729 = vmul.f32 %v3713, %v3713
    %v3730 = vmul.f32 %v3714, %v3714
    %v3731 = vmul.f32 %v3715, %v3715
    %v3732 = vmul.f32 %v3716, %v3716
    %v3733 = vmul.f32 %v3717, %v3717
    %v3734 = vmul.f32 %v3718, %v3718
    %v3735 = vmul.f32 %v3719, %v3719
    %v3736 = vmul.f32 %v3720, %v3720
    %v3737 = vmul.f32 %v3721, %v3721
    %v3738 = vmul.f32 %v3722, %v3722
    %v3739 = vmul.f32 %v3723, %v3723
    %v3740 = vmul.f32 %v3724, %v3724
    %v3741 = vmul.f32 %v3725, %v3725
    %v3742 = vsel %vm913, %v3726, 0.0
    %3743 = vadd.xlane.f32.xlu0 %v3742
    %v3744 = vpop.xlane.xlu0 %3743
    %v3745 = vsel %vm913, %v3727, 0.0
    %3746 = vadd.xlane.f32.xlu0 %v3745
    %v3747 = vpop.xlane.xlu0 %3746
    %v3748 = vsel %vm913, %v3728, 0.0
    %3749 = vadd.xlane.f32.xlu0 %v3748
    %v3750 = vpop.xlane.xlu0 %3749
    %v3751 = vsel %vm913, %v3729, 0.0
    %3752 = vadd.xlane.f32.xlu0 %v3751
    %v3753 = vpop.xlane.xlu0 %3752
    %v3754 = vsel %vm913, %v3730, 0.0
    %3755 = vadd.xlane.f32.xlu0 %v3754
    %v3756 = vpop.xlane.xlu0 %3755
    %v3757 = vsel %vm913, %v3731, 0.0
    %3758 = vadd.xlane.f32.xlu0 %v3757
    %v3759 = vpop.xlane.xlu0 %3758
    %v3760 = vsel %vm913, %v3732, 0.0
    %3761 = vadd.xlane.f32.xlu0 %v3760
    %v3762 = vpop.xlane.xlu0 %3761
    %v3763 = vsel %vm913, %v3733, 0.0
    %3764 = vadd.xlane.f32.xlu0 %v3763
    %v3765 = vpop.xlane.xlu0 %3764
    %v3766 = vsel %vm913, %v3734, 0.0
    %3767 = vadd.xlane.f32.xlu0 %v3766
    %v3768 = vpop.xlane.xlu0 %3767
    %v3769 = vsel %vm913, %v3735, 0.0
    %3770 = vadd.xlane.f32.xlu0 %v3769
    %v3771 = vpop.xlane.xlu0 %3770
    %v3772 = vsel %vm913, %v3736, 0.0
    %3773 = vadd.xlane.f32.xlu0 %v3772
    %v3774 = vpop.xlane.xlu0 %3773
    %v3775 = vsel %vm913, %v3737, 0.0
    %3776 = vadd.xlane.f32.xlu0 %v3775
    %v3777 = vpop.xlane.xlu0 %3776
    %v3778 = vsel %vm913, %v3738, 0.0
    %3779 = vadd.xlane.f32.xlu0 %v3778
    %v3780 = vpop.xlane.xlu0 %3779
    %v3781 = vsel %vm913, %v3739, 0.0
    %3782 = vadd.xlane.f32.xlu0 %v3781
    %v3783 = vpop.xlane.xlu0 %3782
    %v3784 = vsel %vm913, %v3740, 0.0
    %3785 = vadd.xlane.f32.xlu0 %v3784
    %v3786 = vpop.xlane.xlu0 %3785
    %v3787 = vsel %vm913, %v3741, 0.0
    %3788 = vadd.xlane.f32.xlu0 %v3787
    %v3789 = vpop.xlane.xlu0 %3788
    %v3790 = vmul.f32 %v3744, %v2072
    %v3791 = vmul.f32 %v3747, %v2072
    %v3792 = vmul.f32 %v3750, %v2072
    %v3793 = vmul.f32 %v3753, %v2072
    %v3794 = vmul.f32 %v3756, %v2072
    %v3795 = vmul.f32 %v3759, %v2072
    %v3796 = vmul.f32 %v3762, %v2072
    %v3797 = vmul.f32 %v3765, %v2072
    %v3798 = vmul.f32 %v3768, %v2072
    %v3799 = vmul.f32 %v3771, %v2072
    %v3800 = vmul.f32 %v3774, %v2072
    %v3801 = vmul.f32 %v3777, %v2072
    %v3802 = vmul.f32 %v3780, %v2072
    %v3803 = vmul.f32 %v3783, %v2072
    %v3804 = vmul.f32 %v3786, %v2072
    %v3805 = vmul.f32 %v3789, %v2072
    %v3806 = vadd.f32 %v3790, 1e-05
    %v3807 = vadd.f32 %v3791, 1e-05
    %v3808 = vadd.f32 %v3792, 1e-05
    %v3809 = vadd.f32 %v3793, 1e-05
    %v3810 = vadd.f32 %v3794, 1e-05
    %v3811 = vadd.f32 %v3795, 1e-05
    %v3812 = vadd.f32 %v3796, 1e-05
    %v3813 = vadd.f32 %v3797, 1e-05
    %v3814 = vadd.f32 %v3798, 1e-05
    %v3815 = vadd.f32 %v3799, 1e-05
    %v3816 = vadd.f32 %v3800, 1e-05
    %v3817 = vadd.f32 %v3801, 1e-05
    %v3818 = vadd.f32 %v3802, 1e-05
    %v3819 = vadd.f32 %v3803, 1e-05
    %v3820 = vadd.f32 %v3804, 1e-05
    %v3821 = vadd.f32 %v3805, 1e-05
    %v3822 = vrsqrt.pop %v3806
    %v3823 = vmul.f32 %v3822, %v3806
    %v3824 = vmul.f32 %v3823, %v3822
    %v3825 = vmul.f32 0.5, %v3824
    %v3826 = vsub.f32 1.5, %v3825
    %v3827 = vmul.f32 %v3822, %v3826
    %vm3828 = vweird.f32 %v3806
    %vm3829 = vweird.f32 %v3822
    %vm3830 = vmor %vm3828, %vm3829
    %v3831 = vsel %vm3830, %v3822, %v3827
    %v3832 = vrsqrt.pop %v3807
    %v3833 = vmul.f32 %v3832, %v3807
    %v3834 = vmul.f32 %v3833, %v3832
    %v3835 = vmul.f32 0.5, %v3834
    %v3836 = vsub.f32 1.5, %v3835
    %v3837 = vmul.f32 %v3832, %v3836
    %vm3838 = vweird.f32 %v3807
    %vm3839 = vweird.f32 %v3832
    %vm3840 = vmor %vm3838, %vm3839
    %v3841 = vsel %vm3840, %v3832, %v3837
    %v3842 = vrsqrt.pop %v3808
    %v3843 = vmul.f32 %v3842, %v3808
    %v3844 = vmul.f32 %v3843, %v3842
    %v3845 = vmul.f32 0.5, %v3844
    %v3846 = vsub.f32 1.5, %v3845
    %v3847 = vmul.f32 %v3842, %v3846
    %vm3848 = vweird.f32 %v3808
    %vm3849 = vweird.f32 %v3842
    %vm3850 = vmor %vm3848, %vm3849
    %v3851 = vsel %vm3850, %v3842, %v3847
    %v3852 = vrsqrt.pop %v3809
    %v3853 = vmul.f32 %v3852, %v3809
    %v3854 = vmul.f32 %v3853, %v3852
    %v3855 = vmul.f32 0.5, %v3854
    %v3856 = vsub.f32 1.5, %v3855
    %v3857 = vmul.f32 %v3852, %v3856
    %vm3858 = vweird.f32 %v3809
    %vm3859 = vweird.f32 %v3852
    %vm3860 = vmor %vm3858, %vm3859
    %v3861 = vsel %vm3860, %v3852, %v3857
    %v3862 = vrsqrt.pop %v3810
    %v3863 = vmul.f32 %v3862, %v3810
    %v3864 = vmul.f32 %v3863, %v3862
    %v3865 = vmul.f32 0.5, %v3864
    %v3866 = vsub.f32 1.5, %v3865
    %v3867 = vmul.f32 %v3862, %v3866
    %vm3868 = vweird.f32 %v3810
    %vm3869 = vweird.f32 %v3862
    %vm3870 = vmor %vm3868, %vm3869
    %v3871 = vsel %vm3870, %v3862, %v3867
    %v3872 = vrsqrt.pop %v3811
    %v3873 = vmul.f32 %v3872, %v3811
    %v3874 = vmul.f32 %v3873, %v3872
    %v3875 = vmul.f32 0.5, %v3874
    %v3876 = vsub.f32 1.5, %v3875
    %v3877 = vmul.f32 %v3872, %v3876
    %vm3878 = vweird.f32 %v3811
    %vm3879 = vweird.f32 %v3872
    %vm3880 = vmor %vm3878, %vm3879
    %v3881 = vsel %vm3880, %v3872, %v3877
    %v3882 = vrsqrt.pop %v3812
    %v3883 = vmul.f32 %v3882, %v3812
    %v3884 = vmul.f32 %v3883, %v3882
    %v3885 = vmul.f32 0.5, %v3884
    %v3886 = vsub.f32 1.5, %v3885
    %v3887 = vmul.f32 %v3882, %v3886
    %vm3888 = vweird.f32 %v3812
    %vm3889 = vweird.f32 %v3882
    %vm3890 = vmor %vm3888, %vm3889
    %v3891 = vsel %vm3890, %v3882, %v3887
    %v3892 = vrsqrt.pop %v3813
    %v3893 = vmul.f32 %v3892, %v3813
    %v3894 = vmul.f32 %v3893, %v3892
    %v3895 = vmul.f32 0.5, %v3894
    %v3896 = vsub.f32 1.5, %v3895
    %v3897 = vmul.f32 %v3892, %v3896
    %vm3898 = vweird.f32 %v3813
    %vm3899 = vweird.f32 %v3892
    %vm3900 = vmor %vm3898, %vm3899
    %v3901 = vsel %vm3900, %v3892, %v3897
    %v3902 = vrsqrt.pop %v3814
    %v3903 = vmul.f32 %v3902, %v3814
    %v3904 = vmul.f32 %v3903, %v3902
    %v3905 = vmul.f32 0.5, %v3904
    %v3906 = vsub.f32 1.5, %v3905
    %v3907 = vmul.f32 %v3902, %v3906
    %vm3908 = vweird.f32 %v3814
    %vm3909 = vweird.f32 %v3902
    %vm3910 = vmor %vm3908, %vm3909
    %v3911 = vsel %vm3910, %v3902, %v3907
    %v3912 = vrsqrt.pop %v3815
    %v3913 = vmul.f32 %v3912, %v3815
    %v3914 = vmul.f32 %v3913, %v3912
    %v3915 = vmul.f32 0.5, %v3914
    %v3916 = vsub.f32 1.5, %v3915
    %v3917 = vmul.f32 %v3912, %v3916
    %vm3918 = vweird.f32 %v3815
    %vm3919 = vweird.f32 %v3912
    %vm3920 = vmor %vm3918, %vm3919
    %v3921 = vsel %vm3920, %v3912, %v3917
    %v3922 = vrsqrt.pop %v3816
    %v3923 = vmul.f32 %v3922, %v3816
    %v3924 = vmul.f32 %v3923, %v3922
    %v3925 = vmul.f32 0.5, %v3924
    %v3926 = vsub.f32 1.5, %v3925
    %v3927 = vmul.f32 %v3922, %v3926
    %vm3928 = vweird.f32 %v3816
    %vm3929 = vweird.f32 %v3922
    %vm3930 = vmor %vm3928, %vm3929
    %v3931 = vsel %vm3930, %v3922, %v3927
    %v3932 = vrsqrt.pop %v3817
    %v3933 = vmul.f32 %v3932, %v3817
    %v3934 = vmul.f32 %v3933, %v3932
    %v3935 = vmul.f32 0.5, %v3934
    %v3936 = vsub.f32 1.5, %v3935
    %v3937 = vmul.f32 %v3932, %v3936
    %vm3938 = vweird.f32 %v3817
    %vm3939 = vweird.f32 %v3932
    %vm3940 = vmor %vm3938, %vm3939
    %v3941 = vsel %vm3940, %v3932, %v3937
    %v3942 = vrsqrt.pop %v3818
    %v3943 = vmul.f32 %v3942, %v3818
    %v3944 = vmul.f32 %v3943, %v3942
    %v3945 = vmul.f32 0.5, %v3944
    %v3946 = vsub.f32 1.5, %v3945
    %v3947 = vmul.f32 %v3942, %v3946
    %vm3948 = vweird.f32 %v3818
    %vm3949 = vweird.f32 %v3942
    %vm3950 = vmor %vm3948, %vm3949
    %v3951 = vsel %vm3950, %v3942, %v3947
    %v3952 = vrsqrt.pop %v3819
    %v3953 = vmul.f32 %v3952, %v3819
    %v3954 = vmul.f32 %v3953, %v3952
    %v3955 = vmul.f32 0.5, %v3954
    %v3956 = vsub.f32 1.5, %v3955
    %v3957 = vmul.f32 %v3952, %v3956
    %vm3958 = vweird.f32 %v3819
    %vm3959 = vweird.f32 %v3952
    %vm3960 = vmor %vm3958, %vm3959
    %v3961 = vsel %vm3960, %v3952, %v3957
    %v3962 = vrsqrt.pop %v3820
    %v3963 = vmul.f32 %v3962, %v3820
    %v3964 = vmul.f32 %v3963, %v3962
    %v3965 = vmul.f32 0.5, %v3964
    %v3966 = vsub.f32 1.5, %v3965
    %v3967 = vmul.f32 %v3962, %v3966
    %vm3968 = vweird.f32 %v3820
    %vm3969 = vweird.f32 %v3962
    %vm3970 = vmor %vm3968, %vm3969
    %v3971 = vsel %vm3970, %v3962, %v3967
    %v3972 = vrsqrt.pop %v3821
    %v3973 = vmul.f32 %v3972, %v3821
    %v3974 = vmul.f32 %v3973, %v3972
    %v3975 = vmul.f32 0.5, %v3974
    %v3976 = vsub.f32 1.5, %v3975
    %v3977 = vmul.f32 %v3972, %v3976
    %vm3978 = vweird.f32 %v3821
    %vm3979 = vweird.f32 %v3972
    %vm3980 = vmor %vm3978, %vm3979
    %v3981 = vsel %vm3980, %v3972, %v3977
    %v3982 = vmul.f32 %v3710, %v3831
    %v3983 = vmul.f32 %v3711, %v3841
    %v3984 = vmul.f32 %v3712, %v3851
    %v3985 = vmul.f32 %v3713, %v3861
    %v3986 = vmul.f32 %v3714, %v3871
    %v3987 = vmul.f32 %v3715, %v3881
    %v3988 = vmul.f32 %v3716, %v3891
    %v3989 = vmul.f32 %v3717, %v3901
    %v3990 = vmul.f32 %v3718, %v3911
    %v3991 = vmul.f32 %v3719, %v3921
    %v3992 = vmul.f32 %v3720, %v3931
    %v3993 = vmul.f32 %v3721, %v3941
    %v3994 = vmul.f32 %v3722, %v3951
    %v3995 = vmul.f32 %v3723, %v3961
    %v3996 = vmul.f32 %v3724, %v3971
    %v3997 = vmul.f32 %v3725, %v3981
    %v3998 = vperm.slane %v35, 5
    %v3999 = vmul.f32 %v3982, %v3998
    %v4000 = vmul.f32 %v3983, %v3998
    %v4001 = vmul.f32 %v3984, %v3998
    %v4002 = vmul.f32 %v3985, %v3998
    %v4003 = vmul.f32 %v3986, %v3998
    %v4004 = vmul.f32 %v3987, %v3998
    %v4005 = vmul.f32 %v3988, %v3998
    %v4006 = vmul.f32 %v3989, %v3998
    %v4007 = vmul.f32 %v3990, %v3998
    %v4008 = vmul.f32 %v3991, %v3998
    %v4009 = vmul.f32 %v3992, %v3998
    %v4010 = vmul.f32 %v3993, %v3998
    %v4011 = vmul.f32 %v3994, %v3998
    %v4012 = vmul.f32 %v3995, %v3998
    %v4013 = vmul.f32 %v3996, %v3998
    %v4014 = vmul.f32 %v3997, %v3998
    %v4015 = vperm.slane %v35, 6
    %v4016 = vadd.f32 %v3999, %v4015
    %v4017 = vadd.f32 %v4000, %v4015
    %v4018 = vadd.f32 %v4001, %v4015
    %v4019 = vadd.f32 %v4002, %v4015
    %v4020 = vadd.f32 %v4003, %v4015
    %v4021 = vadd.f32 %v4004, %v4015
    %v4022 = vadd.f32 %v4005, %v4015
    %v4023 = vadd.f32 %v4006, %v4015
    %v4024 = vadd.f32 %v4007, %v4015
    %v4025 = vadd.f32 %v4008, %v4015
    %v4026 = vadd.f32 %v4009, %v4015
    %v4027 = vadd.f32 %v4010, %v4015
    %v4028 = vadd.f32 %v4011, %v4015
    %v4029 = vadd.f32 %v4012, %v4015
    %v4030 = vadd.f32 %v4013, %v4015
    %v4031 = vadd.f32 %v4014, %v4015
    %v4032 = vmax.f32 %v4016, 0.0
    %v4033 = vmax.f32 %v4017, 0.0
    %v4034 = vmax.f32 %v4018, 0.0
    %v4035 = vmax.f32 %v4019, 0.0
    %v4036 = vmax.f32 %v4020, 0.0
    %v4037 = vmax.f32 %v4021, 0.0
    %v4038 = vmax.f32 %v4022, 0.0
    %v4039 = vmax.f32 %v4023, 0.0
    %v4040 = vmax.f32 %v4024, 0.0
    %v4041 = vmax.f32 %v4025, 0.0
    %v4042 = vmax.f32 %v4026, 0.0
    %v4043 = vmax.f32 %v4027, 0.0
    %v4044 = vmax.f32 %v4028, 0.0
    %v4045 = vmax.f32 %v4029, 0.0
    %v4046 = vmax.f32 %v4030, 0.0
    %v4047 = vmax.f32 %v4031, 0.0
    %v4048 = vpack.c.bf16 %v4033, %v4032
    %v4049 = vpack.c.bf16 %v4035, %v4034
    %v4050 = vpack.c.bf16 %v4037, %v4036
    %v4051 = vpack.c.bf16 %v4039, %v4038
    %v4052 = vpack.c.bf16 %v4041, %v4040
    %v4053 = vpack.c.bf16 %v4043, %v4042
    %v4054 = vpack.c.bf16 %v4045, %v4044
    %v4055 = vpack.c.bf16 %v4047, %v4046
    %v4056 = vperm.slane %v35, 7
    %v4065 = vunpack.c.l.b16 %v3319
    %v4066 = vunpack.c.l.b16 %v3320
    %v4067 = vunpack.c.l.b16 %v3321
    %v4068 = vunpack.c.l.b16 %v3322
    %v4069 = vunpack.c.l.b16 %v3323
    %v4070 = vunpack.c.l.b16 %v3324
    %v4071 = vunpack.c.l.b16 %v3325
    %v4072 = vunpack.c.l.b16 %v3326
    %v4073 = vpack.c.b16 %v4066, %v4065
    %v4074 = vpack.c.b16 %v4068, %v4067
    %v4075 = vpack.c.b16 %v4070, %v4069
    %v4076 = vpack.c.b16 %v4072, %v4071
    %v4082 = vsel %vm913, %v4048, 0
    %v4085 = vsel %vm913, %v4049, 0
    %v4088 = vsel %vm913, %v4050, 0
    %v4091 = vsel %vm913, %v4051, 0
    %v4094 = vsel %vm913, %v4052, 0
    %v4097 = vsel %vm913, %v4053, 0
    %v4100 = vsel %vm913, %v4054, 0
    %v4103 = vsel %vm913, %v4055, 0
    %4105 = vmatpush.bf16.msra.mxu0 0
    %4106 = vmatpush.bf16.msra.mxu0 0
    %4107 = vmatpush.bf16.msra.mxu0 0
    %4108 = vmatpush.bf16.msra.mxu0 0
    %4109 = vmatpush.bf16.msra.mxu0 %v4076
    %4110 = vmatpush.bf16.msra.mxu0 %v4075
    %4111 = vmatpush.bf16.msra.mxu0 %v4074
    %4112 = vmatpush.bf16.msra.mxu0 %v4073
    %4113 = vmatmul.bf16.gmra.mxu0 %v4082
    %v4114 = vpop.f32.mrf.mxu0
    %v4115 = vadd.f32 %v4056, %v4114
    %v4116 = vpop.f32.mrf.mxu0
    %v4117 = vadd.f32 %v4056, %v4116
    %4118 = vmatmul.bf16.gmra.mxu0 %v4085
    %v4119 = vpop.f32.mrf.mxu0
    %v4120 = vadd.f32 %v4056, %v4119
    %v4121 = vpop.f32.mrf.mxu0
    %v4122 = vadd.f32 %v4056, %v4121
    %4123 = vmatmul.bf16.gmra.mxu0 %v4088
    %v4124 = vpop.f32.mrf.mxu0
    %v4125 = vadd.f32 %v4056, %v4124
    %v4126 = vpop.f32.mrf.mxu0
    %v4127 = vadd.f32 %v4056, %v4126
    %4128 = vmatmul.bf16.gmra.mxu0 %v4091
    %v4129 = vpop.f32.mrf.mxu0
    %v4130 = vadd.f32 %v4056, %v4129
    %v4131 = vpop.f32.mrf.mxu0
    %v4132 = vadd.f32 %v4056, %v4131
    %4133 = vmatmul.bf16.gmra.mxu0 %v4094
    %v4134 = vpop.f32.mrf.mxu0
    %v4135 = vadd.f32 %v4056, %v4134
    %v4136 = vpop.f32.mrf.mxu0
    %v4137 = vadd.f32 %v4056, %v4136
    %4138 = vmatmul.bf16.gmra.mxu0 %v4097
    %v4139 = vpop.f32.mrf.mxu0
    %v4140 = vadd.f32 %v4056, %v4139
    %v4141 = vpop.f32.mrf.mxu0
    %v4142 = vadd.f32 %v4056, %v4141
    %4143 = vmatmul.bf16.gmra.mxu0 %v4100
    %v4144 = vpop.f32.mrf.mxu0
    %v4145 = vadd.f32 %v4056, %v4144
    %v4146 = vpop.f32.mrf.mxu0
    %v4147 = vadd.f32 %v4056, %v4146
    %4148 = vmatmul.bf16.gmra.mxu0 %v4103
    %v4149 = vpop.f32.mrf.mxu0
    %v4150 = vadd.f32 %v4056, %v4149
    %v4151 = vpop.f32.mrf.mxu0
    %v4152 = vadd.f32 %v4056, %v4151
    %4153 = vdwg.mxu0
    %v4154 = vpack.c.bf16 %v4117, %v4115
    %v4155 = vpack.c.bf16 %v4122, %v4120
    %v4156 = vpack.c.bf16 %v4127, %v4125
    %v4157 = vpack.c.bf16 %v4132, %v4130
    %v4158 = vpack.c.bf16 %v4137, %v4135
    %v4159 = vpack.c.bf16 %v4142, %v4140
    %v4160 = vpack.c.bf16 %v4147, %v4145
    %v4161 = vpack.c.bf16 %v4152, %v4150
    %4162 = vxpose.xlu0.c.b16.start [1/8] %v345, 128
    %4163 = vxpose.xlu0.c.b16.cont [2/8] %v346, 128
    %4164 = vxpose.xlu0.c.b16.cont [3/8] %v347, 128
    %4165 = vxpose.xlu0.c.b16.cont [4/8] %v348, 128
    %4166 = vxpose.xlu0.c.b16.cont [5/8] %v349, 128
    %4167 = vxpose.xlu0.c.b16.cont [6/8] %v350, 128
    %4168 = vxpose.xlu0.c.b16.cont [7/8] %v351, 128
    %4169 = vxpose.xlu0.c.b16.end [8/8] %v352, 128
    %v4170 = vpop.trf.xlu0
    %v4171 = vpop.trf.xlu0
    %v4172 = vpop.trf.xlu0
    %v4173 = vpop.trf.xlu0
    %v4174 = vpop.trf.xlu0
    %v4175 = vpop.trf.xlu0
    %v4176 = vpop.trf.xlu0
    %v4177 = vpop.trf.xlu0
    %4178 = vmatpush.bf16.msra.mxu0 %v4161
    %4179 = vmatpush.bf16.msra.mxu0 %v4160
    %4180 = vmatpush.bf16.msra.mxu0 %v4159
    %4181 = vmatpush.bf16.msra.mxu0 %v4158
    %4182 = vmatpush.bf16.msra.mxu0 %v4157
    %4183 = vmatpush.bf16.msra.mxu0 %v4156
    %4184 = vmatpush.bf16.msra.mxu0 %v4155
    %4185 = vmatpush.bf16.msra.mxu0 %v4154
    %4186 = vmatmul.bf16.gmra.mxu0 %v4170
    %v4187 = vpop.f32.mrf.mxu0
    %v4188 = vadd.f32 0.0, %v4187
    %v4189 = vpop.f32.mrf.mxu0
    %v4190 = vadd.f32 0.0, %v4189
    %4191 = vmatmul.bf16.gmra.mxu0 %v4171
    %v4192 = vpop.f32.mrf.mxu0
    %v4193 = vadd.f32 0.0, %v4192
    %v4194 = vpop.f32.mrf.mxu0
    %v4195 = vadd.f32 0.0, %v4194
    %4196 = vmatmul.bf16.gmra.mxu0 %v4172
    %v4197 = vpop.f32.mrf.mxu0
    %v4198 = vadd.f32 0.0, %v4197
    %v4199 = vpop.f32.mrf.mxu0
    %v4200 = vadd.f32 0.0, %v4199
    %4201 = vmatmul.bf16.gmra.mxu0 %v4173
    %v4202 = vpop.f32.mrf.mxu0
    %v4203 = vadd.f32 0.0, %v4202
    %v4204 = vpop.f32.mrf.mxu0
    %v4205 = vadd.f32 0.0, %v4204
    %4206 = vmatmul.bf16.gmra.mxu0 %v4174
    %v4207 = vpop.f32.mrf.mxu0
    %v4208 = vadd.f32 0.0, %v4207
    %v4209 = vpop.f32.mrf.mxu0
    %v4210 = vadd.f32 0.0, %v4209
    %4211 = vmatmul.bf16.gmra.mxu0 %v4175
    %v4212 = vpop.f32.mrf.mxu0
    %v4213 = vadd.f32 0.0, %v4212
    %v4214 = vpop.f32.mrf.mxu0
    %v4215 = vadd.f32 0.0, %v4214
    %4216 = vmatmul.bf16.gmra.mxu0 %v4176
    %v4217 = vpop.f32.mrf.mxu0
    %v4218 = vadd.f32 0.0, %v4217
    %v4219 = vpop.f32.mrf.mxu0
    %v4220 = vadd.f32 0.0, %v4219
    %4221 = vmatmul.bf16.gmra.mxu0 %v4177
    %v4222 = vpop.f32.mrf.mxu0
    %v4223 = vadd.f32 0.0, %v4222
    %v4224 = vpop.f32.mrf.mxu0
    %v4225 = vadd.f32 0.0, %v4224
    %4226 = vdwg.mxu0
    %v4227 = vsel %vm913, %v4188, 0.0
    %4228 = vadd.xlane.f32.xlu0 %v4227
    %v4229 = vpop.xlane.xlu0 %4228
    %v4230 = vsel %vm913, %v4190, 0.0
    %4231 = vadd.xlane.f32.xlu0 %v4230
    %v4232 = vpop.xlane.xlu0 %4231
    %v4233 = vsel %vm913, %v4193, 0.0
    %4234 = vadd.xlane.f32.xlu0 %v4233
    %v4235 = vpop.xlane.xlu0 %4234
    %v4236 = vsel %vm913, %v4195, 0.0
    %4237 = vadd.xlane.f32.xlu0 %v4236
    %v4238 = vpop.xlane.xlu0 %4237
    %v4239 = vsel %vm913, %v4198, 0.0
    %4240 = vadd.xlane.f32.xlu0 %v4239
    %v4241 = vpop.xlane.xlu0 %4240
    %v4242 = vsel %vm913, %v4200, 0.0
    %4243 = vadd.xlane.f32.xlu0 %v4242
    %v4244 = vpop.xlane.xlu0 %4243
    %v4245 = vsel %vm913, %v4203, 0.0
    %4246 = vadd.xlane.f32.xlu0 %v4245
    %v4247 = vpop.xlane.xlu0 %4246
    %v4248 = vsel %vm913, %v4205, 0.0
    %4249 = vadd.xlane.f32.xlu0 %v4248
    %v4250 = vpop.xlane.xlu0 %4249
    %v4251 = vsel %vm913, %v4208, 0.0
    %4252 = vadd.xlane.f32.xlu0 %v4251
    %v4253 = vpop.xlane.xlu0 %4252
    %v4254 = vsel %vm913, %v4210, 0.0
    %4255 = vadd.xlane.f32.xlu0 %v4254
    %v4256 = vpop.xlane.xlu0 %4255
    %v4257 = vsel %vm913, %v4213, 0.0
    %4258 = vadd.xlane.f32.xlu0 %v4257
    %v4259 = vpop.xlane.xlu0 %4258
    %v4260 = vsel %vm913, %v4215, 0.0
    %4261 = vadd.xlane.f32.xlu0 %v4260
    %v4262 = vpop.xlane.xlu0 %4261
    %v4263 = vsel %vm913, %v4218, 0.0
    %4264 = vadd.xlane.f32.xlu0 %v4263
    %v4265 = vpop.xlane.xlu0 %4264
    %v4266 = vsel %vm913, %v4220, 0.0
    %4267 = vadd.xlane.f32.xlu0 %v4266
    %v4268 = vpop.xlane.xlu0 %4267
    %v4269 = vsel %vm913, %v4223, 0.0
    %4270 = vadd.xlane.f32.xlu0 %v4269
    %v4271 = vpop.xlane.xlu0 %4270
    %v4272 = vsel %vm913, %v4225, 0.0
    %4273 = vadd.xlane.f32.xlu0 %v4272
    %v4274 = vpop.xlane.xlu0 %4273
    %v4275 = vmul.f32 %v4229, %v2072
    %v4276 = vmul.f32 %v4232, %v2072
    %v4277 = vmul.f32 %v4235, %v2072
    %v4278 = vmul.f32 %v4238, %v2072
    %v4279 = vmul.f32 %v4241, %v2072
    %v4280 = vmul.f32 %v4244, %v2072
    %v4281 = vmul.f32 %v4247, %v2072
    %v4282 = vmul.f32 %v4250, %v2072
    %v4283 = vmul.f32 %v4253, %v2072
    %v4284 = vmul.f32 %v4256, %v2072
    %v4285 = vmul.f32 %v4259, %v2072
    %v4286 = vmul.f32 %v4262, %v2072
    %v4287 = vmul.f32 %v4265, %v2072
    %v4288 = vmul.f32 %v4268, %v2072
    %v4289 = vmul.f32 %v4271, %v2072
    %v4290 = vmul.f32 %v4274, %v2072
    %v4291 = vsub.f32 %v4188, %v4275
    %v4292 = vsub.f32 %v4190, %v4276
    %v4293 = vsub.f32 %v4193, %v4277
    %v4294 = vsub.f32 %v4195, %v4278
    %v4295 = vsub.f32 %v4198, %v4279
    %v4296 = vsub.f32 %v4200, %v4280
    %v4297 = vsub.f32 %v4203, %v4281
    %v4298 = vsub.f32 %v4205, %v4282
    %v4299 = vsub.f32 %v4208, %v4283
    %v4300 = vsub.f32 %v4210, %v4284
    %v4301 = vsub.f32 %v4213, %v4285
    %v4302 = vsub.f32 %v4215, %v4286
    %v4303 = vsub.f32 %v4218, %v4287
    %v4304 = vsub.f32 %v4220, %v4288
    %v4305 = vsub.f32 %v4223, %v4289
    %v4306 = vsub.f32 %v4225, %v4290
    %v4307 = vmul.f32 %v4291, %v4291
    %v4308 = vmul.f32 %v4292, %v4292
    %v4309 = vmul.f32 %v4293, %v4293
    %v4310 = vmul.f32 %v4294, %v4294
    %v4311 = vmul.f32 %v4295, %v4295
    %v4312 = vmul.f32 %v4296, %v4296
    %v4313 = vmul.f32 %v4297, %v4297
    %v4314 = vmul.f32 %v4298, %v4298
    %v4315 = vmul.f32 %v4299, %v4299
    %v4316 = vmul.f32 %v4300, %v4300
    %v4317 = vmul.f32 %v4301, %v4301
    %v4318 = vmul.f32 %v4302, %v4302
    %v4319 = vmul.f32 %v4303, %v4303
    %v4320 = vmul.f32 %v4304, %v4304
    %v4321 = vmul.f32 %v4305, %v4305
    %v4322 = vmul.f32 %v4306, %v4306
    %v4323 = vsel %vm913, %v4307, 0.0
    %4324 = vadd.xlane.f32.xlu0 %v4323
    %v4325 = vpop.xlane.xlu0 %4324
    %v4326 = vsel %vm913, %v4308, 0.0
    %4327 = vadd.xlane.f32.xlu0 %v4326
    %v4328 = vpop.xlane.xlu0 %4327
    %v4329 = vsel %vm913, %v4309, 0.0
    %4330 = vadd.xlane.f32.xlu0 %v4329
    %v4331 = vpop.xlane.xlu0 %4330
    %v4332 = vsel %vm913, %v4310, 0.0
    %4333 = vadd.xlane.f32.xlu0 %v4332
    %v4334 = vpop.xlane.xlu0 %4333
    %v4335 = vsel %vm913, %v4311, 0.0
    %4336 = vadd.xlane.f32.xlu0 %v4335
    %v4337 = vpop.xlane.xlu0 %4336
    %v4338 = vsel %vm913, %v4312, 0.0
    %4339 = vadd.xlane.f32.xlu0 %v4338
    %v4340 = vpop.xlane.xlu0 %4339
    %v4341 = vsel %vm913, %v4313, 0.0
    %4342 = vadd.xlane.f32.xlu0 %v4341
    %v4343 = vpop.xlane.xlu0 %4342
    %v4344 = vsel %vm913, %v4314, 0.0
    %4345 = vadd.xlane.f32.xlu0 %v4344
    %v4346 = vpop.xlane.xlu0 %4345
    %v4347 = vsel %vm913, %v4315, 0.0
    %4348 = vadd.xlane.f32.xlu0 %v4347
    %v4349 = vpop.xlane.xlu0 %4348
    %v4350 = vsel %vm913, %v4316, 0.0
    %4351 = vadd.xlane.f32.xlu0 %v4350
    %v4352 = vpop.xlane.xlu0 %4351
    %v4353 = vsel %vm913, %v4317, 0.0
    %4354 = vadd.xlane.f32.xlu0 %v4353
    %v4355 = vpop.xlane.xlu0 %4354
    %v4356 = vsel %vm913, %v4318, 0.0
    %4357 = vadd.xlane.f32.xlu0 %v4356
    %v4358 = vpop.xlane.xlu0 %4357
    %v4359 = vsel %vm913, %v4319, 0.0
    %4360 = vadd.xlane.f32.xlu0 %v4359
    %v4361 = vpop.xlane.xlu0 %4360
    %v4362 = vsel %vm913, %v4320, 0.0
    %4363 = vadd.xlane.f32.xlu0 %v4362
    %v4364 = vpop.xlane.xlu0 %4363
    %v4365 = vsel %vm913, %v4321, 0.0
    %4366 = vadd.xlane.f32.xlu0 %v4365
    %v4367 = vpop.xlane.xlu0 %4366
    %v4368 = vsel %vm913, %v4322, 0.0
    %4369 = vadd.xlane.f32.xlu0 %v4368
    %v4370 = vpop.xlane.xlu0 %4369
    %v4371 = vmul.f32 %v4325, %v2072
    %v4372 = vmul.f32 %v4328, %v2072
    %v4373 = vmul.f32 %v4331, %v2072
    %v4374 = vmul.f32 %v4334, %v2072
    %v4375 = vmul.f32 %v4337, %v2072
    %v4376 = vmul.f32 %v4340, %v2072
    %v4377 = vmul.f32 %v4343, %v2072
    %v4378 = vmul.f32 %v4346, %v2072
    %v4379 = vmul.f32 %v4349, %v2072
    %v4380 = vmul.f32 %v4352, %v2072
    %v4381 = vmul.f32 %v4355, %v2072
    %v4382 = vmul.f32 %v4358, %v2072
    %v4383 = vmul.f32 %v4361, %v2072
    %v4384 = vmul.f32 %v4364, %v2072
    %v4385 = vmul.f32 %v4367, %v2072
    %v4386 = vmul.f32 %v4370, %v2072
    %v4387 = vadd.f32 %v4371, 1e-05
    %v4388 = vadd.f32 %v4372, 1e-05
    %v4389 = vadd.f32 %v4373, 1e-05
    %v4390 = vadd.f32 %v4374, 1e-05
    %v4391 = vadd.f32 %v4375, 1e-05
    %v4392 = vadd.f32 %v4376, 1e-05
    %v4393 = vadd.f32 %v4377, 1e-05
    %v4394 = vadd.f32 %v4378, 1e-05
    %v4395 = vadd.f32 %v4379, 1e-05
    %v4396 = vadd.f32 %v4380, 1e-05
    %v4397 = vadd.f32 %v4381, 1e-05
    %v4398 = vadd.f32 %v4382, 1e-05
    %v4399 = vadd.f32 %v4383, 1e-05
    %v4400 = vadd.f32 %v4384, 1e-05
    %v4401 = vadd.f32 %v4385, 1e-05
    %v4402 = vadd.f32 %v4386, 1e-05
    %v4403 = vrsqrt.pop %v4387
    %v4404 = vmul.f32 %v4403, %v4387
    %v4405 = vmul.f32 %v4404, %v4403
    %v4406 = vmul.f32 0.5, %v4405
    %v4407 = vsub.f32 1.5, %v4406
    %v4408 = vmul.f32 %v4403, %v4407
    %vm4409 = vweird.f32 %v4387
    %vm4410 = vweird.f32 %v4403
    %vm4411 = vmor %vm4409, %vm4410
    %v4412 = vsel %vm4411, %v4403, %v4408
    %v4413 = vrsqrt.pop %v4388
    %v4414 = vmul.f32 %v4413, %v4388
    %v4415 = vmul.f32 %v4414, %v4413
    %v4416 = vmul.f32 0.5, %v4415
    %v4417 = vsub.f32 1.5, %v4416
    %v4418 = vmul.f32 %v4413, %v4417
    %vm4419 = vweird.f32 %v4388
    %vm4420 = vweird.f32 %v4413
    %vm4421 = vmor %vm4419, %vm4420
    %v4422 = vsel %vm4421, %v4413, %v4418
    %v4423 = vrsqrt.pop %v4389
    %v4424 = vmul.f32 %v4423, %v4389
    %v4425 = vmul.f32 %v4424, %v4423
    %v4426 = vmul.f32 0.5, %v4425
    %v4427 = vsub.f32 1.5, %v4426
    %v4428 = vmul.f32 %v4423, %v4427
    %vm4429 = vweird.f32 %v4389
    %vm4430 = vweird.f32 %v4423
    %vm4431 = vmor %vm4429, %vm4430
    %v4432 = vsel %vm4431, %v4423, %v4428
    %v4433 = vrsqrt.pop %v4390
    %v4434 = vmul.f32 %v4433, %v4390
    %v4435 = vmul.f32 %v4434, %v4433
    %v4436 = vmul.f32 0.5, %v4435
    %v4437 = vsub.f32 1.5, %v4436
    %v4438 = vmul.f32 %v4433, %v4437
    %vm4439 = vweird.f32 %v4390
    %vm4440 = vweird.f32 %v4433
    %vm4441 = vmor %vm4439, %vm4440
    %v4442 = vsel %vm4441, %v4433, %v4438
    %v4443 = vrsqrt.pop %v4391
    %v4444 = vmul.f32 %v4443, %v4391
    %v4445 = vmul.f32 %v4444, %v4443
    %v4446 = vmul.f32 0.5, %v4445
    %v4447 = vsub.f32 1.5, %v4446
    %v4448 = vmul.f32 %v4443, %v4447
    %vm4449 = vweird.f32 %v4391
    %vm4450 = vweird.f32 %v4443
    %vm4451 = vmor %vm4449, %vm4450
    %v4452 = vsel %vm4451, %v4443, %v4448
    %v4453 = vrsqrt.pop %v4392
    %v4454 = vmul.f32 %v4453, %v4392
    %v4455 = vmul.f32 %v4454, %v4453
    %v4456 = vmul.f32 0.5, %v4455
    %v4457 = vsub.f32 1.5, %v4456
    %v4458 = vmul.f32 %v4453, %v4457
    %vm4459 = vweird.f32 %v4392
    %vm4460 = vweird.f32 %v4453
    %vm4461 = vmor %vm4459, %vm4460
    %v4462 = vsel %vm4461, %v4453, %v4458
    %v4463 = vrsqrt.pop %v4393
    %v4464 = vmul.f32 %v4463, %v4393
    %v4465 = vmul.f32 %v4464, %v4463
    %v4466 = vmul.f32 0.5, %v4465
    %v4467 = vsub.f32 1.5, %v4466
    %v4468 = vmul.f32 %v4463, %v4467
    %vm4469 = vweird.f32 %v4393
    %vm4470 = vweird.f32 %v4463
    %vm4471 = vmor %vm4469, %vm4470
    %v4472 = vsel %vm4471, %v4463, %v4468
    %v4473 = vrsqrt.pop %v4394
    %v4474 = vmul.f32 %v4473, %v4394
    %v4475 = vmul.f32 %v4474, %v4473
    %v4476 = vmul.f32 0.5, %v4475
    %v4477 = vsub.f32 1.5, %v4476
    %v4478 = vmul.f32 %v4473, %v4477
    %vm4479 = vweird.f32 %v4394
    %vm4480 = vweird.f32 %v4473
    %vm4481 = vmor %vm4479, %vm4480
    %v4482 = vsel %vm4481, %v4473, %v4478
    %v4483 = vrsqrt.pop %v4395
    %v4484 = vmul.f32 %v4483, %v4395
    %v4485 = vmul.f32 %v4484, %v4483
    %v4486 = vmul.f32 0.5, %v4485
    %v4487 = vsub.f32 1.5, %v4486
    %v4488 = vmul.f32 %v4483, %v4487
    %vm4489 = vweird.f32 %v4395
    %vm4490 = vweird.f32 %v4483
    %vm4491 = vmor %vm4489, %vm4490
    %v4492 = vsel %vm4491, %v4483, %v4488
    %v4493 = vrsqrt.pop %v4396
    %v4494 = vmul.f32 %v4493, %v4396
    %v4495 = vmul.f32 %v4494, %v4493
    %v4496 = vmul.f32 0.5, %v4495
    %v4497 = vsub.f32 1.5, %v4496
    %v4498 = vmul.f32 %v4493, %v4497
    %vm4499 = vweird.f32 %v4396
    %vm4500 = vweird.f32 %v4493
    %vm4501 = vmor %vm4499, %vm4500
    %v4502 = vsel %vm4501, %v4493, %v4498
    %v4503 = vrsqrt.pop %v4397
    %v4504 = vmul.f32 %v4503, %v4397
    %v4505 = vmul.f32 %v4504, %v4503
    %v4506 = vmul.f32 0.5, %v4505
    %v4507 = vsub.f32 1.5, %v4506
    %v4508 = vmul.f32 %v4503, %v4507
    %vm4509 = vweird.f32 %v4397
    %vm4510 = vweird.f32 %v4503
    %vm4511 = vmor %vm4509, %vm4510
    %v4512 = vsel %vm4511, %v4503, %v4508
    %v4513 = vrsqrt.pop %v4398
    %v4514 = vmul.f32 %v4513, %v4398
    %v4515 = vmul.f32 %v4514, %v4513
    %v4516 = vmul.f32 0.5, %v4515
    %v4517 = vsub.f32 1.5, %v4516
    %v4518 = vmul.f32 %v4513, %v4517
    %vm4519 = vweird.f32 %v4398
    %vm4520 = vweird.f32 %v4513
    %vm4521 = vmor %vm4519, %vm4520
    %v4522 = vsel %vm4521, %v4513, %v4518
    %v4523 = vrsqrt.pop %v4399
    %v4524 = vmul.f32 %v4523, %v4399
    %v4525 = vmul.f32 %v4524, %v4523
    %v4526 = vmul.f32 0.5, %v4525
    %v4527 = vsub.f32 1.5, %v4526
    %v4528 = vmul.f32 %v4523, %v4527
    %vm4529 = vweird.f32 %v4399
    %vm4530 = vweird.f32 %v4523
    %vm4531 = vmor %vm4529, %vm4530
    %v4532 = vsel %vm4531, %v4523, %v4528
    %v4533 = vrsqrt.pop %v4400
    %v4534 = vmul.f32 %v4533, %v4400
    %v4535 = vmul.f32 %v4534, %v4533
    %v4536 = vmul.f32 0.5, %v4535
    %v4537 = vsub.f32 1.5, %v4536
    %v4538 = vmul.f32 %v4533, %v4537
    %vm4539 = vweird.f32 %v4400
    %vm4540 = vweird.f32 %v4533
    %vm4541 = vmor %vm4539, %vm4540
    %v4542 = vsel %vm4541, %v4533, %v4538
    %v4543 = vrsqrt.pop %v4401
    %v4544 = vmul.f32 %v4543, %v4401
    %v4545 = vmul.f32 %v4544, %v4543
    %v4546 = vmul.f32 0.5, %v4545
    %v4547 = vsub.f32 1.5, %v4546
    %v4548 = vmul.f32 %v4543, %v4547
    %vm4549 = vweird.f32 %v4401
    %vm4550 = vweird.f32 %v4543
    %vm4551 = vmor %vm4549, %vm4550
    %v4552 = vsel %vm4551, %v4543, %v4548
    %v4553 = vrsqrt.pop %v4402
    %v4554 = vmul.f32 %v4553, %v4402
    %v4555 = vmul.f32 %v4554, %v4553
    %v4556 = vmul.f32 0.5, %v4555
    %v4557 = vsub.f32 1.5, %v4556
    %v4558 = vmul.f32 %v4553, %v4557
    %vm4559 = vweird.f32 %v4402
    %vm4560 = vweird.f32 %v4553
    %vm4561 = vmor %vm4559, %vm4560
    %v4562 = vsel %vm4561, %v4553, %v4558
    %v4563 = vmul.f32 %v4291, %v4412
    %v4564 = vmul.f32 %v4292, %v4422
    %v4565 = vmul.f32 %v4293, %v4432
    %v4566 = vmul.f32 %v4294, %v4442
    %v4567 = vmul.f32 %v4295, %v4452
    %v4568 = vmul.f32 %v4296, %v4462
    %v4569 = vmul.f32 %v4297, %v4472
    %v4570 = vmul.f32 %v4298, %v4482
    %v4571 = vmul.f32 %v4299, %v4492
    %v4572 = vmul.f32 %v4300, %v4502
    %v4573 = vmul.f32 %v4301, %v4512
    %v4574 = vmul.f32 %v4302, %v4522
    %v4575 = vmul.f32 %v4303, %v4532
    %v4576 = vmul.f32 %v4304, %v4542
    %v4577 = vmul.f32 %v4305, %v4552
    %v4578 = vmul.f32 %v4306, %v4562
    %v4579 = vperm.slane %v36, 0
    %v4580 = vmul.f32 %v4563, %v4579
    %v4581 = vmul.f32 %v4564, %v4579
    %v4582 = vmul.f32 %v4565, %v4579
    %v4583 = vmul.f32 %v4566, %v4579
    %v4584 = vmul.f32 %v4567, %v4579
    %v4585 = vmul.f32 %v4568, %v4579
    %v4586 = vmul.f32 %v4569, %v4579
    %v4587 = vmul.f32 %v4570, %v4579
    %v4588 = vmul.f32 %v4571, %v4579
    %v4589 = vmul.f32 %v4572, %v4579
    %v4590 = vmul.f32 %v4573, %v4579
    %v4591 = vmul.f32 %v4574, %v4579
    %v4592 = vmul.f32 %v4575, %v4579
    %v4593 = vmul.f32 %v4576, %v4579
    %v4594 = vmul.f32 %v4577, %v4579
    %v4595 = vmul.f32 %v4578, %v4579
    %v4596 = vperm.slane %v36, 1
    %v4597 = vadd.f32 %v4580, %v4596
    %v4598 = vadd.f32 %v4581, %v4596
    %v4599 = vadd.f32 %v4582, %v4596
    %v4600 = vadd.f32 %v4583, %v4596
    %v4601 = vadd.f32 %v4584, %v4596
    %v4602 = vadd.f32 %v4585, %v4596
    %v4603 = vadd.f32 %v4586, %v4596
    %v4604 = vadd.f32 %v4587, %v4596
    %v4605 = vadd.f32 %v4588, %v4596
    %v4606 = vadd.f32 %v4589, %v4596
    %v4607 = vadd.f32 %v4590, %v4596
    %v4608 = vadd.f32 %v4591, %v4596
    %v4609 = vadd.f32 %v4592, %v4596
    %v4610 = vadd.f32 %v4593, %v4596
    %v4611 = vadd.f32 %v4594, %v4596
    %v4612 = vadd.f32 %v4595, %v4596
    %4629 = vrot.lane.b32.xlu0 %v1625, 64
    %v4630 = vpop.permute.xlu0 %4629
    %4631 = vrot.lane.b32.xlu0 %v1626, 64
    %v4632 = vpop.permute.xlu0 %4631
    %4633 = vrot.lane.b32.xlu0 %v1627, 64
    %v4634 = vpop.permute.xlu0 %4633
    %4635 = vrot.lane.b32.xlu0 %v1628, 64
    %v4636 = vpop.permute.xlu0 %4635
    %4637 = vrot.lane.b32.xlu0 %v1629, 64
    %v4638 = vpop.permute.xlu0 %4637
    %4639 = vrot.lane.b32.xlu0 %v1630, 64
    %v4640 = vpop.permute.xlu0 %4639
    %4641 = vrot.lane.b32.xlu0 %v1631, 64
    %v4642 = vpop.permute.xlu0 %4641
    %4643 = vrot.lane.b32.xlu0 %v1632, 64
    %v4644 = vpop.permute.xlu0 %4643
    %4645 = vrot.lane.b32.xlu0 %v1633, 64
    %v4646 = vpop.permute.xlu0 %4645
    %4647 = vrot.lane.b32.xlu0 %v1634, 64
    %v4648 = vpop.permute.xlu0 %4647
    %4649 = vrot.lane.b32.xlu0 %v1635, 64
    %v4650 = vpop.permute.xlu0 %4649
    %4651 = vrot.lane.b32.xlu0 %v1636, 64
    %v4652 = vpop.permute.xlu0 %4651
    %4653 = vrot.lane.b32.xlu0 %v1637, 64
    %v4654 = vpop.permute.xlu0 %4653
    %4655 = vrot.lane.b32.xlu0 %v1638, 64
    %v4656 = vpop.permute.xlu0 %4655
    %4657 = vrot.lane.b32.xlu0 %v1639, 64
    %v4658 = vpop.permute.xlu0 %4657
    %4659 = vrot.lane.b32.xlu0 %v1640, 64
    %v4660 = vpop.permute.xlu0 %4659
    %v4677 = vsel %vm913, %v4597, %v4630
    %v4678 = vsel %vm913, %v4598, %v4632
    %v4679 = vsel %vm913, %v4599, %v4634
    %v4680 = vsel %vm913, %v4600, %v4636
    %v4681 = vsel %vm913, %v4601, %v4638
    %v4682 = vsel %vm913, %v4602, %v4640
    %v4683 = vsel %vm913, %v4603, %v4642
    %v4684 = vsel %vm913, %v4604, %v4644
    %v4685 = vsel %vm913, %v4605, %v4646
    %v4686 = vsel %vm913, %v4606, %v4648
    %v4687 = vsel %vm913, %v4607, %v4650
    %v4688 = vsel %vm913, %v4608, %v4652
    %v4689 = vsel %vm913, %v4609, %v4654
    %v4690 = vsel %vm913, %v4610, %v4656
    %v4691 = vsel %vm913, %v4611, %v4658
    %v4692 = vsel %vm913, %v4612, %v4660
    %v4693 = vpack.c.bf16 %v4678, %v4677
    %v4694 = vpack.c.bf16 %v4680, %v4679
    %v4695 = vpack.c.bf16 %v4682, %v4681
    %v4696 = vpack.c.bf16 %v4684, %v4683
    %v4697 = vpack.c.bf16 %v4686, %v4685
    %v4698 = vpack.c.bf16 %v4688, %v4687
    %v4699 = vpack.c.bf16 %v4690, %v4689
    %v4700 = vpack.c.bf16 %v4692, %v4691
    %v4701 = vperm.slane %v36, 2
    %v4718 = vunpack.c.l.b16 %v3337
    %v4719 = vunpack.c.l.b16 %v3338
    %v4720 = vunpack.c.l.b16 %v3339
    %v4721 = vunpack.c.l.b16 %v3340
    %v4722 = vunpack.c.l.b16 %v3341
    %v4723 = vunpack.c.l.b16 %v3342
    %v4724 = vunpack.c.l.b16 %v3343
    %v4725 = vunpack.c.l.b16 %v3344
    %v4726 = vunpack.c.l.b16 %v3345
    %v4727 = vunpack.c.l.b16 %v3346
    %v4728 = vunpack.c.l.b16 %v3347
    %v4729 = vunpack.c.l.b16 %v3348
    %v4730 = vunpack.c.l.b16 %v3349
    %v4731 = vunpack.c.l.b16 %v3350
    %v4732 = vunpack.c.l.b16 %v3351
    %v4733 = vunpack.c.l.b16 %v3352
    %v4734 = vpack.c.b16 %v4719, %v4718
    %v4735 = vpack.c.b16 %v4721, %v4720
    %v4736 = vpack.c.b16 %v4723, %v4722
    %v4737 = vpack.c.b16 %v4725, %v4724
    %v4738 = vpack.c.b16 %v4727, %v4726
    %v4739 = vpack.c.b16 %v4729, %v4728
    %v4740 = vpack.c.b16 %v4731, %v4730
    %v4741 = vpack.c.b16 %v4733, %v4732
    %4750 = vmatpush.bf16.msra.mxu0 %v4741
    %4751 = vmatpush.bf16.msra.mxu0 %v4740
    %4752 = vmatpush.bf16.msra.mxu0 %v4739
    %4753 = vmatpush.bf16.msra.mxu0 %v4738
    %4754 = vmatpush.bf16.msra.mxu0 %v4737
    %4755 = vmatpush.bf16.msra.mxu0 %v4736
    %4756 = vmatpush.bf16.msra.mxu0 %v4735
    %4757 = vmatpush.bf16.msra.mxu0 %v4734
    %4758 = vmatmul.bf16.gmra.mxu0 %v4693
    %v4759 = vpop.f32.mrf.mxu0
    %v4760 = vadd.f32 %v4701, %v4759
    %v4761 = vpop.f32.mrf.mxu0
    %v4762 = vadd.f32 %v4701, %v4761
    %4763 = vmatmul.bf16.gmra.mxu0 %v4694
    %v4764 = vpop.f32.mrf.mxu0
    %v4765 = vadd.f32 %v4701, %v4764
    %v4766 = vpop.f32.mrf.mxu0
    %v4767 = vadd.f32 %v4701, %v4766
    %4768 = vmatmul.bf16.gmra.mxu0 %v4695
    %v4769 = vpop.f32.mrf.mxu0
    %v4770 = vadd.f32 %v4701, %v4769
    %v4771 = vpop.f32.mrf.mxu0
    %v4772 = vadd.f32 %v4701, %v4771
    %4773 = vmatmul.bf16.gmra.mxu0 %v4696
    %v4774 = vpop.f32.mrf.mxu0
    %v4775 = vadd.f32 %v4701, %v4774
    %v4776 = vpop.f32.mrf.mxu0
    %v4777 = vadd.f32 %v4701, %v4776
    %4778 = vmatmul.bf16.gmra.mxu0 %v4697
    %v4779 = vpop.f32.mrf.mxu0
    %v4780 = vadd.f32 %v4701, %v4779
    %v4781 = vpop.f32.mrf.mxu0
    %v4782 = vadd.f32 %v4701, %v4781
    %4783 = vmatmul.bf16.gmra.mxu0 %v4698
    %v4784 = vpop.f32.mrf.mxu0
    %v4785 = vadd.f32 %v4701, %v4784
    %v4786 = vpop.f32.mrf.mxu0
    %v4787 = vadd.f32 %v4701, %v4786
    %4788 = vmatmul.bf16.gmra.mxu0 %v4699
    %v4789 = vpop.f32.mrf.mxu0
    %v4790 = vadd.f32 %v4701, %v4789
    %v4791 = vpop.f32.mrf.mxu0
    %v4792 = vadd.f32 %v4701, %v4791
    %4793 = vmatmul.bf16.gmra.mxu0 %v4700
    %v4794 = vpop.f32.mrf.mxu0
    %v4795 = vadd.f32 %v4701, %v4794
    %v4796 = vpop.f32.mrf.mxu0
    %v4797 = vadd.f32 %v4701, %v4796
    %4798 = vdwg.mxu0
    %v4799 = vmax.f32 %v4760, 0.0
    %v4800 = vmax.f32 %v4762, 0.0
    %v4801 = vmax.f32 %v4765, 0.0
    %v4802 = vmax.f32 %v4767, 0.0
    %v4803 = vmax.f32 %v4770, 0.0
    %v4804 = vmax.f32 %v4772, 0.0
    %v4805 = vmax.f32 %v4775, 0.0
    %v4806 = vmax.f32 %v4777, 0.0
    %v4807 = vmax.f32 %v4780, 0.0
    %v4808 = vmax.f32 %v4782, 0.0
    %v4809 = vmax.f32 %v4785, 0.0
    %v4810 = vmax.f32 %v4787, 0.0
    %v4811 = vmax.f32 %v4790, 0.0
    %v4812 = vmax.f32 %v4792, 0.0
    %v4813 = vmax.f32 %v4795, 0.0
    %v4814 = vmax.f32 %v4797, 0.0
    %v4815 = vpack.c.bf16 %v4800, %v4799
    %v4816 = vpack.c.bf16 %v4802, %v4801
    %v4817 = vpack.c.bf16 %v4804, %v4803
    %v4818 = vpack.c.bf16 %v4806, %v4805
    %v4819 = vpack.c.bf16 %v4808, %v4807
    %v4820 = vpack.c.bf16 %v4810, %v4809
    %v4821 = vpack.c.bf16 %v4812, %v4811
    %v4822 = vpack.c.bf16 %v4814, %v4813
    %v4823 = vperm.slane %v36, 3
    %v4832 = vunpack.c.l.b16 %v3328
    %v4833 = vunpack.c.l.b16 %v3329
    %v4834 = vunpack.c.l.b16 %v3330
    %v4835 = vunpack.c.l.b16 %v3331
    %v4836 = vunpack.c.l.b16 %v3332
    %v4837 = vunpack.c.l.b16 %v3333
    %v4838 = vunpack.c.l.b16 %v3334
    %v4839 = vunpack.c.l.b16 %v3335
    %v4840 = vpack.c.b16 %v4833, %v4832
    %v4841 = vpack.c.b16 %v4835, %v4834
    %v4842 = vpack.c.b16 %v4837, %v4836
    %v4843 = vpack.c.b16 %v4839, %v4838
    %v4849 = vsel %vm913, %v4815, 0
    %v4852 = vsel %vm913, %v4816, 0
    %v4855 = vsel %vm913, %v4817, 0
    %v4858 = vsel %vm913, %v4818, 0
    %v4861 = vsel %vm913, %v4819, 0
    %v4864 = vsel %vm913, %v4820, 0
    %v4867 = vsel %vm913, %v4821, 0
    %v4870 = vsel %vm913, %v4822, 0
    %4872 = vmatpush.bf16.msra.mxu0 0
    %4873 = vmatpush.bf16.msra.mxu0 0
    %4874 = vmatpush.bf16.msra.mxu0 0
    %4875 = vmatpush.bf16.msra.mxu0 0
    %4876 = vmatpush.bf16.msra.mxu0 %v4843
    %4877 = vmatpush.bf16.msra.mxu0 %v4842
    %4878 = vmatpush.bf16.msra.mxu0 %v4841
    %4879 = vmatpush.bf16.msra.mxu0 %v4840
    %4880 = vmatmul.bf16.gmra.mxu0 %v4849
    %v4881 = vpop.f32.mrf.mxu0
    %v4882 = vadd.f32 %v4823, %v4881
    %v4883 = vpop.f32.mrf.mxu0
    %v4884 = vadd.f32 %v4823, %v4883
    %4885 = vmatmul.bf16.gmra.mxu0 %v4852
    %v4886 = vpop.f32.mrf.mxu0
    %v4887 = vadd.f32 %v4823, %v4886
    %v4888 = vpop.f32.mrf.mxu0
    %v4889 = vadd.f32 %v4823, %v4888
    %4890 = vmatmul.bf16.gmra.mxu0 %v4855
    %v4891 = vpop.f32.mrf.mxu0
    %v4892 = vadd.f32 %v4823, %v4891
    %v4893 = vpop.f32.mrf.mxu0
    %v4894 = vadd.f32 %v4823, %v4893
    %4895 = vmatmul.bf16.gmra.mxu0 %v4858
    %v4896 = vpop.f32.mrf.mxu0
    %v4897 = vadd.f32 %v4823, %v4896
    %v4898 = vpop.f32.mrf.mxu0
    %v4899 = vadd.f32 %v4823, %v4898
    %4900 = vmatmul.bf16.gmra.mxu0 %v4861
    %v4901 = vpop.f32.mrf.mxu0
    %v4902 = vadd.f32 %v4823, %v4901
    %v4903 = vpop.f32.mrf.mxu0
    %v4904 = vadd.f32 %v4823, %v4903
    %4905 = vmatmul.bf16.gmra.mxu0 %v4864
    %v4906 = vpop.f32.mrf.mxu0
    %v4907 = vadd.f32 %v4823, %v4906
    %v4908 = vpop.f32.mrf.mxu0
    %v4909 = vadd.f32 %v4823, %v4908
    %4910 = vmatmul.bf16.gmra.mxu0 %v4867
    %v4911 = vpop.f32.mrf.mxu0
    %v4912 = vadd.f32 %v4823, %v4911
    %v4913 = vpop.f32.mrf.mxu0
    %v4914 = vadd.f32 %v4823, %v4913
    %4915 = vmatmul.bf16.gmra.mxu0 %v4870
    %v4916 = vpop.f32.mrf.mxu0
    %v4917 = vadd.f32 %v4823, %v4916
    %v4918 = vpop.f32.mrf.mxu0
    %v4919 = vadd.f32 %v4823, %v4918
    %4920 = vdwg.mxu0
    %s4921 = scalar_lea.vmem %s6, 320
    %v4922 = vld [vmem:[%s4921] sm:$0xf]
    %v4923 = vld [vmem:[%s4921 + $0x4] sm:$0xf]
    %v4924 = vld [vmem:[%s4921 + $0x8] sm:$0xf]
    %v4925 = vld [vmem:[%s4921 + $0xc] sm:$0xf]
    %v4926 = vld [vmem:[%s4921 + $0x10] sm:$0xf]
    %v4927 = vld [vmem:[%s4921 + $0x14] sm:$0xf]
    %v4928 = vld [vmem:[%s4921 + $0x18] sm:$0xf]
    %v4929 = vld [vmem:[%s4921 + $0x1c] sm:$0xf]
    %s4930 = scalar_lea.vmem %s6, 352
    %v4931 = vld [vmem:[%s4930] sm:$0xf]
    %v4932 = vld [vmem:[%s4930 + $0x4] sm:$0xf]
    %v4933 = vld [vmem:[%s4930 + $0x8] sm:$0xf]
    %v4934 = vld [vmem:[%s4930 + $0xc] sm:$0xf]
    %v4935 = vld [vmem:[%s4930 + $0x10] sm:$0xf]
    %v4936 = vld [vmem:[%s4930 + $0x14] sm:$0xf]
    %v4937 = vld [vmem:[%s4930 + $0x18] sm:$0xf]
    %v4938 = vld [vmem:[%s4930 + $0x1c] sm:$0xf]
    %s4939 = scalar_lea.vmem %s6, 384
    %v4940 = vld [vmem:[%s4939] sm:$0xf]
    %v4941 = vld [vmem:[%s4939 + $0x4] sm:$0xf]
    %v4942 = vld [vmem:[%s4939 + $0x8] sm:$0xf]
    %v4943 = vld [vmem:[%s4939 + $0xc] sm:$0xf]
    %v4944 = vld [vmem:[%s4939 + $0x10] sm:$0xf]
    %v4945 = vld [vmem:[%s4939 + $0x14] sm:$0xf]
    %v4946 = vld [vmem:[%s4939 + $0x18] sm:$0xf]
    %v4947 = vld [vmem:[%s4939 + $0x1c] sm:$0xf]
    %s4948 = scalar_lea.vmem %s6, 416
    %v4949 = vld [vmem:[%s4948] sm:$0xf]
    %v4950 = vld [vmem:[%s4948 + $0x4] sm:$0xf]
    %v4951 = vld [vmem:[%s4948 + $0x8] sm:$0xf]
    %v4952 = vld [vmem:[%s4948 + $0xc] sm:$0xf]
    %v4953 = vld [vmem:[%s4948 + $0x10] sm:$0xf]
    %v4954 = vld [vmem:[%s4948 + $0x14] sm:$0xf]
    %v4955 = vld [vmem:[%s4948 + $0x18] sm:$0xf]
    %v4956 = vld [vmem:[%s4948 + $0x1c] sm:$0xf]
    %s4957 = scalar_lea.vmem %s7, 128
    %v4958 = vld [vmem:[%s4957] sm:$0xf]
    %v4959 = vld [vmem:[%s4957 + $0x4] sm:$0xf]
    %v4960 = vld [vmem:[%s4957 + $0x8] sm:$0xf]
    %v4961 = vld [vmem:[%s4957 + $0xc] sm:$0xf]
    %v4962 = vld [vmem:[%s4957 + $0x10] sm:$0xf]
    %v4963 = vld [vmem:[%s4957 + $0x14] sm:$0xf]
    %v4964 = vld [vmem:[%s4957 + $0x18] sm:$0xf]
    %v4965 = vld [vmem:[%s4957 + $0x1c] sm:$0xf]
    %v4966 = vld [vmem:[%s4957 + $0x20] sm:$0xf]
    %v4967 = vld [vmem:[%s4957 + $0x24] sm:$0xf]
    %v4968 = vld [vmem:[%s4957 + $0x28] sm:$0xf]
    %v4969 = vld [vmem:[%s4957 + $0x2c] sm:$0xf]
    %v4970 = vld [vmem:[%s4957 + $0x30] sm:$0xf]
    %v4971 = vld [vmem:[%s4957 + $0x34] sm:$0xf]
    %v4972 = vld [vmem:[%s4957 + $0x38] sm:$0xf]
    %v4973 = vld [vmem:[%s4957 + $0x3c] sm:$0xf]
    %v4982 = vunpack.c.l.b16 %v4922
    %v4983 = vunpack.c.l.b16 %v4923
    %v4984 = vunpack.c.l.b16 %v4924
    %v4985 = vunpack.c.l.b16 %v4925
    %v4986 = vunpack.c.l.b16 %v4926
    %v4987 = vunpack.c.l.b16 %v4927
    %v4988 = vunpack.c.l.b16 %v4928
    %v4989 = vunpack.c.l.b16 %v4929
    %v4990 = vpack.c.b16 %v4983, %v4982
    %v4991 = vpack.c.b16 %v4985, %v4984
    %v4992 = vpack.c.b16 %v4987, %v4986
    %v4993 = vpack.c.b16 %v4989, %v4988
    %4998 = vmatpush.bf16.msra.mxu0 0
    %4999 = vmatpush.bf16.msra.mxu0 0
    %5000 = vmatpush.bf16.msra.mxu0 0
    %5001 = vmatpush.bf16.msra.mxu0 0
    %5002 = vmatpush.bf16.msra.mxu0 %v4993
    %5003 = vmatpush.bf16.msra.mxu0 %v4992
    %5004 = vmatpush.bf16.msra.mxu0 %v4991
    %5005 = vmatpush.bf16.msra.mxu0 %v4990
    %5006 = vmatmul.bf16.gmra.mxu0 %v3386
    %v5007 = vpop.f32.mrf.mxu0
    %v5008 = vadd.f32 0.0, %v5007
    %v5009 = vpop.f32.mrf.mxu0
    %v5010 = vadd.f32 0.0, %v5009
    %5011 = vmatmul.bf16.gmra.mxu0 %v3389
    %v5012 = vpop.f32.mrf.mxu0
    %v5013 = vadd.f32 0.0, %v5012
    %v5014 = vpop.f32.mrf.mxu0
    %v5015 = vadd.f32 0.0, %v5014
    %5016 = vmatmul.bf16.gmra.mxu0 %v3392
    %v5017 = vpop.f32.mrf.mxu0
    %v5018 = vadd.f32 0.0, %v5017
    %v5019 = vpop.f32.mrf.mxu0
    %v5020 = vadd.f32 0.0, %v5019
    %5021 = vmatmul.bf16.gmra.mxu0 %v3395
    %v5022 = vpop.f32.mrf.mxu0
    %v5023 = vadd.f32 0.0, %v5022
    %v5024 = vpop.f32.mrf.mxu0
    %v5025 = vadd.f32 0.0, %v5024
    %5026 = vmatmul.bf16.gmra.mxu0 %v3398
    %v5027 = vpop.f32.mrf.mxu0
    %v5028 = vadd.f32 0.0, %v5027
    %v5029 = vpop.f32.mrf.mxu0
    %v5030 = vadd.f32 0.0, %v5029
    %5031 = vmatmul.bf16.gmra.mxu0 %v3401
    %v5032 = vpop.f32.mrf.mxu0
    %v5033 = vadd.f32 0.0, %v5032
    %v5034 = vpop.f32.mrf.mxu0
    %v5035 = vadd.f32 0.0, %v5034
    %5036 = vmatmul.bf16.gmra.mxu0 %v3404
    %v5037 = vpop.f32.mrf.mxu0
    %v5038 = vadd.f32 0.0, %v5037
    %v5039 = vpop.f32.mrf.mxu0
    %v5040 = vadd.f32 0.0, %v5039
    %5041 = vmatmul.bf16.gmra.mxu0 %v3407
    %v5042 = vpop.f32.mrf.mxu0
    %v5043 = vadd.f32 0.0, %v5042
    %v5044 = vpop.f32.mrf.mxu0
    %v5045 = vadd.f32 0.0, %v5044
    %5046 = vdwg.mxu0
    %v5047 = vpack.c.bf16 %v4884, %v4882
    %v5048 = vpack.c.bf16 %v4889, %v4887
    %v5049 = vpack.c.bf16 %v4894, %v4892
    %v5050 = vpack.c.bf16 %v4899, %v4897
    %v5051 = vpack.c.bf16 %v4904, %v4902
    %v5052 = vpack.c.bf16 %v4909, %v4907
    %v5053 = vpack.c.bf16 %v4914, %v4912
    %v5054 = vpack.c.bf16 %v4919, %v4917
    %v5063 = vunpack.c.l.b16 %v4931
    %v5064 = vunpack.c.l.b16 %v4932
    %v5065 = vunpack.c.l.b16 %v4933
    %v5066 = vunpack.c.l.b16 %v4934
    %v5067 = vunpack.c.l.b16 %v4935
    %v5068 = vunpack.c.l.b16 %v4936
    %v5069 = vunpack.c.l.b16 %v4937
    %v5070 = vunpack.c.l.b16 %v4938
    %v5071 = vpack.c.b16 %v5064, %v5063
    %v5072 = vpack.c.b16 %v5066, %v5065
    %v5073 = vpack.c.b16 %v5068, %v5067
    %v5074 = vpack.c.b16 %v5070, %v5069
    %v5080 = vsel %vm913, %v5047, 0
    %v5083 = vsel %vm913, %v5048, 0
    %v5086 = vsel %vm913, %v5049, 0
    %v5089 = vsel %vm913, %v5050, 0
    %v5092 = vsel %vm913, %v5051, 0
    %v5095 = vsel %vm913, %v5052, 0
    %v5098 = vsel %vm913, %v5053, 0
    %v5101 = vsel %vm913, %v5054, 0
    %5103 = vmatpush.bf16.msra.mxu0 0
    %5104 = vmatpush.bf16.msra.mxu0 0
    %5105 = vmatpush.bf16.msra.mxu0 0
    %5106 = vmatpush.bf16.msra.mxu0 0
    %5107 = vmatpush.bf16.msra.mxu0 %v5074
    %5108 = vmatpush.bf16.msra.mxu0 %v5073
    %5109 = vmatpush.bf16.msra.mxu0 %v5072
    %5110 = vmatpush.bf16.msra.mxu0 %v5071
    %5111 = vmatmul.bf16.gmra.mxu0 %v5080
    %v5112 = vpop.f32.mrf.mxu0
    %v5113 = vadd.f32 0.0, %v5112
    %v5114 = vpop.f32.mrf.mxu0
    %v5115 = vadd.f32 0.0, %v5114
    %5116 = vmatmul.bf16.gmra.mxu0 %v5083
    %v5117 = vpop.f32.mrf.mxu0
    %v5118 = vadd.f32 0.0, %v5117
    %v5119 = vpop.f32.mrf.mxu0
    %v5120 = vadd.f32 0.0, %v5119
    %5121 = vmatmul.bf16.gmra.mxu0 %v5086
    %v5122 = vpop.f32.mrf.mxu0
    %v5123 = vadd.f32 0.0, %v5122
    %v5124 = vpop.f32.mrf.mxu0
    %v5125 = vadd.f32 0.0, %v5124
    %5126 = vmatmul.bf16.gmra.mxu0 %v5089
    %v5127 = vpop.f32.mrf.mxu0
    %v5128 = vadd.f32 0.0, %v5127
    %v5129 = vpop.f32.mrf.mxu0
    %v5130 = vadd.f32 0.0, %v5129
    %5131 = vmatmul.bf16.gmra.mxu0 %v5092
    %v5132 = vpop.f32.mrf.mxu0
    %v5133 = vadd.f32 0.0, %v5132
    %v5134 = vpop.f32.mrf.mxu0
    %v5135 = vadd.f32 0.0, %v5134
    %5136 = vmatmul.bf16.gmra.mxu0 %v5095
    %v5137 = vpop.f32.mrf.mxu0
    %v5138 = vadd.f32 0.0, %v5137
    %v5139 = vpop.f32.mrf.mxu0
    %v5140 = vadd.f32 0.0, %v5139
    %5141 = vmatmul.bf16.gmra.mxu0 %v5098
    %v5142 = vpop.f32.mrf.mxu0
    %v5143 = vadd.f32 0.0, %v5142
    %v5144 = vpop.f32.mrf.mxu0
    %v5145 = vadd.f32 0.0, %v5144
    %5146 = vmatmul.bf16.gmra.mxu0 %v5101
    %v5147 = vpop.f32.mrf.mxu0
    %v5148 = vadd.f32 0.0, %v5147
    %v5149 = vpop.f32.mrf.mxu0
    %v5150 = vadd.f32 0.0, %v5149
    %5151 = vdwg.mxu0
    %v5152 = vpack.c.bf16 %v5010, %v5008
    %v5153 = vpack.c.bf16 %v5015, %v5013
    %v5154 = vpack.c.bf16 %v5020, %v5018
    %v5155 = vpack.c.bf16 %v5025, %v5023
    %v5156 = vpack.c.bf16 %v5030, %v5028
    %v5157 = vpack.c.bf16 %v5035, %v5033
    %v5158 = vpack.c.bf16 %v5040, %v5038
    %v5159 = vpack.c.bf16 %v5045, %v5043
    %v5160 = vpack.c.bf16 %v5115, %v5113
    %v5161 = vpack.c.bf16 %v5120, %v5118
    %v5162 = vpack.c.bf16 %v5125, %v5123
    %v5163 = vpack.c.bf16 %v5130, %v5128
    %v5164 = vpack.c.bf16 %v5135, %v5133
    %v5165 = vpack.c.bf16 %v5140, %v5138
    %v5166 = vpack.c.bf16 %v5145, %v5143
    %v5167 = vpack.c.bf16 %v5150, %v5148
    %v5168 = vperm.slane %v36, 4
    %5169 = vmatpush.bf16.msra.mxu0 %v5159
    %5170 = vmatpush.bf16.msra.mxu0 %v5158
    %5171 = vmatpush.bf16.msra.mxu0 %v5157
    %5172 = vmatpush.bf16.msra.mxu0 %v5156
    %5173 = vmatpush.bf16.msra.mxu0 %v5155
    %5174 = vmatpush.bf16.msra.mxu0 %v5154
    %5175 = vmatpush.bf16.msra.mxu0 %v5153
    %5176 = vmatpush.bf16.msra.mxu0 %v5152
    %5177 = vmatmul.bf16.gmra.mxu0 %v297
    %v5178 = vpop.f32.mrf.mxu0
    %v5179 = vadd.f32 %v5168, %v5178
    %v5180 = vpop.f32.mrf.mxu0
    %v5181 = vadd.f32 %v5168, %v5180
    %5182 = vmatmul.bf16.gmra.mxu0 %v298
    %v5183 = vpop.f32.mrf.mxu0
    %v5184 = vadd.f32 %v5168, %v5183
    %v5185 = vpop.f32.mrf.mxu0
    %v5186 = vadd.f32 %v5168, %v5185
    %5187 = vmatmul.bf16.gmra.mxu0 %v299
    %v5188 = vpop.f32.mrf.mxu0
    %v5189 = vadd.f32 %v5168, %v5188
    %v5190 = vpop.f32.mrf.mxu0
    %v5191 = vadd.f32 %v5168, %v5190
    %5192 = vmatmul.bf16.gmra.mxu0 %v300
    %v5193 = vpop.f32.mrf.mxu0
    %v5194 = vadd.f32 %v5168, %v5193
    %v5195 = vpop.f32.mrf.mxu0
    %v5196 = vadd.f32 %v5168, %v5195
    %5197 = vmatmul.bf16.gmra.mxu0 %v301
    %v5198 = vpop.f32.mrf.mxu0
    %v5199 = vadd.f32 %v5168, %v5198
    %v5200 = vpop.f32.mrf.mxu0
    %v5201 = vadd.f32 %v5168, %v5200
    %5202 = vmatmul.bf16.gmra.mxu0 %v302
    %v5203 = vpop.f32.mrf.mxu0
    %v5204 = vadd.f32 %v5168, %v5203
    %v5205 = vpop.f32.mrf.mxu0
    %v5206 = vadd.f32 %v5168, %v5205
    %5207 = vmatmul.bf16.gmra.mxu0 %v303
    %v5208 = vpop.f32.mrf.mxu0
    %v5209 = vadd.f32 %v5168, %v5208
    %v5210 = vpop.f32.mrf.mxu0
    %v5211 = vadd.f32 %v5168, %v5210
    %5212 = vmatmul.bf16.gmra.mxu0 %v304
    %v5213 = vpop.f32.mrf.mxu0
    %v5214 = vadd.f32 %v5168, %v5213
    %v5215 = vpop.f32.mrf.mxu0
    %v5216 = vadd.f32 %v5168, %v5215
    %5217 = vdwg.mxu0
    %5218 = vmatpush.bf16.msra.mxu0 %v5167
    %5219 = vmatpush.bf16.msra.mxu0 %v5166
    %5220 = vmatpush.bf16.msra.mxu0 %v5165
    %5221 = vmatpush.bf16.msra.mxu0 %v5164
    %5222 = vmatpush.bf16.msra.mxu0 %v5163
    %5223 = vmatpush.bf16.msra.mxu0 %v5162
    %5224 = vmatpush.bf16.msra.mxu0 %v5161
    %5225 = vmatpush.bf16.msra.mxu0 %v5160
    %5226 = vmatmul.bf16.gmra.mxu0 %v345
    %v5227 = vpop.f32.mrf.mxu0
    %v5228 = vadd.f32 %v5179, %v5227
    %v5229 = vpop.f32.mrf.mxu0
    %v5230 = vadd.f32 %v5181, %v5229
    %5231 = vmatmul.bf16.gmra.mxu0 %v346
    %v5232 = vpop.f32.mrf.mxu0
    %v5233 = vadd.f32 %v5184, %v5232
    %v5234 = vpop.f32.mrf.mxu0
    %v5235 = vadd.f32 %v5186, %v5234
    %5236 = vmatmul.bf16.gmra.mxu0 %v347
    %v5237 = vpop.f32.mrf.mxu0
    %v5238 = vadd.f32 %v5189, %v5237
    %v5239 = vpop.f32.mrf.mxu0
    %v5240 = vadd.f32 %v5191, %v5239
    %5241 = vmatmul.bf16.gmra.mxu0 %v348
    %v5242 = vpop.f32.mrf.mxu0
    %v5243 = vadd.f32 %v5194, %v5242
    %v5244 = vpop.f32.mrf.mxu0
    %v5245 = vadd.f32 %v5196, %v5244
    %5246 = vmatmul.bf16.gmra.mxu0 %v349
    %v5247 = vpop.f32.mrf.mxu0
    %v5248 = vadd.f32 %v5199, %v5247
    %v5249 = vpop.f32.mrf.mxu0
    %v5250 = vadd.f32 %v5201, %v5249
    %5251 = vmatmul.bf16.gmra.mxu0 %v350
    %v5252 = vpop.f32.mrf.mxu0
    %v5253 = vadd.f32 %v5204, %v5252
    %v5254 = vpop.f32.mrf.mxu0
    %v5255 = vadd.f32 %v5206, %v5254
    %5256 = vmatmul.bf16.gmra.mxu0 %v351
    %v5257 = vpop.f32.mrf.mxu0
    %v5258 = vadd.f32 %v5209, %v5257
    %v5259 = vpop.f32.mrf.mxu0
    %v5260 = vadd.f32 %v5211, %v5259
    %5261 = vmatmul.bf16.gmra.mxu0 %v352
    %v5262 = vpop.f32.mrf.mxu0
    %v5263 = vadd.f32 %v5214, %v5262
    %v5264 = vpop.f32.mrf.mxu0
    %v5265 = vadd.f32 %v5216, %v5264
    %5266 = vdwg.mxu0
    %v5267 = vsel %vm913, %v5228, 0.0
    %5268 = vadd.xlane.f32.xlu0 %v5267
    %v5269 = vpop.xlane.xlu0 %5268
    %v5270 = vsel %vm913, %v5230, 0.0
    %5271 = vadd.xlane.f32.xlu0 %v5270
    %v5272 = vpop.xlane.xlu0 %5271
    %v5273 = vsel %vm913, %v5233, 0.0
    %5274 = vadd.xlane.f32.xlu0 %v5273
    %v5275 = vpop.xlane.xlu0 %5274
    %v5276 = vsel %vm913, %v5235, 0.0
    %5277 = vadd.xlane.f32.xlu0 %v5276
    %v5278 = vpop.xlane.xlu0 %5277
    %v5279 = vsel %vm913, %v5238, 0.0
    %5280 = vadd.xlane.f32.xlu0 %v5279
    %v5281 = vpop.xlane.xlu0 %5280
    %v5282 = vsel %vm913, %v5240, 0.0
    %5283 = vadd.xlane.f32.xlu0 %v5282
    %v5284 = vpop.xlane.xlu0 %5283
    %v5285 = vsel %vm913, %v5243, 0.0
    %5286 = vadd.xlane.f32.xlu0 %v5285
    %v5287 = vpop.xlane.xlu0 %5286
    %v5288 = vsel %vm913, %v5245, 0.0
    %5289 = vadd.xlane.f32.xlu0 %v5288
    %v5290 = vpop.xlane.xlu0 %5289
    %v5291 = vsel %vm913, %v5248, 0.0
    %5292 = vadd.xlane.f32.xlu0 %v5291
    %v5293 = vpop.xlane.xlu0 %5292
    %v5294 = vsel %vm913, %v5250, 0.0
    %5295 = vadd.xlane.f32.xlu0 %v5294
    %v5296 = vpop.xlane.xlu0 %5295
    %v5297 = vsel %vm913, %v5253, 0.0
    %5298 = vadd.xlane.f32.xlu0 %v5297
    %v5299 = vpop.xlane.xlu0 %5298
    %v5300 = vsel %vm913, %v5255, 0.0
    %5301 = vadd.xlane.f32.xlu0 %v5300
    %v5302 = vpop.xlane.xlu0 %5301
    %v5303 = vsel %vm913, %v5258, 0.0
    %5304 = vadd.xlane.f32.xlu0 %v5303
    %v5305 = vpop.xlane.xlu0 %5304
    %v5306 = vsel %vm913, %v5260, 0.0
    %5307 = vadd.xlane.f32.xlu0 %v5306
    %v5308 = vpop.xlane.xlu0 %5307
    %v5309 = vsel %vm913, %v5263, 0.0
    %5310 = vadd.xlane.f32.xlu0 %v5309
    %v5311 = vpop.xlane.xlu0 %5310
    %v5312 = vsel %vm913, %v5265, 0.0
    %5313 = vadd.xlane.f32.xlu0 %v5312
    %v5314 = vpop.xlane.xlu0 %5313
    %v5315 = vmul.f32 %v5269, %v2072
    %v5316 = vmul.f32 %v5272, %v2072
    %v5317 = vmul.f32 %v5275, %v2072
    %v5318 = vmul.f32 %v5278, %v2072
    %v5319 = vmul.f32 %v5281, %v2072
    %v5320 = vmul.f32 %v5284, %v2072
    %v5321 = vmul.f32 %v5287, %v2072
    %v5322 = vmul.f32 %v5290, %v2072
    %v5323 = vmul.f32 %v5293, %v2072
    %v5324 = vmul.f32 %v5296, %v2072
    %v5325 = vmul.f32 %v5299, %v2072
    %v5326 = vmul.f32 %v5302, %v2072
    %v5327 = vmul.f32 %v5305, %v2072
    %v5328 = vmul.f32 %v5308, %v2072
    %v5329 = vmul.f32 %v5311, %v2072
    %v5330 = vmul.f32 %v5314, %v2072
    %v5331 = vsub.f32 %v5228, %v5315
    %v5332 = vsub.f32 %v5230, %v5316
    %v5333 = vsub.f32 %v5233, %v5317
    %v5334 = vsub.f32 %v5235, %v5318
    %v5335 = vsub.f32 %v5238, %v5319
    %v5336 = vsub.f32 %v5240, %v5320
    %v5337 = vsub.f32 %v5243, %v5321
    %v5338 = vsub.f32 %v5245, %v5322
    %v5339 = vsub.f32 %v5248, %v5323
    %v5340 = vsub.f32 %v5250, %v5324
    %v5341 = vsub.f32 %v5253, %v5325
    %v5342 = vsub.f32 %v5255, %v5326
    %v5343 = vsub.f32 %v5258, %v5327
    %v5344 = vsub.f32 %v5260, %v5328
    %v5345 = vsub.f32 %v5263, %v5329
    %v5346 = vsub.f32 %v5265, %v5330
    %v5347 = vmul.f32 %v5331, %v5331
    %v5348 = vmul.f32 %v5332, %v5332
    %v5349 = vmul.f32 %v5333, %v5333
    %v5350 = vmul.f32 %v5334, %v5334
    %v5351 = vmul.f32 %v5335, %v5335
    %v5352 = vmul.f32 %v5336, %v5336
    %v5353 = vmul.f32 %v5337, %v5337
    %v5354 = vmul.f32 %v5338, %v5338
    %v5355 = vmul.f32 %v5339, %v5339
    %v5356 = vmul.f32 %v5340, %v5340
    %v5357 = vmul.f32 %v5341, %v5341
    %v5358 = vmul.f32 %v5342, %v5342
    %v5359 = vmul.f32 %v5343, %v5343
    %v5360 = vmul.f32 %v5344, %v5344
    %v5361 = vmul.f32 %v5345, %v5345
    %v5362 = vmul.f32 %v5346, %v5346
    %v5363 = vsel %vm913, %v5347, 0.0
    %5364 = vadd.xlane.f32.xlu0 %v5363
    %v5365 = vpop.xlane.xlu0 %5364
    %v5366 = vsel %vm913, %v5348, 0.0
    %5367 = vadd.xlane.f32.xlu0 %v5366
    %v5368 = vpop.xlane.xlu0 %5367
    %v5369 = vsel %vm913, %v5349, 0.0
    %5370 = vadd.xlane.f32.xlu0 %v5369
    %v5371 = vpop.xlane.xlu0 %5370
    %v5372 = vsel %vm913, %v5350, 0.0
    %5373 = vadd.xlane.f32.xlu0 %v5372
    %v5374 = vpop.xlane.xlu0 %5373
    %v5375 = vsel %vm913, %v5351, 0.0
    %5376 = vadd.xlane.f32.xlu0 %v5375
    %v5377 = vpop.xlane.xlu0 %5376
    %v5378 = vsel %vm913, %v5352, 0.0
    %5379 = vadd.xlane.f32.xlu0 %v5378
    %v5380 = vpop.xlane.xlu0 %5379
    %v5381 = vsel %vm913, %v5353, 0.0
    %5382 = vadd.xlane.f32.xlu0 %v5381
    %v5383 = vpop.xlane.xlu0 %5382
    %v5384 = vsel %vm913, %v5354, 0.0
    %5385 = vadd.xlane.f32.xlu0 %v5384
    %v5386 = vpop.xlane.xlu0 %5385
    %v5387 = vsel %vm913, %v5355, 0.0
    %5388 = vadd.xlane.f32.xlu0 %v5387
    %v5389 = vpop.xlane.xlu0 %5388
    %v5390 = vsel %vm913, %v5356, 0.0
    %5391 = vadd.xlane.f32.xlu0 %v5390
    %v5392 = vpop.xlane.xlu0 %5391
    %v5393 = vsel %vm913, %v5357, 0.0
    %5394 = vadd.xlane.f32.xlu0 %v5393
    %v5395 = vpop.xlane.xlu0 %5394
    %v5396 = vsel %vm913, %v5358, 0.0
    %5397 = vadd.xlane.f32.xlu0 %v5396
    %v5398 = vpop.xlane.xlu0 %5397
    %v5399 = vsel %vm913, %v5359, 0.0
    %5400 = vadd.xlane.f32.xlu0 %v5399
    %v5401 = vpop.xlane.xlu0 %5400
    %v5402 = vsel %vm913, %v5360, 0.0
    %5403 = vadd.xlane.f32.xlu0 %v5402
    %v5404 = vpop.xlane.xlu0 %5403
    %v5405 = vsel %vm913, %v5361, 0.0
    %5406 = vadd.xlane.f32.xlu0 %v5405
    %v5407 = vpop.xlane.xlu0 %5406
    %v5408 = vsel %vm913, %v5362, 0.0
    %5409 = vadd.xlane.f32.xlu0 %v5408
    %v5410 = vpop.xlane.xlu0 %5409
    %v5411 = vmul.f32 %v5365, %v2072
    %v5412 = vmul.f32 %v5368, %v2072
    %v5413 = vmul.f32 %v5371, %v2072
    %v5414 = vmul.f32 %v5374, %v2072
    %v5415 = vmul.f32 %v5377, %v2072
    %v5416 = vmul.f32 %v5380, %v2072
    %v5417 = vmul.f32 %v5383, %v2072
    %v5418 = vmul.f32 %v5386, %v2072
    %v5419 = vmul.f32 %v5389, %v2072
    %v5420 = vmul.f32 %v5392, %v2072
    %v5421 = vmul.f32 %v5395, %v2072
    %v5422 = vmul.f32 %v5398, %v2072
    %v5423 = vmul.f32 %v5401, %v2072
    %v5424 = vmul.f32 %v5404, %v2072
    %v5425 = vmul.f32 %v5407, %v2072
    %v5426 = vmul.f32 %v5410, %v2072
    %v5427 = vadd.f32 %v5411, 1e-05
    %v5428 = vadd.f32 %v5412, 1e-05
    %v5429 = vadd.f32 %v5413, 1e-05
    %v5430 = vadd.f32 %v5414, 1e-05
    %v5431 = vadd.f32 %v5415, 1e-05
    %v5432 = vadd.f32 %v5416, 1e-05
    %v5433 = vadd.f32 %v5417, 1e-05
    %v5434 = vadd.f32 %v5418, 1e-05
    %v5435 = vadd.f32 %v5419, 1e-05
    %v5436 = vadd.f32 %v5420, 1e-05
    %v5437 = vadd.f32 %v5421, 1e-05
    %v5438 = vadd.f32 %v5422, 1e-05
    %v5439 = vadd.f32 %v5423, 1e-05
    %v5440 = vadd.f32 %v5424, 1e-05
    %v5441 = vadd.f32 %v5425, 1e-05
    %v5442 = vadd.f32 %v5426, 1e-05
    %v5443 = vrsqrt.pop %v5427
    %v5444 = vmul.f32 %v5443, %v5427
    %v5445 = vmul.f32 %v5444, %v5443
    %v5446 = vmul.f32 0.5, %v5445
    %v5447 = vsub.f32 1.5, %v5446
    %v5448 = vmul.f32 %v5443, %v5447
    %vm5449 = vweird.f32 %v5427
    %vm5450 = vweird.f32 %v5443
    %vm5451 = vmor %vm5449, %vm5450
    %v5452 = vsel %vm5451, %v5443, %v5448
    %v5453 = vrsqrt.pop %v5428
    %v5454 = vmul.f32 %v5453, %v5428
    %v5455 = vmul.f32 %v5454, %v5453
    %v5456 = vmul.f32 0.5, %v5455
    %v5457 = vsub.f32 1.5, %v5456
    %v5458 = vmul.f32 %v5453, %v5457
    %vm5459 = vweird.f32 %v5428
    %vm5460 = vweird.f32 %v5453
    %vm5461 = vmor %vm5459, %vm5460
    %v5462 = vsel %vm5461, %v5453, %v5458
    %v5463 = vrsqrt.pop %v5429
    %v5464 = vmul.f32 %v5463, %v5429
    %v5465 = vmul.f32 %v5464, %v5463
    %v5466 = vmul.f32 0.5, %v5465
    %v5467 = vsub.f32 1.5, %v5466
    %v5468 = vmul.f32 %v5463, %v5467
    %vm5469 = vweird.f32 %v5429
    %vm5470 = vweird.f32 %v5463
    %vm5471 = vmor %vm5469, %vm5470
    %v5472 = vsel %vm5471, %v5463, %v5468
    %v5473 = vrsqrt.pop %v5430
    %v5474 = vmul.f32 %v5473, %v5430
    %v5475 = vmul.f32 %v5474, %v5473
    %v5476 = vmul.f32 0.5, %v5475
    %v5477 = vsub.f32 1.5, %v5476
    %v5478 = vmul.f32 %v5473, %v5477
    %vm5479 = vweird.f32 %v5430
    %vm5480 = vweird.f32 %v5473
    %vm5481 = vmor %vm5479, %vm5480
    %v5482 = vsel %vm5481, %v5473, %v5478
    %v5483 = vrsqrt.pop %v5431
    %v5484 = vmul.f32 %v5483, %v5431
    %v5485 = vmul.f32 %v5484, %v5483
    %v5486 = vmul.f32 0.5, %v5485
    %v5487 = vsub.f32 1.5, %v5486
    %v5488 = vmul.f32 %v5483, %v5487
    %vm5489 = vweird.f32 %v5431
    %vm5490 = vweird.f32 %v5483
    %vm5491 = vmor %vm5489, %vm5490
    %v5492 = vsel %vm5491, %v5483, %v5488
    %v5493 = vrsqrt.pop %v5432
    %v5494 = vmul.f32 %v5493, %v5432
    %v5495 = vmul.f32 %v5494, %v5493
    %v5496 = vmul.f32 0.5, %v5495
    %v5497 = vsub.f32 1.5, %v5496
    %v5498 = vmul.f32 %v5493, %v5497
    %vm5499 = vweird.f32 %v5432
    %vm5500 = vweird.f32 %v5493
    %vm5501 = vmor %vm5499, %vm5500
    %v5502 = vsel %vm5501, %v5493, %v5498
    %v5503 = vrsqrt.pop %v5433
    %v5504 = vmul.f32 %v5503, %v5433
    %v5505 = vmul.f32 %v5504, %v5503
    %v5506 = vmul.f32 0.5, %v5505
    %v5507 = vsub.f32 1.5, %v5506
    %v5508 = vmul.f32 %v5503, %v5507
    %vm5509 = vweird.f32 %v5433
    %vm5510 = vweird.f32 %v5503
    %vm5511 = vmor %vm5509, %vm5510
    %v5512 = vsel %vm5511, %v5503, %v5508
    %v5513 = vrsqrt.pop %v5434
    %v5514 = vmul.f32 %v5513, %v5434
    %v5515 = vmul.f32 %v5514, %v5513
    %v5516 = vmul.f32 0.5, %v5515
    %v5517 = vsub.f32 1.5, %v5516
    %v5518 = vmul.f32 %v5513, %v5517
    %vm5519 = vweird.f32 %v5434
    %vm5520 = vweird.f32 %v5513
    %vm5521 = vmor %vm5519, %vm5520
    %v5522 = vsel %vm5521, %v5513, %v5518
    %v5523 = vrsqrt.pop %v5435
    %v5524 = vmul.f32 %v5523, %v5435
    %v5525 = vmul.f32 %v5524, %v5523
    %v5526 = vmul.f32 0.5, %v5525
    %v5527 = vsub.f32 1.5, %v5526
    %v5528 = vmul.f32 %v5523, %v5527
    %vm5529 = vweird.f32 %v5435
    %vm5530 = vweird.f32 %v5523
    %vm5531 = vmor %vm5529, %vm5530
    %v5532 = vsel %vm5531, %v5523, %v5528
    %v5533 = vrsqrt.pop %v5436
    %v5534 = vmul.f32 %v5533, %v5436
    %v5535 = vmul.f32 %v5534, %v5533
    %v5536 = vmul.f32 0.5, %v5535
    %v5537 = vsub.f32 1.5, %v5536
    %v5538 = vmul.f32 %v5533, %v5537
    %vm5539 = vweird.f32 %v5436
    %vm5540 = vweird.f32 %v5533
    %vm5541 = vmor %vm5539, %vm5540
    %v5542 = vsel %vm5541, %v5533, %v5538
    %v5543 = vrsqrt.pop %v5437
    %v5544 = vmul.f32 %v5543, %v5437
    %v5545 = vmul.f32 %v5544, %v5543
    %v5546 = vmul.f32 0.5, %v5545
    %v5547 = vsub.f32 1.5, %v5546
    %v5548 = vmul.f32 %v5543, %v5547
    %vm5549 = vweird.f32 %v5437
    %vm5550 = vweird.f32 %v5543
    %vm5551 = vmor %vm5549, %vm5550
    %v5552 = vsel %vm5551, %v5543, %v5548
    %v5553 = vrsqrt.pop %v5438
    %v5554 = vmul.f32 %v5553, %v5438
    %v5555 = vmul.f32 %v5554, %v5553
    %v5556 = vmul.f32 0.5, %v5555
    %v5557 = vsub.f32 1.5, %v5556
    %v5558 = vmul.f32 %v5553, %v5557
    %vm5559 = vweird.f32 %v5438
    %vm5560 = vweird.f32 %v5553
    %vm5561 = vmor %vm5559, %vm5560
    %v5562 = vsel %vm5561, %v5553, %v5558
    %v5563 = vrsqrt.pop %v5439
    %v5564 = vmul.f32 %v5563, %v5439
    %v5565 = vmul.f32 %v5564, %v5563
    %v5566 = vmul.f32 0.5, %v5565
    %v5567 = vsub.f32 1.5, %v5566
    %v5568 = vmul.f32 %v5563, %v5567
    %vm5569 = vweird.f32 %v5439
    %vm5570 = vweird.f32 %v5563
    %vm5571 = vmor %vm5569, %vm5570
    %v5572 = vsel %vm5571, %v5563, %v5568
    %v5573 = vrsqrt.pop %v5440
    %v5574 = vmul.f32 %v5573, %v5440
    %v5575 = vmul.f32 %v5574, %v5573
    %v5576 = vmul.f32 0.5, %v5575
    %v5577 = vsub.f32 1.5, %v5576
    %v5578 = vmul.f32 %v5573, %v5577
    %vm5579 = vweird.f32 %v5440
    %vm5580 = vweird.f32 %v5573
    %vm5581 = vmor %vm5579, %vm5580
    %v5582 = vsel %vm5581, %v5573, %v5578
    %v5583 = vrsqrt.pop %v5441
    %v5584 = vmul.f32 %v5583, %v5441
    %v5585 = vmul.f32 %v5584, %v5583
    %v5586 = vmul.f32 0.5, %v5585
    %v5587 = vsub.f32 1.5, %v5586
    %v5588 = vmul.f32 %v5583, %v5587
    %vm5589 = vweird.f32 %v5441
    %vm5590 = vweird.f32 %v5583
    %vm5591 = vmor %vm5589, %vm5590
    %v5592 = vsel %vm5591, %v5583, %v5588
    %v5593 = vrsqrt.pop %v5442
    %v5594 = vmul.f32 %v5593, %v5442
    %v5595 = vmul.f32 %v5594, %v5593
    %v5596 = vmul.f32 0.5, %v5595
    %v5597 = vsub.f32 1.5, %v5596
    %v5598 = vmul.f32 %v5593, %v5597
    %vm5599 = vweird.f32 %v5442
    %vm5600 = vweird.f32 %v5593
    %vm5601 = vmor %vm5599, %vm5600
    %v5602 = vsel %vm5601, %v5593, %v5598
    %v5603 = vmul.f32 %v5331, %v5452
    %v5604 = vmul.f32 %v5332, %v5462
    %v5605 = vmul.f32 %v5333, %v5472
    %v5606 = vmul.f32 %v5334, %v5482
    %v5607 = vmul.f32 %v5335, %v5492
    %v5608 = vmul.f32 %v5336, %v5502
    %v5609 = vmul.f32 %v5337, %v5512
    %v5610 = vmul.f32 %v5338, %v5522
    %v5611 = vmul.f32 %v5339, %v5532
    %v5612 = vmul.f32 %v5340, %v5542
    %v5613 = vmul.f32 %v5341, %v5552
    %v5614 = vmul.f32 %v5342, %v5562
    %v5615 = vmul.f32 %v5343, %v5572
    %v5616 = vmul.f32 %v5344, %v5582
    %v5617 = vmul.f32 %v5345, %v5592
    %v5618 = vmul.f32 %v5346, %v5602
    %v5619 = vperm.slane %v36, 5
    %v5620 = vmul.f32 %v5603, %v5619
    %v5621 = vmul.f32 %v5604, %v5619
    %v5622 = vmul.f32 %v5605, %v5619
    %v5623 = vmul.f32 %v5606, %v5619
    %v5624 = vmul.f32 %v5607, %v5619
    %v5625 = vmul.f32 %v5608, %v5619
    %v5626 = vmul.f32 %v5609, %v5619
    %v5627 = vmul.f32 %v5610, %v5619
    %v5628 = vmul.f32 %v5611, %v5619
    %v5629 = vmul.f32 %v5612, %v5619
    %v5630 = vmul.f32 %v5613, %v5619
    %v5631 = vmul.f32 %v5614, %v5619
    %v5632 = vmul.f32 %v5615, %v5619
    %v5633 = vmul.f32 %v5616, %v5619
    %v5634 = vmul.f32 %v5617, %v5619
    %v5635 = vmul.f32 %v5618, %v5619
    %v5636 = vperm.slane %v36, 6
    %v5637 = vadd.f32 %v5620, %v5636
    %v5638 = vadd.f32 %v5621, %v5636
    %v5639 = vadd.f32 %v5622, %v5636
    %v5640 = vadd.f32 %v5623, %v5636
    %v5641 = vadd.f32 %v5624, %v5636
    %v5642 = vadd.f32 %v5625, %v5636
    %v5643 = vadd.f32 %v5626, %v5636
    %v5644 = vadd.f32 %v5627, %v5636
    %v5645 = vadd.f32 %v5628, %v5636
    %v5646 = vadd.f32 %v5629, %v5636
    %v5647 = vadd.f32 %v5630, %v5636
    %v5648 = vadd.f32 %v5631, %v5636
    %v5649 = vadd.f32 %v5632, %v5636
    %v5650 = vadd.f32 %v5633, %v5636
    %v5651 = vadd.f32 %v5634, %v5636
    %v5652 = vadd.f32 %v5635, %v5636
    %v5653 = vmax.f32 %v5637, 0.0
    %v5654 = vmax.f32 %v5638, 0.0
    %v5655 = vmax.f32 %v5639, 0.0
    %v5656 = vmax.f32 %v5640, 0.0
    %v5657 = vmax.f32 %v5641, 0.0
    %v5658 = vmax.f32 %v5642, 0.0
    %v5659 = vmax.f32 %v5643, 0.0
    %v5660 = vmax.f32 %v5644, 0.0
    %v5661 = vmax.f32 %v5645, 0.0
    %v5662 = vmax.f32 %v5646, 0.0
    %v5663 = vmax.f32 %v5647, 0.0
    %v5664 = vmax.f32 %v5648, 0.0
    %v5665 = vmax.f32 %v5649, 0.0
    %v5666 = vmax.f32 %v5650, 0.0
    %v5667 = vmax.f32 %v5651, 0.0
    %v5668 = vmax.f32 %v5652, 0.0
    %v5669 = vpack.c.bf16 %v5654, %v5653
    %v5670 = vpack.c.bf16 %v5656, %v5655
    %v5671 = vpack.c.bf16 %v5658, %v5657
    %v5672 = vpack.c.bf16 %v5660, %v5659
    %v5673 = vpack.c.bf16 %v5662, %v5661
    %v5674 = vpack.c.bf16 %v5664, %v5663
    %v5675 = vpack.c.bf16 %v5666, %v5665
    %v5676 = vpack.c.bf16 %v5668, %v5667
    %v5677 = vperm.slane %v36, 7
    %v5686 = vunpack.c.l.b16 %v4940
    %v5687 = vunpack.c.l.b16 %v4941
    %v5688 = vunpack.c.l.b16 %v4942
    %v5689 = vunpack.c.l.b16 %v4943
    %v5690 = vunpack.c.l.b16 %v4944
    %v5691 = vunpack.c.l.b16 %v4945
    %v5692 = vunpack.c.l.b16 %v4946
    %v5693 = vunpack.c.l.b16 %v4947
    %v5694 = vpack.c.b16 %v5687, %v5686
    %v5695 = vpack.c.b16 %v5689, %v5688
    %v5696 = vpack.c.b16 %v5691, %v5690
    %v5697 = vpack.c.b16 %v5693, %v5692
    %v5703 = vsel %vm913, %v5669, 0
    %v5706 = vsel %vm913, %v5670, 0
    %v5709 = vsel %vm913, %v5671, 0
    %v5712 = vsel %vm913, %v5672, 0
    %v5715 = vsel %vm913, %v5673, 0
    %v5718 = vsel %vm913, %v5674, 0
    %v5721 = vsel %vm913, %v5675, 0
    %v5724 = vsel %vm913, %v5676, 0
    %5726 = vmatpush.bf16.msra.mxu0 0
    %5727 = vmatpush.bf16.msra.mxu0 0
    %5728 = vmatpush.bf16.msra.mxu0 0
    %5729 = vmatpush.bf16.msra.mxu0 0
    %5730 = vmatpush.bf16.msra.mxu0 %v5697
    %5731 = vmatpush.bf16.msra.mxu0 %v5696
    %5732 = vmatpush.bf16.msra.mxu0 %v5695
    %5733 = vmatpush.bf16.msra.mxu0 %v5694
    %5734 = vmatmul.bf16.gmra.mxu0 %v5703
    %v5735 = vpop.f32.mrf.mxu0
    %v5736 = vadd.f32 %v5677, %v5735
    %v5737 = vpop.f32.mrf.mxu0
    %v5738 = vadd.f32 %v5677, %v5737
    %5739 = vmatmul.bf16.gmra.mxu0 %v5706
    %v5740 = vpop.f32.mrf.mxu0
    %v5741 = vadd.f32 %v5677, %v5740
    %v5742 = vpop.f32.mrf.mxu0
    %v5743 = vadd.f32 %v5677, %v5742
    %5744 = vmatmul.bf16.gmra.mxu0 %v5709
    %v5745 = vpop.f32.mrf.mxu0
    %v5746 = vadd.f32 %v5677, %v5745
    %v5747 = vpop.f32.mrf.mxu0
    %v5748 = vadd.f32 %v5677, %v5747
    %5749 = vmatmul.bf16.gmra.mxu0 %v5712
    %v5750 = vpop.f32.mrf.mxu0
    %v5751 = vadd.f32 %v5677, %v5750
    %v5752 = vpop.f32.mrf.mxu0
    %v5753 = vadd.f32 %v5677, %v5752
    %5754 = vmatmul.bf16.gmra.mxu0 %v5715
    %v5755 = vpop.f32.mrf.mxu0
    %v5756 = vadd.f32 %v5677, %v5755
    %v5757 = vpop.f32.mrf.mxu0
    %v5758 = vadd.f32 %v5677, %v5757
    %5759 = vmatmul.bf16.gmra.mxu0 %v5718
    %v5760 = vpop.f32.mrf.mxu0
    %v5761 = vadd.f32 %v5677, %v5760
    %v5762 = vpop.f32.mrf.mxu0
    %v5763 = vadd.f32 %v5677, %v5762
    %5764 = vmatmul.bf16.gmra.mxu0 %v5721
    %v5765 = vpop.f32.mrf.mxu0
    %v5766 = vadd.f32 %v5677, %v5765
    %v5767 = vpop.f32.mrf.mxu0
    %v5768 = vadd.f32 %v5677, %v5767
    %5769 = vmatmul.bf16.gmra.mxu0 %v5724
    %v5770 = vpop.f32.mrf.mxu0
    %v5771 = vadd.f32 %v5677, %v5770
    %v5772 = vpop.f32.mrf.mxu0
    %v5773 = vadd.f32 %v5677, %v5772
    %5774 = vdwg.mxu0
    %v5775 = vpack.c.bf16 %v5738, %v5736
    %v5776 = vpack.c.bf16 %v5743, %v5741
    %v5777 = vpack.c.bf16 %v5748, %v5746
    %v5778 = vpack.c.bf16 %v5753, %v5751
    %v5779 = vpack.c.bf16 %v5758, %v5756
    %v5780 = vpack.c.bf16 %v5763, %v5761
    %v5781 = vpack.c.bf16 %v5768, %v5766
    %v5782 = vpack.c.bf16 %v5773, %v5771
    %5783 = vmatpush.bf16.msra.mxu0 %v5782
    %5784 = vmatpush.bf16.msra.mxu0 %v5781
    %5785 = vmatpush.bf16.msra.mxu0 %v5780
    %5786 = vmatpush.bf16.msra.mxu0 %v5779
    %5787 = vmatpush.bf16.msra.mxu0 %v5778
    %5788 = vmatpush.bf16.msra.mxu0 %v5777
    %5789 = vmatpush.bf16.msra.mxu0 %v5776
    %5790 = vmatpush.bf16.msra.mxu0 %v5775
    %5791 = vmatmul.bf16.gmra.mxu0 %v2549
    %v5792 = vpop.f32.mrf.mxu0
    %v5793 = vadd.f32 0.0, %v5792
    %v5794 = vpop.f32.mrf.mxu0
    %v5795 = vadd.f32 0.0, %v5794
    %5796 = vmatmul.bf16.gmra.mxu0 %v2550
    %v5797 = vpop.f32.mrf.mxu0
    %v5798 = vadd.f32 0.0, %v5797
    %v5799 = vpop.f32.mrf.mxu0
    %v5800 = vadd.f32 0.0, %v5799
    %5801 = vmatmul.bf16.gmra.mxu0 %v2551
    %v5802 = vpop.f32.mrf.mxu0
    %v5803 = vadd.f32 0.0, %v5802
    %v5804 = vpop.f32.mrf.mxu0
    %v5805 = vadd.f32 0.0, %v5804
    %5806 = vmatmul.bf16.gmra.mxu0 %v2552
    %v5807 = vpop.f32.mrf.mxu0
    %v5808 = vadd.f32 0.0, %v5807
    %v5809 = vpop.f32.mrf.mxu0
    %v5810 = vadd.f32 0.0, %v5809
    %5811 = vmatmul.bf16.gmra.mxu0 %v2553
    %v5812 = vpop.f32.mrf.mxu0
    %v5813 = vadd.f32 0.0, %v5812
    %v5814 = vpop.f32.mrf.mxu0
    %v5815 = vadd.f32 0.0, %v5814
    %5816 = vmatmul.bf16.gmra.mxu0 %v2554
    %v5817 = vpop.f32.mrf.mxu0
    %v5818 = vadd.f32 0.0, %v5817
    %v5819 = vpop.f32.mrf.mxu0
    %v5820 = vadd.f32 0.0, %v5819
    %5821 = vmatmul.bf16.gmra.mxu0 %v2555
    %v5822 = vpop.f32.mrf.mxu0
    %v5823 = vadd.f32 0.0, %v5822
    %v5824 = vpop.f32.mrf.mxu0
    %v5825 = vadd.f32 0.0, %v5824
    %5826 = vmatmul.bf16.gmra.mxu0 %v2556
    %v5827 = vpop.f32.mrf.mxu0
    %v5828 = vadd.f32 0.0, %v5827
    %v5829 = vpop.f32.mrf.mxu0
    %v5830 = vadd.f32 0.0, %v5829
    %5831 = vdwg.mxu0
    %v5832 = vsel %vm913, %v5793, 0.0
    %5833 = vadd.xlane.f32.xlu0 %v5832
    %v5834 = vpop.xlane.xlu0 %5833
    %v5835 = vsel %vm913, %v5795, 0.0
    %5836 = vadd.xlane.f32.xlu0 %v5835
    %v5837 = vpop.xlane.xlu0 %5836
    %v5838 = vsel %vm913, %v5798, 0.0
    %5839 = vadd.xlane.f32.xlu0 %v5838
    %v5840 = vpop.xlane.xlu0 %5839
    %v5841 = vsel %vm913, %v5800, 0.0
    %5842 = vadd.xlane.f32.xlu0 %v5841
    %v5843 = vpop.xlane.xlu0 %5842
    %v5844 = vsel %vm913, %v5803, 0.0
    %5845 = vadd.xlane.f32.xlu0 %v5844
    %v5846 = vpop.xlane.xlu0 %5845
    %v5847 = vsel %vm913, %v5805, 0.0
    %5848 = vadd.xlane.f32.xlu0 %v5847
    %v5849 = vpop.xlane.xlu0 %5848
    %v5850 = vsel %vm913, %v5808, 0.0
    %5851 = vadd.xlane.f32.xlu0 %v5850
    %v5852 = vpop.xlane.xlu0 %5851
    %v5853 = vsel %vm913, %v5810, 0.0
    %5854 = vadd.xlane.f32.xlu0 %v5853
    %v5855 = vpop.xlane.xlu0 %5854
    %v5856 = vsel %vm913, %v5813, 0.0
    %5857 = vadd.xlane.f32.xlu0 %v5856
    %v5858 = vpop.xlane.xlu0 %5857
    %v5859 = vsel %vm913, %v5815, 0.0
    %5860 = vadd.xlane.f32.xlu0 %v5859
    %v5861 = vpop.xlane.xlu0 %5860
    %v5862 = vsel %vm913, %v5818, 0.0
    %5863 = vadd.xlane.f32.xlu0 %v5862
    %v5864 = vpop.xlane.xlu0 %5863
    %v5865 = vsel %vm913, %v5820, 0.0
    %5866 = vadd.xlane.f32.xlu0 %v5865
    %v5867 = vpop.xlane.xlu0 %5866
    %v5868 = vsel %vm913, %v5823, 0.0
    %5869 = vadd.xlane.f32.xlu0 %v5868
    %v5870 = vpop.xlane.xlu0 %5869
    %v5871 = vsel %vm913, %v5825, 0.0
    %5872 = vadd.xlane.f32.xlu0 %v5871
    %v5873 = vpop.xlane.xlu0 %5872
    %v5874 = vsel %vm913, %v5828, 0.0
    %5875 = vadd.xlane.f32.xlu0 %v5874
    %v5876 = vpop.xlane.xlu0 %5875
    %v5877 = vsel %vm913, %v5830, 0.0
    %5878 = vadd.xlane.f32.xlu0 %v5877
    %v5879 = vpop.xlane.xlu0 %5878
    %v5880 = vmul.f32 %v5834, %v2072
    %v5881 = vmul.f32 %v5837, %v2072
    %v5882 = vmul.f32 %v5840, %v2072
    %v5883 = vmul.f32 %v5843, %v2072
    %v5884 = vmul.f32 %v5846, %v2072
    %v5885 = vmul.f32 %v5849, %v2072
    %v5886 = vmul.f32 %v5852, %v2072
    %v5887 = vmul.f32 %v5855, %v2072
    %v5888 = vmul.f32 %v5858, %v2072
    %v5889 = vmul.f32 %v5861, %v2072
    %v5890 = vmul.f32 %v5864, %v2072
    %v5891 = vmul.f32 %v5867, %v2072
    %v5892 = vmul.f32 %v5870, %v2072
    %v5893 = vmul.f32 %v5873, %v2072
    %v5894 = vmul.f32 %v5876, %v2072
    %v5895 = vmul.f32 %v5879, %v2072
    %v5896 = vsub.f32 %v5793, %v5880
    %v5897 = vsub.f32 %v5795, %v5881
    %v5898 = vsub.f32 %v5798, %v5882
    %v5899 = vsub.f32 %v5800, %v5883
    %v5900 = vsub.f32 %v5803, %v5884
    %v5901 = vsub.f32 %v5805, %v5885
    %v5902 = vsub.f32 %v5808, %v5886
    %v5903 = vsub.f32 %v5810, %v5887
    %v5904 = vsub.f32 %v5813, %v5888
    %v5905 = vsub.f32 %v5815, %v5889
    %v5906 = vsub.f32 %v5818, %v5890
    %v5907 = vsub.f32 %v5820, %v5891
    %v5908 = vsub.f32 %v5823, %v5892
    %v5909 = vsub.f32 %v5825, %v5893
    %v5910 = vsub.f32 %v5828, %v5894
    %v5911 = vsub.f32 %v5830, %v5895
    %v5912 = vmul.f32 %v5896, %v5896
    %v5913 = vmul.f32 %v5897, %v5897
    %v5914 = vmul.f32 %v5898, %v5898
    %v5915 = vmul.f32 %v5899, %v5899
    %v5916 = vmul.f32 %v5900, %v5900
    %v5917 = vmul.f32 %v5901, %v5901
    %v5918 = vmul.f32 %v5902, %v5902
    %v5919 = vmul.f32 %v5903, %v5903
    %v5920 = vmul.f32 %v5904, %v5904
    %v5921 = vmul.f32 %v5905, %v5905
    %v5922 = vmul.f32 %v5906, %v5906
    %v5923 = vmul.f32 %v5907, %v5907
    %v5924 = vmul.f32 %v5908, %v5908
    %v5925 = vmul.f32 %v5909, %v5909
    %v5926 = vmul.f32 %v5910, %v5910
    %v5927 = vmul.f32 %v5911, %v5911
    %v5928 = vsel %vm913, %v5912, 0.0
    %5929 = vadd.xlane.f32.xlu0 %v5928
    %v5930 = vpop.xlane.xlu0 %5929
    %v5931 = vsel %vm913, %v5913, 0.0
    %5932 = vadd.xlane.f32.xlu0 %v5931
    %v5933 = vpop.xlane.xlu0 %5932
    %v5934 = vsel %vm913, %v5914, 0.0
    %5935 = vadd.xlane.f32.xlu0 %v5934
    %v5936 = vpop.xlane.xlu0 %5935
    %v5937 = vsel %vm913, %v5915, 0.0
    %5938 = vadd.xlane.f32.xlu0 %v5937
    %v5939 = vpop.xlane.xlu0 %5938
    %v5940 = vsel %vm913, %v5916, 0.0
    %5941 = vadd.xlane.f32.xlu0 %v5940
    %v5942 = vpop.xlane.xlu0 %5941
    %v5943 = vsel %vm913, %v5917, 0.0
    %5944 = vadd.xlane.f32.xlu0 %v5943
    %v5945 = vpop.xlane.xlu0 %5944
    %v5946 = vsel %vm913, %v5918, 0.0
    %5947 = vadd.xlane.f32.xlu0 %v5946
    %v5948 = vpop.xlane.xlu0 %5947
    %v5949 = vsel %vm913, %v5919, 0.0
    %5950 = vadd.xlane.f32.xlu0 %v5949
    %v5951 = vpop.xlane.xlu0 %5950
    %v5952 = vsel %vm913, %v5920, 0.0
    %5953 = vadd.xlane.f32.xlu0 %v5952
    %v5954 = vpop.xlane.xlu0 %5953
    %v5955 = vsel %vm913, %v5921, 0.0
    %5956 = vadd.xlane.f32.xlu0 %v5955
    %v5957 = vpop.xlane.xlu0 %5956
    %v5958 = vsel %vm913, %v5922, 0.0
    %5959 = vadd.xlane.f32.xlu0 %v5958
    %v5960 = vpop.xlane.xlu0 %5959
    %v5961 = vsel %vm913, %v5923, 0.0
    %5962 = vadd.xlane.f32.xlu0 %v5961
    %v5963 = vpop.xlane.xlu0 %5962
    %v5964 = vsel %vm913, %v5924, 0.0
    %5965 = vadd.xlane.f32.xlu0 %v5964
    %v5966 = vpop.xlane.xlu0 %5965
    %v5967 = vsel %vm913, %v5925, 0.0
    %5968 = vadd.xlane.f32.xlu0 %v5967
    %v5969 = vpop.xlane.xlu0 %5968
    %v5970 = vsel %vm913, %v5926, 0.0
    %5971 = vadd.xlane.f32.xlu0 %v5970
    %v5972 = vpop.xlane.xlu0 %5971
    %v5973 = vsel %vm913, %v5927, 0.0
    %5974 = vadd.xlane.f32.xlu0 %v5973
    %v5975 = vpop.xlane.xlu0 %5974
    %v5976 = vmul.f32 %v5930, %v2072
    %v5977 = vmul.f32 %v5933, %v2072
    %v5978 = vmul.f32 %v5936, %v2072
    %v5979 = vmul.f32 %v5939, %v2072
    %v5980 = vmul.f32 %v5942, %v2072
    %v5981 = vmul.f32 %v5945, %v2072
    %v5982 = vmul.f32 %v5948, %v2072
    %v5983 = vmul.f32 %v5951, %v2072
    %v5984 = vmul.f32 %v5954, %v2072
    %v5985 = vmul.f32 %v5957, %v2072
    %v5986 = vmul.f32 %v5960, %v2072
    %v5987 = vmul.f32 %v5963, %v2072
    %v5988 = vmul.f32 %v5966, %v2072
    %v5989 = vmul.f32 %v5969, %v2072
    %v5990 = vmul.f32 %v5972, %v2072
    %v5991 = vmul.f32 %v5975, %v2072
    %v5992 = vadd.f32 %v5976, 1e-05
    %v5993 = vadd.f32 %v5977, 1e-05
    %v5994 = vadd.f32 %v5978, 1e-05
    %v5995 = vadd.f32 %v5979, 1e-05
    %v5996 = vadd.f32 %v5980, 1e-05
    %v5997 = vadd.f32 %v5981, 1e-05
    %v5998 = vadd.f32 %v5982, 1e-05
    %v5999 = vadd.f32 %v5983, 1e-05
    %v6000 = vadd.f32 %v5984, 1e-05
    %v6001 = vadd.f32 %v5985, 1e-05
    %v6002 = vadd.f32 %v5986, 1e-05
    %v6003 = vadd.f32 %v5987, 1e-05
    %v6004 = vadd.f32 %v5988, 1e-05
    %v6005 = vadd.f32 %v5989, 1e-05
    %v6006 = vadd.f32 %v5990, 1e-05
    %v6007 = vadd.f32 %v5991, 1e-05
    %v6008 = vrsqrt.pop %v5992
    %v6009 = vmul.f32 %v6008, %v5992
    %v6010 = vmul.f32 %v6009, %v6008
    %v6011 = vmul.f32 0.5, %v6010
    %v6012 = vsub.f32 1.5, %v6011
    %v6013 = vmul.f32 %v6008, %v6012
    %vm6014 = vweird.f32 %v5992
    %vm6015 = vweird.f32 %v6008
    %vm6016 = vmor %vm6014, %vm6015
    %v6017 = vsel %vm6016, %v6008, %v6013
    %v6018 = vrsqrt.pop %v5993
    %v6019 = vmul.f32 %v6018, %v5993
    %v6020 = vmul.f32 %v6019, %v6018
    %v6021 = vmul.f32 0.5, %v6020
    %v6022 = vsub.f32 1.5, %v6021
    %v6023 = vmul.f32 %v6018, %v6022
    %vm6024 = vweird.f32 %v5993
    %vm6025 = vweird.f32 %v6018
    %vm6026 = vmor %vm6024, %vm6025
    %v6027 = vsel %vm6026, %v6018, %v6023
    %v6028 = vrsqrt.pop %v5994
    %v6029 = vmul.f32 %v6028, %v5994
    %v6030 = vmul.f32 %v6029, %v6028
    %v6031 = vmul.f32 0.5, %v6030
    %v6032 = vsub.f32 1.5, %v6031
    %v6033 = vmul.f32 %v6028, %v6032
    %vm6034 = vweird.f32 %v5994
    %vm6035 = vweird.f32 %v6028
    %vm6036 = vmor %vm6034, %vm6035
    %v6037 = vsel %vm6036, %v6028, %v6033
    %v6038 = vrsqrt.pop %v5995
    %v6039 = vmul.f32 %v6038, %v5995
    %v6040 = vmul.f32 %v6039, %v6038
    %v6041 = vmul.f32 0.5, %v6040
    %v6042 = vsub.f32 1.5, %v6041
    %v6043 = vmul.f32 %v6038, %v6042
    %vm6044 = vweird.f32 %v5995
    %vm6045 = vweird.f32 %v6038
    %vm6046 = vmor %vm6044, %vm6045
    %v6047 = vsel %vm6046, %v6038, %v6043
    %v6048 = vrsqrt.pop %v5996
    %v6049 = vmul.f32 %v6048, %v5996
    %v6050 = vmul.f32 %v6049, %v6048
    %v6051 = vmul.f32 0.5, %v6050
    %v6052 = vsub.f32 1.5, %v6051
    %v6053 = vmul.f32 %v6048, %v6052
    %vm6054 = vweird.f32 %v5996
    %vm6055 = vweird.f32 %v6048
    %vm6056 = vmor %vm6054, %vm6055
    %v6057 = vsel %vm6056, %v6048, %v6053
    %v6058 = vrsqrt.pop %v5997
    %v6059 = vmul.f32 %v6058, %v5997
    %v6060 = vmul.f32 %v6059, %v6058
    %v6061 = vmul.f32 0.5, %v6060
    %v6062 = vsub.f32 1.5, %v6061
    %v6063 = vmul.f32 %v6058, %v6062
    %vm6064 = vweird.f32 %v5997
    %vm6065 = vweird.f32 %v6058
    %vm6066 = vmor %vm6064, %vm6065
    %v6067 = vsel %vm6066, %v6058, %v6063
    %v6068 = vrsqrt.pop %v5998
    %v6069 = vmul.f32 %v6068, %v5998
    %v6070 = vmul.f32 %v6069, %v6068
    %v6071 = vmul.f32 0.5, %v6070
    %v6072 = vsub.f32 1.5, %v6071
    %v6073 = vmul.f32 %v6068, %v6072
    %vm6074 = vweird.f32 %v5998
    %vm6075 = vweird.f32 %v6068
    %vm6076 = vmor %vm6074, %vm6075
    %v6077 = vsel %vm6076, %v6068, %v6073
    %v6078 = vrsqrt.pop %v5999
    %v6079 = vmul.f32 %v6078, %v5999
    %v6080 = vmul.f32 %v6079, %v6078
    %v6081 = vmul.f32 0.5, %v6080
    %v6082 = vsub.f32 1.5, %v6081
    %v6083 = vmul.f32 %v6078, %v6082
    %vm6084 = vweird.f32 %v5999
    %vm6085 = vweird.f32 %v6078
    %vm6086 = vmor %vm6084, %vm6085
    %v6087 = vsel %vm6086, %v6078, %v6083
    %v6088 = vrsqrt.pop %v6000
    %v6089 = vmul.f32 %v6088, %v6000
    %v6090 = vmul.f32 %v6089, %v6088
    %v6091 = vmul.f32 0.5, %v6090
    %v6092 = vsub.f32 1.5, %v6091
    %v6093 = vmul.f32 %v6088, %v6092
    %vm6094 = vweird.f32 %v6000
    %vm6095 = vweird.f32 %v6088
    %vm6096 = vmor %vm6094, %vm6095
    %v6097 = vsel %vm6096, %v6088, %v6093
    %v6098 = vrsqrt.pop %v6001
    %v6099 = vmul.f32 %v6098, %v6001
    %v6100 = vmul.f32 %v6099, %v6098
    %v6101 = vmul.f32 0.5, %v6100
    %v6102 = vsub.f32 1.5, %v6101
    %v6103 = vmul.f32 %v6098, %v6102
    %vm6104 = vweird.f32 %v6001
    %vm6105 = vweird.f32 %v6098
    %vm6106 = vmor %vm6104, %vm6105
    %v6107 = vsel %vm6106, %v6098, %v6103
    %v6108 = vrsqrt.pop %v6002
    %v6109 = vmul.f32 %v6108, %v6002
    %v6110 = vmul.f32 %v6109, %v6108
    %v6111 = vmul.f32 0.5, %v6110
    %v6112 = vsub.f32 1.5, %v6111
    %v6113 = vmul.f32 %v6108, %v6112
    %vm6114 = vweird.f32 %v6002
    %vm6115 = vweird.f32 %v6108
    %vm6116 = vmor %vm6114, %vm6115
    %v6117 = vsel %vm6116, %v6108, %v6113
    %v6118 = vrsqrt.pop %v6003
    %v6119 = vmul.f32 %v6118, %v6003
    %v6120 = vmul.f32 %v6119, %v6118
    %v6121 = vmul.f32 0.5, %v6120
    %v6122 = vsub.f32 1.5, %v6121
    %v6123 = vmul.f32 %v6118, %v6122
    %vm6124 = vweird.f32 %v6003
    %vm6125 = vweird.f32 %v6118
    %vm6126 = vmor %vm6124, %vm6125
    %v6127 = vsel %vm6126, %v6118, %v6123
    %v6128 = vrsqrt.pop %v6004
    %v6129 = vmul.f32 %v6128, %v6004
    %v6130 = vmul.f32 %v6129, %v6128
    %v6131 = vmul.f32 0.5, %v6130
    %v6132 = vsub.f32 1.5, %v6131
    %v6133 = vmul.f32 %v6128, %v6132
    %vm6134 = vweird.f32 %v6004
    %vm6135 = vweird.f32 %v6128
    %vm6136 = vmor %vm6134, %vm6135
    %v6137 = vsel %vm6136, %v6128, %v6133
    %v6138 = vrsqrt.pop %v6005
    %v6139 = vmul.f32 %v6138, %v6005
    %v6140 = vmul.f32 %v6139, %v6138
    %v6141 = vmul.f32 0.5, %v6140
    %v6142 = vsub.f32 1.5, %v6141
    %v6143 = vmul.f32 %v6138, %v6142
    %vm6144 = vweird.f32 %v6005
    %vm6145 = vweird.f32 %v6138
    %vm6146 = vmor %vm6144, %vm6145
    %v6147 = vsel %vm6146, %v6138, %v6143
    %v6148 = vrsqrt.pop %v6006
    %v6149 = vmul.f32 %v6148, %v6006
    %v6150 = vmul.f32 %v6149, %v6148
    %v6151 = vmul.f32 0.5, %v6150
    %v6152 = vsub.f32 1.5, %v6151
    %v6153 = vmul.f32 %v6148, %v6152
    %vm6154 = vweird.f32 %v6006
    %vm6155 = vweird.f32 %v6148
    %vm6156 = vmor %vm6154, %vm6155
    %v6157 = vsel %vm6156, %v6148, %v6153
    %v6158 = vrsqrt.pop %v6007
    %v6159 = vmul.f32 %v6158, %v6007
    %v6160 = vmul.f32 %v6159, %v6158
    %v6161 = vmul.f32 0.5, %v6160
    %v6162 = vsub.f32 1.5, %v6161
    %v6163 = vmul.f32 %v6158, %v6162
    %vm6164 = vweird.f32 %v6007
    %vm6165 = vweird.f32 %v6158
    %vm6166 = vmor %vm6164, %vm6165
    %v6167 = vsel %vm6166, %v6158, %v6163
    %v6168 = vmul.f32 %v5896, %v6017
    %v6169 = vmul.f32 %v5897, %v6027
    %v6170 = vmul.f32 %v5898, %v6037
    %v6171 = vmul.f32 %v5899, %v6047
    %v6172 = vmul.f32 %v5900, %v6057
    %v6173 = vmul.f32 %v5901, %v6067
    %v6174 = vmul.f32 %v5902, %v6077
    %v6175 = vmul.f32 %v5903, %v6087
    %v6176 = vmul.f32 %v5904, %v6097
    %v6177 = vmul.f32 %v5905, %v6107
    %v6178 = vmul.f32 %v5906, %v6117
    %v6179 = vmul.f32 %v5907, %v6127
    %v6180 = vmul.f32 %v5908, %v6137
    %v6181 = vmul.f32 %v5909, %v6147
    %v6182 = vmul.f32 %v5910, %v6157
    %v6183 = vmul.f32 %v5911, %v6167
    %v6184 = vperm.slane %v37, 0
    %v6185 = vmul.f32 %v6168, %v6184
    %v6186 = vmul.f32 %v6169, %v6184
    %v6187 = vmul.f32 %v6170, %v6184
    %v6188 = vmul.f32 %v6171, %v6184
    %v6189 = vmul.f32 %v6172, %v6184
    %v6190 = vmul.f32 %v6173, %v6184
    %v6191 = vmul.f32 %v6174, %v6184
    %v6192 = vmul.f32 %v6175, %v6184
    %v6193 = vmul.f32 %v6176, %v6184
    %v6194 = vmul.f32 %v6177, %v6184
    %v6195 = vmul.f32 %v6178, %v6184
    %v6196 = vmul.f32 %v6179, %v6184
    %v6197 = vmul.f32 %v6180, %v6184
    %v6198 = vmul.f32 %v6181, %v6184
    %v6199 = vmul.f32 %v6182, %v6184
    %v6200 = vmul.f32 %v6183, %v6184
    %v6201 = vperm.slane %v37, 1
    %v6202 = vadd.f32 %v6185, %v6201
    %v6203 = vadd.f32 %v6186, %v6201
    %v6204 = vadd.f32 %v6187, %v6201
    %v6205 = vadd.f32 %v6188, %v6201
    %v6206 = vadd.f32 %v6189, %v6201
    %v6207 = vadd.f32 %v6190, %v6201
    %v6208 = vadd.f32 %v6191, %v6201
    %v6209 = vadd.f32 %v6192, %v6201
    %v6210 = vadd.f32 %v6193, %v6201
    %v6211 = vadd.f32 %v6194, %v6201
    %v6212 = vadd.f32 %v6195, %v6201
    %v6213 = vadd.f32 %v6196, %v6201
    %v6214 = vadd.f32 %v6197, %v6201
    %v6215 = vadd.f32 %v6198, %v6201
    %v6216 = vadd.f32 %v6199, %v6201
    %v6217 = vadd.f32 %v6200, %v6201
    %6234 = vrot.lane.b32.xlu0 %v3261, 64
    %v6235 = vpop.permute.xlu0 %6234
    %6236 = vrot.lane.b32.xlu0 %v3263, 64
    %v6237 = vpop.permute.xlu0 %6236
    %6238 = vrot.lane.b32.xlu0 %v3266, 64
    %v6239 = vpop.permute.xlu0 %6238
    %6240 = vrot.lane.b32.xlu0 %v3268, 64
    %v6241 = vpop.permute.xlu0 %6240
    %6242 = vrot.lane.b32.xlu0 %v3271, 64
    %v6243 = vpop.permute.xlu0 %6242
    %6244 = vrot.lane.b32.xlu0 %v3273, 64
    %v6245 = vpop.permute.xlu0 %6244
    %6246 = vrot.lane.b32.xlu0 %v3276, 64
    %v6247 = vpop.permute.xlu0 %6246
    %6248 = vrot.lane.b32.xlu0 %v3278, 64
    %v6249 = vpop.permute.xlu0 %6248
    %6250 = vrot.lane.b32.xlu0 %v3281, 64
    %v6251 = vpop.permute.xlu0 %6250
    %6252 = vrot.lane.b32.xlu0 %v3283, 64
    %v6253 = vpop.permute.xlu0 %6252
    %6254 = vrot.lane.b32.xlu0 %v3286, 64
    %v6255 = vpop.permute.xlu0 %6254
    %6256 = vrot.lane.b32.xlu0 %v3288, 64
    %v6257 = vpop.permute.xlu0 %6256
    %6258 = vrot.lane.b32.xlu0 %v3291, 64
    %v6259 = vpop.permute.xlu0 %6258
    %6260 = vrot.lane.b32.xlu0 %v3293, 64
    %v6261 = vpop.permute.xlu0 %6260
    %6262 = vrot.lane.b32.xlu0 %v3296, 64
    %v6263 = vpop.permute.xlu0 %6262
    %6264 = vrot.lane.b32.xlu0 %v3298, 64
    %v6265 = vpop.permute.xlu0 %6264
    %v6282 = vsel %vm913, %v6202, %v6235
    %v6283 = vsel %vm913, %v6203, %v6237
    %v6284 = vsel %vm913, %v6204, %v6239
    %v6285 = vsel %vm913, %v6205, %v6241
    %v6286 = vsel %vm913, %v6206, %v6243
    %v6287 = vsel %vm913, %v6207, %v6245
    %v6288 = vsel %vm913, %v6208, %v6247
    %v6289 = vsel %vm913, %v6209, %v6249
    %v6290 = vsel %vm913, %v6210, %v6251
    %v6291 = vsel %vm913, %v6211, %v6253
    %v6292 = vsel %vm913, %v6212, %v6255
    %v6293 = vsel %vm913, %v6213, %v6257
    %v6294 = vsel %vm913, %v6214, %v6259
    %v6295 = vsel %vm913, %v6215, %v6261
    %v6296 = vsel %vm913, %v6216, %v6263
    %v6297 = vsel %vm913, %v6217, %v6265
    %v6298 = vpack.c.bf16 %v6283, %v6282
    %v6299 = vpack.c.bf16 %v6285, %v6284
    %v6300 = vpack.c.bf16 %v6287, %v6286
    %v6301 = vpack.c.bf16 %v6289, %v6288
    %v6302 = vpack.c.bf16 %v6291, %v6290
    %v6303 = vpack.c.bf16 %v6293, %v6292
    %v6304 = vpack.c.bf16 %v6295, %v6294
    %v6305 = vpack.c.bf16 %v6297, %v6296
    %v6306 = vperm.slane %v37, 2
    %v6323 = vunpack.c.l.b16 %v4958
    %v6324 = vunpack.c.l.b16 %v4959
    %v6325 = vunpack.c.l.b16 %v4960
    %v6326 = vunpack.c.l.b16 %v4961
    %v6327 = vunpack.c.l.b16 %v4962
    %v6328 = vunpack.c.l.b16 %v4963
    %v6329 = vunpack.c.l.b16 %v4964
    %v6330 = vunpack.c.l.b16 %v4965
    %v6331 = vunpack.c.l.b16 %v4966
    %v6332 = vunpack.c.l.b16 %v4967
    %v6333 = vunpack.c.l.b16 %v4968
    %v6334 = vunpack.c.l.b16 %v4969
    %v6335 = vunpack.c.l.b16 %v4970
    %v6336 = vunpack.c.l.b16 %v4971
    %v6337 = vunpack.c.l.b16 %v4972
    %v6338 = vunpack.c.l.b16 %v4973
    %v6339 = vpack.c.b16 %v6324, %v6323
    %v6340 = vpack.c.b16 %v6326, %v6325
    %v6341 = vpack.c.b16 %v6328, %v6327
    %v6342 = vpack.c.b16 %v6330, %v6329
    %v6343 = vpack.c.b16 %v6332, %v6331
    %v6344 = vpack.c.b16 %v6334, %v6333
    %v6345 = vpack.c.b16 %v6336, %v6335
    %v6346 = vpack.c.b16 %v6338, %v6337
    %6355 = vmatpush.bf16.msra.mxu0 %v6346
    %6356 = vmatpush.bf16.msra.mxu0 %v6345
    %6357 = vmatpush.bf16.msra.mxu0 %v6344
    %6358 = vmatpush.bf16.msra.mxu0 %v6343
    %6359 = vmatpush.bf16.msra.mxu0 %v6342
    %6360 = vmatpush.bf16.msra.mxu0 %v6341
    %6361 = vmatpush.bf16.msra.mxu0 %v6340
    %6362 = vmatpush.bf16.msra.mxu0 %v6339
    %6363 = vmatmul.bf16.gmra.mxu0 %v6298
    %v6364 = vpop.f32.mrf.mxu0
    %v6365 = vadd.f32 %v6306, %v6364
    %v6366 = vpop.f32.mrf.mxu0
    %v6367 = vadd.f32 %v6306, %v6366
    %6368 = vmatmul.bf16.gmra.mxu0 %v6299
    %v6369 = vpop.f32.mrf.mxu0
    %v6370 = vadd.f32 %v6306, %v6369
    %v6371 = vpop.f32.mrf.mxu0
    %v6372 = vadd.f32 %v6306, %v6371
    %6373 = vmatmul.bf16.gmra.mxu0 %v6300
    %v6374 = vpop.f32.mrf.mxu0
    %v6375 = vadd.f32 %v6306, %v6374
    %v6376 = vpop.f32.mrf.mxu0
    %v6377 = vadd.f32 %v6306, %v6376
    %6378 = vmatmul.bf16.gmra.mxu0 %v6301
    %v6379 = vpop.f32.mrf.mxu0
    %v6380 = vadd.f32 %v6306, %v6379
    %v6381 = vpop.f32.mrf.mxu0
    %v6382 = vadd.f32 %v6306, %v6381
    %6383 = vmatmul.bf16.gmra.mxu0 %v6302
    %v6384 = vpop.f32.mrf.mxu0
    %v6385 = vadd.f32 %v6306, %v6384
    %v6386 = vpop.f32.mrf.mxu0
    %v6387 = vadd.f32 %v6306, %v6386
    %6388 = vmatmul.bf16.gmra.mxu0 %v6303
    %v6389 = vpop.f32.mrf.mxu0
    %v6390 = vadd.f32 %v6306, %v6389
    %v6391 = vpop.f32.mrf.mxu0
    %v6392 = vadd.f32 %v6306, %v6391
    %6393 = vmatmul.bf16.gmra.mxu0 %v6304
    %v6394 = vpop.f32.mrf.mxu0
    %v6395 = vadd.f32 %v6306, %v6394
    %v6396 = vpop.f32.mrf.mxu0
    %v6397 = vadd.f32 %v6306, %v6396
    %6398 = vmatmul.bf16.gmra.mxu0 %v6305
    %v6399 = vpop.f32.mrf.mxu0
    %v6400 = vadd.f32 %v6306, %v6399
    %v6401 = vpop.f32.mrf.mxu0
    %v6402 = vadd.f32 %v6306, %v6401
    %6403 = vdwg.mxu0
    %v6404 = vmax.f32 %v6365, 0.0
    %v6405 = vmax.f32 %v6367, 0.0
    %v6406 = vmax.f32 %v6370, 0.0
    %v6407 = vmax.f32 %v6372, 0.0
    %v6408 = vmax.f32 %v6375, 0.0
    %v6409 = vmax.f32 %v6377, 0.0
    %v6410 = vmax.f32 %v6380, 0.0
    %v6411 = vmax.f32 %v6382, 0.0
    %v6412 = vmax.f32 %v6385, 0.0
    %v6413 = vmax.f32 %v6387, 0.0
    %v6414 = vmax.f32 %v6390, 0.0
    %v6415 = vmax.f32 %v6392, 0.0
    %v6416 = vmax.f32 %v6395, 0.0
    %v6417 = vmax.f32 %v6397, 0.0
    %v6418 = vmax.f32 %v6400, 0.0
    %v6419 = vmax.f32 %v6402, 0.0
    %v6420 = vpack.c.bf16 %v6405, %v6404
    %v6421 = vpack.c.bf16 %v6407, %v6406
    %v6422 = vpack.c.bf16 %v6409, %v6408
    %v6423 = vpack.c.bf16 %v6411, %v6410
    %v6424 = vpack.c.bf16 %v6413, %v6412
    %v6425 = vpack.c.bf16 %v6415, %v6414
    %v6426 = vpack.c.bf16 %v6417, %v6416
    %v6427 = vpack.c.bf16 %v6419, %v6418
    %v6428 = vperm.slane %v37, 3
    %v6437 = vunpack.c.l.b16 %v4949
    %v6438 = vunpack.c.l.b16 %v4950
    %v6439 = vunpack.c.l.b16 %v4951
    %v6440 = vunpack.c.l.b16 %v4952
    %v6441 = vunpack.c.l.b16 %v4953
    %v6442 = vunpack.c.l.b16 %v4954
    %v6443 = vunpack.c.l.b16 %v4955
    %v6444 = vunpack.c.l.b16 %v4956
    %v6445 = vpack.c.b16 %v6438, %v6437
    %v6446 = vpack.c.b16 %v6440, %v6439
    %v6447 = vpack.c.b16 %v6442, %v6441
    %v6448 = vpack.c.b16 %v6444, %v6443
    %v6454 = vsel %vm913, %v6420, 0
    %v6457 = vsel %vm913, %v6421, 0
    %v6460 = vsel %vm913, %v6422, 0
    %v6463 = vsel %vm913, %v6423, 0
    %v6466 = vsel %vm913, %v6424, 0
    %v6469 = vsel %vm913, %v6425, 0
    %v6472 = vsel %vm913, %v6426, 0
    %v6475 = vsel %vm913, %v6427, 0
    %6477 = vmatpush.bf16.msra.mxu0 0
    %6478 = vmatpush.bf16.msra.mxu0 0
    %6479 = vmatpush.bf16.msra.mxu0 0
    %6480 = vmatpush.bf16.msra.mxu0 0
    %6481 = vmatpush.bf16.msra.mxu0 %v6448
    %6482 = vmatpush.bf16.msra.mxu0 %v6447
    %6483 = vmatpush.bf16.msra.mxu0 %v6446
    %6484 = vmatpush.bf16.msra.mxu0 %v6445
    %6485 = vmatmul.bf16.gmra.mxu0 %v6454
    %v6486 = vpop.f32.mrf.mxu0
    %v6487 = vadd.f32 %v6428, %v6486
    %v6488 = vpop.f32.mrf.mxu0
    %v6489 = vadd.f32 %v6428, %v6488
    %6490 = vmatmul.bf16.gmra.mxu0 %v6457
    %v6491 = vpop.f32.mrf.mxu0
    %v6492 = vadd.f32 %v6428, %v6491
    %v6493 = vpop.f32.mrf.mxu0
    %v6494 = vadd.f32 %v6428, %v6493
    %6495 = vmatmul.bf16.gmra.mxu0 %v6460
    %v6496 = vpop.f32.mrf.mxu0
    %v6497 = vadd.f32 %v6428, %v6496
    %v6498 = vpop.f32.mrf.mxu0
    %v6499 = vadd.f32 %v6428, %v6498
    %6500 = vmatmul.bf16.gmra.mxu0 %v6463
    %v6501 = vpop.f32.mrf.mxu0
    %v6502 = vadd.f32 %v6428, %v6501
    %v6503 = vpop.f32.mrf.mxu0
    %v6504 = vadd.f32 %v6428, %v6503
    %6505 = vmatmul.bf16.gmra.mxu0 %v6466
    %v6506 = vpop.f32.mrf.mxu0
    %v6507 = vadd.f32 %v6428, %v6506
    %v6508 = vpop.f32.mrf.mxu0
    %v6509 = vadd.f32 %v6428, %v6508
    %6510 = vmatmul.bf16.gmra.mxu0 %v6469
    %v6511 = vpop.f32.mrf.mxu0
    %v6512 = vadd.f32 %v6428, %v6511
    %v6513 = vpop.f32.mrf.mxu0
    %v6514 = vadd.f32 %v6428, %v6513
    %6515 = vmatmul.bf16.gmra.mxu0 %v6472
    %v6516 = vpop.f32.mrf.mxu0
    %v6517 = vadd.f32 %v6428, %v6516
    %v6518 = vpop.f32.mrf.mxu0
    %v6519 = vadd.f32 %v6428, %v6518
    %6520 = vmatmul.bf16.gmra.mxu0 %v6475
    %v6521 = vpop.f32.mrf.mxu0
    %v6522 = vadd.f32 %v6428, %v6521
    %v6523 = vpop.f32.mrf.mxu0
    %v6524 = vadd.f32 %v6428, %v6523
    %6525 = vdwg.mxu0
    %s6526 = scalar_lea.vmem %s6, 448
    %v6527 = vld [vmem:[%s6526] sm:$0xf]
    %v6528 = vld [vmem:[%s6526 + $0x4] sm:$0xf]
    %v6529 = vld [vmem:[%s6526 + $0x8] sm:$0xf]
    %v6530 = vld [vmem:[%s6526 + $0xc] sm:$0xf]
    %v6531 = vld [vmem:[%s6526 + $0x10] sm:$0xf]
    %v6532 = vld [vmem:[%s6526 + $0x14] sm:$0xf]
    %v6533 = vld [vmem:[%s6526 + $0x18] sm:$0xf]
    %v6534 = vld [vmem:[%s6526 + $0x1c] sm:$0xf]
    %s6535 = scalar_lea.vmem %s6, 480
    %v6536 = vld [vmem:[%s6535] sm:$0xf]
    %v6537 = vld [vmem:[%s6535 + $0x4] sm:$0xf]
    %v6538 = vld [vmem:[%s6535 + $0x8] sm:$0xf]
    %v6539 = vld [vmem:[%s6535 + $0xc] sm:$0xf]
    %v6540 = vld [vmem:[%s6535 + $0x10] sm:$0xf]
    %v6541 = vld [vmem:[%s6535 + $0x14] sm:$0xf]
    %v6542 = vld [vmem:[%s6535 + $0x18] sm:$0xf]
    %v6543 = vld [vmem:[%s6535 + $0x1c] sm:$0xf]
    %s6544 = scalar_lea.vmem %s6, 512
    %v6545 = vld [vmem:[%s6544] sm:$0xf]
    %v6546 = vld [vmem:[%s6544 + $0x4] sm:$0xf]
    %v6547 = vld [vmem:[%s6544 + $0x8] sm:$0xf]
    %v6548 = vld [vmem:[%s6544 + $0xc] sm:$0xf]
    %v6549 = vld [vmem:[%s6544 + $0x10] sm:$0xf]
    %v6550 = vld [vmem:[%s6544 + $0x14] sm:$0xf]
    %v6551 = vld [vmem:[%s6544 + $0x18] sm:$0xf]
    %v6552 = vld [vmem:[%s6544 + $0x1c] sm:$0xf]
    %s6553 = scalar_lea.vmem %s6, 544
    %v6554 = vld [vmem:[%s6553] sm:$0xf]
    %v6555 = vld [vmem:[%s6553 + $0x4] sm:$0xf]
    %v6556 = vld [vmem:[%s6553 + $0x8] sm:$0xf]
    %v6557 = vld [vmem:[%s6553 + $0xc] sm:$0xf]
    %v6558 = vld [vmem:[%s6553 + $0x10] sm:$0xf]
    %v6559 = vld [vmem:[%s6553 + $0x14] sm:$0xf]
    %v6560 = vld [vmem:[%s6553 + $0x18] sm:$0xf]
    %v6561 = vld [vmem:[%s6553 + $0x1c] sm:$0xf]
    %s6562 = scalar_lea.vmem %s7, 192
    %v6563 = vld [vmem:[%s6562] sm:$0xf]
    %v6564 = vld [vmem:[%s6562 + $0x4] sm:$0xf]
    %v6565 = vld [vmem:[%s6562 + $0x8] sm:$0xf]
    %v6566 = vld [vmem:[%s6562 + $0xc] sm:$0xf]
    %v6567 = vld [vmem:[%s6562 + $0x10] sm:$0xf]
    %v6568 = vld [vmem:[%s6562 + $0x14] sm:$0xf]
    %v6569 = vld [vmem:[%s6562 + $0x18] sm:$0xf]
    %v6570 = vld [vmem:[%s6562 + $0x1c] sm:$0xf]
    %v6571 = vld [vmem:[%s6562 + $0x20] sm:$0xf]
    %v6572 = vld [vmem:[%s6562 + $0x24] sm:$0xf]
    %v6573 = vld [vmem:[%s6562 + $0x28] sm:$0xf]
    %v6574 = vld [vmem:[%s6562 + $0x2c] sm:$0xf]
    %v6575 = vld [vmem:[%s6562 + $0x30] sm:$0xf]
    %v6576 = vld [vmem:[%s6562 + $0x34] sm:$0xf]
    %v6577 = vld [vmem:[%s6562 + $0x38] sm:$0xf]
    %v6578 = vld [vmem:[%s6562 + $0x3c] sm:$0xf]
    %v6579 = vpack.c.bf16 %v6489, %v6487
    %v6580 = vpack.c.bf16 %v6494, %v6492
    %v6581 = vpack.c.bf16 %v6499, %v6497
    %v6582 = vpack.c.bf16 %v6504, %v6502
    %v6583 = vpack.c.bf16 %v6509, %v6507
    %v6584 = vpack.c.bf16 %v6514, %v6512
    %v6585 = vpack.c.bf16 %v6519, %v6517
    %v6586 = vpack.c.bf16 %v6524, %v6522
    %v6595 = vunpack.c.l.b16 %v6536
    %v6596 = vunpack.c.l.b16 %v6537
    %v6597 = vunpack.c.l.b16 %v6538
    %v6598 = vunpack.c.l.b16 %v6539
    %v6599 = vunpack.c.l.b16 %v6540
    %v6600 = vunpack.c.l.b16 %v6541
    %v6601 = vunpack.c.l.b16 %v6542
    %v6602 = vunpack.c.l.b16 %v6543
    %v6603 = vpack.c.b16 %v6596, %v6595
    %v6604 = vpack.c.b16 %v6598, %v6597
    %v6605 = vpack.c.b16 %v6600, %v6599
    %v6606 = vpack.c.b16 %v6602, %v6601
    %v6612 = vsel %vm913, %v6579, 0
    %v6615 = vsel %vm913, %v6580, 0
    %v6618 = vsel %vm913, %v6581, 0
    %v6621 = vsel %vm913, %v6582, 0
    %v6624 = vsel %vm913, %v6583, 0
    %v6627 = vsel %vm913, %v6584, 0
    %v6630 = vsel %vm913, %v6585, 0
    %v6633 = vsel %vm913, %v6586, 0
    %6635 = vmatpush.bf16.msra.mxu0 0
    %6636 = vmatpush.bf16.msra.mxu0 0
    %6637 = vmatpush.bf16.msra.mxu0 0
    %6638 = vmatpush.bf16.msra.mxu0 0
    %6639 = vmatpush.bf16.msra.mxu0 %v6606
    %6640 = vmatpush.bf16.msra.mxu0 %v6605
    %6641 = vmatpush.bf16.msra.mxu0 %v6604
    %6642 = vmatpush.bf16.msra.mxu0 %v6603
    %6643 = vmatmul.bf16.gmra.mxu0 %v6612
    %v6644 = vpop.f32.mrf.mxu0
    %v6645 = vadd.f32 0.0, %v6644
    %v6646 = vpop.f32.mrf.mxu0
    %v6647 = vadd.f32 0.0, %v6646
    %6648 = vmatmul.bf16.gmra.mxu0 %v6615
    %v6649 = vpop.f32.mrf.mxu0
    %v6650 = vadd.f32 0.0, %v6649
    %v6651 = vpop.f32.mrf.mxu0
    %v6652 = vadd.f32 0.0, %v6651
    %6653 = vmatmul.bf16.gmra.mxu0 %v6618
    %v6654 = vpop.f32.mrf.mxu0
    %v6655 = vadd.f32 0.0, %v6654
    %v6656 = vpop.f32.mrf.mxu0
    %v6657 = vadd.f32 0.0, %v6656
    %6658 = vmatmul.bf16.gmra.mxu0 %v6621
    %v6659 = vpop.f32.mrf.mxu0
    %v6660 = vadd.f32 0.0, %v6659
    %v6661 = vpop.f32.mrf.mxu0
    %v6662 = vadd.f32 0.0, %v6661
    %6663 = vmatmul.bf16.gmra.mxu0 %v6624
    %v6664 = vpop.f32.mrf.mxu0
    %v6665 = vadd.f32 0.0, %v6664
    %v6666 = vpop.f32.mrf.mxu0
    %v6667 = vadd.f32 0.0, %v6666
    %6668 = vmatmul.bf16.gmra.mxu0 %v6627
    %v6669 = vpop.f32.mrf.mxu0
    %v6670 = vadd.f32 0.0, %v6669
    %v6671 = vpop.f32.mrf.mxu0
    %v6672 = vadd.f32 0.0, %v6671
    %6673 = vmatmul.bf16.gmra.mxu0 %v6630
    %v6674 = vpop.f32.mrf.mxu0
    %v6675 = vadd.f32 0.0, %v6674
    %v6676 = vpop.f32.mrf.mxu0
    %v6677 = vadd.f32 0.0, %v6676
    %6678 = vmatmul.bf16.gmra.mxu0 %v6633
    %v6679 = vpop.f32.mrf.mxu0
    %v6680 = vadd.f32 0.0, %v6679
    %v6681 = vpop.f32.mrf.mxu0
    %v6682 = vadd.f32 0.0, %v6681
    %6683 = vdwg.mxu0
    %v6692 = vunpack.c.l.b16 %v6527
    %v6693 = vunpack.c.l.b16 %v6528
    %v6694 = vunpack.c.l.b16 %v6529
    %v6695 = vunpack.c.l.b16 %v6530
    %v6696 = vunpack.c.l.b16 %v6531
    %v6697 = vunpack.c.l.b16 %v6532
    %v6698 = vunpack.c.l.b16 %v6533
    %v6699 = vunpack.c.l.b16 %v6534
    %v6700 = vpack.c.b16 %v6693, %v6692
    %v6701 = vpack.c.b16 %v6695, %v6694
    %v6702 = vpack.c.b16 %v6697, %v6696
    %v6703 = vpack.c.b16 %v6699, %v6698
    %6708 = vmatpush.bf16.msra.mxu0 0
    %6709 = vmatpush.bf16.msra.mxu0 0
    %6710 = vmatpush.bf16.msra.mxu0 0
    %6711 = vmatpush.bf16.msra.mxu0 0
    %6712 = vmatpush.bf16.msra.mxu0 %v6703
    %6713 = vmatpush.bf16.msra.mxu0 %v6702
    %6714 = vmatpush.bf16.msra.mxu0 %v6701
    %6715 = vmatpush.bf16.msra.mxu0 %v6700
    %6716 = vmatmul.bf16.gmra.mxu0 %v5080
    %v6717 = vpop.f32.mrf.mxu0
    %v6718 = vadd.f32 0.0, %v6717
    %v6719 = vpop.f32.mrf.mxu0
    %v6720 = vadd.f32 0.0, %v6719
    %6721 = vmatmul.bf16.gmra.mxu0 %v5083
    %v6722 = vpop.f32.mrf.mxu0
    %v6723 = vadd.f32 0.0, %v6722
    %v6724 = vpop.f32.mrf.mxu0
    %v6725 = vadd.f32 0.0, %v6724
    %6726 = vmatmul.bf16.gmra.mxu0 %v5086
    %v6727 = vpop.f32.mrf.mxu0
    %v6728 = vadd.f32 0.0, %v6727
    %v6729 = vpop.f32.mrf.mxu0
    %v6730 = vadd.f32 0.0, %v6729
    %6731 = vmatmul.bf16.gmra.mxu0 %v5089
    %v6732 = vpop.f32.mrf.mxu0
    %v6733 = vadd.f32 0.0, %v6732
    %v6734 = vpop.f32.mrf.mxu0
    %v6735 = vadd.f32 0.0, %v6734
    %6736 = vmatmul.bf16.gmra.mxu0 %v5092
    %v6737 = vpop.f32.mrf.mxu0
    %v6738 = vadd.f32 0.0, %v6737
    %v6739 = vpop.f32.mrf.mxu0
    %v6740 = vadd.f32 0.0, %v6739
    %6741 = vmatmul.bf16.gmra.mxu0 %v5095
    %v6742 = vpop.f32.mrf.mxu0
    %v6743 = vadd.f32 0.0, %v6742
    %v6744 = vpop.f32.mrf.mxu0
    %v6745 = vadd.f32 0.0, %v6744
    %6746 = vmatmul.bf16.gmra.mxu0 %v5098
    %v6747 = vpop.f32.mrf.mxu0
    %v6748 = vadd.f32 0.0, %v6747
    %v6749 = vpop.f32.mrf.mxu0
    %v6750 = vadd.f32 0.0, %v6749
    %6751 = vmatmul.bf16.gmra.mxu0 %v5101
    %v6752 = vpop.f32.mrf.mxu0
    %v6753 = vadd.f32 0.0, %v6752
    %v6754 = vpop.f32.mrf.mxu0
    %v6755 = vadd.f32 0.0, %v6754
    %6756 = vdwg.mxu0
    %v6757 = vpack.c.bf16 %v6647, %v6645
    %v6758 = vpack.c.bf16 %v6652, %v6650
    %v6759 = vpack.c.bf16 %v6657, %v6655
    %v6760 = vpack.c.bf16 %v6662, %v6660
    %v6761 = vpack.c.bf16 %v6667, %v6665
    %v6762 = vpack.c.bf16 %v6672, %v6670
    %v6763 = vpack.c.bf16 %v6677, %v6675
    %v6764 = vpack.c.bf16 %v6682, %v6680
    %v6765 = vpack.c.bf16 %v6720, %v6718
    %v6766 = vpack.c.bf16 %v6725, %v6723
    %v6767 = vpack.c.bf16 %v6730, %v6728
    %v6768 = vpack.c.bf16 %v6735, %v6733
    %v6769 = vpack.c.bf16 %v6740, %v6738
    %v6770 = vpack.c.bf16 %v6745, %v6743
    %v6771 = vpack.c.bf16 %v6750, %v6748
    %v6772 = vpack.c.bf16 %v6755, %v6753
    %v6773 = vperm.slane %v37, 4
    %6774 = vmatpush.bf16.msra.mxu0 %v6764
    %6775 = vmatpush.bf16.msra.mxu0 %v6763
    %6776 = vmatpush.bf16.msra.mxu0 %v6762
    %6777 = vmatpush.bf16.msra.mxu0 %v6761
    %6778 = vmatpush.bf16.msra.mxu0 %v6760
    %6779 = vmatpush.bf16.msra.mxu0 %v6759
    %6780 = vmatpush.bf16.msra.mxu0 %v6758
    %6781 = vmatpush.bf16.msra.mxu0 %v6757
    %6782 = vmatmul.bf16.gmra.mxu0 %v297
    %v6783 = vpop.f32.mrf.mxu0
    %v6784 = vadd.f32 %v6773, %v6783
    %v6785 = vpop.f32.mrf.mxu0
    %v6786 = vadd.f32 %v6773, %v6785
    %6787 = vmatmul.bf16.gmra.mxu0 %v298
    %v6788 = vpop.f32.mrf.mxu0
    %v6789 = vadd.f32 %v6773, %v6788
    %v6790 = vpop.f32.mrf.mxu0
    %v6791 = vadd.f32 %v6773, %v6790
    %6792 = vmatmul.bf16.gmra.mxu0 %v299
    %v6793 = vpop.f32.mrf.mxu0
    %v6794 = vadd.f32 %v6773, %v6793
    %v6795 = vpop.f32.mrf.mxu0
    %v6796 = vadd.f32 %v6773, %v6795
    %6797 = vmatmul.bf16.gmra.mxu0 %v300
    %v6798 = vpop.f32.mrf.mxu0
    %v6799 = vadd.f32 %v6773, %v6798
    %v6800 = vpop.f32.mrf.mxu0
    %v6801 = vadd.f32 %v6773, %v6800
    %6802 = vmatmul.bf16.gmra.mxu0 %v301
    %v6803 = vpop.f32.mrf.mxu0
    %v6804 = vadd.f32 %v6773, %v6803
    %v6805 = vpop.f32.mrf.mxu0
    %v6806 = vadd.f32 %v6773, %v6805
    %6807 = vmatmul.bf16.gmra.mxu0 %v302
    %v6808 = vpop.f32.mrf.mxu0
    %v6809 = vadd.f32 %v6773, %v6808
    %v6810 = vpop.f32.mrf.mxu0
    %v6811 = vadd.f32 %v6773, %v6810
    %6812 = vmatmul.bf16.gmra.mxu0 %v303
    %v6813 = vpop.f32.mrf.mxu0
    %v6814 = vadd.f32 %v6773, %v6813
    %v6815 = vpop.f32.mrf.mxu0
    %v6816 = vadd.f32 %v6773, %v6815
    %6817 = vmatmul.bf16.gmra.mxu0 %v304
    %v6818 = vpop.f32.mrf.mxu0
    %v6819 = vadd.f32 %v6773, %v6818
    %v6820 = vpop.f32.mrf.mxu0
    %v6821 = vadd.f32 %v6773, %v6820
    %6822 = vdwg.mxu0
    %6823 = vmatpush.bf16.msra.mxu0 %v6772
    %6824 = vmatpush.bf16.msra.mxu0 %v6771
    %6825 = vmatpush.bf16.msra.mxu0 %v6770
    %6826 = vmatpush.bf16.msra.mxu0 %v6769
    %6827 = vmatpush.bf16.msra.mxu0 %v6768
    %6828 = vmatpush.bf16.msra.mxu0 %v6767
    %6829 = vmatpush.bf16.msra.mxu0 %v6766
    %6830 = vmatpush.bf16.msra.mxu0 %v6765
    %6831 = vmatmul.bf16.gmra.mxu0 %v345
    %v6832 = vpop.f32.mrf.mxu0
    %v6833 = vadd.f32 %v6784, %v6832
    %v6834 = vpop.f32.mrf.mxu0
    %v6835 = vadd.f32 %v6786, %v6834
    %6836 = vmatmul.bf16.gmra.mxu0 %v346
    %v6837 = vpop.f32.mrf.mxu0
    %v6838 = vadd.f32 %v6789, %v6837
    %v6839 = vpop.f32.mrf.mxu0
    %v6840 = vadd.f32 %v6791, %v6839
    %6841 = vmatmul.bf16.gmra.mxu0 %v347
    %v6842 = vpop.f32.mrf.mxu0
    %v6843 = vadd.f32 %v6794, %v6842
    %v6844 = vpop.f32.mrf.mxu0
    %v6845 = vadd.f32 %v6796, %v6844
    %6846 = vmatmul.bf16.gmra.mxu0 %v348
    %v6847 = vpop.f32.mrf.mxu0
    %v6848 = vadd.f32 %v6799, %v6847
    %v6849 = vpop.f32.mrf.mxu0
    %v6850 = vadd.f32 %v6801, %v6849
    %6851 = vmatmul.bf16.gmra.mxu0 %v349
    %v6852 = vpop.f32.mrf.mxu0
    %v6853 = vadd.f32 %v6804, %v6852
    %v6854 = vpop.f32.mrf.mxu0
    %v6855 = vadd.f32 %v6806, %v6854
    %6856 = vmatmul.bf16.gmra.mxu0 %v350
    %v6857 = vpop.f32.mrf.mxu0
    %v6858 = vadd.f32 %v6809, %v6857
    %v6859 = vpop.f32.mrf.mxu0
    %v6860 = vadd.f32 %v6811, %v6859
    %6861 = vmatmul.bf16.gmra.mxu0 %v351
    %v6862 = vpop.f32.mrf.mxu0
    %v6863 = vadd.f32 %v6814, %v6862
    %v6864 = vpop.f32.mrf.mxu0
    %v6865 = vadd.f32 %v6816, %v6864
    %6866 = vmatmul.bf16.gmra.mxu0 %v352
    %v6867 = vpop.f32.mrf.mxu0
    %v6868 = vadd.f32 %v6819, %v6867
    %v6869 = vpop.f32.mrf.mxu0
    %v6870 = vadd.f32 %v6821, %v6869
    %6871 = vdwg.mxu0
    %v6872 = vsel %vm913, %v6833, 0.0
    %6873 = vadd.xlane.f32.xlu0 %v6872
    %v6874 = vpop.xlane.xlu0 %6873
    %v6875 = vsel %vm913, %v6835, 0.0
    %6876 = vadd.xlane.f32.xlu0 %v6875
    %v6877 = vpop.xlane.xlu0 %6876
    %v6878 = vsel %vm913, %v6838, 0.0
    %6879 = vadd.xlane.f32.xlu0 %v6878
    %v6880 = vpop.xlane.xlu0 %6879
    %v6881 = vsel %vm913, %v6840, 0.0
    %6882 = vadd.xlane.f32.xlu0 %v6881
    %v6883 = vpop.xlane.xlu0 %6882
    %v6884 = vsel %vm913, %v6843, 0.0
    %6885 = vadd.xlane.f32.xlu0 %v6884
    %v6886 = vpop.xlane.xlu0 %6885
    %v6887 = vsel %vm913, %v6845, 0.0
    %6888 = vadd.xlane.f32.xlu0 %v6887
    %v6889 = vpop.xlane.xlu0 %6888
    %v6890 = vsel %vm913, %v6848, 0.0
    %6891 = vadd.xlane.f32.xlu0 %v6890
    %v6892 = vpop.xlane.xlu0 %6891
    %v6893 = vsel %vm913, %v6850, 0.0
    %6894 = vadd.xlane.f32.xlu0 %v6893
    %v6895 = vpop.xlane.xlu0 %6894
    %v6896 = vsel %vm913, %v6853, 0.0
    %6897 = vadd.xlane.f32.xlu0 %v6896
    %v6898 = vpop.xlane.xlu0 %6897
    %v6899 = vsel %vm913, %v6855, 0.0
    %6900 = vadd.xlane.f32.xlu0 %v6899
    %v6901 = vpop.xlane.xlu0 %6900
    %v6902 = vsel %vm913, %v6858, 0.0
    %6903 = vadd.xlane.f32.xlu0 %v6902
    %v6904 = vpop.xlane.xlu0 %6903
    %v6905 = vsel %vm913, %v6860, 0.0
    %6906 = vadd.xlane.f32.xlu0 %v6905
    %v6907 = vpop.xlane.xlu0 %6906
    %v6908 = vsel %vm913, %v6863, 0.0
    %6909 = vadd.xlane.f32.xlu0 %v6908
    %v6910 = vpop.xlane.xlu0 %6909
    %v6911 = vsel %vm913, %v6865, 0.0
    %6912 = vadd.xlane.f32.xlu0 %v6911
    %v6913 = vpop.xlane.xlu0 %6912
    %v6914 = vsel %vm913, %v6868, 0.0
    %6915 = vadd.xlane.f32.xlu0 %v6914
    %v6916 = vpop.xlane.xlu0 %6915
    %v6917 = vsel %vm913, %v6870, 0.0
    %6918 = vadd.xlane.f32.xlu0 %v6917
    %v6919 = vpop.xlane.xlu0 %6918
    %v6920 = vmul.f32 %v6874, %v2072
    %v6921 = vmul.f32 %v6877, %v2072
    %v6922 = vmul.f32 %v6880, %v2072
    %v6923 = vmul.f32 %v6883, %v2072
    %v6924 = vmul.f32 %v6886, %v2072
    %v6925 = vmul.f32 %v6889, %v2072
    %v6926 = vmul.f32 %v6892, %v2072
    %v6927 = vmul.f32 %v6895, %v2072
    %v6928 = vmul.f32 %v6898, %v2072
    %v6929 = vmul.f32 %v6901, %v2072
    %v6930 = vmul.f32 %v6904, %v2072
    %v6931 = vmul.f32 %v6907, %v2072
    %v6932 = vmul.f32 %v6910, %v2072
    %v6933 = vmul.f32 %v6913, %v2072
    %v6934 = vmul.f32 %v6916, %v2072
    %v6935 = vmul.f32 %v6919, %v2072
    %v6936 = vsub.f32 %v6833, %v6920
    %v6937 = vsub.f32 %v6835, %v6921
    %v6938 = vsub.f32 %v6838, %v6922
    %v6939 = vsub.f32 %v6840, %v6923
    %v6940 = vsub.f32 %v6843, %v6924
    %v6941 = vsub.f32 %v6845, %v6925
    %v6942 = vsub.f32 %v6848, %v6926
    %v6943 = vsub.f32 %v6850, %v6927
    %v6944 = vsub.f32 %v6853, %v6928
    %v6945 = vsub.f32 %v6855, %v6929
    %v6946 = vsub.f32 %v6858, %v6930
    %v6947 = vsub.f32 %v6860, %v6931
    %v6948 = vsub.f32 %v6863, %v6932
    %v6949 = vsub.f32 %v6865, %v6933
    %v6950 = vsub.f32 %v6868, %v6934
    %v6951 = vsub.f32 %v6870, %v6935
    %v6952 = vmul.f32 %v6936, %v6936
    %v6953 = vmul.f32 %v6937, %v6937
    %v6954 = vmul.f32 %v6938, %v6938
    %v6955 = vmul.f32 %v6939, %v6939
    %v6956 = vmul.f32 %v6940, %v6940
    %v6957 = vmul.f32 %v6941, %v6941
    %v6958 = vmul.f32 %v6942, %v6942
    %v6959 = vmul.f32 %v6943, %v6943
    %v6960 = vmul.f32 %v6944, %v6944
    %v6961 = vmul.f32 %v6945, %v6945
    %v6962 = vmul.f32 %v6946, %v6946
    %v6963 = vmul.f32 %v6947, %v6947
    %v6964 = vmul.f32 %v6948, %v6948
    %v6965 = vmul.f32 %v6949, %v6949
    %v6966 = vmul.f32 %v6950, %v6950
    %v6967 = vmul.f32 %v6951, %v6951
    %v6968 = vsel %vm913, %v6952, 0.0
    %6969 = vadd.xlane.f32.xlu0 %v6968
    %v6970 = vpop.xlane.xlu0 %6969
    %v6971 = vsel %vm913, %v6953, 0.0
    %6972 = vadd.xlane.f32.xlu0 %v6971
    %v6973 = vpop.xlane.xlu0 %6972
    %v6974 = vsel %vm913, %v6954, 0.0
    %6975 = vadd.xlane.f32.xlu0 %v6974
    %v6976 = vpop.xlane.xlu0 %6975
    %v6977 = vsel %vm913, %v6955, 0.0
    %6978 = vadd.xlane.f32.xlu0 %v6977
    %v6979 = vpop.xlane.xlu0 %6978
    %v6980 = vsel %vm913, %v6956, 0.0
    %6981 = vadd.xlane.f32.xlu0 %v6980
    %v6982 = vpop.xlane.xlu0 %6981
    %v6983 = vsel %vm913, %v6957, 0.0
    %6984 = vadd.xlane.f32.xlu0 %v6983
    %v6985 = vpop.xlane.xlu0 %6984
    %v6986 = vsel %vm913, %v6958, 0.0
    %6987 = vadd.xlane.f32.xlu0 %v6986
    %v6988 = vpop.xlane.xlu0 %6987
    %v6989 = vsel %vm913, %v6959, 0.0
    %6990 = vadd.xlane.f32.xlu0 %v6989
    %v6991 = vpop.xlane.xlu0 %6990
    %v6992 = vsel %vm913, %v6960, 0.0
    %6993 = vadd.xlane.f32.xlu0 %v6992
    %v6994 = vpop.xlane.xlu0 %6993
    %v6995 = vsel %vm913, %v6961, 0.0
    %6996 = vadd.xlane.f32.xlu0 %v6995
    %v6997 = vpop.xlane.xlu0 %6996
    %v6998 = vsel %vm913, %v6962, 0.0
    %6999 = vadd.xlane.f32.xlu0 %v6998
    %v7000 = vpop.xlane.xlu0 %6999
    %v7001 = vsel %vm913, %v6963, 0.0
    %7002 = vadd.xlane.f32.xlu0 %v7001
    %v7003 = vpop.xlane.xlu0 %7002
    %v7004 = vsel %vm913, %v6964, 0.0
    %7005 = vadd.xlane.f32.xlu0 %v7004
    %v7006 = vpop.xlane.xlu0 %7005
    %v7007 = vsel %vm913, %v6965, 0.0
    %7008 = vadd.xlane.f32.xlu0 %v7007
    %v7009 = vpop.xlane.xlu0 %7008
    %v7010 = vsel %vm913, %v6966, 0.0
    %7011 = vadd.xlane.f32.xlu0 %v7010
    %v7012 = vpop.xlane.xlu0 %7011
    %v7013 = vsel %vm913, %v6967, 0.0
    %7014 = vadd.xlane.f32.xlu0 %v7013
    %v7015 = vpop.xlane.xlu0 %7014
    %v7016 = vmul.f32 %v6970, %v2072
    %v7017 = vmul.f32 %v6973, %v2072
    %v7018 = vmul.f32 %v6976, %v2072
    %v7019 = vmul.f32 %v6979, %v2072
    %v7020 = vmul.f32 %v6982, %v2072
    %v7021 = vmul.f32 %v6985, %v2072
    %v7022 = vmul.f32 %v6988, %v2072
    %v7023 = vmul.f32 %v6991, %v2072
    %v7024 = vmul.f32 %v6994, %v2072
    %v7025 = vmul.f32 %v6997, %v2072
    %v7026 = vmul.f32 %v7000, %v2072
    %v7027 = vmul.f32 %v7003, %v2072
    %v7028 = vmul.f32 %v7006, %v2072
    %v7029 = vmul.f32 %v7009, %v2072
    %v7030 = vmul.f32 %v7012, %v2072
    %v7031 = vmul.f32 %v7015, %v2072
    %v7032 = vadd.f32 %v7016, 1e-05
    %v7033 = vadd.f32 %v7017, 1e-05
    %v7034 = vadd.f32 %v7018, 1e-05
    %v7035 = vadd.f32 %v7019, 1e-05
    %v7036 = vadd.f32 %v7020, 1e-05
    %v7037 = vadd.f32 %v7021, 1e-05
    %v7038 = vadd.f32 %v7022, 1e-05
    %v7039 = vadd.f32 %v7023, 1e-05
    %v7040 = vadd.f32 %v7024, 1e-05
    %v7041 = vadd.f32 %v7025, 1e-05
    %v7042 = vadd.f32 %v7026, 1e-05
    %v7043 = vadd.f32 %v7027, 1e-05
    %v7044 = vadd.f32 %v7028, 1e-05
    %v7045 = vadd.f32 %v7029, 1e-05
    %v7046 = vadd.f32 %v7030, 1e-05
    %v7047 = vadd.f32 %v7031, 1e-05
    %v7048 = vrsqrt.pop %v7032
    %v7049 = vmul.f32 %v7048, %v7032
    %v7050 = vmul.f32 %v7049, %v7048
    %v7051 = vmul.f32 0.5, %v7050
    %v7052 = vsub.f32 1.5, %v7051
    %v7053 = vmul.f32 %v7048, %v7052
    %vm7054 = vweird.f32 %v7032
    %vm7055 = vweird.f32 %v7048
    %vm7056 = vmor %vm7054, %vm7055
    %v7057 = vsel %vm7056, %v7048, %v7053
    %v7058 = vrsqrt.pop %v7033
    %v7059 = vmul.f32 %v7058, %v7033
    %v7060 = vmul.f32 %v7059, %v7058
    %v7061 = vmul.f32 0.5, %v7060
    %v7062 = vsub.f32 1.5, %v7061
    %v7063 = vmul.f32 %v7058, %v7062
    %vm7064 = vweird.f32 %v7033
    %vm7065 = vweird.f32 %v7058
    %vm7066 = vmor %vm7064, %vm7065
    %v7067 = vsel %vm7066, %v7058, %v7063
    %v7068 = vrsqrt.pop %v7034
    %v7069 = vmul.f32 %v7068, %v7034
    %v7070 = vmul.f32 %v7069, %v7068
    %v7071 = vmul.f32 0.5, %v7070
    %v7072 = vsub.f32 1.5, %v7071
    %v7073 = vmul.f32 %v7068, %v7072
    %vm7074 = vweird.f32 %v7034
    %vm7075 = vweird.f32 %v7068
    %vm7076 = vmor %vm7074, %vm7075
    %v7077 = vsel %vm7076, %v7068, %v7073
    %v7078 = vrsqrt.pop %v7035
    %v7079 = vmul.f32 %v7078, %v7035
    %v7080 = vmul.f32 %v7079, %v7078
    %v7081 = vmul.f32 0.5, %v7080
    %v7082 = vsub.f32 1.5, %v7081
    %v7083 = vmul.f32 %v7078, %v7082
    %vm7084 = vweird.f32 %v7035
    %vm7085 = vweird.f32 %v7078
    %vm7086 = vmor %vm7084, %vm7085
    %v7087 = vsel %vm7086, %v7078, %v7083
    %v7088 = vrsqrt.pop %v7036
    %v7089 = vmul.f32 %v7088, %v7036
    %v7090 = vmul.f32 %v7089, %v7088
    %v7091 = vmul.f32 0.5, %v7090
    %v7092 = vsub.f32 1.5, %v7091
    %v7093 = vmul.f32 %v7088, %v7092
    %vm7094 = vweird.f32 %v7036
    %vm7095 = vweird.f32 %v7088
    %vm7096 = vmor %vm7094, %vm7095
    %v7097 = vsel %vm7096, %v7088, %v7093
    %v7098 = vrsqrt.pop %v7037
    %v7099 = vmul.f32 %v7098, %v7037
    %v7100 = vmul.f32 %v7099, %v7098
    %v7101 = vmul.f32 0.5, %v7100
    %v7102 = vsub.f32 1.5, %v7101
    %v7103 = vmul.f32 %v7098, %v7102
    %vm7104 = vweird.f32 %v7037
    %vm7105 = vweird.f32 %v7098
    %vm7106 = vmor %vm7104, %vm7105
    %v7107 = vsel %vm7106, %v7098, %v7103
    %v7108 = vrsqrt.pop %v7038
    %v7109 = vmul.f32 %v7108, %v7038
    %v7110 = vmul.f32 %v7109, %v7108
    %v7111 = vmul.f32 0.5, %v7110
    %v7112 = vsub.f32 1.5, %v7111
    %v7113 = vmul.f32 %v7108, %v7112
    %vm7114 = vweird.f32 %v7038
    %vm7115 = vweird.f32 %v7108
    %vm7116 = vmor %vm7114, %vm7115
    %v7117 = vsel %vm7116, %v7108, %v7113
    %v7118 = vrsqrt.pop %v7039
    %v7119 = vmul.f32 %v7118, %v7039
    %v7120 = vmul.f32 %v7119, %v7118
    %v7121 = vmul.f32 0.5, %v7120
    %v7122 = vsub.f32 1.5, %v7121
    %v7123 = vmul.f32 %v7118, %v7122
    %vm7124 = vweird.f32 %v7039
    %vm7125 = vweird.f32 %v7118
    %vm7126 = vmor %vm7124, %vm7125
    %v7127 = vsel %vm7126, %v7118, %v7123
    %v7128 = vrsqrt.pop %v7040
    %v7129 = vmul.f32 %v7128, %v7040
    %v7130 = vmul.f32 %v7129, %v7128
    %v7131 = vmul.f32 0.5, %v7130
    %v7132 = vsub.f32 1.5, %v7131
    %v7133 = vmul.f32 %v7128, %v7132
    %vm7134 = vweird.f32 %v7040
    %vm7135 = vweird.f32 %v7128
    %vm7136 = vmor %vm7134, %vm7135
    %v7137 = vsel %vm7136, %v7128, %v7133
    %v7138 = vrsqrt.pop %v7041
    %v7139 = vmul.f32 %v7138, %v7041
    %v7140 = vmul.f32 %v7139, %v7138
    %v7141 = vmul.f32 0.5, %v7140
    %v7142 = vsub.f32 1.5, %v7141
    %v7143 = vmul.f32 %v7138, %v7142
    %vm7144 = vweird.f32 %v7041
    %vm7145 = vweird.f32 %v7138
    %vm7146 = vmor %vm7144, %vm7145
    %v7147 = vsel %vm7146, %v7138, %v7143
    %v7148 = vrsqrt.pop %v7042
    %v7149 = vmul.f32 %v7148, %v7042
    %v7150 = vmul.f32 %v7149, %v7148
    %v7151 = vmul.f32 0.5, %v7150
    %v7152 = vsub.f32 1.5, %v7151
    %v7153 = vmul.f32 %v7148, %v7152
    %vm7154 = vweird.f32 %v7042
    %vm7155 = vweird.f32 %v7148
    %vm7156 = vmor %vm7154, %vm7155
    %v7157 = vsel %vm7156, %v7148, %v7153
    %v7158 = vrsqrt.pop %v7043
    %v7159 = vmul.f32 %v7158, %v7043
    %v7160 = vmul.f32 %v7159, %v7158
    %v7161 = vmul.f32 0.5, %v7160
    %v7162 = vsub.f32 1.5, %v7161
    %v7163 = vmul.f32 %v7158, %v7162
    %vm7164 = vweird.f32 %v7043
    %vm7165 = vweird.f32 %v7158
    %vm7166 = vmor %vm7164, %vm7165
    %v7167 = vsel %vm7166, %v7158, %v7163
    %v7168 = vrsqrt.pop %v7044
    %v7169 = vmul.f32 %v7168, %v7044
    %v7170 = vmul.f32 %v7169, %v7168
    %v7171 = vmul.f32 0.5, %v7170
    %v7172 = vsub.f32 1.5, %v7171
    %v7173 = vmul.f32 %v7168, %v7172
    %vm7174 = vweird.f32 %v7044
    %vm7175 = vweird.f32 %v7168
    %vm7176 = vmor %vm7174, %vm7175
    %v7177 = vsel %vm7176, %v7168, %v7173
    %v7178 = vrsqrt.pop %v7045
    %v7179 = vmul.f32 %v7178, %v7045
    %v7180 = vmul.f32 %v7179, %v7178
    %v7181 = vmul.f32 0.5, %v7180
    %v7182 = vsub.f32 1.5, %v7181
    %v7183 = vmul.f32 %v7178, %v7182
    %vm7184 = vweird.f32 %v7045
    %vm7185 = vweird.f32 %v7178
    %vm7186 = vmor %vm7184, %vm7185
    %v7187 = vsel %vm7186, %v7178, %v7183
    %v7188 = vrsqrt.pop %v7046
    %v7189 = vmul.f32 %v7188, %v7046
    %v7190 = vmul.f32 %v7189, %v7188
    %v7191 = vmul.f32 0.5, %v7190
    %v7192 = vsub.f32 1.5, %v7191
    %v7193 = vmul.f32 %v7188, %v7192
    %vm7194 = vweird.f32 %v7046
    %vm7195 = vweird.f32 %v7188
    %vm7196 = vmor %vm7194, %vm7195
    %v7197 = vsel %vm7196, %v7188, %v7193
    %v7198 = vrsqrt.pop %v7047
    %v7199 = vmul.f32 %v7198, %v7047
    %v7200 = vmul.f32 %v7199, %v7198
    %v7201 = vmul.f32 0.5, %v7200
    %v7202 = vsub.f32 1.5, %v7201
    %v7203 = vmul.f32 %v7198, %v7202
    %vm7204 = vweird.f32 %v7047
    %vm7205 = vweird.f32 %v7198
    %vm7206 = vmor %vm7204, %vm7205
    %v7207 = vsel %vm7206, %v7198, %v7203
    %v7208 = vmul.f32 %v6936, %v7057
    %v7209 = vmul.f32 %v6937, %v7067
    %v7210 = vmul.f32 %v6938, %v7077
    %v7211 = vmul.f32 %v6939, %v7087
    %v7212 = vmul.f32 %v6940, %v7097
    %v7213 = vmul.f32 %v6941, %v7107
    %v7214 = vmul.f32 %v6942, %v7117
    %v7215 = vmul.f32 %v6943, %v7127
    %v7216 = vmul.f32 %v6944, %v7137
    %v7217 = vmul.f32 %v6945, %v7147
    %v7218 = vmul.f32 %v6946, %v7157
    %v7219 = vmul.f32 %v6947, %v7167
    %v7220 = vmul.f32 %v6948, %v7177
    %v7221 = vmul.f32 %v6949, %v7187
    %v7222 = vmul.f32 %v6950, %v7197
    %v7223 = vmul.f32 %v6951, %v7207
    %v7224 = vperm.slane %v37, 5
    %v7225 = vmul.f32 %v7208, %v7224
    %v7226 = vmul.f32 %v7209, %v7224
    %v7227 = vmul.f32 %v7210, %v7224
    %v7228 = vmul.f32 %v7211, %v7224
    %v7229 = vmul.f32 %v7212, %v7224
    %v7230 = vmul.f32 %v7213, %v7224
    %v7231 = vmul.f32 %v7214, %v7224
    %v7232 = vmul.f32 %v7215, %v7224
    %v7233 = vmul.f32 %v7216, %v7224
    %v7234 = vmul.f32 %v7217, %v7224
    %v7235 = vmul.f32 %v7218, %v7224
    %v7236 = vmul.f32 %v7219, %v7224
    %v7237 = vmul.f32 %v7220, %v7224
    %v7238 = vmul.f32 %v7221, %v7224
    %v7239 = vmul.f32 %v7222, %v7224
    %v7240 = vmul.f32 %v7223, %v7224
    %v7241 = vperm.slane %v37, 6
    %v7242 = vadd.f32 %v7225, %v7241
    %v7243 = vadd.f32 %v7226, %v7241
    %v7244 = vadd.f32 %v7227, %v7241
    %v7245 = vadd.f32 %v7228, %v7241
    %v7246 = vadd.f32 %v7229, %v7241
    %v7247 = vadd.f32 %v7230, %v7241
    %v7248 = vadd.f32 %v7231, %v7241
    %v7249 = vadd.f32 %v7232, %v7241
    %v7250 = vadd.f32 %v7233, %v7241
    %v7251 = vadd.f32 %v7234, %v7241
    %v7252 = vadd.f32 %v7235, %v7241
    %v7253 = vadd.f32 %v7236, %v7241
    %v7254 = vadd.f32 %v7237, %v7241
    %v7255 = vadd.f32 %v7238, %v7241
    %v7256 = vadd.f32 %v7239, %v7241
    %v7257 = vadd.f32 %v7240, %v7241
    %v7258 = vmax.f32 %v7242, 0.0
    %v7259 = vmax.f32 %v7243, 0.0
    %v7260 = vmax.f32 %v7244, 0.0
    %v7261 = vmax.f32 %v7245, 0.0
    %v7262 = vmax.f32 %v7246, 0.0
    %v7263 = vmax.f32 %v7247, 0.0
    %v7264 = vmax.f32 %v7248, 0.0
    %v7265 = vmax.f32 %v7249, 0.0
    %v7266 = vmax.f32 %v7250, 0.0
    %v7267 = vmax.f32 %v7251, 0.0
    %v7268 = vmax.f32 %v7252, 0.0
    %v7269 = vmax.f32 %v7253, 0.0
    %v7270 = vmax.f32 %v7254, 0.0
    %v7271 = vmax.f32 %v7255, 0.0
    %v7272 = vmax.f32 %v7256, 0.0
    %v7273 = vmax.f32 %v7257, 0.0
    %v7274 = vpack.c.bf16 %v7259, %v7258
    %v7275 = vpack.c.bf16 %v7261, %v7260
    %v7276 = vpack.c.bf16 %v7263, %v7262
    %v7277 = vpack.c.bf16 %v7265, %v7264
    %v7278 = vpack.c.bf16 %v7267, %v7266
    %v7279 = vpack.c.bf16 %v7269, %v7268
    %v7280 = vpack.c.bf16 %v7271, %v7270
    %v7281 = vpack.c.bf16 %v7273, %v7272
    %v7282 = vperm.slane %v37, 7
    %v7291 = vunpack.c.l.b16 %v6545
    %v7292 = vunpack.c.l.b16 %v6546
    %v7293 = vunpack.c.l.b16 %v6547
    %v7294 = vunpack.c.l.b16 %v6548
    %v7295 = vunpack.c.l.b16 %v6549
    %v7296 = vunpack.c.l.b16 %v6550
    %v7297 = vunpack.c.l.b16 %v6551
    %v7298 = vunpack.c.l.b16 %v6552
    %v7299 = vpack.c.b16 %v7292, %v7291
    %v7300 = vpack.c.b16 %v7294, %v7293
    %v7301 = vpack.c.b16 %v7296, %v7295
    %v7302 = vpack.c.b16 %v7298, %v7297
    %v7308 = vsel %vm913, %v7274, 0
    %v7311 = vsel %vm913, %v7275, 0
    %v7314 = vsel %vm913, %v7276, 0
    %v7317 = vsel %vm913, %v7277, 0
    %v7320 = vsel %vm913, %v7278, 0
    %v7323 = vsel %vm913, %v7279, 0
    %v7326 = vsel %vm913, %v7280, 0
    %v7329 = vsel %vm913, %v7281, 0
    %7331 = vmatpush.bf16.msra.mxu0 0
    %7332 = vmatpush.bf16.msra.mxu0 0
    %7333 = vmatpush.bf16.msra.mxu0 0
    %7334 = vmatpush.bf16.msra.mxu0 0
    %7335 = vmatpush.bf16.msra.mxu0 %v7302
    %7336 = vmatpush.bf16.msra.mxu0 %v7301
    %7337 = vmatpush.bf16.msra.mxu0 %v7300
    %7338 = vmatpush.bf16.msra.mxu0 %v7299
    %7339 = vmatmul.bf16.gmra.mxu0 %v7308
    %v7340 = vpop.f32.mrf.mxu0
    %v7341 = vadd.f32 %v7282, %v7340
    %v7342 = vpop.f32.mrf.mxu0
    %v7343 = vadd.f32 %v7282, %v7342
    %7344 = vmatmul.bf16.gmra.mxu0 %v7311
    %v7345 = vpop.f32.mrf.mxu0
    %v7346 = vadd.f32 %v7282, %v7345
    %v7347 = vpop.f32.mrf.mxu0
    %v7348 = vadd.f32 %v7282, %v7347
    %7349 = vmatmul.bf16.gmra.mxu0 %v7314
    %v7350 = vpop.f32.mrf.mxu0
    %v7351 = vadd.f32 %v7282, %v7350
    %v7352 = vpop.f32.mrf.mxu0
    %v7353 = vadd.f32 %v7282, %v7352
    %7354 = vmatmul.bf16.gmra.mxu0 %v7317
    %v7355 = vpop.f32.mrf.mxu0
    %v7356 = vadd.f32 %v7282, %v7355
    %v7357 = vpop.f32.mrf.mxu0
    %v7358 = vadd.f32 %v7282, %v7357
    %7359 = vmatmul.bf16.gmra.mxu0 %v7320
    %v7360 = vpop.f32.mrf.mxu0
    %v7361 = vadd.f32 %v7282, %v7360
    %v7362 = vpop.f32.mrf.mxu0
    %v7363 = vadd.f32 %v7282, %v7362
    %7364 = vmatmul.bf16.gmra.mxu0 %v7323
    %v7365 = vpop.f32.mrf.mxu0
    %v7366 = vadd.f32 %v7282, %v7365
    %v7367 = vpop.f32.mrf.mxu0
    %v7368 = vadd.f32 %v7282, %v7367
    %7369 = vmatmul.bf16.gmra.mxu0 %v7326
    %v7370 = vpop.f32.mrf.mxu0
    %v7371 = vadd.f32 %v7282, %v7370
    %v7372 = vpop.f32.mrf.mxu0
    %v7373 = vadd.f32 %v7282, %v7372
    %7374 = vmatmul.bf16.gmra.mxu0 %v7329
    %v7375 = vpop.f32.mrf.mxu0
    %v7376 = vadd.f32 %v7282, %v7375
    %v7377 = vpop.f32.mrf.mxu0
    %v7378 = vadd.f32 %v7282, %v7377
    %7379 = vdwg.mxu0
    %v7380 = vpack.c.bf16 %v7343, %v7341
    %v7381 = vpack.c.bf16 %v7348, %v7346
    %v7382 = vpack.c.bf16 %v7353, %v7351
    %v7383 = vpack.c.bf16 %v7358, %v7356
    %v7384 = vpack.c.bf16 %v7363, %v7361
    %v7385 = vpack.c.bf16 %v7368, %v7366
    %v7386 = vpack.c.bf16 %v7373, %v7371
    %v7387 = vpack.c.bf16 %v7378, %v7376
    %7388 = vmatpush.bf16.msra.mxu0 %v7387
    %7389 = vmatpush.bf16.msra.mxu0 %v7386
    %7390 = vmatpush.bf16.msra.mxu0 %v7385
    %7391 = vmatpush.bf16.msra.mxu0 %v7384
    %7392 = vmatpush.bf16.msra.mxu0 %v7383
    %7393 = vmatpush.bf16.msra.mxu0 %v7382
    %7394 = vmatpush.bf16.msra.mxu0 %v7381
    %7395 = vmatpush.bf16.msra.mxu0 %v7380
    %7396 = vmatmul.bf16.gmra.mxu0 %v4170
    %v7397 = vpop.f32.mrf.mxu0
    %v7398 = vadd.f32 0.0, %v7397
    %v7399 = vpop.f32.mrf.mxu0
    %v7400 = vadd.f32 0.0, %v7399
    %7401 = vmatmul.bf16.gmra.mxu0 %v4171
    %v7402 = vpop.f32.mrf.mxu0
    %v7403 = vadd.f32 0.0, %v7402
    %v7404 = vpop.f32.mrf.mxu0
    %v7405 = vadd.f32 0.0, %v7404
    %7406 = vmatmul.bf16.gmra.mxu0 %v4172
    %v7407 = vpop.f32.mrf.mxu0
    %v7408 = vadd.f32 0.0, %v7407
    %v7409 = vpop.f32.mrf.mxu0
    %v7410 = vadd.f32 0.0, %v7409
    %7411 = vmatmul.bf16.gmra.mxu0 %v4173
    %v7412 = vpop.f32.mrf.mxu0
    %v7413 = vadd.f32 0.0, %v7412
    %v7414 = vpop.f32.mrf.mxu0
    %v7415 = vadd.f32 0.0, %v7414
    %7416 = vmatmul.bf16.gmra.mxu0 %v4174
    %v7417 = vpop.f32.mrf.mxu0
    %v7418 = vadd.f32 0.0, %v7417
    %v7419 = vpop.f32.mrf.mxu0
    %v7420 = vadd.f32 0.0, %v7419
    %7421 = vmatmul.bf16.gmra.mxu0 %v4175
    %v7422 = vpop.f32.mrf.mxu0
    %v7423 = vadd.f32 0.0, %v7422
    %v7424 = vpop.f32.mrf.mxu0
    %v7425 = vadd.f32 0.0, %v7424
    %7426 = vmatmul.bf16.gmra.mxu0 %v4176
    %v7427 = vpop.f32.mrf.mxu0
    %v7428 = vadd.f32 0.0, %v7427
    %v7429 = vpop.f32.mrf.mxu0
    %v7430 = vadd.f32 0.0, %v7429
    %7431 = vmatmul.bf16.gmra.mxu0 %v4177
    %v7432 = vpop.f32.mrf.mxu0
    %v7433 = vadd.f32 0.0, %v7432
    %v7434 = vpop.f32.mrf.mxu0
    %v7435 = vadd.f32 0.0, %v7434
    %7436 = vdwg.mxu0
    %v7437 = vsel %vm913, %v7398, 0.0
    %7438 = vadd.xlane.f32.xlu0 %v7437
    %v7439 = vpop.xlane.xlu0 %7438
    %v7440 = vsel %vm913, %v7400, 0.0
    %7441 = vadd.xlane.f32.xlu0 %v7440
    %v7442 = vpop.xlane.xlu0 %7441
    %v7443 = vsel %vm913, %v7403, 0.0
    %7444 = vadd.xlane.f32.xlu0 %v7443
    %v7445 = vpop.xlane.xlu0 %7444
    %v7446 = vsel %vm913, %v7405, 0.0
    %7447 = vadd.xlane.f32.xlu0 %v7446
    %v7448 = vpop.xlane.xlu0 %7447
    %v7449 = vsel %vm913, %v7408, 0.0
    %7450 = vadd.xlane.f32.xlu0 %v7449
    %v7451 = vpop.xlane.xlu0 %7450
    %v7452 = vsel %vm913, %v7410, 0.0
    %7453 = vadd.xlane.f32.xlu0 %v7452
    %v7454 = vpop.xlane.xlu0 %7453
    %v7455 = vsel %vm913, %v7413, 0.0
    %7456 = vadd.xlane.f32.xlu0 %v7455
    %v7457 = vpop.xlane.xlu0 %7456
    %v7458 = vsel %vm913, %v7415, 0.0
    %7459 = vadd.xlane.f32.xlu0 %v7458
    %v7460 = vpop.xlane.xlu0 %7459
    %v7461 = vsel %vm913, %v7418, 0.0
    %7462 = vadd.xlane.f32.xlu0 %v7461
    %v7463 = vpop.xlane.xlu0 %7462
    %v7464 = vsel %vm913, %v7420, 0.0
    %7465 = vadd.xlane.f32.xlu0 %v7464
    %v7466 = vpop.xlane.xlu0 %7465
    %v7467 = vsel %vm913, %v7423, 0.0
    %7468 = vadd.xlane.f32.xlu0 %v7467
    %v7469 = vpop.xlane.xlu0 %7468
    %v7470 = vsel %vm913, %v7425, 0.0
    %7471 = vadd.xlane.f32.xlu0 %v7470
    %v7472 = vpop.xlane.xlu0 %7471
    %v7473 = vsel %vm913, %v7428, 0.0
    %7474 = vadd.xlane.f32.xlu0 %v7473
    %v7475 = vpop.xlane.xlu0 %7474
    %v7476 = vsel %vm913, %v7430, 0.0
    %7477 = vadd.xlane.f32.xlu0 %v7476
    %v7478 = vpop.xlane.xlu0 %7477
    %v7479 = vsel %vm913, %v7433, 0.0
    %7480 = vadd.xlane.f32.xlu0 %v7479
    %v7481 = vpop.xlane.xlu0 %7480
    %v7482 = vsel %vm913, %v7435, 0.0
    %7483 = vadd.xlane.f32.xlu0 %v7482
    %v7484 = vpop.xlane.xlu0 %7483
    %v7485 = vmul.f32 %v7439, %v2072
    %v7486 = vmul.f32 %v7442, %v2072
    %v7487 = vmul.f32 %v7445, %v2072
    %v7488 = vmul.f32 %v7448, %v2072
    %v7489 = vmul.f32 %v7451, %v2072
    %v7490 = vmul.f32 %v7454, %v2072
    %v7491 = vmul.f32 %v7457, %v2072
    %v7492 = vmul.f32 %v7460, %v2072
    %v7493 = vmul.f32 %v7463, %v2072
    %v7494 = vmul.f32 %v7466, %v2072
    %v7495 = vmul.f32 %v7469, %v2072
    %v7496 = vmul.f32 %v7472, %v2072
    %v7497 = vmul.f32 %v7475, %v2072
    %v7498 = vmul.f32 %v7478, %v2072
    %v7499 = vmul.f32 %v7481, %v2072
    %v7500 = vmul.f32 %v7484, %v2072
    %v7501 = vsub.f32 %v7398, %v7485
    %v7502 = vsub.f32 %v7400, %v7486
    %v7503 = vsub.f32 %v7403, %v7487
    %v7504 = vsub.f32 %v7405, %v7488
    %v7505 = vsub.f32 %v7408, %v7489
    %v7506 = vsub.f32 %v7410, %v7490
    %v7507 = vsub.f32 %v7413, %v7491
    %v7508 = vsub.f32 %v7415, %v7492
    %v7509 = vsub.f32 %v7418, %v7493
    %v7510 = vsub.f32 %v7420, %v7494
    %v7511 = vsub.f32 %v7423, %v7495
    %v7512 = vsub.f32 %v7425, %v7496
    %v7513 = vsub.f32 %v7428, %v7497
    %v7514 = vsub.f32 %v7430, %v7498
    %v7515 = vsub.f32 %v7433, %v7499
    %v7516 = vsub.f32 %v7435, %v7500
    %v7517 = vmul.f32 %v7501, %v7501
    %v7518 = vmul.f32 %v7502, %v7502
    %v7519 = vmul.f32 %v7503, %v7503
    %v7520 = vmul.f32 %v7504, %v7504
    %v7521 = vmul.f32 %v7505, %v7505
    %v7522 = vmul.f32 %v7506, %v7506
    %v7523 = vmul.f32 %v7507, %v7507
    %v7524 = vmul.f32 %v7508, %v7508
    %v7525 = vmul.f32 %v7509, %v7509
    %v7526 = vmul.f32 %v7510, %v7510
    %v7527 = vmul.f32 %v7511, %v7511
    %v7528 = vmul.f32 %v7512, %v7512
    %v7529 = vmul.f32 %v7513, %v7513
    %v7530 = vmul.f32 %v7514, %v7514
    %v7531 = vmul.f32 %v7515, %v7515
    %v7532 = vmul.f32 %v7516, %v7516
    %v7533 = vsel %vm913, %v7517, 0.0
    %7534 = vadd.xlane.f32.xlu0 %v7533
    %v7535 = vpop.xlane.xlu0 %7534
    %v7536 = vsel %vm913, %v7518, 0.0
    %7537 = vadd.xlane.f32.xlu0 %v7536
    %v7538 = vpop.xlane.xlu0 %7537
    %v7539 = vsel %vm913, %v7519, 0.0
    %7540 = vadd.xlane.f32.xlu0 %v7539
    %v7541 = vpop.xlane.xlu0 %7540
    %v7542 = vsel %vm913, %v7520, 0.0
    %7543 = vadd.xlane.f32.xlu0 %v7542
    %v7544 = vpop.xlane.xlu0 %7543
    %v7545 = vsel %vm913, %v7521, 0.0
    %7546 = vadd.xlane.f32.xlu0 %v7545
    %v7547 = vpop.xlane.xlu0 %7546
    %v7548 = vsel %vm913, %v7522, 0.0
    %7549 = vadd.xlane.f32.xlu0 %v7548
    %v7550 = vpop.xlane.xlu0 %7549
    %v7551 = vsel %vm913, %v7523, 0.0
    %7552 = vadd.xlane.f32.xlu0 %v7551
    %v7553 = vpop.xlane.xlu0 %7552
    %v7554 = vsel %vm913, %v7524, 0.0
    %7555 = vadd.xlane.f32.xlu0 %v7554
    %v7556 = vpop.xlane.xlu0 %7555
    %v7557 = vsel %vm913, %v7525, 0.0
    %7558 = vadd.xlane.f32.xlu0 %v7557
    %v7559 = vpop.xlane.xlu0 %7558
    %v7560 = vsel %vm913, %v7526, 0.0
    %7561 = vadd.xlane.f32.xlu0 %v7560
    %v7562 = vpop.xlane.xlu0 %7561
    %v7563 = vsel %vm913, %v7527, 0.0
    %7564 = vadd.xlane.f32.xlu0 %v7563
    %v7565 = vpop.xlane.xlu0 %7564
    %v7566 = vsel %vm913, %v7528, 0.0
    %7567 = vadd.xlane.f32.xlu0 %v7566
    %v7568 = vpop.xlane.xlu0 %7567
    %v7569 = vsel %vm913, %v7529, 0.0
    %7570 = vadd.xlane.f32.xlu0 %v7569
    %v7571 = vpop.xlane.xlu0 %7570
    %v7572 = vsel %vm913, %v7530, 0.0
    %7573 = vadd.xlane.f32.xlu0 %v7572
    %v7574 = vpop.xlane.xlu0 %7573
    %v7575 = vsel %vm913, %v7531, 0.0
    %7576 = vadd.xlane.f32.xlu0 %v7575
    %v7577 = vpop.xlane.xlu0 %7576
    %v7578 = vsel %vm913, %v7532, 0.0
    %7579 = vadd.xlane.f32.xlu0 %v7578
    %v7580 = vpop.xlane.xlu0 %7579
    %v7581 = vmul.f32 %v7535, %v2072
    %v7582 = vmul.f32 %v7538, %v2072
    %v7583 = vmul.f32 %v7541, %v2072
    %v7584 = vmul.f32 %v7544, %v2072
    %v7585 = vmul.f32 %v7547, %v2072
    %v7586 = vmul.f32 %v7550, %v2072
    %v7587 = vmul.f32 %v7553, %v2072
    %v7588 = vmul.f32 %v7556, %v2072
    %v7589 = vmul.f32 %v7559, %v2072
    %v7590 = vmul.f32 %v7562, %v2072
    %v7591 = vmul.f32 %v7565, %v2072
    %v7592 = vmul.f32 %v7568, %v2072
    %v7593 = vmul.f32 %v7571, %v2072
    %v7594 = vmul.f32 %v7574, %v2072
    %v7595 = vmul.f32 %v7577, %v2072
    %v7596 = vmul.f32 %v7580, %v2072
    %v7597 = vadd.f32 %v7581, 1e-05
    %v7598 = vadd.f32 %v7582, 1e-05
    %v7599 = vadd.f32 %v7583, 1e-05
    %v7600 = vadd.f32 %v7584, 1e-05
    %v7601 = vadd.f32 %v7585, 1e-05
    %v7602 = vadd.f32 %v7586, 1e-05
    %v7603 = vadd.f32 %v7587, 1e-05
    %v7604 = vadd.f32 %v7588, 1e-05
    %v7605 = vadd.f32 %v7589, 1e-05
    %v7606 = vadd.f32 %v7590, 1e-05
    %v7607 = vadd.f32 %v7591, 1e-05
    %v7608 = vadd.f32 %v7592, 1e-05
    %v7609 = vadd.f32 %v7593, 1e-05
    %v7610 = vadd.f32 %v7594, 1e-05
    %v7611 = vadd.f32 %v7595, 1e-05
    %v7612 = vadd.f32 %v7596, 1e-05
    %v7613 = vrsqrt.pop %v7597
    %v7614 = vmul.f32 %v7613, %v7597
    %v7615 = vmul.f32 %v7614, %v7613
    %v7616 = vmul.f32 0.5, %v7615
    %v7617 = vsub.f32 1.5, %v7616
    %v7618 = vmul.f32 %v7613, %v7617
    %vm7619 = vweird.f32 %v7597
    %vm7620 = vweird.f32 %v7613
    %vm7621 = vmor %vm7619, %vm7620
    %v7622 = vsel %vm7621, %v7613, %v7618
    %v7623 = vrsqrt.pop %v7598
    %v7624 = vmul.f32 %v7623, %v7598
    %v7625 = vmul.f32 %v7624, %v7623
    %v7626 = vmul.f32 0.5, %v7625
    %v7627 = vsub.f32 1.5, %v7626
    %v7628 = vmul.f32 %v7623, %v7627
    %vm7629 = vweird.f32 %v7598
    %vm7630 = vweird.f32 %v7623
    %vm7631 = vmor %vm7629, %vm7630
    %v7632 = vsel %vm7631, %v7623, %v7628
    %v7633 = vrsqrt.pop %v7599
    %v7634 = vmul.f32 %v7633, %v7599
    %v7635 = vmul.f32 %v7634, %v7633
    %v7636 = vmul.f32 0.5, %v7635
    %v7637 = vsub.f32 1.5, %v7636
    %v7638 = vmul.f32 %v7633, %v7637
    %vm7639 = vweird.f32 %v7599
    %vm7640 = vweird.f32 %v7633
    %vm7641 = vmor %vm7639, %vm7640
    %v7642 = vsel %vm7641, %v7633, %v7638
    %v7643 = vrsqrt.pop %v7600
    %v7644 = vmul.f32 %v7643, %v7600
    %v7645 = vmul.f32 %v7644, %v7643
    %v7646 = vmul.f32 0.5, %v7645
    %v7647 = vsub.f32 1.5, %v7646
    %v7648 = vmul.f32 %v7643, %v7647
    %vm7649 = vweird.f32 %v7600
    %vm7650 = vweird.f32 %v7643
    %vm7651 = vmor %vm7649, %vm7650
    %v7652 = vsel %vm7651, %v7643, %v7648
    %v7653 = vrsqrt.pop %v7601
    %v7654 = vmul.f32 %v7653, %v7601
    %v7655 = vmul.f32 %v7654, %v7653
    %v7656 = vmul.f32 0.5, %v7655
    %v7657 = vsub.f32 1.5, %v7656
    %v7658 = vmul.f32 %v7653, %v7657
    %vm7659 = vweird.f32 %v7601
    %vm7660 = vweird.f32 %v7653
    %vm7661 = vmor %vm7659, %vm7660
    %v7662 = vsel %vm7661, %v7653, %v7658
    %v7663 = vrsqrt.pop %v7602
    %v7664 = vmul.f32 %v7663, %v7602
    %v7665 = vmul.f32 %v7664, %v7663
    %v7666 = vmul.f32 0.5, %v7665
    %v7667 = vsub.f32 1.5, %v7666
    %v7668 = vmul.f32 %v7663, %v7667
    %vm7669 = vweird.f32 %v7602
    %vm7670 = vweird.f32 %v7663
    %vm7671 = vmor %vm7669, %vm7670
    %v7672 = vsel %vm7671, %v7663, %v7668
    %v7673 = vrsqrt.pop %v7603
    %v7674 = vmul.f32 %v7673, %v7603
    %v7675 = vmul.f32 %v7674, %v7673
    %v7676 = vmul.f32 0.5, %v7675
    %v7677 = vsub.f32 1.5, %v7676
    %v7678 = vmul.f32 %v7673, %v7677
    %vm7679 = vweird.f32 %v7603
    %vm7680 = vweird.f32 %v7673
    %vm7681 = vmor %vm7679, %vm7680
    %v7682 = vsel %vm7681, %v7673, %v7678
    %v7683 = vrsqrt.pop %v7604
    %v7684 = vmul.f32 %v7683, %v7604
    %v7685 = vmul.f32 %v7684, %v7683
    %v7686 = vmul.f32 0.5, %v7685
    %v7687 = vsub.f32 1.5, %v7686
    %v7688 = vmul.f32 %v7683, %v7687
    %vm7689 = vweird.f32 %v7604
    %vm7690 = vweird.f32 %v7683
    %vm7691 = vmor %vm7689, %vm7690
    %v7692 = vsel %vm7691, %v7683, %v7688
    %v7693 = vrsqrt.pop %v7605
    %v7694 = vmul.f32 %v7693, %v7605
    %v7695 = vmul.f32 %v7694, %v7693
    %v7696 = vmul.f32 0.5, %v7695
    %v7697 = vsub.f32 1.5, %v7696
    %v7698 = vmul.f32 %v7693, %v7697
    %vm7699 = vweird.f32 %v7605
    %vm7700 = vweird.f32 %v7693
    %vm7701 = vmor %vm7699, %vm7700
    %v7702 = vsel %vm7701, %v7693, %v7698
    %v7703 = vrsqrt.pop %v7606
    %v7704 = vmul.f32 %v7703, %v7606
    %v7705 = vmul.f32 %v7704, %v7703
    %v7706 = vmul.f32 0.5, %v7705
    %v7707 = vsub.f32 1.5, %v7706
    %v7708 = vmul.f32 %v7703, %v7707
    %vm7709 = vweird.f32 %v7606
    %vm7710 = vweird.f32 %v7703
    %vm7711 = vmor %vm7709, %vm7710
    %v7712 = vsel %vm7711, %v7703, %v7708
    %v7713 = vrsqrt.pop %v7607
    %v7714 = vmul.f32 %v7713, %v7607
    %v7715 = vmul.f32 %v7714, %v7713
    %v7716 = vmul.f32 0.5, %v7715
    %v7717 = vsub.f32 1.5, %v7716
    %v7718 = vmul.f32 %v7713, %v7717
    %vm7719 = vweird.f32 %v7607
    %vm7720 = vweird.f32 %v7713
    %vm7721 = vmor %vm7719, %vm7720
    %v7722 = vsel %vm7721, %v7713, %v7718
    %v7723 = vrsqrt.pop %v7608
    %v7724 = vmul.f32 %v7723, %v7608
    %v7725 = vmul.f32 %v7724, %v7723
    %v7726 = vmul.f32 0.5, %v7725
    %v7727 = vsub.f32 1.5, %v7726
    %v7728 = vmul.f32 %v7723, %v7727
    %vm7729 = vweird.f32 %v7608
    %vm7730 = vweird.f32 %v7723
    %vm7731 = vmor %vm7729, %vm7730
    %v7732 = vsel %vm7731, %v7723, %v7728
    %v7733 = vrsqrt.pop %v7609
    %v7734 = vmul.f32 %v7733, %v7609
    %v7735 = vmul.f32 %v7734, %v7733
    %v7736 = vmul.f32 0.5, %v7735
    %v7737 = vsub.f32 1.5, %v7736
    %v7738 = vmul.f32 %v7733, %v7737
    %vm7739 = vweird.f32 %v7609
    %vm7740 = vweird.f32 %v7733
    %vm7741 = vmor %vm7739, %vm7740
    %v7742 = vsel %vm7741, %v7733, %v7738
    %v7743 = vrsqrt.pop %v7610
    %v7744 = vmul.f32 %v7743, %v7610
    %v7745 = vmul.f32 %v7744, %v7743
    %v7746 = vmul.f32 0.5, %v7745
    %v7747 = vsub.f32 1.5, %v7746
    %v7748 = vmul.f32 %v7743, %v7747
    %vm7749 = vweird.f32 %v7610
    %vm7750 = vweird.f32 %v7743
    %vm7751 = vmor %vm7749, %vm7750
    %v7752 = vsel %vm7751, %v7743, %v7748
    %v7753 = vrsqrt.pop %v7611
    %v7754 = vmul.f32 %v7753, %v7611
    %v7755 = vmul.f32 %v7754, %v7753
    %v7756 = vmul.f32 0.5, %v7755
    %v7757 = vsub.f32 1.5, %v7756
    %v7758 = vmul.f32 %v7753, %v7757
    %vm7759 = vweird.f32 %v7611
    %vm7760 = vweird.f32 %v7753
    %vm7761 = vmor %vm7759, %vm7760
    %v7762 = vsel %vm7761, %v7753, %v7758
    %v7763 = vrsqrt.pop %v7612
    %v7764 = vmul.f32 %v7763, %v7612
    %v7765 = vmul.f32 %v7764, %v7763
    %v7766 = vmul.f32 0.5, %v7765
    %v7767 = vsub.f32 1.5, %v7766
    %v7768 = vmul.f32 %v7763, %v7767
    %vm7769 = vweird.f32 %v7612
    %vm7770 = vweird.f32 %v7763
    %vm7771 = vmor %vm7769, %vm7770
    %v7772 = vsel %vm7771, %v7763, %v7768
    %v7773 = vmul.f32 %v7501, %v7622
    %v7774 = vmul.f32 %v7502, %v7632
    %v7775 = vmul.f32 %v7503, %v7642
    %v7776 = vmul.f32 %v7504, %v7652
    %v7777 = vmul.f32 %v7505, %v7662
    %v7778 = vmul.f32 %v7506, %v7672
    %v7779 = vmul.f32 %v7507, %v7682
    %v7780 = vmul.f32 %v7508, %v7692
    %v7781 = vmul.f32 %v7509, %v7702
    %v7782 = vmul.f32 %v7510, %v7712
    %v7783 = vmul.f32 %v7511, %v7722
    %v7784 = vmul.f32 %v7512, %v7732
    %v7785 = vmul.f32 %v7513, %v7742
    %v7786 = vmul.f32 %v7514, %v7752
    %v7787 = vmul.f32 %v7515, %v7762
    %v7788 = vmul.f32 %v7516, %v7772
    %v7789 = vperm.slane %v38, 0
    %v7790 = vmul.f32 %v7773, %v7789
    %v7791 = vmul.f32 %v7774, %v7789
    %v7792 = vmul.f32 %v7775, %v7789
    %v7793 = vmul.f32 %v7776, %v7789
    %v7794 = vmul.f32 %v7777, %v7789
    %v7795 = vmul.f32 %v7778, %v7789
    %v7796 = vmul.f32 %v7779, %v7789
    %v7797 = vmul.f32 %v7780, %v7789
    %v7798 = vmul.f32 %v7781, %v7789
    %v7799 = vmul.f32 %v7782, %v7789
    %v7800 = vmul.f32 %v7783, %v7789
    %v7801 = vmul.f32 %v7784, %v7789
    %v7802 = vmul.f32 %v7785, %v7789
    %v7803 = vmul.f32 %v7786, %v7789
    %v7804 = vmul.f32 %v7787, %v7789
    %v7805 = vmul.f32 %v7788, %v7789
    %v7806 = vperm.slane %v38, 1
    %v7807 = vadd.f32 %v7790, %v7806
    %v7808 = vadd.f32 %v7791, %v7806
    %v7809 = vadd.f32 %v7792, %v7806
    %v7810 = vadd.f32 %v7793, %v7806
    %v7811 = vadd.f32 %v7794, %v7806
    %v7812 = vadd.f32 %v7795, %v7806
    %v7813 = vadd.f32 %v7796, %v7806
    %v7814 = vadd.f32 %v7797, %v7806
    %v7815 = vadd.f32 %v7798, %v7806
    %v7816 = vadd.f32 %v7799, %v7806
    %v7817 = vadd.f32 %v7800, %v7806
    %v7818 = vadd.f32 %v7801, %v7806
    %v7819 = vadd.f32 %v7802, %v7806
    %v7820 = vadd.f32 %v7803, %v7806
    %v7821 = vadd.f32 %v7804, %v7806
    %v7822 = vadd.f32 %v7805, %v7806
    %7839 = vrot.lane.b32.xlu0 %v4882, 64
    %v7840 = vpop.permute.xlu0 %7839
    %7841 = vrot.lane.b32.xlu0 %v4884, 64
    %v7842 = vpop.permute.xlu0 %7841
    %7843 = vrot.lane.b32.xlu0 %v4887, 64
    %v7844 = vpop.permute.xlu0 %7843
    %7845 = vrot.lane.b32.xlu0 %v4889, 64
    %v7846 = vpop.permute.xlu0 %7845
    %7847 = vrot.lane.b32.xlu0 %v4892, 64
    %v7848 = vpop.permute.xlu0 %7847
    %7849 = vrot.lane.b32.xlu0 %v4894, 64
    %v7850 = vpop.permute.xlu0 %7849
    %7851 = vrot.lane.b32.xlu0 %v4897, 64
    %v7852 = vpop.permute.xlu0 %7851
    %7853 = vrot.lane.b32.xlu0 %v4899, 64
    %v7854 = vpop.permute.xlu0 %7853
    %7855 = vrot.lane.b32.xlu0 %v4902, 64
    %v7856 = vpop.permute.xlu0 %7855
    %7857 = vrot.lane.b32.xlu0 %v4904, 64
    %v7858 = vpop.permute.xlu0 %7857
    %7859 = vrot.lane.b32.xlu0 %v4907, 64
    %v7860 = vpop.permute.xlu0 %7859
    %7861 = vrot.lane.b32.xlu0 %v4909, 64
    %v7862 = vpop.permute.xlu0 %7861
    %7863 = vrot.lane.b32.xlu0 %v4912, 64
    %v7864 = vpop.permute.xlu0 %7863
    %7865 = vrot.lane.b32.xlu0 %v4914, 64
    %v7866 = vpop.permute.xlu0 %7865
    %7867 = vrot.lane.b32.xlu0 %v4917, 64
    %v7868 = vpop.permute.xlu0 %7867
    %7869 = vrot.lane.b32.xlu0 %v4919, 64
    %v7870 = vpop.permute.xlu0 %7869
    %v7887 = vsel %vm913, %v7807, %v7840
    %v7888 = vsel %vm913, %v7808, %v7842
    %v7889 = vsel %vm913, %v7809, %v7844
    %v7890 = vsel %vm913, %v7810, %v7846
    %v7891 = vsel %vm913, %v7811, %v7848
    %v7892 = vsel %vm913, %v7812, %v7850
    %v7893 = vsel %vm913, %v7813, %v7852
    %v7894 = vsel %vm913, %v7814, %v7854
    %v7895 = vsel %vm913, %v7815, %v7856
    %v7896 = vsel %vm913, %v7816, %v7858
    %v7897 = vsel %vm913, %v7817, %v7860
    %v7898 = vsel %vm913, %v7818, %v7862
    %v7899 = vsel %vm913, %v7819, %v7864
    %v7900 = vsel %vm913, %v7820, %v7866
    %v7901 = vsel %vm913, %v7821, %v7868
    %v7902 = vsel %vm913, %v7822, %v7870
    %v7903 = vpack.c.bf16 %v7888, %v7887
    %v7904 = vpack.c.bf16 %v7890, %v7889
    %v7905 = vpack.c.bf16 %v7892, %v7891
    %v7906 = vpack.c.bf16 %v7894, %v7893
    %v7907 = vpack.c.bf16 %v7896, %v7895
    %v7908 = vpack.c.bf16 %v7898, %v7897
    %v7909 = vpack.c.bf16 %v7900, %v7899
    %v7910 = vpack.c.bf16 %v7902, %v7901
    %v7911 = vperm.slane %v38, 2
    %v7928 = vunpack.c.l.b16 %v6563
    %v7929 = vunpack.c.l.b16 %v6564
    %v7930 = vunpack.c.l.b16 %v6565
    %v7931 = vunpack.c.l.b16 %v6566
    %v7932 = vunpack.c.l.b16 %v6567
    %v7933 = vunpack.c.l.b16 %v6568
    %v7934 = vunpack.c.l.b16 %v6569
    %v7935 = vunpack.c.l.b16 %v6570
    %v7936 = vunpack.c.l.b16 %v6571
    %v7937 = vunpack.c.l.b16 %v6572
    %v7938 = vunpack.c.l.b16 %v6573
    %v7939 = vunpack.c.l.b16 %v6574
    %v7940 = vunpack.c.l.b16 %v6575
    %v7941 = vunpack.c.l.b16 %v6576
    %v7942 = vunpack.c.l.b16 %v6577
    %v7943 = vunpack.c.l.b16 %v6578
    %v7944 = vpack.c.b16 %v7929, %v7928
    %v7945 = vpack.c.b16 %v7931, %v7930
    %v7946 = vpack.c.b16 %v7933, %v7932
    %v7947 = vpack.c.b16 %v7935, %v7934
    %v7948 = vpack.c.b16 %v7937, %v7936
    %v7949 = vpack.c.b16 %v7939, %v7938
    %v7950 = vpack.c.b16 %v7941, %v7940
    %v7951 = vpack.c.b16 %v7943, %v7942
    %7960 = vmatpush.bf16.msra.mxu0 %v7951
    %7961 = vmatpush.bf16.msra.mxu0 %v7950
    %7962 = vmatpush.bf16.msra.mxu0 %v7949
    %7963 = vmatpush.bf16.msra.mxu0 %v7948
    %7964 = vmatpush.bf16.msra.mxu0 %v7947
    %7965 = vmatpush.bf16.msra.mxu0 %v7946
    %7966 = vmatpush.bf16.msra.mxu0 %v7945
    %7967 = vmatpush.bf16.msra.mxu0 %v7944
    %7968 = vmatmul.bf16.gmra.mxu0 %v7903
    %v7969 = vpop.f32.mrf.mxu0
    %v7970 = vadd.f32 %v7911, %v7969
    %v7971 = vpop.f32.mrf.mxu0
    %v7972 = vadd.f32 %v7911, %v7971
    %7973 = vmatmul.bf16.gmra.mxu0 %v7904
    %v7974 = vpop.f32.mrf.mxu0
    %v7975 = vadd.f32 %v7911, %v7974
    %v7976 = vpop.f32.mrf.mxu0
    %v7977 = vadd.f32 %v7911, %v7976
    %7978 = vmatmul.bf16.gmra.mxu0 %v7905
    %v7979 = vpop.f32.mrf.mxu0
    %v7980 = vadd.f32 %v7911, %v7979
    %v7981 = vpop.f32.mrf.mxu0
    %v7982 = vadd.f32 %v7911, %v7981
    %7983 = vmatmul.bf16.gmra.mxu0 %v7906
    %v7984 = vpop.f32.mrf.mxu0
    %v7985 = vadd.f32 %v7911, %v7984
    %v7986 = vpop.f32.mrf.mxu0
    %v7987 = vadd.f32 %v7911, %v7986
    %7988 = vmatmul.bf16.gmra.mxu0 %v7907
    %v7989 = vpop.f32.mrf.mxu0
    %v7990 = vadd.f32 %v7911, %v7989
    %v7991 = vpop.f32.mrf.mxu0
    %v7992 = vadd.f32 %v7911, %v7991
    %7993 = vmatmul.bf16.gmra.mxu0 %v7908
    %v7994 = vpop.f32.mrf.mxu0
    %v7995 = vadd.f32 %v7911, %v7994
    %v7996 = vpop.f32.mrf.mxu0
    %v7997 = vadd.f32 %v7911, %v7996
    %7998 = vmatmul.bf16.gmra.mxu0 %v7909
    %v7999 = vpop.f32.mrf.mxu0
    %v8000 = vadd.f32 %v7911, %v7999
    %v8001 = vpop.f32.mrf.mxu0
    %v8002 = vadd.f32 %v7911, %v8001
    %8003 = vmatmul.bf16.gmra.mxu0 %v7910
    %v8004 = vpop.f32.mrf.mxu0
    %v8005 = vadd.f32 %v7911, %v8004
    %v8006 = vpop.f32.mrf.mxu0
    %v8007 = vadd.f32 %v7911, %v8006
    %8008 = vdwg.mxu0
    %v8009 = vmax.f32 %v7970, 0.0
    %v8010 = vmax.f32 %v7972, 0.0
    %v8011 = vmax.f32 %v7975, 0.0
    %v8012 = vmax.f32 %v7977, 0.0
    %v8013 = vmax.f32 %v7980, 0.0
    %v8014 = vmax.f32 %v7982, 0.0
    %v8015 = vmax.f32 %v7985, 0.0
    %v8016 = vmax.f32 %v7987, 0.0
    %v8017 = vmax.f32 %v7990, 0.0
    %v8018 = vmax.f32 %v7992, 0.0
    %v8019 = vmax.f32 %v7995, 0.0
    %v8020 = vmax.f32 %v7997, 0.0
    %v8021 = vmax.f32 %v8000, 0.0
    %v8022 = vmax.f32 %v8002, 0.0
    %v8023 = vmax.f32 %v8005, 0.0
    %v8024 = vmax.f32 %v8007, 0.0
    %v8025 = vpack.c.bf16 %v8010, %v8009
    %v8026 = vpack.c.bf16 %v8012, %v8011
    %v8027 = vpack.c.bf16 %v8014, %v8013
    %v8028 = vpack.c.bf16 %v8016, %v8015
    %v8029 = vpack.c.bf16 %v8018, %v8017
    %v8030 = vpack.c.bf16 %v8020, %v8019
    %v8031 = vpack.c.bf16 %v8022, %v8021
    %v8032 = vpack.c.bf16 %v8024, %v8023
    %v8033 = vperm.slane %v38, 3
    %v8042 = vunpack.c.l.b16 %v6554
    %v8043 = vunpack.c.l.b16 %v6555
    %v8044 = vunpack.c.l.b16 %v6556
    %v8045 = vunpack.c.l.b16 %v6557
    %v8046 = vunpack.c.l.b16 %v6558
    %v8047 = vunpack.c.l.b16 %v6559
    %v8048 = vunpack.c.l.b16 %v6560
    %v8049 = vunpack.c.l.b16 %v6561
    %v8050 = vpack.c.b16 %v8043, %v8042
    %v8051 = vpack.c.b16 %v8045, %v8044
    %v8052 = vpack.c.b16 %v8047, %v8046
    %v8053 = vpack.c.b16 %v8049, %v8048
    %v8059 = vsel %vm913, %v8025, 0
    %v8062 = vsel %vm913, %v8026, 0
    %v8065 = vsel %vm913, %v8027, 0
    %v8068 = vsel %vm913, %v8028, 0
    %v8071 = vsel %vm913, %v8029, 0
    %v8074 = vsel %vm913, %v8030, 0
    %v8077 = vsel %vm913, %v8031, 0
    %v8080 = vsel %vm913, %v8032, 0
    %8082 = vmatpush.bf16.msra.mxu0 0
    %8083 = vmatpush.bf16.msra.mxu0 0
    %8084 = vmatpush.bf16.msra.mxu0 0
    %8085 = vmatpush.bf16.msra.mxu0 0
    %8086 = vmatpush.bf16.msra.mxu0 %v8053
    %8087 = vmatpush.bf16.msra.mxu0 %v8052
    %8088 = vmatpush.bf16.msra.mxu0 %v8051
    %8089 = vmatpush.bf16.msra.mxu0 %v8050
    %8090 = vmatmul.bf16.gmra.mxu0 %v8059
    %v8091 = vpop.f32.mrf.mxu0
    %v8092 = vadd.f32 %v8033, %v8091
    %v8093 = vpop.f32.mrf.mxu0
    %v8094 = vadd.f32 %v8033, %v8093
    %8095 = vmatmul.bf16.gmra.mxu0 %v8062
    %v8096 = vpop.f32.mrf.mxu0
    %v8097 = vadd.f32 %v8033, %v8096
    %v8098 = vpop.f32.mrf.mxu0
    %v8099 = vadd.f32 %v8033, %v8098
    %8100 = vmatmul.bf16.gmra.mxu0 %v8065
    %v8101 = vpop.f32.mrf.mxu0
    %v8102 = vadd.f32 %v8033, %v8101
    %v8103 = vpop.f32.mrf.mxu0
    %v8104 = vadd.f32 %v8033, %v8103
    %8105 = vmatmul.bf16.gmra.mxu0 %v8068
    %v8106 = vpop.f32.mrf.mxu0
    %v8107 = vadd.f32 %v8033, %v8106
    %v8108 = vpop.f32.mrf.mxu0
    %v8109 = vadd.f32 %v8033, %v8108
    %8110 = vmatmul.bf16.gmra.mxu0 %v8071
    %v8111 = vpop.f32.mrf.mxu0
    %v8112 = vadd.f32 %v8033, %v8111
    %v8113 = vpop.f32.mrf.mxu0
    %v8114 = vadd.f32 %v8033, %v8113
    %8115 = vmatmul.bf16.gmra.mxu0 %v8074
    %v8116 = vpop.f32.mrf.mxu0
    %v8117 = vadd.f32 %v8033, %v8116
    %v8118 = vpop.f32.mrf.mxu0
    %v8119 = vadd.f32 %v8033, %v8118
    %8120 = vmatmul.bf16.gmra.mxu0 %v8077
    %v8121 = vpop.f32.mrf.mxu0
    %v8122 = vadd.f32 %v8033, %v8121
    %v8123 = vpop.f32.mrf.mxu0
    %v8124 = vadd.f32 %v8033, %v8123
    %8125 = vmatmul.bf16.gmra.mxu0 %v8080
    %v8126 = vpop.f32.mrf.mxu0
    %v8127 = vadd.f32 %v8033, %v8126
    %v8128 = vpop.f32.mrf.mxu0
    %v8129 = vadd.f32 %v8033, %v8128
    %8130 = vdwg.mxu0
    %s8131 = scalar_lea.vmem %s6, 576
    %v8132 = vld [vmem:[%s8131] sm:$0xf]
    %v8133 = vld [vmem:[%s8131 + $0x4] sm:$0xf]
    %v8134 = vld [vmem:[%s8131 + $0x8] sm:$0xf]
    %v8135 = vld [vmem:[%s8131 + $0xc] sm:$0xf]
    %v8136 = vld [vmem:[%s8131 + $0x10] sm:$0xf]
    %v8137 = vld [vmem:[%s8131 + $0x14] sm:$0xf]
    %v8138 = vld [vmem:[%s8131 + $0x18] sm:$0xf]
    %v8139 = vld [vmem:[%s8131 + $0x1c] sm:$0xf]
    %v8140 = vpack.c.bf16 %v8094, %v8092
    %v8141 = vpack.c.bf16 %v8099, %v8097
    %v8142 = vpack.c.bf16 %v8104, %v8102
    %v8143 = vpack.c.bf16 %v8109, %v8107
    %v8144 = vpack.c.bf16 %v8114, %v8112
    %v8145 = vpack.c.bf16 %v8119, %v8117
    %v8146 = vpack.c.bf16 %v8124, %v8122
    %v8147 = vpack.c.bf16 %v8129, %v8127
    %v8148 = vperm.slane %v38, 4
    %v8157 = vunpack.c.l.b16 %v8132
    %v8158 = vunpack.c.l.b16 %v8133
    %v8159 = vunpack.c.l.b16 %v8134
    %v8160 = vunpack.c.l.b16 %v8135
    %v8161 = vunpack.c.l.b16 %v8136
    %v8162 = vunpack.c.l.b16 %v8137
    %v8163 = vunpack.c.l.b16 %v8138
    %v8164 = vunpack.c.l.b16 %v8139
    %v8165 = vpack.c.b16 %v8158, %v8157
    %v8166 = vpack.c.b16 %v8160, %v8159
    %v8167 = vpack.c.b16 %v8162, %v8161
    %v8168 = vpack.c.b16 %v8164, %v8163
    %v8174 = vsel %vm913, %v8140, 0
    %v8177 = vsel %vm913, %v8141, 0
    %v8180 = vsel %vm913, %v8142, 0
    %v8183 = vsel %vm913, %v8143, 0
    %v8186 = vsel %vm913, %v8144, 0
    %v8189 = vsel %vm913, %v8145, 0
    %v8192 = vsel %vm913, %v8146, 0
    %v8195 = vsel %vm913, %v8147, 0
    %8197 = vmatpush.bf16.msra.mxu0 0
    %8198 = vmatpush.bf16.msra.mxu0 0
    %8199 = vmatpush.bf16.msra.mxu0 0
    %8200 = vmatpush.bf16.msra.mxu0 0
    %8201 = vmatpush.bf16.msra.mxu0 %v8168
    %8202 = vmatpush.bf16.msra.mxu0 %v8167
    %8203 = vmatpush.bf16.msra.mxu0 %v8166
    %8204 = vmatpush.bf16.msra.mxu0 %v8165
    %8205 = vmatmul.bf16.gmra.mxu0 %v8174
    %v8206 = vpop.f32.mrf.mxu0
    %v8207 = vadd.f32 %v8148, %v8206
    %v8208 = vpop.f32.mrf.mxu0
    %v8209 = vadd.f32 %v8148, %v8208
    %8210 = vmatmul.bf16.gmra.mxu0 %v8177
    %v8211 = vpop.f32.mrf.mxu0
    %v8212 = vadd.f32 %v8148, %v8211
    %v8213 = vpop.f32.mrf.mxu0
    %v8214 = vadd.f32 %v8148, %v8213
    %8215 = vmatmul.bf16.gmra.mxu0 %v8180
    %v8216 = vpop.f32.mrf.mxu0
    %v8217 = vadd.f32 %v8148, %v8216
    %v8218 = vpop.f32.mrf.mxu0
    %v8219 = vadd.f32 %v8148, %v8218
    %8220 = vmatmul.bf16.gmra.mxu0 %v8183
    %v8221 = vpop.f32.mrf.mxu0
    %v8222 = vadd.f32 %v8148, %v8221
    %v8223 = vpop.f32.mrf.mxu0
    %v8224 = vadd.f32 %v8148, %v8223
    %8225 = vmatmul.bf16.gmra.mxu0 %v8186
    %v8226 = vpop.f32.mrf.mxu0
    %v8227 = vadd.f32 %v8148, %v8226
    %v8228 = vpop.f32.mrf.mxu0
    %v8229 = vadd.f32 %v8148, %v8228
    %8230 = vmatmul.bf16.gmra.mxu0 %v8189
    %v8231 = vpop.f32.mrf.mxu0
    %v8232 = vadd.f32 %v8148, %v8231
    %v8233 = vpop.f32.mrf.mxu0
    %v8234 = vadd.f32 %v8148, %v8233
    %8235 = vmatmul.bf16.gmra.mxu0 %v8192
    %v8236 = vpop.f32.mrf.mxu0
    %v8237 = vadd.f32 %v8148, %v8236
    %v8238 = vpop.f32.mrf.mxu0
    %v8239 = vadd.f32 %v8148, %v8238
    %8240 = vmatmul.bf16.gmra.mxu0 %v8195
    %v8241 = vpop.f32.mrf.mxu0
    %v8242 = vadd.f32 %v8148, %v8241
    %v8243 = vpop.f32.mrf.mxu0
    %v8244 = vadd.f32 %v8148, %v8243
    %8245 = vdwg.mxu0
    %v8246 = vtanh.pop %v8207
    %v8247 = vtanh.pop %v8209
    %v8248 = vtanh.pop %v8212
    %v8249 = vtanh.pop %v8214
    %v8250 = vtanh.pop %v8217
    %v8251 = vtanh.pop %v8219
    %v8252 = vtanh.pop %v8222
    %v8253 = vtanh.pop %v8224
    %v8254 = vtanh.pop %v8227
    %v8255 = vtanh.pop %v8229
    %v8256 = vtanh.pop %v8232
    %v8257 = vtanh.pop %v8234
    %v8258 = vtanh.pop %v8237
    %v8259 = vtanh.pop %v8239
    %v8260 = vtanh.pop %v8242
    %v8261 = vtanh.pop %v8244
    %s8262 = scalar_lea.vmem %s6, 608
    %v8263 = vld [vmem:[%s8262] sm:$0xf]
    %v8264 = vld [vmem:[%s8262 + $0x4] sm:$0xf]
    %v8265 = vld [vmem:[%s8262 + $0x8] sm:$0xf]
    %v8266 = vld [vmem:[%s8262 + $0xc] sm:$0xf]
    %v8267 = vld [vmem:[%s8262 + $0x10] sm:$0xf]
    %v8268 = vld [vmem:[%s8262 + $0x14] sm:$0xf]
    %v8269 = vld [vmem:[%s8262 + $0x18] sm:$0xf]
    %v8270 = vld [vmem:[%s8262 + $0x1c] sm:$0xf]
    %v8271 = vpack.c.bf16 %v8247, %v8246
    %v8272 = vpack.c.bf16 %v8249, %v8248
    %v8273 = vpack.c.bf16 %v8251, %v8250
    %v8274 = vpack.c.bf16 %v8253, %v8252
    %v8275 = vpack.c.bf16 %v8255, %v8254
    %v8276 = vpack.c.bf16 %v8257, %v8256
    %v8277 = vpack.c.bf16 %v8259, %v8258
    %v8278 = vpack.c.bf16 %v8261, %v8260
    %v8287 = vunpack.c.l.b16 %v8263
    %v8288 = vunpack.c.l.b16 %v8264
    %v8289 = vunpack.c.l.b16 %v8265
    %v8290 = vunpack.c.l.b16 %v8266
    %v8291 = vunpack.c.l.b16 %v8267
    %v8292 = vunpack.c.l.b16 %v8268
    %v8293 = vunpack.c.l.b16 %v8269
    %v8294 = vunpack.c.l.b16 %v8270
    %v8295 = vpack.c.b16 %v8288, %v8287
    %v8296 = vpack.c.b16 %v8290, %v8289
    %v8297 = vpack.c.b16 %v8292, %v8291
    %v8298 = vpack.c.b16 %v8294, %v8293
    %v8304 = vsel %vm913, %v8271, 0
    %v8307 = vsel %vm913, %v8272, 0
    %v8310 = vsel %vm913, %v8273, 0
    %v8313 = vsel %vm913, %v8274, 0
    %v8316 = vsel %vm913, %v8275, 0
    %v8319 = vsel %vm913, %v8276, 0
    %v8322 = vsel %vm913, %v8277, 0
    %v8325 = vsel %vm913, %v8278, 0
    %8327 = vmatpush.bf16.msra.mxu0 0
    %8328 = vmatpush.bf16.msra.mxu0 0
    %8329 = vmatpush.bf16.msra.mxu0 0
    %8330 = vmatpush.bf16.msra.mxu0 0
    %8331 = vmatpush.bf16.msra.mxu0 %v8298
    %8332 = vmatpush.bf16.msra.mxu0 %v8297
    %8333 = vmatpush.bf16.msra.mxu0 %v8296
    %8334 = vmatpush.bf16.msra.mxu0 %v8295
    %8335 = vmatmul.bf16.gmra.mxu0 %v8304
    %v8336 = vpop.f32.mrf.mxu0
    %v8337 = vadd.f32 0.0, %v8336
    %v8338 = vpop.f32.mrf.mxu0
    %v8339 = vadd.f32 0.0, %v8338
    %8340 = vmatmul.bf16.gmra.mxu0 %v8307
    %v8341 = vpop.f32.mrf.mxu0
    %v8342 = vadd.f32 0.0, %v8341
    %v8343 = vpop.f32.mrf.mxu0
    %v8344 = vadd.f32 0.0, %v8343
    %8345 = vmatmul.bf16.gmra.mxu0 %v8310
    %v8346 = vpop.f32.mrf.mxu0
    %v8347 = vadd.f32 0.0, %v8346
    %v8348 = vpop.f32.mrf.mxu0
    %v8349 = vadd.f32 0.0, %v8348
    %8350 = vmatmul.bf16.gmra.mxu0 %v8313
    %v8351 = vpop.f32.mrf.mxu0
    %v8352 = vadd.f32 0.0, %v8351
    %v8353 = vpop.f32.mrf.mxu0
    %v8354 = vadd.f32 0.0, %v8353
    %8355 = vmatmul.bf16.gmra.mxu0 %v8316
    %v8356 = vpop.f32.mrf.mxu0
    %v8357 = vadd.f32 0.0, %v8356
    %v8358 = vpop.f32.mrf.mxu0
    %v8359 = vadd.f32 0.0, %v8358
    %8360 = vmatmul.bf16.gmra.mxu0 %v8319
    %v8361 = vpop.f32.mrf.mxu0
    %v8362 = vadd.f32 0.0, %v8361
    %v8363 = vpop.f32.mrf.mxu0
    %v8364 = vadd.f32 0.0, %v8363
    %8365 = vmatmul.bf16.gmra.mxu0 %v8322
    %v8366 = vpop.f32.mrf.mxu0
    %v8367 = vadd.f32 0.0, %v8366
    %v8368 = vpop.f32.mrf.mxu0
    %v8369 = vadd.f32 0.0, %v8368
    %8370 = vmatmul.bf16.gmra.mxu0 %v8325
    %v8371 = vpop.f32.mrf.mxu0
    %v8372 = vadd.f32 0.0, %v8371
    %v8373 = vpop.f32.mrf.mxu0
    %v8374 = vadd.f32 0.0, %v8373
    %8375 = vdwg.mxu0
    %v8376 = vtanh.pop %v8337
    %v8377 = vtanh.pop %v8339
    %v8378 = vtanh.pop %v8342
    %v8379 = vtanh.pop %v8344
    %v8380 = vtanh.pop %v8347
    %v8381 = vtanh.pop %v8349
    %v8382 = vtanh.pop %v8352
    %v8383 = vtanh.pop %v8354
    %v8384 = vtanh.pop %v8357
    %v8385 = vtanh.pop %v8359
    %v8386 = vtanh.pop %v8362
    %v8387 = vtanh.pop %v8364
    %v8388 = vtanh.pop %v8367
    %v8389 = vtanh.pop %v8369
    %v8390 = vtanh.pop %v8372
    %v8391 = vtanh.pop %v8374
    %v8392 = vlaneseq
    %v8393 = vshrl.u32 %v8392, 7
    %v8394 = vadd.s32 %v8393, 8
    %v8395 = vadd.s32 %v8393, 16
    %v8396 = vadd.s32 %v8393, 24
    %v8397 = vadd.s32 %v8393, 32
    %v8398 = vadd.s32 %v8393, 40
    %v8399 = vadd.s32 %v8393, 48
    %v8400 = vadd.s32 %v8393, 56
    %v8401 = vadd.s32 %v8393, 64
    %v8402 = vadd.s32 %v8393, 72
    %v8403 = vadd.s32 %v8393, 80
    %v8404 = vadd.s32 %v8393, 88
    %v8405 = vadd.s32 %v8393, 96
    %v8406 = vadd.s32 %v8393, 104
    %v8407 = vadd.s32 %v8393, 112
    %v8408 = vadd.s32 %v8393, 120
    %vm8409 = vcmp.lt.s32.totalorder %v8393, 16
    %vm8410 = vcmp.lt.s32.totalorder %v8394, 16
    %vm8411 = vcmp.lt.s32.totalorder %v8395, 16
    %vm8412 = vcmp.lt.s32.totalorder %v8396, 16
    %vm8413 = vcmp.lt.s32.totalorder %v8397, 16
    %vm8414 = vcmp.lt.s32.totalorder %v8398, 16
    %vm8415 = vcmp.lt.s32.totalorder %v8399, 16
    %vm8416 = vcmp.lt.s32.totalorder %v8400, 16
    %vm8417 = vcmp.lt.s32.totalorder %v8401, 16
    %vm8418 = vcmp.lt.s32.totalorder %v8402, 16
    %vm8419 = vcmp.lt.s32.totalorder %v8403, 16
    %vm8420 = vcmp.lt.s32.totalorder %v8404, 16
    %vm8421 = vcmp.lt.s32.totalorder %v8405, 16
    %vm8422 = vcmp.lt.s32.totalorder %v8406, 16
    %vm8423 = vcmp.lt.s32.totalorder %v8407, 16
    %vm8424 = vcmp.lt.s32.totalorder %v8408, 16
    %v8425 = vsel %vm8409, 1.0, 0.0
    %v8426 = vsel %vm8410, 1.0, 0.0
    %v8427 = vsel %vm8411, 1.0, 0.0
    %v8428 = vsel %vm8412, 1.0, 0.0
    %v8429 = vsel %vm8413, 1.0, 0.0
    %v8430 = vsel %vm8414, 1.0, 0.0
    %v8431 = vsel %vm8415, 1.0, 0.0
    %v8432 = vsel %vm8416, 1.0, 0.0
    %v8433 = vsel %vm8417, 1.0, 0.0
    %v8434 = vsel %vm8418, 1.0, 0.0
    %v8435 = vsel %vm8419, 1.0, 0.0
    %v8436 = vsel %vm8420, 1.0, 0.0
    %v8437 = vsel %vm8421, 1.0, 0.0
    %v8438 = vsel %vm8422, 1.0, 0.0
    %v8439 = vsel %vm8423, 1.0, 0.0
    %v8440 = vsel %vm8424, 1.0, 0.0
    %v8441 = vmul.f32 %v8376, %v8425
    %v8442 = vmul.f32 %v8377, %v8426
    %v8443 = vmul.f32 %v8378, %v8427
    %v8444 = vmul.f32 %v8379, %v8428
    %v8445 = vmul.f32 %v8380, %v8429
    %v8446 = vmul.f32 %v8381, %v8430
    %v8447 = vmul.f32 %v8382, %v8431
    %v8448 = vmul.f32 %v8383, %v8432
    %v8449 = vmul.f32 %v8384, %v8433
    %v8450 = vmul.f32 %v8385, %v8434
    %v8451 = vmul.f32 %v8386, %v8435
    %v8452 = vmul.f32 %v8387, %v8436
    %v8453 = vmul.f32 %v8388, %v8437
    %v8454 = vmul.f32 %v8389, %v8438
    %v8455 = vmul.f32 %v8390, %v8439
    %v8456 = vmul.f32 %v8391, %v8440
    %v8457 = vsel %vm913, %v8441, 0.0
    %8458 = vadd.xlane.f32.xlu0 %v8457
    %v8459 = vpop.xlane.xlu0 %8458
    %v8460 = vsel %vm913, %v8442, 0.0
    %8461 = vadd.xlane.f32.xlu0 %v8460
    %v8462 = vpop.xlane.xlu0 %8461
    %v8463 = vsel %vm913, %v8443, 0.0
    %8464 = vadd.xlane.f32.xlu0 %v8463
    %v8465 = vpop.xlane.xlu0 %8464
    %v8466 = vsel %vm913, %v8444, 0.0
    %8467 = vadd.xlane.f32.xlu0 %v8466
    %v8468 = vpop.xlane.xlu0 %8467
    %v8469 = vsel %vm913, %v8445, 0.0
    %8470 = vadd.xlane.f32.xlu0 %v8469
    %v8471 = vpop.xlane.xlu0 %8470
    %v8472 = vsel %vm913, %v8446, 0.0
    %8473 = vadd.xlane.f32.xlu0 %v8472
    %v8474 = vpop.xlane.xlu0 %8473
    %v8475 = vsel %vm913, %v8447, 0.0
    %8476 = vadd.xlane.f32.xlu0 %v8475
    %v8477 = vpop.xlane.xlu0 %8476
    %v8478 = vsel %vm913, %v8448, 0.0
    %8479 = vadd.xlane.f32.xlu0 %v8478
    %v8480 = vpop.xlane.xlu0 %8479
    %v8481 = vsel %vm913, %v8449, 0.0
    %8482 = vadd.xlane.f32.xlu0 %v8481
    %v8483 = vpop.xlane.xlu0 %8482
    %v8484 = vsel %vm913, %v8450, 0.0
    %8485 = vadd.xlane.f32.xlu0 %v8484
    %v8486 = vpop.xlane.xlu0 %8485
    %v8487 = vsel %vm913, %v8451, 0.0
    %8488 = vadd.xlane.f32.xlu0 %v8487
    %v8489 = vpop.xlane.xlu0 %8488
    %v8490 = vsel %vm913, %v8452, 0.0
    %8491 = vadd.xlane.f32.xlu0 %v8490
    %v8492 = vpop.xlane.xlu0 %8491
    %v8493 = vsel %vm913, %v8453, 0.0
    %8494 = vadd.xlane.f32.xlu0 %v8493
    %v8495 = vpop.xlane.xlu0 %8494
    %v8496 = vsel %vm913, %v8454, 0.0
    %8497 = vadd.xlane.f32.xlu0 %v8496
    %v8498 = vpop.xlane.xlu0 %8497
    %v8499 = vsel %vm913, %v8455, 0.0
    %8500 = vadd.xlane.f32.xlu0 %v8499
    %v8501 = vpop.xlane.xlu0 %8500
    %v8502 = vsel %vm913, %v8456, 0.0
    %8503 = vadd.xlane.f32.xlu0 %v8502
    %v8504 = vpop.xlane.xlu0 %8503
    %v8505 = vadd.f32 %v8459, %v8462
    %v8506 = vadd.f32 %v8505, %v8465
    %v8507 = vadd.f32 %v8506, %v8468
    %v8508 = vadd.f32 %v8507, %v8471
    %v8509 = vadd.f32 %v8508, %v8474
    %v8510 = vadd.f32 %v8509, %v8477
    %v8511 = vadd.f32 %v8510, %v8480
    %v8512 = vadd.f32 %v8511, %v8483
    %v8513 = vadd.f32 %v8512, %v8486
    %v8514 = vadd.f32 %v8513, %v8489
    %v8515 = vadd.f32 %v8514, %v8492
    %v8516 = vadd.f32 %v8515, %v8495
    %v8517 = vadd.f32 %v8516, %v8498
    %v8518 = vadd.f32 %v8517, %v8501
    %v8519 = vadd.f32 %v8518, %v8504
    %v8520 = vrot.slane %v8519, 4
    %v8521 = vadd.f32 %v8519, %v8520
    %v8522 = vrot.slane %v8521, 2
    %v8523 = vadd.f32 %v8521, %v8522
    %v8524 = vrot.slane %v8523, 1
    %v8525 = vadd.f32 %v8523, %v8524
    %v8526 = vmul.f32 %v8525, 0.0625
    %vm8527 = vcmask 0
    %8528 = vst.msk [vmem:[#allocation2] sm:$0x1] %vm8527, %v8526
    // Predicated region
    $region38: #{value_net_forward.1} parent=1 // pred_check
      _
    $region39: #{value_net_forward.1} parent=1 // pred_check_branch
      %8530 = sbr.rel (0) target = $region41
    $region40: #{value_net_forward.1} parent=1 // pred_region
      %8532 = vsyncadd [#allocation3], 0
      %s8534 = sshll.u32 [#allocation2], 4
      %s8535 = int_to_ptr.vmem [resolvable:$true] %s8534
      %s8536 = sshll.u32 %s9, 4
      %s8537 = int_to_ptr.hbm [resolvable:$true] %s8536
      %8539 = dma.vmem_to_hbm [thread:$0]  %s8535, 16, %s8537, [#allocation3]
    $region41: #{value_net_forward.1} parent=1 // pred_fallthru
      _
    // Predicated region
    $region42: #{value_net_forward.1} parent=1 // pred_check
      _
    $region43: #{value_net_forward.1} parent=1 // pred_check_branch
      %8541 = sbr.rel (0) target = $region45
    $region44: #{value_net_forward.1} parent=1 // pred_region
      %8543 = dma.done [#allocation3], 16
    $region45: #{value_net_forward.1} parent=1 // pred_fallthru
      _
    %8544 = vsyncpa [#allocation3], 1

</llo_original>
